<compile_context>
chip_gen: v7x
topology: tpu7x:2x2x1
jax: 0.10.0
libtpu: 0.0.40
codegen_flags: <defaults>
</compile_context>

<pallas_src>
import functools

import jax
import jax.numpy as jnp
from jax.experimental import pallas as pl
from jax.experimental.pallas import tpu as pltpu


# --------------------------------------------------------------------------
# Pallas kernels
# --------------------------------------------------------------------------
def _stem_kernel(x_ref, w0_ref, wdx_ref, wdy_ref,
                 s0_ref, b0_ref, sdx_ref, bdx_ref, sdy_ref, bdy_ref,
                 o0_ref, odx_ref, ody_ref, xp_ref, *, k):
    # x_ref : (1, Cin, H, W)            one batch element, NCHW
    # w*_ref: (ks*ks, Cout, Cin)        conv taps, one (Cout, Cin) matrix per tap
    # s/b   : (Cout, 1)                 fused BatchNorm (+conv bias) affine
    # o*_ref: (1, Cout, H*W)            lane-dense outputs
    # xp_ref: (Cin, H+2p, W+2p) VMEM    zero-padded copy of x (built in-kernel)
    _, cin, h, w = x_ref.shape
    hw = h * w
    pad = max(k // 2, 1)

    # In-kernel zero padding: no host-side jnp.pad / extra HBM pass for the halo.
    xp_ref[...] = jnp.zeros(xp_ref.shape, xp_ref.dtype)
    xp_ref[:, pad:pad + h, pad:pad + w] = x_ref[0].astype(jnp.float32)

    # Shifted windows shared by all three convolutions, flattened to (Cin, H*W)
    # so the matmul accumulators / stores are lane-dense along H*W.
    cache = {}

    def window(dh, dw):
        if (dh, dw) not in cache:
            cache[(dh, dw)] = xp_ref[:, dh:dh + h, dw:dw + w].reshape(cin, hw)
        return cache[(dh, dw)]

    def conv_affine(w_taps_ref, s_ref, b_ref, ksz, base):
        cout = w_taps_ref.shape[1]
        acc = jnp.zeros((cout, hw), jnp.float32)
        for kh in range(ksz):
            for kw in range(ksz):
                wt = w_taps_ref[kh * ksz + kw].astype(jnp.float32)   # (Cout, Cin)
                acc = acc + jnp.dot(wt, window(base + kh, base + kw),
                                    preferred_element_type=jnp.float32)
        return acc * s_ref[...] + b_ref[...]

    y0 = conv_affine(w0_ref, s0_ref, b0_ref, k, pad - k // 2)
    o0_ref[0] = (y0 * jax.nn.sigmoid(y0)).astype(o0_ref.dtype)        # conv_0: SiLU

    ydx = conv_affine(wdx_ref, sdx_ref, bdx_ref, 3, pad - 1)
    odx_ref[0] = jnp.tanh(ydx).astype(odx_ref.dtype)                  # offsets, morph 0

    ydy = conv_affine(wdy_ref, sdy_ref, bdy_ref, 3, pad - 1)
    ody_ref[0] = jnp.tanh(ydy).astype(ody_ref.dtype)                  # offsets, morph 1


def _dsc_head_kernel(d_ref, w_ref, b_ref, g_ref, bb_ref, o_ref, *, groups, eps):
    # d_ref: (1, k*Cin, H*W) deformed features; w_ref: (Cout, k*Cin)
    # b/g/bb: (Cout, 1) conv bias / GroupNorm gamma / GroupNorm beta
    # Implements the (k,1)|(1,k) strided conv + bias + GroupNorm + SiLU, fused.
    cout, hw = o_ref.shape[1], o_ref.shape[2]
    z = jnp.dot(w_ref[...].astype(jnp.float32), d_ref[0].astype(jnp.float32),
                preferred_element_type=jnp.float32) + b_ref[...]
    cg = cout // groups
    zg = z.reshape(groups, cg * hw)
    m = jnp.mean(zg, axis=1, keepdims=True)
    v = jnp.mean(jnp.square(zg - m), axis=1, keepdims=True)
    zn = ((zg - m) * jax.lax.rsqrt(v + eps)).reshape(cout, hw)
    y = zn * g_ref[...] + bb_ref[...]
    y = y * jax.nn.sigmoid(y)                                         # SiLU
    o_ref[0] = y.astype(o_ref.dtype)


# --------------------------------------------------------------------------
# pallas_call wrappers
# --------------------------------------------------------------------------
def stem_convs(x, w0_taps, s0, b0, wdx_taps, sdx, bdx, wdy_taps, sdy, bdy, *, k):
    n, cin, h, w = x.shape
    hw = h * w
    c0 = w0_taps.shape[1]
    coff = wdx_taps.shape[1]
    pad = max(k // 2, 1)
    kern = functools.partial(_stem_kernel, k=k)

    flops = 2 * n * hw * cin * (k * k * c0 + 9 * 2 * coff)
    bytes_accessed = 4 * (x.size + w0_taps.size + wdx_taps.size + wdy_taps.size
                          + n * hw * (c0 + 2 * coff))

    def per_ch(c):
        return pl.BlockSpec((c, 1), lambda i: (0, 0))

    return pl.pallas_call(
        kern,
        out_shape=(jax.ShapeDtypeStruct((n, c0, hw), x.dtype),
                   jax.ShapeDtypeStruct((n, coff, hw), x.dtype),
                   jax.ShapeDtypeStruct((n, coff, hw), x.dtype)),
        grid=(n,),
        in_specs=[
            pl.BlockSpec((1, cin, h, w), lambda i: (i, 0, 0, 0)),
            pl.BlockSpec(w0_taps.shape, lambda i: (0, 0, 0)),
            pl.BlockSpec(wdx_taps.shape, lambda i: (0, 0, 0)),
            pl.BlockSpec(wdy_taps.shape, lambda i: (0, 0, 0)),
            per_ch(c0), per_ch(c0),
            per_ch(coff), per_ch(coff),
            per_ch(coff), per_ch(coff),
        ],
        out_specs=(pl.BlockSpec((1, c0, hw), lambda i: (i, 0, 0)),
                   pl.BlockSpec((1, coff, hw), lambda i: (i, 0, 0)),
                   pl.BlockSpec((1, coff, hw), lambda i: (i, 0, 0))),
        scratch_shapes=[pltpu.VMEM((cin, h + 2 * pad, w + 2 * pad), jnp.float32)],
        compiler_params=pltpu.CompilerParams(
            dimension_semantics=("parallel",),
            vmem_limit_bytes=32 * 1024 * 1024),
        cost_estimate=pl.CostEstimate(flops=int(flops),
                                      transcendentals=int(n * hw * (c0 + 2 * coff)),
                                      bytes_accessed=int(bytes_accessed)),
    )(x, w0_taps, wdx_taps, wdy_taps,
      s0.reshape(-1, 1), b0.reshape(-1, 1),
      sdx.reshape(-1, 1), bdx.reshape(-1, 1),
      sdy.reshape(-1, 1), bdy.reshape(-1, 1))


def dsc_head_gn_silu(dmat, wmat, bias, gamma, beta, groups):
    n, kc, hw = dmat.shape
    cout = wmat.shape[0]
    kern = functools.partial(_dsc_head_kernel, groups=groups, eps=1e-5)
    return pl.pallas_call(
        kern,
        out_shape=jax.ShapeDtypeStruct((n, cout, hw), dmat.dtype),
        grid=(n,),
        in_specs=[
            pl.BlockSpec((1, kc, hw), lambda i: (i, 0, 0)),
            pl.BlockSpec((cout, kc), lambda i: (0, 0)),
            pl.BlockSpec((cout, 1), lambda i: (0, 0)),
            pl.BlockSpec((cout, 1), lambda i: (0, 0)),
            pl.BlockSpec((cout, 1), lambda i: (0, 0)),
        ],
        out_specs=pl.BlockSpec((1, cout, hw), lambda i: (i, 0, 0)),
        compiler_params=pltpu.CompilerParams(
            dimension_semantics=("parallel",),
            vmem_limit_bytes=32 * 1024 * 1024),
        cost_estimate=pl.CostEstimate(
            flops=int(2 * n * cout * kc * hw),
            transcendentals=int(n * cout * hw),
            bytes_accessed=int(4 * (dmat.size + wmat.size + n * cout * hw))),
    )(dmat, wmat, bias.reshape(-1, 1), gamma.reshape(-1, 1), beta.reshape(-1, 1))


# --------------------------------------------------------------------------
# Parameter preprocessing helpers
# --------------------------------------------------------------------------
def _fuse_bn(gamma, beta, mean, var, conv_bias=None, eps=1e-5):
    s = gamma / jnp.sqrt(var + eps)
    b = beta - mean * s
    if conv_bias is not None:
        b = b + conv_bias * s
    return s, b


def _conv_weight_taps(w_oihw):
    # (Cout, Cin, KH, KW) -> (KH*KW, Cout, Cin): one (Cout, Cin) matrix per tap.
    co, ci, kh, kw = w_oihw.shape
    return jnp.transpose(w_oihw, (2, 3, 0, 1)).reshape(kh * kw, co, ci)


def _head_weight_matrix(w):
    # (Cout, Cin, k, 1) or (Cout, Cin, 1, k) -> (Cout, k*Cin), row order [p*Cin + ci].
    co, ci = w.shape[0], w.shape[1]
    wk = w.reshape(co, ci, -1)
    return jnp.transpose(wk, (0, 2, 1)).reshape(co, -1)


# --------------------------------------------------------------------------
# Snake coordinates + bilinear sampling (literal translation of DSC; plain JAX)
# --------------------------------------------------------------------------
def _cumulative_offset(off, k):
    # Mirrors the reference in-place update: center tap zeroed, taps 1..center-1
    # accumulate outwards, outermost taps keep their raw offsets (range(1, center)).
    center = k // 2
    parts = [off[:, j] for j in range(k)]
    new = list(parts)
    new[center] = jnp.zeros_like(parts[center])
    for idx in range(1, center):
        new[center + idx] = new[center + idx - 1] + parts[center + idx]
        new[center - idx] = new[center - idx + 1] + parts[center - idx]
    return jnp.stack(new, axis=1)


def _snake_coordinates(offset, k, morph, extend_scope, if_offset):
    # offset: (B, 2k, H, W) after BN + tanh -> float row/col sampling coords (B,k,H,W).
    b, _, h, w = offset.shape
    y_off = offset[:, :k]
    x_off = offset[:, k:2 * k]
    rows = jnp.arange(h, dtype=jnp.float32)[None, None, :, None]
    cols = jnp.arange(w, dtype=jnp.float32)[None, None, None, :]
    taps = jnp.linspace(-(k // 2), k // 2, k).astype(jnp.float32)[None, :, None, None]
    if morph == 0:
        y = jnp.broadcast_to(rows, (b, k, h, w))
        x = jnp.broadcast_to(cols + taps, (b, k, h, w))
        if if_offset:
            y = y + extend_scope * _cumulative_offset(y_off, k)
    else:
        y = jnp.broadcast_to(rows + taps, (b, k, h, w))
        x = jnp.broadcast_to(cols, (b, k, h, w))
        if if_offset:
            x = x + extend_scope * _cumulative_offset(x_off, k)
    return y, x


def _bilinear_sample(feat, y, x):
    # feat: (B, C, H, W); y/x: (B, k, H, W).  Literal translation of
    # DSC._bilinear_interpolate_3D, including the fact that the reference's batch
    # `base` term cancels (all samples come from batch 0's feature map).
    _, c, h, w = feat.shape
    feat0 = jnp.transpose(feat[0], (1, 2, 0)).reshape(h * w, c)
    max_y, max_x = h - 1, w - 1
    y0 = jnp.floor(y).astype(jnp.int32)
    x0 = jnp.floor(x).astype(jnp.int32)
    y1, x1 = y0 + 1, x0 + 1
    y0c = jnp.clip(y0, 0, max_y)
    y1c = jnp.clip(y1, 0, max_y)
    x0c = jnp.clip(x0, 0, max_x)
    x1c = jnp.clip(x1, 0, max_x)
    v_a0 = feat0[y0c * w + x0c]
    v_c0 = feat0[y0c * w + x1c]
    v_a1 = feat0[y1c * w + x0c]
    v_c1 = feat0[y1c * w + x1c]
    # interpolation weights use the reference's second clamp range [0, max+1]
    y0w = jnp.clip(y0, 0, max_y + 1).astype(jnp.float32)
    y1w = jnp.clip(y1, 0, max_y + 1).astype(jnp.float32)
    x0w = jnp.clip(x0, 0, max_x + 1).astype(jnp.float32)
    x1w = jnp.clip(x1, 0, max_x + 1).astype(jnp.float32)
    w_a0 = ((y1w - y) * (x1w - x))[..., None]
    w_c0 = ((y1w - y) * (x - x0w))[..., None]
    w_a1 = ((y - y0w) * (x1w - x))[..., None]
    w_c1 = ((y - y0w) * (x - x0w))[..., None]
    return v_a0 * w_a0 + v_c0 * w_c0 + v_a1 * w_a1 + v_c1 * w_c1    # (B,k,H,W,C)


# --------------------------------------------------------------------------
# DySnakeConv forward (Pallas) and parameter init
# --------------------------------------------------------------------------
def make_dysnake_forward(inc, ouc, k=5, extend_scope=1.0, if_offset=True):
    c_ = ouc // 3
    groups = [i + 1 for i in range(4) if c_ % (i + 1) == 0][-1]   # GroupNorm groups

    def forward(x, params):
        b, cin, h, w = x.shape
        hw = h * w
        p0, pdx, pdy = params["c0"], params["dx"], params["dy"]

        s0, b0 = _fuse_bn(p0["bn_g"], p0["bn_b"], p0["bn_m"], p0["bn_v"])
        sdx, bdx = _fuse_bn(pdx["bn_g"], pdx["bn_b"], pdx["bn_m"], pdx["bn_v"],
                            pdx["off_cb"])
        sdy, bdy = _fuse_bn(pdy["bn_g"], pdy["bn_b"], pdy["bn_m"], pdy["bn_v"],
                            pdy["off_cb"])

        # Fused stem: conv_0 (+BN+SiLU) and both offset convs (+bias+BN+tanh).
        out0, offx, offy = stem_convs(
            x,
            _conv_weight_taps(p0["w"]), s0, b0,
            _conv_weight_taps(pdx["off_w"]), sdx, bdx,
            _conv_weight_taps(pdy["off_w"]), sdy, bdy,
            k=k)

        outs = [out0]
        for off_flat, pbr, morph in ((offx, pdx, 0), (offy, pdy, 1)):
            off = off_flat.reshape(b, 2 * k, h, w)
            yy, xx = _snake_coordinates(off, k, morph, extend_scope, if_offset)
            samp = _bilinear_sample(x, yy, xx)                    # (B, k, H, W, C)
            dmat = jnp.transpose(samp, (0, 1, 4, 2, 3)).reshape(b, k * cin, hw)
            outs.append(dsc_head_gn_silu(
                dmat, _head_weight_matrix(pbr["head_w"]),
                pbr["head_b"], pbr["gn_g"], pbr["gn_b"], groups))

        return jnp.concatenate(outs, axis=1).reshape(b, ouc, h, w)

    return jax.jit(forward)


def init_dysnake_params(key, inc, ouc, k):
    c_ = ouc // 3
    c0 = ouc - 2 * c_
    keys = iter(jax.random.split(key, 32))

    def nrm(shape, scale=0.1):
        return scale * jax.random.normal(next(keys), shape, jnp.float32)

    def bn(c):
        return dict(bn_g=1.0 + nrm((c,)), bn_b=nrm((c,)), bn_m=nrm((c,)),
                    bn_v=jnp.abs(1.0 + nrm((c,))))

    def dsconv(morph):
        head_shape = (c_, inc, k, 1) if morph == 0 else (c_, inc, 1, k)
        return dict(off_w=nrm((2 * k, inc, 3, 3)), off_cb=nrm((2 * k,)),
                    **bn(2 * k),
                    head_w=nrm(head_shape), head_b=nrm((c_,)),
                    gn_g=1.0 + nrm((c_,)), gn_b=nrm((c_,)))

    return {"c0": dict(w=nrm((c0, inc, k, k)), **bn(c0)),
            "dx": dsconv(0), "dy": dsconv(1)}


# --------------------------------------------------------------------------
# Plain-JAX reference (XLA convs) for the numerical check
# --------------------------------------------------------------------------
def _ref_dysnake(x, params, inc, ouc, k, extend_scope=1.0, if_offset=True):
    c_ = ouc // 3
    groups = [i + 1 for i in range(4) if c_ % (i + 1) == 0][-1]
    hi = jax.lax.Precision.HIGHEST

    def conv(inp, wgt, pad):
        return jax.lax.conv_general_dilated(
            inp, wgt, (1, 1), [(pad, pad), (pad, pad)],
            dimension_numbers=("NCHW", "OIHW", "NCHW"), precision=hi)

    p0 = params["c0"]
    s, b = _fuse_bn(p0["bn_g"], p0["bn_b"], p0["bn_m"], p0["bn_v"])
    z = conv(x, p0["w"], k // 2) * s[None, :, None, None] + b[None, :, None, None]
    outs = [z * jax.nn.sigmoid(z)]

    for name, morph in (("dx", 0), ("dy", 1)):
        p = params[name]
        s, b = _fuse_bn(p["bn_g"], p["bn_b"], p["bn_m"], p["bn_v"], p["off_cb"])
        off = jnp.tanh(conv(x, p["off_w"], 1) * s[None, :, None, None]
                       + b[None, :, None, None])
        yy, xx = _snake_coordinates(off, k, morph, extend_scope, if_offset)
        samp = _bilinear_sample(x, yy, xx)
        wk = p["head_w"].reshape(c_, inc, k)
        z = jnp.einsum("bpwhc,ocp->bowh", samp, wk, precision=hi)
        z = z + p["head_b"][None, :, None, None]
        zg = z.reshape(z.shape[0], groups, -1)
        m = zg.mean(axis=2, keepdims=True)
        v = ((zg - m) ** 2).mean(axis=2, keepdims=True)
        zn = ((zg - m) / jnp.sqrt(v + 1e-5)).reshape(z.shape)
        z = zn * p["gn_g"][None, :, None, None] + p["gn_b"][None, :, None, None]
        outs.append(z * jax.nn.sigmoid(z))

    return jnp.concatenate(outs, axis=1)


# --------------------------------------------------------------------------
if __name__ == "__main__":
    key = jax.random.PRNGKey(0)
    kx, kp = jax.random.split(key)

    batch, inc, height, width = 2, 4, 16, 16
    ouc, k = 6, 5                                    # DySnakeConv(inc=4, ouc=6, k=5)

    x = jax.random.normal(kx, (batch, inc, height, width), jnp.float32)
    params = init_dysnake_params(kp, inc, ouc, k)

    forward = make_dysnake_forward(inc, ouc, k)
    out = jax.block_until_ready(forward(x, params))

    ref = _ref_dysnake(x, params, inc, ouc, k)
    assert out.shape == (batch, ouc, height, width), out.shape
    max_err = jnp.max(jnp.abs(out - ref))
    assert jnp.allclose(out, ref, atol=1e-3, rtol=1e-3), f"mismatch vs reference: {max_err}"

    print("KERNEL_OK")
</pallas_src>

<mosaic_0001>
module attributes {stable_mosaic.version = 11 : i64} {
  func.func @_stem_kernel(%arg0: i32, %arg1: memref<1x4x16x16xf32, #tpu.memory_space<vmem>>, %arg2: memref<25x2x4xf32, #tpu.memory_space<vmem>>, %arg3: memref<9x10x4xf32, #tpu.memory_space<vmem>>, %arg4: memref<9x10x4xf32, #tpu.memory_space<vmem>>, %arg5: memref<2x1xf32, #tpu.memory_space<vmem>>, %arg6: memref<2x1xf32, #tpu.memory_space<vmem>>, %arg7: memref<10x1xf32, #tpu.memory_space<vmem>>, %arg8: memref<10x1xf32, #tpu.memory_space<vmem>>, %arg9: memref<10x1xf32, #tpu.memory_space<vmem>>, %arg10: memref<10x1xf32, #tpu.memory_space<vmem>>, %arg11: memref<1x2x256xf32, #tpu.memory_space<vmem>>, %arg12: memref<1x10x256xf32, #tpu.memory_space<vmem>>, %arg13: memref<1x10x256xf32, #tpu.memory_space<vmem>>, %arg14: memref<4x20x20xf32, #tpu.memory_space<vmem>>) attributes {dimension_semantics = [#tpu.dimension_semantics<parallel>], iteration_bounds = array<i64: 2>, scalar_prefetch = 0 : i64, scratch_operands = 1 : i64, tpu.core_type = #tpu.core_type<tc>, window_params = [{transform_indices = @transform_0, window_bounds = array<i64: 1, 4, 16, 16>}, {pipeline_mode = #tpu.pipeline_mode<synchronous>, transform_indices = @transform_1, window_bounds = array<i64: 25, 2, 4>}, {pipeline_mode = #tpu.pipeline_mode<synchronous>, transform_indices = @transform_2, window_bounds = array<i64: 9, 10, 4>}, {pipeline_mode = #tpu.pipeline_mode<synchronous>, transform_indices = @transform_3, window_bounds = array<i64: 9, 10, 4>}, {pipeline_mode = #tpu.pipeline_mode<synchronous>, transform_indices = @transform_4, window_bounds = array<i64: 2, 1>}, {pipeline_mode = #tpu.pipeline_mode<synchronous>, transform_indices = @transform_5, window_bounds = array<i64: 2, 1>}, {pipeline_mode = #tpu.pipeline_mode<synchronous>, transform_indices = @transform_6, window_bounds = array<i64: 10, 1>}, {pipeline_mode = #tpu.pipeline_mode<synchronous>, transform_indices = @transform_7, window_bounds = array<i64: 10, 1>}, {pipeline_mode = #tpu.pipeline_mode<synchronous>, transform_indices = @transform_8, window_bounds = array<i64: 10, 1>}, {pipeline_mode = #tpu.pipeline_mode<synchronous>, transform_indices = @transform_9, window_bounds = array<i64: 10, 1>}, {transform_indices = @transform_10, window_bounds = array<i64: 1, 2, 256>}, {transform_indices = @transform_11, window_bounds = array<i64: 1, 10, 256>}, {transform_indices = @transform_12, window_bounds = array<i64: 1, 10, 256>}]} {
    %cst = arith.constant 0.000000e+00 : f32
    %0 = vector.broadcast %cst : f32 to vector<4x20x20xf32>
    %c0 = arith.constant 0 : index
    %c0_0 = arith.constant 0 : index
    %c0_1 = arith.constant 0 : index
    %1 = vector.load %arg14[%c0, %c0_0, %c0_1] : memref<4x20x20xf32, #tpu.memory_space<vmem>>, vector<4x20x20xf32>
    tpu.vector_store %arg14[%c0, %c0_0, %c0_1], %0 {strides = array<i32>} : memref<4x20x20xf32, #tpu.memory_space<vmem>>, vector<4x20x20xf32>,
    %c0_2 = arith.constant 0 : index
    %c0_3 = arith.constant 0 : index
    %c0_4 = arith.constant 0 : index
    %c0_5 = arith.constant 0 : index
    %2 = vector.load %arg1[%c0_2, %c0_3, %c0_4, %c0_5] : memref<1x4x16x16xf32, #tpu.memory_space<vmem>>, vector<1x4x16x16xf32>
    %3 = vector.shape_cast %2 : vector<1x4x16x16xf32> to vector<4x16x16xf32>
    %c0_6 = arith.constant 0 : index
    %c2 = arith.constant 2 : index
    %c2_7 = arith.constant 2 : index
    %4 = vector.load %arg14[%c0_6, %c2, %c2_7] : memref<4x20x20xf32, #tpu.memory_space<vmem>>, vector<4x16x16xf32>
    tpu.vector_store %arg14[%c0_6, %c2, %c2_7], %3 {strides = array<i32>} : memref<4x20x20xf32, #tpu.memory_space<vmem>>, vector<4x16x16xf32>,
    %cst_8 = arith.constant 0.000000e+00 : f32
    %5 = vector.broadcast %cst_8 : f32 to vector<2x256xf32>
    %c0_9 = arith.constant 0 : index
    %c0_10 = arith.constant 0 : index
    %c0_11 = arith.constant 0 : index
    %6 = vector.load %arg2[%c0_9, %c0_10, %c0_11] : memref<25x2x4xf32, #tpu.memory_space<vmem>>, vector<1x2x4xf32>
    %7 = vector.shape_cast %6 : vector<1x2x4xf32> to vector<2x4xf32>
    %c0_12 = arith.constant 0 : index
    %c0_13 = arith.constant 0 : index
    %c0_14 = arith.constant 0 : index
    %8 = vector.load %arg14[%c0_12, %c0_13, %c0_14] : memref<4x20x20xf32, #tpu.memory_space<vmem>>, vector<4x16x16xf32>
    %9 = vector.shape_cast %8 : vector<4x16x16xf32> to vector<4x256xf32>
    %cst_15 = arith.constant dense<0.000000e+00> : vector<2x256xf32>
    %10 = tpu.matmul %7, %9, %cst_15 {dimension_numbers = #tpu.dot_dimension_numbers<[1], [0], [0], [1], [0, 0, 1, 1], [], []>} : vector<2x4xf32>, vector<4x256xf32>, vector<2x256xf32> -> vector<2x256xf32>
    %11 = arith.addf %5, %10 : vector<2x256xf32>
    %c1 = arith.constant 1 : index
    %c0_16 = arith.constant 0 : index
    %c0_17 = arith.constant 0 : index
    %12 = vector.load %arg2[%c1, %c0_16, %c0_17] : memref<25x2x4xf32, #tpu.memory_space<vmem>>, vector<1x2x4xf32>
    %13 = vector.shape_cast %12 : vector<1x2x4xf32> to vector<2x4xf32>
    %c0_18 = arith.constant 0 : index
    %c0_19 = arith.constant 0 : index
    %c1_20 = arith.constant 1 : index
    %14 = vector.load %arg14[%c0_18, %c0_19, %c1_20] : memref<4x20x20xf32, #tpu.memory_space<vmem>>, vector<4x16x16xf32>
    %15 = vector.shape_cast %14 : vector<4x16x16xf32> to vector<4x256xf32>
    %cst_21 = arith.constant dense<0.000000e+00> : vector<2x256xf32>
    %16 = tpu.matmul %13, %15, %cst_21 {dimension_numbers = #tpu.dot_dimension_numbers<[1], [0], [0], [1], [0, 0, 1, 1], [], []>} : vector<2x4xf32>, vector<4x256xf32>, vector<2x256xf32> -> vector<2x256xf32>
    %17 = arith.addf %11, %16 : vector<2x256xf32>
    %c2_22 = arith.constant 2 : index
    %c0_23 = arith.constant 0 : index
    %c0_24 = arith.constant 0 : index
    %18 = vector.load %arg2[%c2_22, %c0_23, %c0_24] : memref<25x2x4xf32, #tpu.memory_space<vmem>>, vector<1x2x4xf32>
    %19 = vector.shape_cast %18 : vector<1x2x4xf32> to vector<2x4xf32>
    %c0_25 = arith.constant 0 : index
    %c0_26 = arith.constant 0 : index
    %c2_27 = arith.constant 2 : index
    %20 = vector.load %arg14[%c0_25, %c0_26, %c2_27] : memref<4x20x20xf32, #tpu.memory_space<vmem>>, vector<4x16x16xf32>
    %21 = vector.shape_cast %20 : vector<4x16x16xf32> to vector<4x256xf32>
    %cst_28 = arith.constant dense<0.000000e+00> : vector<2x256xf32>
    %22 = tpu.matmul %19, %21, %cst_28 {dimension_numbers = #tpu.dot_dimension_numbers<[1], [0], [0], [1], [0, 0, 1, 1], [], []>} : vector<2x4xf32>, vector<4x256xf32>, vector<2x256xf32> -> vector<2x256xf32>
    %23 = arith.addf %17, %22 : vector<2x256xf32>
    %c3 = arith.constant 3 : index
    %c0_29 = arith.constant 0 : index
    %c0_30 = arith.constant 0 : index
    %24 = vector.load %arg2[%c3, %c0_29, %c0_30] : memref<25x2x4xf32, #tpu.memory_space<vmem>>, vector<1x2x4xf32>
    %25 = vector.shape_cast %24 : vector<1x2x4xf32> to vector<2x4xf32>
    %c0_31 = arith.constant 0 : index
    %c0_32 = arith.constant 0 : index
    %c3_33 = arith.constant 3 : index
    %26 = vector.load %arg14[%c0_31, %c0_32, %c3_33] : memref<4x20x20xf32, #tpu.memory_space<vmem>>, vector<4x16x16xf32>
    %27 = vector.shape_cast %26 : vector<4x16x16xf32> to vector<4x256xf32>
    %cst_34 = arith.constant dense<0.000000e+00> : vector<2x256xf32>
    %28 = tpu.matmul %25, %27, %cst_34 {dimension_numbers = #tpu.dot_dimension_numbers<[1], [0], [0], [1], [0, 0, 1, 1], [], []>} : vector<2x4xf32>, vector<4x256xf32>, vector<2x256xf32> -> vector<2x256xf32>
    %29 = arith.addf %23, %28 : vector<2x256xf32>
    %c4 = arith.constant 4 : index
    %c0_35 = arith.constant 0 : index
    %c0_36 = arith.constant 0 : index
    %30 = vector.load %arg2[%c4, %c0_35, %c0_36] : memref<25x2x4xf32, #tpu.memory_space<vmem>>, vector<1x2x4xf32>
    %31 = vector.shape_cast %30 : vector<1x2x4xf32> to vector<2x4xf32>
    %c0_37 = arith.constant 0 : index
    %c0_38 = arith.constant 0 : index
    %c4_39 = arith.constant 4 : index
    %32 = vector.load %arg14[%c0_37, %c0_38, %c4_39] : memref<4x20x20xf32, #tpu.memory_space<vmem>>, vector<4x16x16xf32>
    %33 = vector.shape_cast %32 : vector<4x16x16xf32> to vector<4x256xf32>
    %cst_40 = arith.constant dense<0.000000e+00> : vector<2x256xf32>
    %34 = tpu.matmul %31, %33, %cst_40 {dimension_numbers = #tpu.dot_dimension_numbers<[1], [0], [0], [1], [0, 0, 1, 1], [], []>} : vector<2x4xf32>, vector<4x256xf32>, vector<2x256xf32> -> vector<2x256xf32>
    %35 = arith.addf %29, %34 : vector<2x256xf32>
    %c5 = arith.constant 5 : index
    %c0_41 = arith.constant 0 : index
    %c0_42 = arith.constant 0 : index
    %36 = vector.load %arg2[%c5, %c0_41, %c0_42] : memref<25x2x4xf32, #tpu.memory_space<vmem>>, vector<1x2x4xf32>
    %37 = vector.shape_cast %36 : vector<1x2x4xf32> to vector<2x4xf32>
    %c0_43 = arith.constant 0 : index
    %c1_44 = arith.constant 1 : index
    %c0_45 = arith.constant 0 : index
    %38 = vector.load %arg14[%c0_43, %c1_44, %c0_45] : memref<4x20x20xf32, #tpu.memory_space<vmem>>, vector<4x16x16xf32>
    %39 = vector.shape_cast %38 : vector<4x16x16xf32> to vector<4x256xf32>
    %cst_46 = arith.constant dense<0.000000e+00> : vector<2x256xf32>
    %40 = tpu.matmul %37, %39, %cst_46 {dimension_numbers = #tpu.dot_dimension_numbers<[1], [0], [0], [1], [0, 0, 1, 1], [], []>} : vector<2x4xf32>, vector<4x256xf32>, vector<2x256xf32> -> vector<2x256xf32>
    %41 = arith.addf %35, %40 : vector<2x256xf32>
    %c6 = arith.constant 6 : index
    %c0_47 = arith.constant 0 : index
    %c0_48 = arith.constant 0 : index
    %42 = vector.load %arg2[%c6, %c0_47, %c0_48] : memref<25x2x4xf32, #tpu.memory_space<vmem>>, vector<1x2x4xf32>
    %43 = vector.shape_cast %42 : vector<1x2x4xf32> to vector<2x4xf32>
    %c0_49 = arith.constant 0 : index
    %c1_50 = arith.constant 1 : index
    %c1_51 = arith.constant 1 : index
    %44 = vector.load %arg14[%c0_49, %c1_50, %c1_51] : memref<4x20x20xf32, #tpu.memory_space<vmem>>, vector<4x16x16xf32>
    %45 = vector.shape_cast %44 : vector<4x16x16xf32> to vector<4x256xf32>
    %cst_52 = arith.constant dense<0.000000e+00> : vector<2x256xf32>
    %46 = tpu.matmul %43, %45, %cst_52 {dimension_numbers = #tpu.dot_dimension_numbers<[1], [0], [0], [1], [0, 0, 1, 1], [], []>} : vector<2x4xf32>, vector<4x256xf32>, vector<2x256xf32> -> vector<2x256xf32>
    %47 = arith.addf %41, %46 : vector<2x256xf32>
    %c7 = arith.constant 7 : index
    %c0_53 = arith.constant 0 : index
    %c0_54 = arith.constant 0 : index
    %48 = vector.load %arg2[%c7, %c0_53, %c0_54] : memref<25x2x4xf32, #tpu.memory_space<vmem>>, vector<1x2x4xf32>
    %49 = vector.shape_cast %48 : vector<1x2x4xf32> to vector<2x4xf32>
    %c0_55 = arith.constant 0 : index
    %c1_56 = arith.constant 1 : index
    %c2_57 = arith.constant 2 : index
    %50 = vector.load %arg14[%c0_55, %c1_56, %c2_57] : memref<4x20x20xf32, #tpu.memory_space<vmem>>, vector<4x16x16xf32>
    %51 = vector.shape_cast %50 : vector<4x16x16xf32> to vector<4x256xf32>
    %cst_58 = arith.constant dense<0.000000e+00> : vector<2x256xf32>
    %52 = tpu.matmul %49, %51, %cst_58 {dimension_numbers = #tpu.dot_dimension_numbers<[1], [0], [0], [1], [0, 0, 1, 1], [], []>} : vector<2x4xf32>, vector<4x256xf32>, vector<2x256xf32> -> vector<2x256xf32>
    %53 = arith.addf %47, %52 : vector<2x256xf32>
    %c8 = arith.constant 8 : index
    %c0_59 = arith.constant 0 : index
    %c0_60 = arith.constant 0 : index
    %54 = vector.load %arg2[%c8, %c0_59, %c0_60] : memref<25x2x4xf32, #tpu.memory_space<vmem>>, vector<1x2x4xf32>
    %55 = vector.shape_cast %54 : vector<1x2x4xf32> to vector<2x4xf32>
    %c0_61 = arith.constant 0 : index
    %c1_62 = arith.constant 1 : index
    %c3_63 = arith.constant 3 : index
    %56 = vector.load %arg14[%c0_61, %c1_62, %c3_63] : memref<4x20x20xf32, #tpu.memory_space<vmem>>, vector<4x16x16xf32>
    %57 = vector.shape_cast %56 : vector<4x16x16xf32> to vector<4x256xf32>
    %cst_64 = arith.constant dense<0.000000e+00> : vector<2x256xf32>
    %58 = tpu.matmul %55, %57, %cst_64 {dimension_numbers = #tpu.dot_dimension_numbers<[1], [0], [0], [1], [0, 0, 1, 1], [], []>} : vector<2x4xf32>, vector<4x256xf32>, vector<2x256xf32> -> vector<2x256xf32>
    %59 = arith.addf %53, %58 : vector<2x256xf32>
    %c9 = arith.constant 9 : index
    %c0_65 = arith.constant 0 : index
    %c0_66 = arith.constant 0 : index
    %60 = vector.load %arg2[%c9, %c0_65, %c0_66] : memref<25x2x4xf32, #tpu.memory_space<vmem>>, vector<1x2x4xf32>
    %61 = vector.shape_cast %60 : vector<1x2x4xf32> to vector<2x4xf32>
    %c0_67 = arith.constant 0 : index
    %c1_68 = arith.constant 1 : index
    %c4_69 = arith.constant 4 : index
    %62 = vector.load %arg14[%c0_67, %c1_68, %c4_69] : memref<4x20x20xf32, #tpu.memory_space<vmem>>, vector<4x16x16xf32>
    %63 = vector.shape_cast %62 : vector<4x16x16xf32> to vector<4x256xf32>
    %cst_70 = arith.constant dense<0.000000e+00> : vector<2x256xf32>
    %64 = tpu.matmul %61, %63, %cst_70 {dimension_numbers = #tpu.dot_dimension_numbers<[1], [0], [0], [1], [0, 0, 1, 1], [], []>} : vector<2x4xf32>, vector<4x256xf32>, vector<2x256xf32> -> vector<2x256xf32>
    %65 = arith.addf %59, %64 : vector<2x256xf32>
    %c10 = arith.constant 10 : index
    %c0_71 = arith.constant 0 : index
    %c0_72 = arith.constant 0 : index
    %66 = vector.load %arg2[%c10, %c0_71, %c0_72] : memref<25x2x4xf32, #tpu.memory_space<vmem>>, vector<1x2x4xf32>
    %67 = vector.shape_cast %66 : vector<1x2x4xf32> to vector<2x4xf32>
    %c0_73 = arith.constant 0 : index
    %c2_74 = arith.constant 2 : index
    %c0_75 = arith.constant 0 : index
    %68 = vector.load %arg14[%c0_73, %c2_74, %c0_75] : memref<4x20x20xf32, #tpu.memory_space<vmem>>, vector<4x16x16xf32>
    %69 = vector.shape_cast %68 : vector<4x16x16xf32> to vector<4x256xf32>
    %cst_76 = arith.constant dense<0.000000e+00> : vector<2x256xf32>
    %70 = tpu.matmul %67, %69, %cst_76 {dimension_numbers = #tpu.dot_dimension_numbers<[1], [0], [0], [1], [0, 0, 1, 1], [], []>} : vector<2x4xf32>, vector<4x256xf32>, vector<2x256xf32> -> vector<2x256xf32>
    %71 = arith.addf %65, %70 : vector<2x256xf32>
    %c11 = arith.constant 11 : index
    %c0_77 = arith.constant 0 : index
    %c0_78 = arith.constant 0 : index
    %72 = vector.load %arg2[%c11, %c0_77, %c0_78] : memref<25x2x4xf32, #tpu.memory_space<vmem>>, vector<1x2x4xf32>
    %73 = vector.shape_cast %72 : vector<1x2x4xf32> to vector<2x4xf32>
    %c0_79 = arith.constant 0 : index
    %c2_80 = arith.constant 2 : index
    %c1_81 = arith.constant 1 : index
    %74 = vector.load %arg14[%c0_79, %c2_80, %c1_81] : memref<4x20x20xf32, #tpu.memory_space<vmem>>, vector<4x16x16xf32>
    %75 = vector.shape_cast %74 : vector<4x16x16xf32> to vector<4x256xf32>
    %cst_82 = arith.constant dense<0.000000e+00> : vector<2x256xf32>
    %76 = tpu.matmul %73, %75, %cst_82 {dimension_numbers = #tpu.dot_dimension_numbers<[1], [0], [0], [1], [0, 0, 1, 1], [], []>} : vector<2x4xf32>, vector<4x256xf32>, vector<2x256xf32> -> vector<2x256xf32>
    %77 = arith.addf %71, %76 : vector<2x256xf32>
    %c12 = arith.constant 12 : index
    %c0_83 = arith.constant 0 : index
    %c0_84 = arith.constant 0 : index
    %78 = vector.load %arg2[%c12, %c0_83, %c0_84] : memref<25x2x4xf32, #tpu.memory_space<vmem>>, vector<1x2x4xf32>
    %79 = vector.shape_cast %78 : vector<1x2x4xf32> to vector<2x4xf32>
    %c0_85 = arith.constant 0 : index
    %c2_86 = arith.constant 2 : index
    %c2_87 = arith.constant 2 : index
    %80 = vector.load %arg14[%c0_85, %c2_86, %c2_87] : memref<4x20x20xf32, #tpu.memory_space<vmem>>, vector<4x16x16xf32>
    %81 = vector.shape_cast %80 : vector<4x16x16xf32> to vector<4x256xf32>
    %cst_88 = arith.constant dense<0.000000e+00> : vector<2x256xf32>
    %82 = tpu.matmul %79, %81, %cst_88 {dimension_numbers = #tpu.dot_dimension_numbers<[1], [0], [0], [1], [0, 0, 1, 1], [], []>} : vector<2x4xf32>, vector<4x256xf32>, vector<2x256xf32> -> vector<2x256xf32>
    %83 = arith.addf %77, %82 : vector<2x256xf32>
    %c13 = arith.constant 13 : index
    %c0_89 = arith.constant 0 : index
    %c0_90 = arith.constant 0 : index
    %84 = vector.load %arg2[%c13, %c0_89, %c0_90] : memref<25x2x4xf32, #tpu.memory_space<vmem>>, vector<1x2x4xf32>
    %85 = vector.shape_cast %84 : vector<1x2x4xf32> to vector<2x4xf32>
    %c0_91 = arith.constant 0 : index
    %c2_92 = arith.constant 2 : index
    %c3_93 = arith.constant 3 : index
    %86 = vector.load %arg14[%c0_91, %c2_92, %c3_93] : memref<4x20x20xf32, #tpu.memory_space<vmem>>, vector<4x16x16xf32>
    %87 = vector.shape_cast %86 : vector<4x16x16xf32> to vector<4x256xf32>
    %cst_94 = arith.constant dense<0.000000e+00> : vector<2x256xf32>
    %88 = tpu.matmul %85, %87, %cst_94 {dimension_numbers = #tpu.dot_dimension_numbers<[1], [0], [0], [1], [0, 0, 1, 1], [], []>} : vector<2x4xf32>, vector<4x256xf32>, vector<2x256xf32> -> vector<2x256xf32>
    %89 = arith.addf %83, %88 : vector<2x256xf32>
    %c14 = arith.constant 14 : index
    %c0_95 = arith.constant 0 : index
    %c0_96 = arith.constant 0 : index
    %90 = vector.load %arg2[%c14, %c0_95, %c0_96] : memref<25x2x4xf32, #tpu.memory_space<vmem>>, vector<1x2x4xf32>
    %91 = vector.shape_cast %90 : vector<1x2x4xf32> to vector<2x4xf32>
    %c0_97 = arith.constant 0 : index
    %c2_98 = arith.constant 2 : index
    %c4_99 = arith.constant 4 : index
    %92 = vector.load %arg14[%c0_97, %c2_98, %c4_99] : memref<4x20x20xf32, #tpu.memory_space<vmem>>, vector<4x16x16xf32>
    %93 = vector.shape_cast %92 : vector<4x16x16xf32> to vector<4x256xf32>
    %cst_100 = arith.constant dense<0.000000e+00> : vector<2x256xf32>
    %94 = tpu.matmul %91, %93, %cst_100 {dimension_numbers = #tpu.dot_dimension_numbers<[1], [0], [0], [1], [0, 0, 1, 1], [], []>} : vector<2x4xf32>, vector<4x256xf32>, vector<2x256xf32> -> vector<2x256xf32>
    %95 = arith.addf %89, %94 : vector<2x256xf32>
    %c15 = arith.constant 15 : index
    %c0_101 = arith.constant 0 : index
    %c0_102 = arith.constant 0 : index
    %96 = vector.load %arg2[%c15, %c0_101, %c0_102] : memref<25x2x4xf32, #tpu.memory_space<vmem>>, vector<1x2x4xf32>
    %97 = vector.shape_cast %96 : vector<1x2x4xf32> to vector<2x4xf32>
    %c0_103 = arith.constant 0 : index
    %c3_104 = arith.constant 3 : index
    %c0_105 = arith.constant 0 : index
    %98 = vector.load %arg14[%c0_103, %c3_104, %c0_105] : memref<4x20x20xf32, #tpu.memory_space<vmem>>, vector<4x16x16xf32>
    %99 = vector.shape_cast %98 : vector<4x16x16xf32> to vector<4x256xf32>
    %cst_106 = arith.constant dense<0.000000e+00> : vector<2x256xf32>
    %100 = tpu.matmul %97, %99, %cst_106 {dimension_numbers = #tpu.dot_dimension_numbers<[1], [0], [0], [1], [0, 0, 1, 1], [], []>} : vector<2x4xf32>, vector<4x256xf32>, vector<2x256xf32> -> vector<2x256xf32>
    %101 = arith.addf %95, %100 : vector<2x256xf32>
    %c16 = arith.constant 16 : index
    %c0_107 = arith.constant 0 : index
    %c0_108 = arith.constant 0 : index
    %102 = vector.load %arg2[%c16, %c0_107, %c0_108] : memref<25x2x4xf32, #tpu.memory_space<vmem>>, vector<1x2x4xf32>
    %103 = vector.shape_cast %102 : vector<1x2x4xf32> to vector<2x4xf32>
    %c0_109 = arith.constant 0 : index
    %c3_110 = arith.constant 3 : index
    %c1_111 = arith.constant 1 : index
    %104 = vector.load %arg14[%c0_109, %c3_110, %c1_111] : memref<4x20x20xf32, #tpu.memory_space<vmem>>, vector<4x16x16xf32>
    %105 = vector.shape_cast %104 : vector<4x16x16xf32> to vector<4x256xf32>
    %cst_112 = arith.constant dense<0.000000e+00> : vector<2x256xf32>
    %106 = tpu.matmul %103, %105, %cst_112 {dimension_numbers = #tpu.dot_dimension_numbers<[1], [0], [0], [1], [0, 0, 1, 1], [], []>} : vector<2x4xf32>, vector<4x256xf32>, vector<2x256xf32> -> vector<2x256xf32>
    %107 = arith.addf %101, %106 : vector<2x256xf32>
    %c17 = arith.constant 17 : index
    %c0_113 = arith.constant 0 : index
    %c0_114 = arith.constant 0 : index
    %108 = vector.load %arg2[%c17, %c0_113, %c0_114] : memref<25x2x4xf32, #tpu.memory_space<vmem>>, vector<1x2x4xf32>
    %109 = vector.shape_cast %108 : vector<1x2x4xf32> to vector<2x4xf32>
    %c0_115 = arith.constant 0 : index
    %c3_116 = arith.constant 3 : index
    %c2_117 = arith.constant 2 : index
    %110 = vector.load %arg14[%c0_115, %c3_116, %c2_117] : memref<4x20x20xf32, #tpu.memory_space<vmem>>, vector<4x16x16xf32>
    %111 = vector.shape_cast %110 : vector<4x16x16xf32> to vector<4x256xf32>
    %cst_118 = arith.constant dense<0.000000e+00> : vector<2x256xf32>
    %112 = tpu.matmul %109, %111, %cst_118 {dimension_numbers = #tpu.dot_dimension_numbers<[1], [0], [0], [1], [0, 0, 1, 1], [], []>} : vector<2x4xf32>, vector<4x256xf32>, vector<2x256xf32> -> vector<2x256xf32>
    %113 = arith.addf %107, %112 : vector<2x256xf32>
    %c18 = arith.constant 18 : index
    %c0_119 = arith.constant 0 : index
    %c0_120 = arith.constant 0 : index
    %114 = vector.load %arg2[%c18, %c0_119, %c0_120] : memref<25x2x4xf32, #tpu.memory_space<vmem>>, vector<1x2x4xf32>
    %115 = vector.shape_cast %114 : vector<1x2x4xf32> to vector<2x4xf32>
    %c0_121 = arith.constant 0 : index
    %c3_122 = arith.constant 3 : index
    %c3_123 = arith.constant 3 : index
    %116 = vector.load %arg14[%c0_121, %c3_122, %c3_123] : memref<4x20x20xf32, #tpu.memory_space<vmem>>, vector<4x16x16xf32>
    %117 = vector.shape_cast %116 : vector<4x16x16xf32> to vector<4x256xf32>
    %cst_124 = arith.constant dense<0.000000e+00> : vector<2x256xf32>
    %118 = tpu.matmul %115, %117, %cst_124 {dimension_numbers = #tpu.dot_dimension_numbers<[1], [0], [0], [1], [0, 0, 1, 1], [], []>} : vector<2x4xf32>, vector<4x256xf32>, vector<2x256xf32> -> vector<2x256xf32>
    %119 = arith.addf %113, %118 : vector<2x256xf32>
    %c19 = arith.constant 19 : index
    %c0_125 = arith.constant 0 : index
    %c0_126 = arith.constant 0 : index
    %120 = vector.load %arg2[%c19, %c0_125, %c0_126] : memref<25x2x4xf32, #tpu.memory_space<vmem>>, vector<1x2x4xf32>
    %121 = vector.shape_cast %120 : vector<1x2x4xf32> to vector<2x4xf32>
    %c0_127 = arith.constant 0 : index
    %c3_128 = arith.constant 3 : index
    %c4_129 = arith.constant 4 : index
    %122 = vector.load %arg14[%c0_127, %c3_128, %c4_129] : memref<4x20x20xf32, #tpu.memory_space<vmem>>, vector<4x16x16xf32>
    %123 = vector.shape_cast %122 : vector<4x16x16xf32> to vector<4x256xf32>
    %cst_130 = arith.constant dense<0.000000e+00> : vector<2x256xf32>
    %124 = tpu.matmul %121, %123, %cst_130 {dimension_numbers = #tpu.dot_dimension_numbers<[1], [0], [0], [1], [0, 0, 1, 1], [], []>} : vector<2x4xf32>, vector<4x256xf32>, vector<2x256xf32> -> vector<2x256xf32>
    %125 = arith.addf %119, %124 : vector<2x256xf32>
    %c20 = arith.constant 20 : index
    %c0_131 = arith.constant 0 : index
    %c0_132 = arith.constant 0 : index
    %126 = vector.load %arg2[%c20, %c0_131, %c0_132] : memref<25x2x4xf32, #tpu.memory_space<vmem>>, vector<1x2x4xf32>
    %127 = vector.shape_cast %126 : vector<1x2x4xf32> to vector<2x4xf32>
    %c0_133 = arith.constant 0 : index
    %c4_134 = arith.constant 4 : index
    %c0_135 = arith.constant 0 : index
    %128 = vector.load %arg14[%c0_133, %c4_134, %c0_135] : memref<4x20x20xf32, #tpu.memory_space<vmem>>, vector<4x16x16xf32>
    %129 = vector.shape_cast %128 : vector<4x16x16xf32> to vector<4x256xf32>
    %cst_136 = arith.constant dense<0.000000e+00> : vector<2x256xf32>
    %130 = tpu.matmul %127, %129, %cst_136 {dimension_numbers = #tpu.dot_dimension_numbers<[1], [0], [0], [1], [0, 0, 1, 1], [], []>} : vector<2x4xf32>, vector<4x256xf32>, vector<2x256xf32> -> vector<2x256xf32>
    %131 = arith.addf %125, %130 : vector<2x256xf32>
    %c21 = arith.constant 21 : index
    %c0_137 = arith.constant 0 : index
    %c0_138 = arith.constant 0 : index
    %132 = vector.load %arg2[%c21, %c0_137, %c0_138] : memref<25x2x4xf32, #tpu.memory_space<vmem>>, vector<1x2x4xf32>
    %133 = vector.shape_cast %132 : vector<1x2x4xf32> to vector<2x4xf32>
    %c0_139 = arith.constant 0 : index
    %c4_140 = arith.constant 4 : index
    %c1_141 = arith.constant 1 : index
    %134 = vector.load %arg14[%c0_139, %c4_140, %c1_141] : memref<4x20x20xf32, #tpu.memory_space<vmem>>, vector<4x16x16xf32>
    %135 = vector.shape_cast %134 : vector<4x16x16xf32> to vector<4x256xf32>
    %cst_142 = arith.constant dense<0.000000e+00> : vector<2x256xf32>
    %136 = tpu.matmul %133, %135, %cst_142 {dimension_numbers = #tpu.dot_dimension_numbers<[1], [0], [0], [1], [0, 0, 1, 1], [], []>} : vector<2x4xf32>, vector<4x256xf32>, vector<2x256xf32> -> vector<2x256xf32>
    %137 = arith.addf %131, %136 : vector<2x256xf32>
    %c22 = arith.constant 22 : index
    %c0_143 = arith.constant 0 : index
    %c0_144 = arith.constant 0 : index
    %138 = vector.load %arg2[%c22, %c0_143, %c0_144] : memref<25x2x4xf32, #tpu.memory_space<vmem>>, vector<1x2x4xf32>
    %139 = vector.shape_cast %138 : vector<1x2x4xf32> to vector<2x4xf32>
    %c0_145 = arith.constant 0 : index
    %c4_146 = arith.constant 4 : index
    %c2_147 = arith.constant 2 : index
    %140 = vector.load %arg14[%c0_145, %c4_146, %c2_147] : memref<4x20x20xf32, #tpu.memory_space<vmem>>, vector<4x16x16xf32>
    %141 = vector.shape_cast %140 : vector<4x16x16xf32> to vector<4x256xf32>
    %cst_148 = arith.constant dense<0.000000e+00> : vector<2x256xf32>
    %142 = tpu.matmul %139, %141, %cst_148 {dimension_numbers = #tpu.dot_dimension_numbers<[1], [0], [0], [1], [0, 0, 1, 1], [], []>} : vector<2x4xf32>, vector<4x256xf32>, vector<2x256xf32> -> vector<2x256xf32>
    %143 = arith.addf %137, %142 : vector<2x256xf32>
    %c23 = arith.constant 23 : index
    %c0_149 = arith.constant 0 : index
    %c0_150 = arith.constant 0 : index
    %144 = vector.load %arg2[%c23, %c0_149, %c0_150] : memref<25x2x4xf32, #tpu.memory_space<vmem>>, vector<1x2x4xf32>
    %145 = vector.shape_cast %144 : vector<1x2x4xf32> to vector<2x4xf32>
    %c0_151 = arith.constant 0 : index
    %c4_152 = arith.constant 4 : index
    %c3_153 = arith.constant 3 : index
    %146 = vector.load %arg14[%c0_151, %c4_152, %c3_153] : memref<4x20x20xf32, #tpu.memory_space<vmem>>, vector<4x16x16xf32>
    %147 = vector.shape_cast %146 : vector<4x16x16xf32> to vector<4x256xf32>
    %cst_154 = arith.constant dense<0.000000e+00> : vector<2x256xf32>
    %148 = tpu.matmul %145, %147, %cst_154 {dimension_numbers = #tpu.dot_dimension_numbers<[1], [0], [0], [1], [0, 0, 1, 1], [], []>} : vector<2x4xf32>, vector<4x256xf32>, vector<2x256xf32> -> vector<2x256xf32>
    %149 = arith.addf %143, %148 : vector<2x256xf32>
    %c24 = arith.constant 24 : index
    %c0_155 = arith.constant 0 : index
    %c0_156 = arith.constant 0 : index
    %150 = vector.load %arg2[%c24, %c0_155, %c0_156] : memref<25x2x4xf32, #tpu.memory_space<vmem>>, vector<1x2x4xf32>
    %151 = vector.shape_cast %150 : vector<1x2x4xf32> to vector<2x4xf32>
    %c0_157 = arith.constant 0 : index
    %c4_158 = arith.constant 4 : index
    %c4_159 = arith.constant 4 : index
    %152 = vector.load %arg14[%c0_157, %c4_158, %c4_159] : memref<4x20x20xf32, #tpu.memory_space<vmem>>, vector<4x16x16xf32>
    %153 = vector.shape_cast %152 : vector<4x16x16xf32> to vector<4x256xf32>
    %cst_160 = arith.constant dense<0.000000e+00> : vector<2x256xf32>
    %154 = tpu.matmul %151, %153, %cst_160 {dimension_numbers = #tpu.dot_dimension_numbers<[1], [0], [0], [1], [0, 0, 1, 1], [], []>} : vector<2x4xf32>, vector<4x256xf32>, vector<2x256xf32> -> vector<2x256xf32>
    %155 = arith.addf %149, %154 : vector<2x256xf32>
    %c0_161 = arith.constant 0 : index
    %c0_162 = arith.constant 0 : index
    %156 = vector.load %arg5[%c0_161, %c0_162] : memref<2x1xf32, #tpu.memory_space<vmem>>, vector<2x1xf32>
    %157 = vector.broadcast %156 : vector<2x1xf32> to vector<2x256xf32>
    %158 = arith.mulf %155, %157 : vector<2x256xf32>
    %c0_163 = arith.constant 0 : index
    %c0_164 = arith.constant 0 : index
    %159 = vector.load %arg6[%c0_163, %c0_164] : memref<2x1xf32, #tpu.memory_space<vmem>>, vector<2x1xf32>
    %160 = vector.broadcast %159 : vector<2x1xf32> to vector<2x256xf32>
    %161 = arith.addf %158, %160 : vector<2x256xf32>
    %162 = arith.negf %161 : vector<2x256xf32>
    %163 = math.exp %162 : vector<2x256xf32>
    %cst_165 = arith.constant 1.000000e+00 : f32
    %164 = vector.broadcast %cst_165 : f32 to vector<2x256xf32>
    %165 = arith.addf %164, %163 : vector<2x256xf32>
    %166 = arith.divf %164, %165 : vector<2x256xf32>
    %167 = arith.mulf %161, %166 : vector<2x256xf32>
    %c0_166 = arith.constant 0 : index
    %c0_167 = arith.constant 0 : index
    %c0_168 = arith.constant 0 : index
    %168 = vector.load %arg11[%c0_166, %c0_167, %c0_168] : memref<1x2x256xf32, #tpu.memory_space<vmem>>, vector<1x2x256xf32>
    %169 = vector.shape_cast %168 : vector<1x2x256xf32> to vector<2x256xf32>
    %170 = vector.shape_cast %167 : vector<2x256xf32> to vector<1x2x256xf32>
    tpu.vector_store %arg11[%c0_166, %c0_167, %c0_168], %170 {strides = array<i32>} : memref<1x2x256xf32, #tpu.memory_space<vmem>>, vector<1x2x256xf32>,
    %cst_169 = arith.constant 0.000000e+00 : f32
    %171 = vector.broadcast %cst_169 : f32 to vector<10x256xf32>
    %c0_170 = arith.constant 0 : index
    %c0_171 = arith.constant 0 : index
    %c0_172 = arith.constant 0 : index
    %172 = vector.load %arg3[%c0_170, %c0_171, %c0_172] : memref<9x10x4xf32, #tpu.memory_space<vmem>>, vector<1x10x4xf32>
    %173 = vector.shape_cast %172 : vector<1x10x4xf32> to vector<10x4xf32>
    %cst_173 = arith.constant dense<0.000000e+00> : vector<10x256xf32>
    %174 = tpu.matmul %173, %45, %cst_173 {dimension_numbers = #tpu.dot_dimension_numbers<[1], [0], [0], [1], [0, 0, 1, 1], [], []>} : vector<10x4xf32>, vector<4x256xf32>, vector<10x256xf32> -> vector<10x256xf32>
    %175 = arith.addf %171, %174 : vector<10x256xf32>
    %c1_174 = arith.constant 1 : index
    %c0_175 = arith.constant 0 : index
    %c0_176 = arith.constant 0 : index
    %176 = vector.load %arg3[%c1_174, %c0_175, %c0_176] : memref<9x10x4xf32, #tpu.memory_space<vmem>>, vector<1x10x4xf32>
    %177 = vector.shape_cast %176 : vector<1x10x4xf32> to vector<10x4xf32>
    %cst_177 = arith.constant dense<0.000000e+00> : vector<10x256xf32>
    %178 = tpu.matmul %177, %51, %cst_177 {dimension_numbers = #tpu.dot_dimension_numbers<[1], [0], [0], [1], [0, 0, 1, 1], [], []>} : vector<10x4xf32>, vector<4x256xf32>, vector<10x256xf32> -> vector<10x256xf32>
    %179 = arith.addf %175, %178 : vector<10x256xf32>
    %c2_178 = arith.constant 2 : index
    %c0_179 = arith.constant 0 : index
    %c0_180 = arith.constant 0 : index
    %180 = vector.load %arg3[%c2_178, %c0_179, %c0_180] : memref<9x10x4xf32, #tpu.memory_space<vmem>>, vector<1x10x4xf32>
    %181 = vector.shape_cast %180 : vector<1x10x4xf32> to vector<10x4xf32>
    %cst_181 = arith.constant dense<0.000000e+00> : vector<10x256xf32>
    %182 = tpu.matmul %181, %57, %cst_181 {dimension_numbers = #tpu.dot_dimension_numbers<[1], [0], [0], [1], [0, 0, 1, 1], [], []>} : vector<10x4xf32>, vector<4x256xf32>, vector<10x256xf32> -> vector<10x256xf32>
    %183 = arith.addf %179, %182 : vector<10x256xf32>
    %c3_182 = arith.constant 3 : index
    %c0_183 = arith.constant 0 : index
    %c0_184 = arith.constant 0 : index
    %184 = vector.load %arg3[%c3_182, %c0_183, %c0_184] : memref<9x10x4xf32, #tpu.memory_space<vmem>>, vector<1x10x4xf32>
    %185 = vector.shape_cast %184 : vector<1x10x4xf32> to vector<10x4xf32>
    %cst_185 = arith.constant dense<0.000000e+00> : vector<10x256xf32>
    %186 = tpu.matmul %185, %75, %cst_185 {dimension_numbers = #tpu.dot_dimension_numbers<[1], [0], [0], [1], [0, 0, 1, 1], [], []>} : vector<10x4xf32>, vector<4x256xf32>, vector<10x256xf32> -> vector<10x256xf32>
    %187 = arith.addf %183, %186 : vector<10x256xf32>
    %c4_186 = arith.constant 4 : index
    %c0_187 = arith.constant 0 : index
    %c0_188 = arith.constant 0 : index
    %188 = vector.load %arg3[%c4_186, %c0_187, %c0_188] : memref<9x10x4xf32, #tpu.memory_space<vmem>>, vector<1x10x4xf32>
    %189 = vector.shape_cast %188 : vector<1x10x4xf32> to vector<10x4xf32>
    %cst_189 = arith.constant dense<0.000000e+00> : vector<10x256xf32>
    %190 = tpu.matmul %189, %81, %cst_189 {dimension_numbers = #tpu.dot_dimension_numbers<[1], [0], [0], [1], [0, 0, 1, 1], [], []>} : vector<10x4xf32>, vector<4x256xf32>, vector<10x256xf32> -> vector<10x256xf32>
    %191 = arith.addf %187, %190 : vector<10x256xf32>
    %c5_190 = arith.constant 5 : index
    %c0_191 = arith.constant 0 : index
    %c0_192 = arith.constant 0 : index
    %192 = vector.load %arg3[%c5_190, %c0_191, %c0_192] : memref<9x10x4xf32, #tpu.memory_space<vmem>>, vector<1x10x4xf32>
    %193 = vector.shape_cast %192 : vector<1x10x4xf32> to vector<10x4xf32>
    %cst_193 = arith.constant dense<0.000000e+00> : vector<10x256xf32>
    %194 = tpu.matmul %193, %87, %cst_193 {dimension_numbers = #tpu.dot_dimension_numbers<[1], [0], [0], [1], [0, 0, 1, 1], [], []>} : vector<10x4xf32>, vector<4x256xf32>, vector<10x256xf32> -> vector<10x256xf32>
    %195 = arith.addf %191, %194 : vector<10x256xf32>
    %c6_194 = arith.constant 6 : index
    %c0_195 = arith.constant 0 : index
    %c0_196 = arith.constant 0 : index
    %196 = vector.load %arg3[%c6_194, %c0_195, %c0_196] : memref<9x10x4xf32, #tpu.memory_space<vmem>>, vector<1x10x4xf32>
    %197 = vector.shape_cast %196 : vector<1x10x4xf32> to vector<10x4xf32>
    %cst_197 = arith.constant dense<0.000000e+00> : vector<10x256xf32>
    %198 = tpu.matmul %197, %105, %cst_197 {dimension_numbers = #tpu.dot_dimension_numbers<[1], [0], [0], [1], [0, 0, 1, 1], [], []>} : vector<10x4xf32>, vector<4x256xf32>, vector<10x256xf32> -> vector<10x256xf32>
    %199 = arith.addf %195, %198 : vector<10x256xf32>
    %c7_198 = arith.constant 7 : index
    %c0_199 = arith.constant 0 : index
    %c0_200 = arith.constant 0 : index
    %200 = vector.load %arg3[%c7_198, %c0_199, %c0_200] : memref<9x10x4xf32, #tpu.memory_space<vmem>>, vector<1x10x4xf32>
    %201 = vector.shape_cast %200 : vector<1x10x4xf32> to vector<10x4xf32>
    %cst_201 = arith.constant dense<0.000000e+00> : vector<10x256xf32>
    %202 = tpu.matmul %201, %111, %cst_201 {dimension_numbers = #tpu.dot_dimension_numbers<[1], [0], [0], [1], [0, 0, 1, 1], [], []>} : vector<10x4xf32>, vector<4x256xf32>, vector<10x256xf32> -> vector<10x256xf32>
    %203 = arith.addf %199, %202 : vector<10x256xf32>
    %c8_202 = arith.constant 8 : index
    %c0_203 = arith.constant 0 : index
    %c0_204 = arith.constant 0 : index
    %204 = vector.load %arg3[%c8_202, %c0_203, %c0_204] : memref<9x10x4xf32, #tpu.memory_space<vmem>>, vector<1x10x4xf32>
    %205 = vector.shape_cast %204 : vector<1x10x4xf32> to vector<10x4xf32>
    %cst_205 = arith.constant dense<0.000000e+00> : vector<10x256xf32>
    %206 = tpu.matmul %205, %117, %cst_205 {dimension_numbers = #tpu.dot_dimension_numbers<[1], [0], [0], [1], [0, 0, 1, 1], [], []>} : vector<10x4xf32>, vector<4x256xf32>, vector<10x256xf32> -> vector<10x256xf32>
    %207 = arith.addf %203, %206 : vector<10x256xf32>
    %c0_206 = arith.constant 0 : index
    %c0_207 = arith.constant 0 : index
    %208 = vector.load %arg7[%c0_206, %c0_207] : memref<10x1xf32, #tpu.memory_space<vmem>>, vector<10x1xf32>
    %209 = vector.broadcast %208 : vector<10x1xf32> to vector<10x256xf32>
    %210 = arith.mulf %207, %209 : vector<10x256xf32>
    %c0_208 = arith.constant 0 : index
    %c0_209 = arith.constant 0 : index
    %211 = vector.load %arg8[%c0_208, %c0_209] : memref<10x1xf32, #tpu.memory_space<vmem>>, vector<10x1xf32>
    %212 = vector.broadcast %211 : vector<10x1xf32> to vector<10x256xf32>
    %213 = arith.addf %210, %212 : vector<10x256xf32>
    %214 = math.tanh %213 : vector<10x256xf32>
    %c0_210 = arith.constant 0 : index
    %c0_211 = arith.constant 0 : index
    %c0_212 = arith.constant 0 : index
    %215 = vector.load %arg12[%c0_210, %c0_211, %c0_212] : memref<1x10x256xf32, #tpu.memory_space<vmem>>, vector<1x10x256xf32>
    %216 = vector.shape_cast %215 : vector<1x10x256xf32> to vector<10x256xf32>
    %217 = vector.shape_cast %214 : vector<10x256xf32> to vector<1x10x256xf32>
    tpu.vector_store %arg12[%c0_210, %c0_211, %c0_212], %217 {strides = array<i32>} : memref<1x10x256xf32, #tpu.memory_space<vmem>>, vector<1x10x256xf32>,
    %cst_213 = arith.constant 0.000000e+00 : f32
    %218 = vector.broadcast %cst_213 : f32 to vector<10x256xf32>
    %c0_214 = arith.constant 0 : index
    %c0_215 = arith.constant 0 : index
    %c0_216 = arith.constant 0 : index
    %219 = vector.load %arg4[%c0_214, %c0_215, %c0_216] : memref<9x10x4xf32, #tpu.memory_space<vmem>>, vector<1x10x4xf32>
    %220 = vector.shape_cast %219 : vector<1x10x4xf32> to vector<10x4xf32>
    %cst_217 = arith.constant dense<0.000000e+00> : vector<10x256xf32>
    %221 = tpu.matmul %220, %45, %cst_217 {dimension_numbers = #tpu.dot_dimension_numbers<[1], [0], [0], [1], [0, 0, 1, 1], [], []>} : vector<10x4xf32>, vector<4x256xf32>, vector<10x256xf32> -> vector<10x256xf32>
    %222 = arith.addf %218, %221 : vector<10x256xf32>
    %c1_218 = arith.constant 1 : index
    %c0_219 = arith.constant 0 : index
    %c0_220 = arith.constant 0 : index
    %223 = vector.load %arg4[%c1_218, %c0_219, %c0_220] : memref<9x10x4xf32, #tpu.memory_space<vmem>>, vector<1x10x4xf32>
    %224 = vector.shape_cast %223 : vector<1x10x4xf32> to vector<10x4xf32>
    %cst_221 = arith.constant dense<0.000000e+00> : vector<10x256xf32>
    %225 = tpu.matmul %224, %51, %cst_221 {dimension_numbers = #tpu.dot_dimension_numbers<[1], [0], [0], [1], [0, 0, 1, 1], [], []>} : vector<10x4xf32>, vector<4x256xf32>, vector<10x256xf32> -> vector<10x256xf32>
    %226 = arith.addf %222, %225 : vector<10x256xf32>
    %c2_222 = arith.constant 2 : index
    %c0_223 = arith.constant 0 : index
    %c0_224 = arith.constant 0 : index
    %227 = vector.load %arg4[%c2_222, %c0_223, %c0_224] : memref<9x10x4xf32, #tpu.memory_space<vmem>>, vector<1x10x4xf32>
    %228 = vector.shape_cast %227 : vector<1x10x4xf32> to vector<10x4xf32>
    %cst_225 = arith.constant dense<0.000000e+00> : vector<10x256xf32>
    %229 = tpu.matmul %228, %57, %cst_225 {dimension_numbers = #tpu.dot_dimension_numbers<[1], [0], [0], [1], [0, 0, 1, 1], [], []>} : vector<10x4xf32>, vector<4x256xf32>, vector<10x256xf32> -> vector<10x256xf32>
    %230 = arith.addf %226, %229 : vector<10x256xf32>
    %c3_226 = arith.constant 3 : index
    %c0_227 = arith.constant 0 : index
    %c0_228 = arith.constant 0 : index
    %231 = vector.load %arg4[%c3_226, %c0_227, %c0_228] : memref<9x10x4xf32, #tpu.memory_space<vmem>>, vector<1x10x4xf32>
    %232 = vector.shape_cast %231 : vector<1x10x4xf32> to vector<10x4xf32>
    %cst_229 = arith.constant dense<0.000000e+00> : vector<10x256xf32>
    %233 = tpu.matmul %232, %75, %cst_229 {dimension_numbers = #tpu.dot_dimension_numbers<[1], [0], [0], [1], [0, 0, 1, 1], [], []>} : vector<10x4xf32>, vector<4x256xf32>, vector<10x256xf32> -> vector<10x256xf32>
    %234 = arith.addf %230, %233 : vector<10x256xf32>
    %c4_230 = arith.constant 4 : index
    %c0_231 = arith.constant 0 : index
    %c0_232 = arith.constant 0 : index
    %235 = vector.load %arg4[%c4_230, %c0_231, %c0_232] : memref<9x10x4xf32, #tpu.memory_space<vmem>>, vector<1x10x4xf32>
    %236 = vector.shape_cast %235 : vector<1x10x4xf32> to vector<10x4xf32>
    %cst_233 = arith.constant dense<0.000000e+00> : vector<10x256xf32>
    %237 = tpu.matmul %236, %81, %cst_233 {dimension_numbers = #tpu.dot_dimension_numbers<[1], [0], [0], [1], [0, 0, 1, 1], [], []>} : vector<10x4xf32>, vector<4x256xf32>, vector<10x256xf32> -> vector<10x256xf32>
    %238 = arith.addf %234, %237 : vector<10x256xf32>
    %c5_234 = arith.constant 5 : index
    %c0_235 = arith.constant 0 : index
    %c0_236 = arith.constant 0 : index
    %239 = vector.load %arg4[%c5_234, %c0_235, %c0_236] : memref<9x10x4xf32, #tpu.memory_space<vmem>>, vector<1x10x4xf32>
    %240 = vector.shape_cast %239 : vector<1x10x4xf32> to vector<10x4xf32>
    %cst_237 = arith.constant dense<0.000000e+00> : vector<10x256xf32>
    %241 = tpu.matmul %240, %87, %cst_237 {dimension_numbers = #tpu.dot_dimension_numbers<[1], [0], [0], [1], [0, 0, 1, 1], [], []>} : vector<10x4xf32>, vector<4x256xf32>, vector<10x256xf32> -> vector<10x256xf32>
    %242 = arith.addf %238, %241 : vector<10x256xf32>
    %c6_238 = arith.constant 6 : index
    %c0_239 = arith.constant 0 : index
    %c0_240 = arith.constant 0 : index
    %243 = vector.load %arg4[%c6_238, %c0_239, %c0_240] : memref<9x10x4xf32, #tpu.memory_space<vmem>>, vector<1x10x4xf32>
    %244 = vector.shape_cast %243 : vector<1x10x4xf32> to vector<10x4xf32>
    %cst_241 = arith.constant dense<0.000000e+00> : vector<10x256xf32>
    %245 = tpu.matmul %244, %105, %cst_241 {dimension_numbers = #tpu.dot_dimension_numbers<[1], [0], [0], [1], [0, 0, 1, 1], [], []>} : vector<10x4xf32>, vector<4x256xf32>, vector<10x256xf32> -> vector<10x256xf32>
    %246 = arith.addf %242, %245 : vector<10x256xf32>
    %c7_242 = arith.constant 7 : index
    %c0_243 = arith.constant 0 : index
    %c0_244 = arith.constant 0 : index
    %247 = vector.load %arg4[%c7_242, %c0_243, %c0_244] : memref<9x10x4xf32, #tpu.memory_space<vmem>>, vector<1x10x4xf32>
    %248 = vector.shape_cast %247 : vector<1x10x4xf32> to vector<10x4xf32>
    %cst_245 = arith.constant dense<0.000000e+00> : vector<10x256xf32>
    %249 = tpu.matmul %248, %111, %cst_245 {dimension_numbers = #tpu.dot_dimension_numbers<[1], [0], [0], [1], [0, 0, 1, 1], [], []>} : vector<10x4xf32>, vector<4x256xf32>, vector<10x256xf32> -> vector<10x256xf32>
    %250 = arith.addf %246, %249 : vector<10x256xf32>
    %c8_246 = arith.constant 8 : index
    %c0_247 = arith.constant 0 : index
    %c0_248 = arith.constant 0 : index
    %251 = vector.load %arg4[%c8_246, %c0_247, %c0_248] : memref<9x10x4xf32, #tpu.memory_space<vmem>>, vector<1x10x4xf32>
    %252 = vector.shape_cast %251 : vector<1x10x4xf32> to vector<10x4xf32>
    %cst_249 = arith.constant dense<0.000000e+00> : vector<10x256xf32>
    %253 = tpu.matmul %252, %117, %cst_249 {dimension_numbers = #tpu.dot_dimension_numbers<[1], [0], [0], [1], [0, 0, 1, 1], [], []>} : vector<10x4xf32>, vector<4x256xf32>, vector<10x256xf32> -> vector<10x256xf32>
    %254 = arith.addf %250, %253 : vector<10x256xf32>
    %c0_250 = arith.constant 0 : index
    %c0_251 = arith.constant 0 : index
    %255 = vector.load %arg9[%c0_250, %c0_251] : memref<10x1xf32, #tpu.memory_space<vmem>>, vector<10x1xf32>
    %256 = vector.broadcast %255 : vector<10x1xf32> to vector<10x256xf32>
    %257 = arith.mulf %254, %256 : vector<10x256xf32>
    %c0_252 = arith.constant 0 : index
    %c0_253 = arith.constant 0 : index
    %258 = vector.load %arg10[%c0_252, %c0_253] : memref<10x1xf32, #tpu.memory_space<vmem>>, vector<10x1xf32>
    %259 = vector.broadcast %258 : vector<10x1xf32> to vector<10x256xf32>
    %260 = arith.addf %257, %259 : vector<10x256xf32>
    %261 = math.tanh %260 : vector<10x256xf32>
    %c0_254 = arith.constant 0 : index
    %c0_255 = arith.constant 0 : index
    %c0_256 = arith.constant 0 : index
    %262 = vector.load %arg13[%c0_254, %c0_255, %c0_256] : memref<1x10x256xf32, #tpu.memory_space<vmem>>, vector<1x10x256xf32>
    %263 = vector.shape_cast %262 : vector<1x10x256xf32> to vector<10x256xf32>
    %264 = vector.shape_cast %261 : vector<10x256xf32> to vector<1x10x256xf32>
    tpu.vector_store %arg13[%c0_254, %c0_255, %c0_256], %264 {strides = array<i32>} : memref<1x10x256xf32, #tpu.memory_space<vmem>>, vector<1x10x256xf32>,
    return
  }
  func.func @transform_0(%arg0: i32) -> (i32, i32, i32, i32) {
    %c0_i32 = arith.constant 0 : i32
    %c0_i32_0 = arith.constant 0 : i32
    %c0_i32_1 = arith.constant 0 : i32
    %c0_i32_2 = arith.constant 0 : i32
    return %arg0, %c0_i32, %c0_i32_0, %c0_i32_1 : i32, i32, i32, i32
  }
  func.func @transform_1(%arg0: i32) -> (i32, i32, i32) {
    %c0_i32 = arith.constant 0 : i32
    %c0_i32_0 = arith.constant 0 : i32
    %c0_i32_1 = arith.constant 0 : i32
    %c0_i32_2 = arith.constant 0 : i32
    return %c0_i32, %c0_i32_0, %c0_i32_1 : i32, i32, i32
  }
  func.func @transform_2(%arg0: i32) -> (i32, i32, i32) {
    %c0_i32 = arith.constant 0 : i32
    %c0_i32_0 = arith.constant 0 : i32
    %c0_i32_1 = arith.constant 0 : i32
    %c0_i32_2 = arith.constant 0 : i32
    return %c0_i32, %c0_i32_0, %c0_i32_1 : i32, i32, i32
  }
  func.func @transform_3(%arg0: i32) -> (i32, i32, i32) {
    %c0_i32 = arith.constant 0 : i32
    %c0_i32_0 = arith.constant 0 : i32
    %c0_i32_1 = arith.constant 0 : i32
    %c0_i32_2 = arith.constant 0 : i32
    return %c0_i32, %c0_i32_0, %c0_i32_1 : i32, i32, i32
  }
  func.func @transform_4(%arg0: i32) -> (i32, i32) {
    %c0_i32 = arith.constant 0 : i32
    %c0_i32_0 = arith.constant 0 : i32
    %c0_i32_1 = arith.constant 0 : i32
    return %c0_i32, %c0_i32_0 : i32, i32
  }
  func.func @transform_5(%arg0: i32) -> (i32, i32) {
    %c0_i32 = arith.constant 0 : i32
    %c0_i32_0 = arith.constant 0 : i32
    %c0_i32_1 = arith.constant 0 : i32
    return %c0_i32, %c0_i32_0 : i32, i32
  }
  func.func @transform_6(%arg0: i32) -> (i32, i32) {
    %c0_i32 = arith.constant 0 : i32
    %c0_i32_0 = arith.constant 0 : i32
    %c0_i32_1 = arith.constant 0 : i32
    return %c0_i32, %c0_i32_0 : i32, i32
  }
  func.func @transform_7(%arg0: i32) -> (i32, i32) {
    %c0_i32 = arith.constant 0 : i32
    %c0_i32_0 = arith.constant 0 : i32
    %c0_i32_1 = arith.constant 0 : i32
    return %c0_i32, %c0_i32_0 : i32, i32
  }
  func.func @transform_8(%arg0: i32) -> (i32, i32) {
    %c0_i32 = arith.constant 0 : i32
    %c0_i32_0 = arith.constant 0 : i32
    %c0_i32_1 = arith.constant 0 : i32
    return %c0_i32, %c0_i32_0 : i32, i32
  }
  func.func @transform_9(%arg0: i32) -> (i32, i32) {
    %c0_i32 = arith.constant 0 : i32
    %c0_i32_0 = arith.constant 0 : i32
    %c0_i32_1 = arith.constant 0 : i32
    return %c0_i32, %c0_i32_0 : i32, i32
  }
  func.func @transform_10(%arg0: i32) -> (i32, i32, i32) {
    %c0_i32 = arith.constant 0 : i32
    %c0_i32_0 = arith.constant 0 : i32
    %c0_i32_1 = arith.constant 0 : i32
    return %arg0, %c0_i32, %c0_i32_0 : i32, i32, i32
  }
  func.func @transform_11(%arg0: i32) -> (i32, i32, i32) {
    %c0_i32 = arith.constant 0 : i32
    %c0_i32_0 = arith.constant 0 : i32
    %c0_i32_1 = arith.constant 0 : i32
    return %arg0, %c0_i32, %c0_i32_0 : i32, i32, i32
  }
  func.func @transform_12(%arg0: i32) -> (i32, i32, i32) {
    %c0_i32 = arith.constant 0 : i32
    %c0_i32_0 = arith.constant 0 : i32
    %c0_i32_1 = arith.constant 0 : i32
    return %arg0, %c0_i32, %c0_i32_0 : i32, i32, i32
  }
}

module attributes {stable_mosaic.version = 11 : i64} {
  func.func @_dsc_head_kernel(%arg0: i32, %arg1: memref<1x20x256xf32, #tpu.memory_space<vmem>>, %arg2: memref<2x20xf32, #tpu.memory_space<vmem>>, %arg3: memref<2x1xf32, #tpu.memory_space<vmem>>, %arg4: memref<2x1xf32, #tpu.memory_space<vmem>>, %arg5: memref<2x1xf32, #tpu.memory_space<vmem>>, %arg6: memref<1x2x256xf32, #tpu.memory_space<vmem>>) attributes {dimension_semantics = [#tpu.dimension_semantics<parallel>], iteration_bounds = array<i64: 2>, scalar_prefetch = 0 : i64, scratch_operands = 0 : i64, tpu.core_type = #tpu.core_type<tc>, window_params = [{transform_indices = @transform_0, window_bounds = array<i64: 1, 20, 256>}, {pipeline_mode = #tpu.pipeline_mode<synchronous>, transform_indices = @transform_1, window_bounds = array<i64: 2, 20>}, {pipeline_mode = #tpu.pipeline_mode<synchronous>, transform_indices = @transform_2, window_bounds = array<i64: 2, 1>}, {pipeline_mode = #tpu.pipeline_mode<synchronous>, transform_indices = @transform_3, window_bounds = array<i64: 2, 1>}, {pipeline_mode = #tpu.pipeline_mode<synchronous>, transform_indices = @transform_4, window_bounds = array<i64: 2, 1>}, {transform_indices = @transform_5, window_bounds = array<i64: 1, 2, 256>}]} {
    %c0 = arith.constant 0 : index
    %c0_0 = arith.constant 0 : index
    %0 = vector.load %arg2[%c0, %c0_0] : memref<2x20xf32, #tpu.memory_space<vmem>>, vector<2x20xf32>
    %c0_1 = arith.constant 0 : index
    %c0_2 = arith.constant 0 : index
    %c0_3 = arith.constant 0 : index
    %1 = vector.load %arg1[%c0_1, %c0_2, %c0_3] : memref<1x20x256xf32, #tpu.memory_space<vmem>>, vector<1x20x256xf32>
    %2 = vector.shape_cast %1 : vector<1x20x256xf32> to vector<20x256xf32>
    %cst = arith.constant dense<0.000000e+00> : vector<2x256xf32>
    %3 = tpu.matmul %0, %2, %cst {dimension_numbers = #tpu.dot_dimension_numbers<[1], [0], [0], [1], [0, 0, 1, 1], [], []>} : vector<2x20xf32>, vector<20x256xf32>, vector<2x256xf32> -> vector<2x256xf32>
    %c0_4 = arith.constant 0 : index
    %c0_5 = arith.constant 0 : index
    %4 = vector.load %arg3[%c0_4, %c0_5] : memref<2x1xf32, #tpu.memory_space<vmem>>, vector<2x1xf32>
    %5 = vector.broadcast %4 : vector<2x1xf32> to vector<2x256xf32>
    %6 = arith.addf %3, %5 : vector<2x256xf32>
    %cst_6 = arith.constant dense<0.000000e+00> : vector<2xf32>
    %7 = vector.multi_reduction <add>, %6, %cst_6 [1] : vector<2x256xf32> to vector<2xf32>
    %8 = vector.shape_cast %7 : vector<2xf32> to vector<2x1xf32>
    %cst_7 = arith.constant 2.560000e+02 : f32
    %9 = vector.broadcast %cst_7 : f32 to vector<2x1xf32>
    %10 = arith.divf %8, %9 : vector<2x1xf32>
    %11 = vector.broadcast %10 : vector<2x1xf32> to vector<2x256xf32>
    %12 = arith.subf %6, %11 : vector<2x256xf32>
    %13 = arith.mulf %12, %12 : vector<2x256xf32>
    %cst_8 = arith.constant dense<0.000000e+00> : vector<2xf32>
    %14 = vector.multi_reduction <add>, %13, %cst_8 [1] : vector<2x256xf32> to vector<2xf32>
    %15 = vector.shape_cast %14 : vector<2xf32> to vector<2x1xf32>
    %cst_9 = arith.constant 2.560000e+02 : f32
    %16 = vector.broadcast %cst_9 : f32 to vector<2x1xf32>
    %17 = arith.divf %15, %16 : vector<2x1xf32>
    %18 = vector.broadcast %10 : vector<2x1xf32> to vector<2x256xf32>
    %19 = arith.subf %6, %18 : vector<2x256xf32>
    %cst_10 = arith.constant 9.99999974E-6 : f32
    %20 = vector.broadcast %cst_10 : f32 to vector<2x1xf32>
    %21 = arith.addf %17, %20 : vector<2x1xf32>
    %22 = math.rsqrt %21 : vector<2x1xf32>
    %23 = vector.broadcast %22 : vector<2x1xf32> to vector<2x256xf32>
    %24 = arith.mulf %19, %23 : vector<2x256xf32>
    %c0_11 = arith.constant 0 : index
    %c0_12 = arith.constant 0 : index
    %25 = vector.load %arg4[%c0_11, %c0_12] : memref<2x1xf32, #tpu.memory_space<vmem>>, vector<2x1xf32>
    %26 = vector.broadcast %25 : vector<2x1xf32> to vector<2x256xf32>
    %27 = arith.mulf %24, %26 : vector<2x256xf32>
    %c0_13 = arith.constant 0 : index
    %c0_14 = arith.constant 0 : index
    %28 = vector.load %arg5[%c0_13, %c0_14] : memref<2x1xf32, #tpu.memory_space<vmem>>, vector<2x1xf32>
    %29 = vector.broadcast %28 : vector<2x1xf32> to vector<2x256xf32>
    %30 = arith.addf %27, %29 : vector<2x256xf32>
    %31 = arith.negf %30 : vector<2x256xf32>
    %32 = math.exp %31 : vector<2x256xf32>
    %cst_15 = arith.constant 1.000000e+00 : f32
    %33 = vector.broadcast %cst_15 : f32 to vector<2x256xf32>
    %34 = arith.addf %33, %32 : vector<2x256xf32>
    %35 = arith.divf %33, %34 : vector<2x256xf32>
    %36 = arith.mulf %30, %35 : vector<2x256xf32>
    %c0_16 = arith.constant 0 : index
    %c0_17 = arith.constant 0 : index
    %c0_18 = arith.constant 0 : index
    %37 = vector.load %arg6[%c0_16, %c0_17, %c0_18] : memref<1x2x256xf32, #tpu.memory_space<vmem>>, vector<1x2x256xf32>
    %38 = vector.shape_cast %37 : vector<1x2x256xf32> to vector<2x256xf32>
    %39 = vector.shape_cast %36 : vector<2x256xf32> to vector<1x2x256xf32>
    tpu.vector_store %arg6[%c0_16, %c0_17, %c0_18], %39 {strides = array<i32>} : memref<1x2x256xf32, #tpu.memory_space<vmem>>, vector<1x2x256xf32>,
    return
  }
  func.func @transform_0(%arg0: i32) -> (i32, i32, i32) {
    %c0_i32 = arith.constant 0 : i32
    %c0_i32_0 = arith.constant 0 : i32
    %c0_i32_1 = arith.constant 0 : i32
    return %arg0, %c0_i32, %c0_i32_0 : i32, i32, i32
  }
  func.func @transform_1(%arg0: i32) -> (i32, i32) {
    %c0_i32 = arith.constant 0 : i32
    %c0_i32_0 = arith.constant 0 : i32
    %c0_i32_1 = arith.constant 0 : i32
    return %c0_i32, %c0_i32_0 : i32, i32
  }
  func.func @transform_2(%arg0: i32) -> (i32, i32) {
    %c0_i32 = arith.constant 0 : i32
    %c0_i32_0 = arith.constant 0 : i32
    %c0_i32_1 = arith.constant 0 : i32
    return %c0_i32, %c0_i32_0 : i32, i32
  }
  func.func @transform_3(%arg0: i32) -> (i32, i32) {
    %c0_i32 = arith.constant 0 : i32
    %c0_i32_0 = arith.constant 0 : i32
    %c0_i32_1 = arith.constant 0 : i32
    return %c0_i32, %c0_i32_0 : i32, i32
  }
  func.func @transform_4(%arg0: i32) -> (i32, i32) {
    %c0_i32 = arith.constant 0 : i32
    %c0_i32_0 = arith.constant 0 : i32
    %c0_i32_1 = arith.constant 0 : i32
    return %c0_i32, %c0_i32_0 : i32, i32
  }
  func.func @transform_5(%arg0: i32) -> (i32, i32, i32) {
    %c0_i32 = arith.constant 0 : i32
    %c0_i32_0 = arith.constant 0 : i32
    %c0_i32_1 = arith.constant 0 : i32
    return %arg0, %c0_i32, %c0_i32_0 : i32, i32, i32
  }
}

</mosaic_0001>

<llo_original>
// kernel: forward.4
$region0: #{forward.4}
  #allocation0 [shape = 'u32[]', space=smem, size = 0x4, offset = 0x4, fixed_abs, tag = 'smem constant byte address 0x4 - core index']
  #allocation1 [shape = 'u32[144,128]{1,0:T(1,128)}', space=vmem, size = 0x12000, scoped, tag = 'internal scratch']
  %s0 = inlined_call_operand.vmem [shape: f32[2,20,256], index: 0, kind: input, shape index: {}]
  %s1 = inlined_call_operand.vmem [shape: f32[2,20], index: 1, kind: input, shape index: {}]
  %s2 = inlined_call_operand.vmem [shape: f32[2,1], index: 2, kind: input, shape index: {}]
  %s3 = inlined_call_operand.vmem [shape: f32[2,1], index: 3, kind: input, shape index: {}]
  %s4 = inlined_call_operand.vmem [shape: f32[2,1], index: 4, kind: input, shape index: {}]
  %s5 = inlined_call_operand.vmem [shape: f32[2,2,256], index: 5, kind: output, shape index: {}]
  %s6 = sld [smem:[#allocation0]]
  $region53: #{forward.4} parent=0
    _
  %s8 = ssub.s32 1, %s6
  %s9 = scalar_select 0, %s8, %s6
  loop: start=0, step=1, limit=4
  $region2: #{forward.4} parent=0 // loop_pre_header
    _
  $region3: #{forward.4} parent=0 // loop_header
    %s11 = sphi 0, %s15
    %p12 = scmp.ge.s32.totalorder %s11, 4
    %s21 = sphi 0, %s23
    %s24 = sphi 0, %s21
    %s25 = sphi 0, %s24
    %s41 = sphi 0, %s25
    %s45 = sphi 0, %s45
    %s47 = sphi 0, %s45
    %s48 = sphi 0, %s47
    %s62 = sphi 0, %s48
    %s66 = sphi 0, %s66
    %s68 = sphi 0, %s66
    %s69 = sphi 0, %s68
    %s83 = sphi 0, %s69
    %s87 = sphi 0, %s87
    %s89 = sphi 0, %s87
    %s90 = sphi 0, %s89
    %s104 = sphi 0, %s90
    %s108 = sphi 0, %s108
    %s110 = sphi 0, %s108
    %s111 = sphi 0, %s110
    %s125 = sphi 0, %s111
    %s131 = sphi 0, %s133
    %s134 = sphi 0, %s131
    %s135 = sphi 0, %s134
    %s151 = sphi 0, %s135
  $region4: #{forward.4} parent=0 // loop_header_branch
    %14 = sbr.rel (%p12) target = $region8
  $region5: #{forward.4} parent=0 // loop_body
    %s16 = ssub.s32 %s11, 1
    %s17 = ssub.s32 %s11, 2
    %s18 = sadd.s32 %s11, 1
    %s19 = ssub.s32 %s11, %s18
    %p20 = scmp.eq.s32.totalorder %s19, 0
    %s22 = sadd.s32 %s21, 1
    %s23 = scalar_select %p20, %s21, %s22
    %p26 = pneg %p20
    %p27 = scmp.eq.s32.totalorder %s11, 1
    %p28 = por %p26, %p27
    %p29 = scmp.ne.s32.totalorder %s21, %s24
    %p30 = scmp.eq.s32.totalorder %s11, 0
    %p31 = por %p29, %p30
    %p32 = scmp.ne.s32.totalorder %s21, %s24
    %p33 = scmp.eq.s32.totalorder %s16, 1
    %p34 = por %p32, %p33
    %p35 = scmp.ne.s32.totalorder %s24, %s25
    %p36 = scmp.eq.s32.totalorder %s16, 0
    %p37 = por %p35, %p36
    %p38 = scmp.ne.s32.totalorder %s24, %s25
    %p39 = scmp.eq.s32.totalorder %s17, 1
    %p40 = por %p38, %p39
    %p42 = scmp.ne.s32.totalorder %s25, %s41
    %p43 = scmp.eq.s32.totalorder %s17, 0
    %p44 = por %p42, %p43
    %s46 = sadd.s32 %s45, 1
    %p49 = scmp.eq.s32.totalorder %s11, 1
    %p50 = scmp.ne.s32.totalorder %s45, %s47
    %p51 = scmp.eq.s32.totalorder %s11, 0
    %p52 = por %p50, %p51
    %p53 = scmp.ne.s32.totalorder %s45, %s47
    %p54 = scmp.eq.s32.totalorder %s16, 1
    %p55 = por %p53, %p54
    %p56 = scmp.ne.s32.totalorder %s47, %s48
    %p57 = scmp.eq.s32.totalorder %s16, 0
    %p58 = por %p56, %p57
    %p59 = scmp.ne.s32.totalorder %s47, %s48
    %p60 = scmp.eq.s32.totalorder %s17, 1
    %p61 = por %p59, %p60
    %p63 = scmp.ne.s32.totalorder %s48, %s62
    %p64 = scmp.eq.s32.totalorder %s17, 0
    %p65 = por %p63, %p64
    %s67 = sadd.s32 %s66, 1
    %p70 = scmp.eq.s32.totalorder %s11, 1
    %p71 = scmp.ne.s32.totalorder %s66, %s68
    %p72 = scmp.eq.s32.totalorder %s11, 0
    %p73 = por %p71, %p72
    %p74 = scmp.ne.s32.totalorder %s66, %s68
    %p75 = scmp.eq.s32.totalorder %s16, 1
    %p76 = por %p74, %p75
    %p77 = scmp.ne.s32.totalorder %s68, %s69
    %p78 = scmp.eq.s32.totalorder %s16, 0
    %p79 = por %p77, %p78
    %p80 = scmp.ne.s32.totalorder %s68, %s69
    %p81 = scmp.eq.s32.totalorder %s17, 1
    %p82 = por %p80, %p81
    %p84 = scmp.ne.s32.totalorder %s69, %s83
    %p85 = scmp.eq.s32.totalorder %s17, 0
    %p86 = por %p84, %p85
    %s88 = sadd.s32 %s87, 1
    %p91 = scmp.eq.s32.totalorder %s11, 1
    %p92 = scmp.ne.s32.totalorder %s87, %s89
    %p93 = scmp.eq.s32.totalorder %s11, 0
    %p94 = por %p92, %p93
    %p95 = scmp.ne.s32.totalorder %s87, %s89
    %p96 = scmp.eq.s32.totalorder %s16, 1
    %p97 = por %p95, %p96
    %p98 = scmp.ne.s32.totalorder %s89, %s90
    %p99 = scmp.eq.s32.totalorder %s16, 0
    %p100 = por %p98, %p99
    %p101 = scmp.ne.s32.totalorder %s89, %s90
    %p102 = scmp.eq.s32.totalorder %s17, 1
    %p103 = por %p101, %p102
    %p105 = scmp.ne.s32.totalorder %s90, %s104
    %p106 = scmp.eq.s32.totalorder %s17, 0
    %p107 = por %p105, %p106
    %s109 = sadd.s32 %s108, 1
    %p112 = scmp.eq.s32.totalorder %s11, 1
    %p113 = scmp.ne.s32.totalorder %s108, %s110
    %p114 = scmp.eq.s32.totalorder %s11, 0
    %p115 = por %p113, %p114
    %p116 = scmp.ne.s32.totalorder %s108, %s110
    %p117 = scmp.eq.s32.totalorder %s16, 1
    %p118 = por %p116, %p117
    %p119 = scmp.ne.s32.totalorder %s110, %s111
    %p120 = scmp.eq.s32.totalorder %s16, 0
    %p121 = por %p119, %p120
    %p122 = scmp.ne.s32.totalorder %s110, %s111
    %p123 = scmp.eq.s32.totalorder %s17, 1
    %p124 = por %p122, %p123
    %p126 = scmp.ne.s32.totalorder %s111, %s125
    %p127 = scmp.eq.s32.totalorder %s17, 0
    %p128 = por %p126, %p127
    %s129 = ssub.s32 %s11, %s18
    %p130 = scmp.eq.s32.totalorder %s129, 0
    %s132 = sadd.s32 %s131, 1
    %s133 = scalar_select %p130, %s131, %s132
    %p136 = pneg %p130
    %p137 = scmp.eq.s32.totalorder %s11, 1
    %p138 = por %p136, %p137
    %p139 = scmp.ne.s32.totalorder %s131, %s134
    %p140 = scmp.eq.s32.totalorder %s11, 0
    %p141 = por %p139, %p140
    %p142 = scmp.ne.s32.totalorder %s131, %s134
    %p143 = scmp.eq.s32.totalorder %s16, 1
    %p144 = por %p142, %p143
    %p145 = scmp.ne.s32.totalorder %s134, %s135
    %p146 = scmp.eq.s32.totalorder %s16, 0
    %p147 = por %p145, %p146
    %p148 = scmp.ne.s32.totalorder %s134, %s135
    %p149 = scmp.eq.s32.totalorder %s17, 1
    %p150 = por %p148, %p149
    %p152 = scmp.ne.s32.totalorder %s135, %s151
    %p153 = scmp.eq.s32.totalorder %s17, 0
    %p154 = por %p152, %p153
    %p155 = scmp.le.s32.totalorder 1, %s11
    %p156 = scmp.lt.s32.totalorder %s11, 3
    %p157 = pnand %p155, %p156
    %p158 = pneg %p157
    // Predicated region
    $region9: #{forward.4} parent=5 // pred_check
      _
    $region10: #{forward.4} parent=5 // pred_check_branch
      %160 = sbr.rel (%p157) target = $region12
    $region11: #{forward.4} parent=5 // pred_region
      %s161 = ssub.s32 %s11, 1
      // Predicated region
      $region13: #{forward.4} parent=11 // pred_check
        %p162 = pneg %p58
      $region14: #{forward.4} parent=11 // pred_check_branch
        %164 = sbr.rel (%p162) target = $region16
      $region15: #{forward.4} parent=11 // pred_region
        _
      $region16: #{forward.4} parent=11 // pred_fallthru
        _
      // Predicated region
      $region17: #{forward.4} parent=11 // pred_check
        %p165 = pneg %p79
      $region18: #{forward.4} parent=11 // pred_check_branch
        %167 = sbr.rel (%p165) target = $region20
      $region19: #{forward.4} parent=11 // pred_region
        _
      $region20: #{forward.4} parent=11 // pred_fallthru
        _
      // Predicated region
      $region21: #{forward.4} parent=11 // pred_check
        %p168 = pneg %p100
      $region22: #{forward.4} parent=11 // pred_check_branch
        %170 = sbr.rel (%p168) target = $region24
      $region23: #{forward.4} parent=11 // pred_region
        _
      $region24: #{forward.4} parent=11 // pred_fallthru
        _
      // Predicated region
      $region25: #{forward.4} parent=11 // pred_check
        %p171 = pneg %p121
      $region26: #{forward.4} parent=11 // pred_check_branch
        %173 = sbr.rel (%p171) target = $region28
      $region27: #{forward.4} parent=11 // pred_region
        _
      $region28: #{forward.4} parent=11 // pred_fallthru
        _
    $region12: #{forward.4} parent=5 // pred_fallthru
      _
    %p174 = scmp.lt.s32.totalorder %s11, 2
    // Predicated region
    $region29: #{forward.4} parent=5 // pred_check
      %p175 = pneg %p174
    $region30: #{forward.4} parent=5 // pred_check_branch
      %177 = sbr.rel (%p175) target = $region32
    $region31: #{forward.4} parent=5 // pred_region
      // Predicated region
      $region33: #{forward.4} parent=31 // pred_check
        %p178 = pneg %p31
      $region34: #{forward.4} parent=31 // pred_check_branch
        %180 = sbr.rel (%p178) target = $region36
      $region35: #{forward.4} parent=31 // pred_region
        %p181 = scmp.lt.s32.totalorder %s11, 1
        %s182 = scalar_select %p181, %s11, 1
        %s183 = smul.addr %s182, 6
        %s184 = smul.addr %s183, 8
        %s185 = scalar_lea.vmem %s0, %s184
      $region36: #{forward.4} parent=31 // pred_fallthru
        _
    $region32: #{forward.4} parent=5 // pred_fallthru
      _
    %p186 = scmp.le.s32.totalorder 1, %s11
    %p187 = scmp.lt.s32.totalorder %s11, 3
    %p188 = pnand %p186, %p187
    %p189 = pneg %p188
    // Predicated region
    $region37: #{forward.4} parent=5 // pred_check
      _
    $region38: #{forward.4} parent=5 // pred_check_branch
      %191 = sbr.rel (%p188) target = $region40
    $region39: #{forward.4} parent=5 // pred_region
      %s192 = ssub.s32 %s11, 1
      %p193 = scmp.lt.s32.totalorder %s16, 1
      %s194 = scalar_select %p193, %s16, 1
      %s195 = smul.addr %s194, 6
      %s196 = smul.addr %s195, 8
      %s197 = scalar_lea.vmem %s0, %s196
      %p198 = pneg %p37
      %p199 = pneg %p34
      %p200 = pneg %p58
      %p201 = pneg %p55
      %p202 = pneg %p79
      %p203 = pneg %p76
      %p204 = pneg %p100
      %p205 = pneg %p97
      %p206 = pneg %p121
      %p207 = pneg %p118
      %p208 = pneg %p147
      %p209 = pneg %p144
      %p210 = scmp.lt.s32.totalorder %s16, 1
      %s211 = scalar_select %p210, %s16, 1
      %s212 = smul.addr %s211, 2
      %s213 = smul.addr %s212, 2
      %s214 = scalar_lea.vmem %s5, %s213
      %p215 = scmp.lt.s32.totalorder %s16, 1
      %s216 = scalar_select %p215, %s16, 1
      %s217 = smul.addr %s216, 6
      %s218 = smul.addr %s217, 8
      %s219 = scalar_lea.vmem %s0, %s218
      %p220 = scmp.lt.s32.totalorder %s16, 1
      %s221 = scalar_select %p220, %s16, 1
      %s222 = smul.addr %s221, 2
      %s223 = smul.addr %s222, 2
      %s224 = scalar_lea.vmem %s5, %s223
      %v225 = vld [vmem:[%s1] sm:$0x3]
      %v226 = vld [vmem:[%s219] sm:$0xff]
      %v227 = vld [vmem:[%s219 + $0x8] sm:$0xff]
      %v228 = vld [vmem:[%s219 + $0x10] sm:$0xff]
      %v229 = vld [vmem:[%s219 + $0x18] sm:$0xff]
      %v230 = vld [vmem:[%s219 + $0x20] sm:$0xf]
      %v231 = vld [vmem:[%s219 + $0x28] sm:$0xf]
      %v232 = vld [vmem:[%s2] sm:$0x3]
      %234 = vset.pattern.permute.xlu0 0
      %235 = vperm.xlu0 %234, %v232
      %v236 = vpop.permute.xlu0 %235
      %vm238 = vcmask 162816
      %v240 = vsel %vm238, %v225, 0
      %vm242 = vcmask 1043456
      %v244 = vsel %vm242, %v230, 0
      %v247 = vsel %vm242, %v231, 0
      %249 = vmatprep.subr.mxu0 %v227
      %250 = vmatpush1.msra.mxu0 %v226
      %251 = vmatprep.subr.mxu0 %v229
      %252 = vmatpush1.msra.mxu0 %v228
      %253 = vmatprep.subr.mxu0 %v247
      %254 = vmatpush1.msra.mxu0 %v244
      %255 = vmatprep.subr.mxu0 0.0
      %256 = vmatpush1.msra.mxu0 0.0
      %257 = vmatprep.subr.mxu0 0.0
      %258 = vmatpush1.msra.mxu0 0.0
      %259 = vmatprep.subr.mxu0 0.0
      %260 = vmatpush1.msra.mxu0 0.0
      %261 = vmatprep.subr.mxu0 0.0
      %262 = vmatpush1.msra.mxu0 0.0
      %263 = vmatprep.subr.mxu0 0.0
      %264 = vmatpush1.msra.mxu0 0.0
      %265 = vmatprep.subr.mxu0 0.0
      %266 = vmatpush1.msra.mxu0 0.0
      %267 = vmatprep.subr.mxu0 0.0
      %268 = vmatpush1.msra.mxu0 0.0
      %269 = vmatprep.subr.mxu0 0.0
      %270 = vmatpush1.msra.mxu0 0.0
      %271 = vmatprep.subr.mxu0 0.0
      %272 = vmatpush1.msra.mxu0 0.0
      %273 = vmatprep.subr.mxu0 0.0
      %274 = vmatpush1.msra.mxu0 0.0
      %275 = vmatprep.subr.mxu0 0.0
      %276 = vmatpush1.msra.mxu0 0.0
      %277 = vmatprep.subr.mxu0 0.0
      %278 = vmatpush1.msra.mxu0 0.0
      %279 = vmatprep.subr.mxu0 0.0
      %280 = vmatpush1.msra.mxu0 0.0
      %281 = vmatprep.subr.mxu0 0.0
      %282 = vmatpush1.msra.mxu0 0.0
      %283 = vmatprep.subr.mxu0 0.0
      %284 = vmatpush1.msra.mxu0 0.0
      %285 = vmatprep.subr.mxu0 0.0
      %286 = vmatpush1.msra.mxu0 0.0
      %287 = vmatprep.subr.mxu0 0.0
      %288 = vmatpush1.msra.mxu0 0.0
      %289 = vmatprep.subr.mxu0 0.0
      %290 = vmatpush1.msra.mxu0 0.0
      %291 = vmatprep.subr.mxu0 0.0
      %292 = vmatpush1.msra.mxu0 0.0
      %293 = vmatprep.subr.mxu0 0.0
      %294 = vmatpush1.msra.mxu0 0.0
      %295 = vmatprep.subr.mxu0 0.0
      %296 = vmatpush1.msra.mxu0 0.0
      %297 = vmatprep.subr.mxu0 0.0
      %298 = vmatpush1.msra.mxu0 0.0
      %299 = vmatprep.subr.mxu0 0.0
      %300 = vmatpush1.msra.mxu0 0.0
      %301 = vmatprep.subr.mxu0 0.0
      %302 = vmatpush1.msra.mxu0 0.0
      %303 = vmatprep.subr.mxu0 0.0
      %304 = vmatpush1.msra.mxu0 0.0
      %305 = vmatprep.subr.mxu0 0.0
      %306 = vmatpush1.msra.mxu0 0.0
      %307 = vmatprep.subr.mxu0 0.0
      %308 = vmatpush1.msra.mxu0 0.0
      %309 = vmatprep.subr.mxu0 0.0
      %310 = vmatpush1.msra.mxu0 0.0
      %311 = vmatprep.subr.mxu0 0.0
      %312 = vmatpush1.msra.mxu0 0.0
      %313 = vmatprep.mubr.f32.mxu0 0.0
      %314 = vmatmul.mubr.f32.gmra.mrb[0].mxu0 %v240
      %v315 = vpop.f32.mrb[0].mxu0
      %v316 = vadd.f32 %v236, %v315
      %v317 = vpop.f32.mrb[0].mxu0
      %v318 = vadd.f32 %v236, %v317
      %319 = vdwg.mxu0
      %vm320 = vcmask 1041408
      %v321 = vsel %vm320, %v316, 0.0
      %v322 = vsel %vm320, %v318, 0.0
      %v323 = vadd.f32 %v321, %v322
      %324 = vadd.xlane.f32.xlu0 %v323
      %v325 = vpop.xlane.xlu0 %324
      %v326 = vrcp.pop 256.0
      %v327 = vmul.f32 %v325, %v326
      %v328 = vsub.f32 %v316, %v327
      %v329 = vsub.f32 %v318, %v327
      %v330 = vmul.f32 %v328, %v328
      %v331 = vmul.f32 %v329, %v329
      %v332 = vsel %vm320, %v330, 0.0
      %v333 = vsel %vm320, %v331, 0.0
      %v334 = vadd.f32 %v332, %v333
      %335 = vadd.xlane.f32.xlu0 %v334
      %v336 = vpop.xlane.xlu0 %335
      %v337 = vmul.f32 %v336, %v326
      %v338 = vadd.f32 %v337, 1e-05
      %v339 = vrsqrt.pop %v338
      %v340 = vmul.f32 %v328, %v339
      %v341 = vmul.f32 %v329, %v339
      %v342 = vld [vmem:[%s3] sm:$0x3]
      %344 = vset.pattern.permute.xlu0 0
      %345 = vperm.xlu0 %344, %v342
      %v346 = vpop.permute.xlu0 %345
      %v348 = vmul.f32 %v340, %v346
      %v349 = vmul.f32 %v341, %v346
      %v350 = vld [vmem:[%s4] sm:$0x3]
      %352 = vset.pattern.permute.xlu0 0
      %353 = vperm.xlu0 %352, %v350
      %v354 = vpop.permute.xlu0 %353
      %v356 = vadd.f32 %v348, %v354
      %v357 = vadd.f32 %v349, %v354
      %v358 = vxor.u32 %v356, 2147483648
      %v359 = vxor.u32 %v357, 2147483648
      %v360 = vmul.f32 %v358, 1.442695
      %v361 = vpow.pop %v360
      %v362 = vmul.f32 %v359, 1.442695
      %v363 = vpow.pop %v362
      %v364 = vadd.f32 %v361, 1.0
      %v365 = vadd.f32 %v363, 1.0
      %v366 = vrcp.pop %v364
      %v367 = vmul.f32 1.0, %v366
      %v368 = vrcp.pop %v365
      %v369 = vmul.f32 1.0, %v368
      %v370 = vmul.f32 %v356, %v367
      %v371 = vmul.f32 %v357, %v369
      %v374 = vcombine.low %v370, %v371
      %v376 = vunpack.c.l.s4 1983009808
      %v377 = vunpack.c.0.s8 %v376
      %v378 = vlaneseq
      %v379 = vshrl.u32 %v378, 7
      %v380 = vsub.s32 %v377, %v379
      %v381 = vrot.slane %v374, %v380
      %383 = vst [vmem:[%s224] sm:$0xf] %v381
      %p384 = scmp.lt.s32.totalorder %s16, 1
      %s385 = scalar_select %p384, %s16, 1
      %s386 = smul.addr %s385, 2
      %s387 = smul.addr %s386, 2
      %s388 = scalar_lea.vmem %s5, %s387
      // Predicated region
      $region41: #{forward.4} parent=39 // pred_check
        %p389 = pneg %p144
      $region42: #{forward.4} parent=39 // pred_check_branch
        %391 = sbr.rel (%p389) target = $region44
      $region43: #{forward.4} parent=39 // pred_region
        _
      $region44: #{forward.4} parent=39 // pred_fallthru
        _
    $region40: #{forward.4} parent=5 // pred_fallthru
      _
    %p392 = scmp.le.s32.totalorder 2, %s11
    // Predicated region
    $region45: #{forward.4} parent=5 // pred_check
      %p393 = pneg %p392
    $region46: #{forward.4} parent=5 // pred_check_branch
      %395 = sbr.rel (%p393) target = $region48
    $region47: #{forward.4} parent=5 // pred_region
      %s396 = ssub.s32 %s11, 2
      // Predicated region
      $region49: #{forward.4} parent=47 // pred_check
        %p397 = pneg %p150
      $region50: #{forward.4} parent=47 // pred_check_branch
        %399 = sbr.rel (%p397) target = $region52
      $region51: #{forward.4} parent=47 // pred_region
        %p400 = scmp.lt.s32.totalorder %s17, 1
        %s401 = scalar_select %p400, %s17, 1
        %s402 = smul.addr %s401, 2
        %s403 = smul.addr %s402, 2
        %s404 = scalar_lea.vmem %s5, %s403
      $region52: #{forward.4} parent=47 // pred_fallthru
        _
    $region48: #{forward.4} parent=5 // pred_fallthru
      _
  $region6: #{forward.4} parent=0 // loop_footer
    %s15 = sadd.s32 1, %s11
  $region7: #{forward.4} parent=0 // loop_footer_branch
    %10 = sbr.rel target = $region3
  $region8: #{forward.4} parent=0 // loop_exit
    _

// kernel: forward.3
$region0: #{forward.3}
  #allocation0 [shape = 'u32[]', space=smem, size = 0x4, offset = 0x4, fixed_abs, tag = 'smem constant byte address 0x4 - core index']
  #allocation1 [shape = 'u32[144,128]{1,0:T(1,128)}', space=vmem, size = 0x12000, scoped, tag = 'internal scratch']
  #allocation2 [shape = 'f32[4,20,20]{2,1,0:T(8,128)}', space=vmem, size = 0xc000, scoped, tag = 'scratch operand']
  %s0 = inlined_call_operand.hbm [shape: f32[2,4,16,16], index: 0, kind: input, shape index: {}]
  %s1 = inlined_call_operand.vmem [shape: f32[25,2,4], index: 1, kind: input, shape index: {}]
  %s2 = inlined_call_operand.vmem [shape: f32[9,10,4], index: 2, kind: input, shape index: {}]
  %s3 = inlined_call_operand.vmem [shape: f32[9,10,4], index: 3, kind: input, shape index: {}]
  %s4 = inlined_call_operand.vmem [shape: f32[2,1], index: 4, kind: input, shape index: {}]
  %s5 = inlined_call_operand.vmem [shape: f32[2,1], index: 5, kind: input, shape index: {}]
  %s6 = inlined_call_operand.vmem [shape: f32[10,1], index: 6, kind: input, shape index: {}]
  %s7 = inlined_call_operand.vmem [shape: f32[10,1], index: 7, kind: input, shape index: {}]
  %s8 = inlined_call_operand.vmem [shape: f32[10,1], index: 8, kind: input, shape index: {}]
  %s9 = inlined_call_operand.vmem [shape: f32[10,1], index: 9, kind: input, shape index: {}]
  %s10 = inlined_call_operand.vmem [shape: f32[2,2,256], index: 10, kind: output, shape index: {0}]
  %s11 = inlined_call_operand.vmem [shape: f32[2,10,256], index: 11, kind: output, shape index: {1}]
  %s12 = inlined_call_operand.vmem [shape: f32[2,10,256], index: 12, kind: output, shape index: {2}]
  %13 = xla_tuple %s10, %s11, %s12
  %s14 = sld [smem:[#allocation0]]
  $region93: #{forward.3} parent=0
    _
  %s16 = ssub.s32 1, %s14
  %s17 = scalar_select 0, %s16, %s14
  $region1: #{forward.3} parent=0
    #allocation3 [shape = 'u8[65536]{0}', space=vmem, size = 0x10000, scoped, tag = 'input window, operand 0']
    #allocation4 [shape = 's32[2]{0}', space=sflag, size = 0x8, scoped, tag = 'scoped memory for forward.3']
    %18 = vsyncpa [#allocation4], 0
    %s19 = scalar_lea.sflag [#allocation4], 1
    %20 = vsyncpa %s19, 0
    loop: start=0, step=1, limit=4
    $region2: #{forward.3} parent=1 // loop_pre_header
      _
    $region3: #{forward.3} parent=1 // loop_header
      %s22 = sphi 0, %s26
      %p23 = scmp.ge.s32.totalorder %s22, 4
      %s32 = sphi 0, %s34
      %s35 = sphi 0, %s32
      %s36 = sphi 0, %s35
      %s52 = sphi 0, %s36
      %s56 = sphi 0, %s56
      %s58 = sphi 0, %s56
      %s59 = sphi 0, %s58
      %s73 = sphi 0, %s59
      %s77 = sphi 0, %s77
      %s79 = sphi 0, %s77
      %s80 = sphi 0, %s79
      %s94 = sphi 0, %s80
      %s98 = sphi 0, %s98
      %s100 = sphi 0, %s98
      %s101 = sphi 0, %s100
      %s115 = sphi 0, %s101
      %s119 = sphi 0, %s119
      %s121 = sphi 0, %s119
      %s122 = sphi 0, %s121
      %s136 = sphi 0, %s122
      %s140 = sphi 0, %s140
      %s142 = sphi 0, %s140
      %s143 = sphi 0, %s142
      %s157 = sphi 0, %s143
      %s161 = sphi 0, %s161
      %s163 = sphi 0, %s161
      %s164 = sphi 0, %s163
      %s178 = sphi 0, %s164
      %s182 = sphi 0, %s182
      %s184 = sphi 0, %s182
      %s185 = sphi 0, %s184
      %s199 = sphi 0, %s185
      %s203 = sphi 0, %s203
      %s205 = sphi 0, %s203
      %s206 = sphi 0, %s205
      %s220 = sphi 0, %s206
      %s224 = sphi 0, %s224
      %s226 = sphi 0, %s224
      %s227 = sphi 0, %s226
      %s241 = sphi 0, %s227
      %s247 = sphi 0, %s249
      %s250 = sphi 0, %s247
      %s251 = sphi 0, %s250
      %s267 = sphi 0, %s251
      %s273 = sphi 0, %s275
      %s276 = sphi 0, %s273
      %s277 = sphi 0, %s276
      %s293 = sphi 0, %s277
      %s299 = sphi 0, %s301
      %s302 = sphi 0, %s299
      %s303 = sphi 0, %s302
      %s319 = sphi 0, %s303
    $region4: #{forward.3} parent=1 // loop_header_branch
      %25 = sbr.rel (%p23) target = $region8
    $region5: #{forward.3} parent=1 // loop_body
      %s27 = ssub.s32 %s22, 1
      %s28 = ssub.s32 %s22, 2
      %s29 = sadd.s32 %s22, 1
      %s30 = ssub.s32 %s22, %s29
      %p31 = scmp.eq.s32.totalorder %s30, 0
      %s33 = sadd.s32 %s32, 1
      %s34 = scalar_select %p31, %s32, %s33
      %p37 = pneg %p31
      %p38 = scmp.eq.s32.totalorder %s22, 1
      %p39 = por %p37, %p38
      %p40 = scmp.ne.s32.totalorder %s32, %s35
      %p41 = scmp.eq.s32.totalorder %s22, 0
      %p42 = por %p40, %p41
      %p43 = scmp.ne.s32.totalorder %s32, %s35
      %p44 = scmp.eq.s32.totalorder %s27, 1
      %p45 = por %p43, %p44
      %p46 = scmp.ne.s32.totalorder %s35, %s36
      %p47 = scmp.eq.s32.totalorder %s27, 0
      %p48 = por %p46, %p47
      %p49 = scmp.ne.s32.totalorder %s35, %s36
      %p50 = scmp.eq.s32.totalorder %s28, 1
      %p51 = por %p49, %p50
      %p53 = scmp.ne.s32.totalorder %s36, %s52
      %p54 = scmp.eq.s32.totalorder %s28, 0
      %p55 = por %p53, %p54
      %s57 = sadd.s32 %s56, 1
      %p60 = scmp.eq.s32.totalorder %s22, 1
      %p61 = scmp.ne.s32.totalorder %s56, %s58
      %p62 = scmp.eq.s32.totalorder %s22, 0
      %p63 = por %p61, %p62
      %p64 = scmp.ne.s32.totalorder %s56, %s58
      %p65 = scmp.eq.s32.totalorder %s27, 1
      %p66 = por %p64, %p65
      %p67 = scmp.ne.s32.totalorder %s58, %s59
      %p68 = scmp.eq.s32.totalorder %s27, 0
      %p69 = por %p67, %p68
      %p70 = scmp.ne.s32.totalorder %s58, %s59
      %p71 = scmp.eq.s32.totalorder %s28, 1
      %p72 = por %p70, %p71
      %p74 = scmp.ne.s32.totalorder %s59, %s73
      %p75 = scmp.eq.s32.totalorder %s28, 0
      %p76 = por %p74, %p75
      %s78 = sadd.s32 %s77, 1
      %p81 = scmp.eq.s32.totalorder %s22, 1
      %p82 = scmp.ne.s32.totalorder %s77, %s79
      %p83 = scmp.eq.s32.totalorder %s22, 0
      %p84 = por %p82, %p83
      %p85 = scmp.ne.s32.totalorder %s77, %s79
      %p86 = scmp.eq.s32.totalorder %s27, 1
      %p87 = por %p85, %p86
      %p88 = scmp.ne.s32.totalorder %s79, %s80
      %p89 = scmp.eq.s32.totalorder %s27, 0
      %p90 = por %p88, %p89
      %p91 = scmp.ne.s32.totalorder %s79, %s80
      %p92 = scmp.eq.s32.totalorder %s28, 1
      %p93 = por %p91, %p92
      %p95 = scmp.ne.s32.totalorder %s80, %s94
      %p96 = scmp.eq.s32.totalorder %s28, 0
      %p97 = por %p95, %p96
      %s99 = sadd.s32 %s98, 1
      %p102 = scmp.eq.s32.totalorder %s22, 1
      %p103 = scmp.ne.s32.totalorder %s98, %s100
      %p104 = scmp.eq.s32.totalorder %s22, 0
      %p105 = por %p103, %p104
      %p106 = scmp.ne.s32.totalorder %s98, %s100
      %p107 = scmp.eq.s32.totalorder %s27, 1
      %p108 = por %p106, %p107
      %p109 = scmp.ne.s32.totalorder %s100, %s101
      %p110 = scmp.eq.s32.totalorder %s27, 0
      %p111 = por %p109, %p110
      %p112 = scmp.ne.s32.totalorder %s100, %s101
      %p113 = scmp.eq.s32.totalorder %s28, 1
      %p114 = por %p112, %p113
      %p116 = scmp.ne.s32.totalorder %s101, %s115
      %p117 = scmp.eq.s32.totalorder %s28, 0
      %p118 = por %p116, %p117
      %s120 = sadd.s32 %s119, 1
      %p123 = scmp.eq.s32.totalorder %s22, 1
      %p124 = scmp.ne.s32.totalorder %s119, %s121
      %p125 = scmp.eq.s32.totalorder %s22, 0
      %p126 = por %p124, %p125
      %p127 = scmp.ne.s32.totalorder %s119, %s121
      %p128 = scmp.eq.s32.totalorder %s27, 1
      %p129 = por %p127, %p128
      %p130 = scmp.ne.s32.totalorder %s121, %s122
      %p131 = scmp.eq.s32.totalorder %s27, 0
      %p132 = por %p130, %p131
      %p133 = scmp.ne.s32.totalorder %s121, %s122
      %p134 = scmp.eq.s32.totalorder %s28, 1
      %p135 = por %p133, %p134
      %p137 = scmp.ne.s32.totalorder %s122, %s136
      %p138 = scmp.eq.s32.totalorder %s28, 0
      %p139 = por %p137, %p138
      %s141 = sadd.s32 %s140, 1
      %p144 = scmp.eq.s32.totalorder %s22, 1
      %p145 = scmp.ne.s32.totalorder %s140, %s142
      %p146 = scmp.eq.s32.totalorder %s22, 0
      %p147 = por %p145, %p146
      %p148 = scmp.ne.s32.totalorder %s140, %s142
      %p149 = scmp.eq.s32.totalorder %s27, 1
      %p150 = por %p148, %p149
      %p151 = scmp.ne.s32.totalorder %s142, %s143
      %p152 = scmp.eq.s32.totalorder %s27, 0
      %p153 = por %p151, %p152
      %p154 = scmp.ne.s32.totalorder %s142, %s143
      %p155 = scmp.eq.s32.totalorder %s28, 1
      %p156 = por %p154, %p155
      %p158 = scmp.ne.s32.totalorder %s143, %s157
      %p159 = scmp.eq.s32.totalorder %s28, 0
      %p160 = por %p158, %p159
      %s162 = sadd.s32 %s161, 1
      %p165 = scmp.eq.s32.totalorder %s22, 1
      %p166 = scmp.ne.s32.totalorder %s161, %s163
      %p167 = scmp.eq.s32.totalorder %s22, 0
      %p168 = por %p166, %p167
      %p169 = scmp.ne.s32.totalorder %s161, %s163
      %p170 = scmp.eq.s32.totalorder %s27, 1
      %p171 = por %p169, %p170
      %p172 = scmp.ne.s32.totalorder %s163, %s164
      %p173 = scmp.eq.s32.totalorder %s27, 0
      %p174 = por %p172, %p173
      %p175 = scmp.ne.s32.totalorder %s163, %s164
      %p176 = scmp.eq.s32.totalorder %s28, 1
      %p177 = por %p175, %p176
      %p179 = scmp.ne.s32.totalorder %s164, %s178
      %p180 = scmp.eq.s32.totalorder %s28, 0
      %p181 = por %p179, %p180
      %s183 = sadd.s32 %s182, 1
      %p186 = scmp.eq.s32.totalorder %s22, 1
      %p187 = scmp.ne.s32.totalorder %s182, %s184
      %p188 = scmp.eq.s32.totalorder %s22, 0
      %p189 = por %p187, %p188
      %p190 = scmp.ne.s32.totalorder %s182, %s184
      %p191 = scmp.eq.s32.totalorder %s27, 1
      %p192 = por %p190, %p191
      %p193 = scmp.ne.s32.totalorder %s184, %s185
      %p194 = scmp.eq.s32.totalorder %s27, 0
      %p195 = por %p193, %p194
      %p196 = scmp.ne.s32.totalorder %s184, %s185
      %p197 = scmp.eq.s32.totalorder %s28, 1
      %p198 = por %p196, %p197
      %p200 = scmp.ne.s32.totalorder %s185, %s199
      %p201 = scmp.eq.s32.totalorder %s28, 0
      %p202 = por %p200, %p201
      %s204 = sadd.s32 %s203, 1
      %p207 = scmp.eq.s32.totalorder %s22, 1
      %p208 = scmp.ne.s32.totalorder %s203, %s205
      %p209 = scmp.eq.s32.totalorder %s22, 0
      %p210 = por %p208, %p209
      %p211 = scmp.ne.s32.totalorder %s203, %s205
      %p212 = scmp.eq.s32.totalorder %s27, 1
      %p213 = por %p211, %p212
      %p214 = scmp.ne.s32.totalorder %s205, %s206
      %p215 = scmp.eq.s32.totalorder %s27, 0
      %p216 = por %p214, %p215
      %p217 = scmp.ne.s32.totalorder %s205, %s206
      %p218 = scmp.eq.s32.totalorder %s28, 1
      %p219 = por %p217, %p218
      %p221 = scmp.ne.s32.totalorder %s206, %s220
      %p222 = scmp.eq.s32.totalorder %s28, 0
      %p223 = por %p221, %p222
      %s225 = sadd.s32 %s224, 1
      %p228 = scmp.eq.s32.totalorder %s22, 1
      %p229 = scmp.ne.s32.totalorder %s224, %s226
      %p230 = scmp.eq.s32.totalorder %s22, 0
      %p231 = por %p229, %p230
      %p232 = scmp.ne.s32.totalorder %s224, %s226
      %p233 = scmp.eq.s32.totalorder %s27, 1
      %p234 = por %p232, %p233
      %p235 = scmp.ne.s32.totalorder %s226, %s227
      %p236 = scmp.eq.s32.totalorder %s27, 0
      %p237 = por %p235, %p236
      %p238 = scmp.ne.s32.totalorder %s226, %s227
      %p239 = scmp.eq.s32.totalorder %s28, 1
      %p240 = por %p238, %p239
      %p242 = scmp.ne.s32.totalorder %s227, %s241
      %p243 = scmp.eq.s32.totalorder %s28, 0
      %p244 = por %p242, %p243
      %s245 = ssub.s32 %s22, %s29
      %p246 = scmp.eq.s32.totalorder %s245, 0
      %s248 = sadd.s32 %s247, 1
      %s249 = scalar_select %p246, %s247, %s248
      %p252 = pneg %p246
      %p253 = scmp.eq.s32.totalorder %s22, 1
      %p254 = por %p252, %p253
      %p255 = scmp.ne.s32.totalorder %s247, %s250
      %p256 = scmp.eq.s32.totalorder %s22, 0
      %p257 = por %p255, %p256
      %p258 = scmp.ne.s32.totalorder %s247, %s250
      %p259 = scmp.eq.s32.totalorder %s27, 1
      %p260 = por %p258, %p259
      %p261 = scmp.ne.s32.totalorder %s250, %s251
      %p262 = scmp.eq.s32.totalorder %s27, 0
      %p263 = por %p261, %p262
      %p264 = scmp.ne.s32.totalorder %s250, %s251
      %p265 = scmp.eq.s32.totalorder %s28, 1
      %p266 = por %p264, %p265
      %p268 = scmp.ne.s32.totalorder %s251, %s267
      %p269 = scmp.eq.s32.totalorder %s28, 0
      %p270 = por %p268, %p269
      %s271 = ssub.s32 %s22, %s29
      %p272 = scmp.eq.s32.totalorder %s271, 0
      %s274 = sadd.s32 %s273, 1
      %s275 = scalar_select %p272, %s273, %s274
      %p278 = pneg %p272
      %p279 = scmp.eq.s32.totalorder %s22, 1
      %p280 = por %p278, %p279
      %p281 = scmp.ne.s32.totalorder %s273, %s276
      %p282 = scmp.eq.s32.totalorder %s22, 0
      %p283 = por %p281, %p282
      %p284 = scmp.ne.s32.totalorder %s273, %s276
      %p285 = scmp.eq.s32.totalorder %s27, 1
      %p286 = por %p284, %p285
      %p287 = scmp.ne.s32.totalorder %s276, %s277
      %p288 = scmp.eq.s32.totalorder %s27, 0
      %p289 = por %p287, %p288
      %p290 = scmp.ne.s32.totalorder %s276, %s277
      %p291 = scmp.eq.s32.totalorder %s28, 1
      %p292 = por %p290, %p291
      %p294 = scmp.ne.s32.totalorder %s277, %s293
      %p295 = scmp.eq.s32.totalorder %s28, 0
      %p296 = por %p294, %p295
      %s297 = ssub.s32 %s22, %s29
      %p298 = scmp.eq.s32.totalorder %s297, 0
      %s300 = sadd.s32 %s299, 1
      %s301 = scalar_select %p298, %s299, %s300
      %p304 = pneg %p298
      %p305 = scmp.eq.s32.totalorder %s22, 1
      %p306 = por %p304, %p305
      %p307 = scmp.ne.s32.totalorder %s299, %s302
      %p308 = scmp.eq.s32.totalorder %s22, 0
      %p309 = por %p307, %p308
      %p310 = scmp.ne.s32.totalorder %s299, %s302
      %p311 = scmp.eq.s32.totalorder %s27, 1
      %p312 = por %p310, %p311
      %p313 = scmp.ne.s32.totalorder %s302, %s303
      %p314 = scmp.eq.s32.totalorder %s27, 0
      %p315 = por %p313, %p314
      %p316 = scmp.ne.s32.totalorder %s302, %s303
      %p317 = scmp.eq.s32.totalorder %s28, 1
      %p318 = por %p316, %p317
      %p320 = scmp.ne.s32.totalorder %s303, %s319
      %p321 = scmp.eq.s32.totalorder %s28, 0
      %p322 = por %p320, %p321
      %p323 = scmp.le.s32.totalorder 1, %s22
      %p324 = scmp.lt.s32.totalorder %s22, 3
      %p325 = pnand %p323, %p324
      %p326 = pneg %p325
      // Predicated region
      $region9: #{forward.3} parent=5 // pred_check
        _
      $region10: #{forward.3} parent=5 // pred_check_branch
        %328 = sbr.rel (%p325) target = $region12
      $region11: #{forward.3} parent=5 // pred_region
        %s329 = ssub.s32 %s22, 1
        // Predicated region
        $region13: #{forward.3} parent=11 // pred_check
          %p330 = pneg %p69
        $region14: #{forward.3} parent=11 // pred_check_branch
          %332 = sbr.rel (%p330) target = $region16
        $region15: #{forward.3} parent=11 // pred_region
          _
        $region16: #{forward.3} parent=11 // pred_fallthru
          _
        // Predicated region
        $region17: #{forward.3} parent=11 // pred_check
          %p333 = pneg %p90
        $region18: #{forward.3} parent=11 // pred_check_branch
          %335 = sbr.rel (%p333) target = $region20
        $region19: #{forward.3} parent=11 // pred_region
          _
        $region20: #{forward.3} parent=11 // pred_fallthru
          _
        // Predicated region
        $region21: #{forward.3} parent=11 // pred_check
          %p336 = pneg %p111
        $region22: #{forward.3} parent=11 // pred_check_branch
          %338 = sbr.rel (%p336) target = $region24
        $region23: #{forward.3} parent=11 // pred_region
          _
        $region24: #{forward.3} parent=11 // pred_fallthru
          _
        // Predicated region
        $region25: #{forward.3} parent=11 // pred_check
          %p339 = pneg %p132
        $region26: #{forward.3} parent=11 // pred_check_branch
          %341 = sbr.rel (%p339) target = $region28
        $region27: #{forward.3} parent=11 // pred_region
          _
        $region28: #{forward.3} parent=11 // pred_fallthru
          _
        // Predicated region
        $region29: #{forward.3} parent=11 // pred_check
          %p342 = pneg %p153
        $region30: #{forward.3} parent=11 // pred_check_branch
          %344 = sbr.rel (%p342) target = $region32
        $region31: #{forward.3} parent=11 // pred_region
          _
        $region32: #{forward.3} parent=11 // pred_fallthru
          _
        // Predicated region
        $region33: #{forward.3} parent=11 // pred_check
          %p345 = pneg %p174
        $region34: #{forward.3} parent=11 // pred_check_branch
          %347 = sbr.rel (%p345) target = $region36
        $region35: #{forward.3} parent=11 // pred_region
          _
        $region36: #{forward.3} parent=11 // pred_fallthru
          _
        // Predicated region
        $region37: #{forward.3} parent=11 // pred_check
          %p348 = pneg %p195
        $region38: #{forward.3} parent=11 // pred_check_branch
          %350 = sbr.rel (%p348) target = $region40
        $region39: #{forward.3} parent=11 // pred_region
          _
        $region40: #{forward.3} parent=11 // pred_fallthru
          _
        // Predicated region
        $region41: #{forward.3} parent=11 // pred_check
          %p351 = pneg %p216
        $region42: #{forward.3} parent=11 // pred_check_branch
          %353 = sbr.rel (%p351) target = $region44
        $region43: #{forward.3} parent=11 // pred_region
          _
        $region44: #{forward.3} parent=11 // pred_fallthru
          _
        // Predicated region
        $region45: #{forward.3} parent=11 // pred_check
          %p354 = pneg %p237
        $region46: #{forward.3} parent=11 // pred_check_branch
          %356 = sbr.rel (%p354) target = $region48
        $region47: #{forward.3} parent=11 // pred_region
          _
        $region48: #{forward.3} parent=11 // pred_fallthru
          _
      $region12: #{forward.3} parent=5 // pred_fallthru
        _
      %p357 = scmp.lt.s32.totalorder %s22, 2
      // Predicated region
      $region49: #{forward.3} parent=5 // pred_check
        %p358 = pneg %p357
      $region50: #{forward.3} parent=5 // pred_check_branch
        %360 = sbr.rel (%p358) target = $region52
      $region51: #{forward.3} parent=5 // pred_region
        // Predicated region
        $region53: #{forward.3} parent=51 // pred_check
          %p361 = pneg %p42
        $region54: #{forward.3} parent=51 // pred_check_branch
          %363 = sbr.rel (%p361) target = $region56
        $region55: #{forward.3} parent=51 // pred_region
          %s364 = sand.u32 %s32, 1
          %s365 = scalar_lea.sflag [#allocation4], %s364
          %s366 = sand.u32 %s32, 1
          %s367 = smul.addr %s366, 64
          %s368 = scalar_lea.vmem [#allocation3], %s367
          %s370 = ssub.s32 1024, 1024
          %371 = vsyncadd %s365, %s370
          %s372 = smul.addr %s22, 8
          %s373 = smul.addr %s372, 128
          %s374 = scalar_lea.hbm %s0, %s373
          %s375 = sshll.u32 %s368, 4
          %s376 = int_to_ptr.vmem [resolvable:$true] %s375
          %381 = dma.hbm_to_vmem [thread:$0]  %s374, 1024, %s376, %s365, 128, 128, 8
        $region56: #{forward.3} parent=51 // pred_fallthru
          _
      $region52: #{forward.3} parent=5 // pred_fallthru
        _
      %p382 = scmp.le.s32.totalorder 1, %s22
      %p383 = scmp.lt.s32.totalorder %s22, 3
      %p384 = pnand %p382, %p383
      %p385 = pneg %p384
      // Predicated region
      $region57: #{forward.3} parent=5 // pred_check
        _
      $region58: #{forward.3} parent=5 // pred_check_branch
        %387 = sbr.rel (%p384) target = $region60
      $region59: #{forward.3} parent=5 // pred_region
        %s388 = ssub.s32 %s22, 1
        %s389 = sand.u32 %s35, 1
        %s390 = scalar_lea.sflag [#allocation4], %s389
        %s391 = sand.u32 %s35, 1
        %s392 = smul.addr %s391, 64
        %s393 = scalar_lea.vmem [#allocation3], %s392
        // Predicated region
        $region61: #{forward.3} parent=59 // pred_check
          %p394 = pneg %p48
        $region62: #{forward.3} parent=59 // pred_check_branch
          %396 = sbr.rel (%p394) target = $region64
        $region63: #{forward.3} parent=59 // pred_region
          %397 = dma.done %s390, 1024
        $region64: #{forward.3} parent=59 // pred_fallthru
          _
        %s398 = sand.u32 %s35, 1
        %s399 = scalar_lea.sflag [#allocation4], %s398
        %s400 = sand.u32 %s35, 1
        %s401 = smul.addr %s400, 64
        %s402 = scalar_lea.vmem [#allocation3], %s401
        %p403 = pneg %p48
        %p404 = pneg %p45
        %p405 = pneg %p69
        %p406 = pneg %p66
        %p407 = pneg %p90
        %p408 = pneg %p87
        %p409 = pneg %p111
        %p410 = pneg %p108
        %p411 = pneg %p132
        %p412 = pneg %p129
        %p413 = pneg %p153
        %p414 = pneg %p150
        %p415 = pneg %p174
        %p416 = pneg %p171
        %p417 = pneg %p195
        %p418 = pneg %p192
        %p419 = pneg %p216
        %p420 = pneg %p213
        %p421 = pneg %p237
        %p422 = pneg %p234
        %p423 = pneg %p263
        %p424 = pneg %p260
        %p425 = scmp.lt.s32.totalorder %s27, 1
        %s426 = scalar_select %p425, %s27, 1
        %s427 = smul.addr %s426, 2
        %s428 = smul.addr %s427, 2
        %s429 = scalar_lea.vmem %s10, %s428
        %p430 = pneg %p289
        %p431 = pneg %p286
        %p432 = scmp.lt.s32.totalorder %s27, 1
        %s433 = scalar_select %p432, %s27, 1
        %s434 = smul.addr %s433, 4
        %s435 = smul.addr %s434, 8
        %s436 = scalar_lea.vmem %s11, %s435
        %p437 = pneg %p315
        %p438 = pneg %p312
        %p439 = scmp.lt.s32.totalorder %s27, 1
        %s440 = scalar_select %p439, %s27, 1
        %s441 = smul.addr %s440, 4
        %s442 = smul.addr %s441, 8
        %s443 = scalar_lea.vmem %s12, %s442
        %p444 = scmp.lt.s32.totalorder %s27, 1
        %s445 = scalar_select %p444, %s27, 1
        %s446 = smul.addr %s445, 2
        %s447 = smul.addr %s446, 2
        %s448 = scalar_lea.vmem %s10, %s447
        %p449 = scmp.lt.s32.totalorder %s27, 1
        %s450 = scalar_select %p449, %s27, 1
        %s451 = smul.addr %s450, 4
        %s452 = smul.addr %s451, 8
        %s453 = scalar_lea.vmem %s11, %s452
        %p454 = scmp.lt.s32.totalorder %s27, 1
        %s455 = scalar_select %p454, %s27, 1
        %s456 = smul.addr %s455, 4
        %s457 = smul.addr %s456, 8
        %s458 = scalar_lea.vmem %s12, %s457
        %vm459 = vcmask 162816
        %460 = vst.msk [vmem:[#allocation2] sm:$0xff] %vm459, 0.0
        %461 = vst.msk [vmem:[#allocation2 + $0x8] sm:$0xff] %vm459, 0.0
        %vm462 = vcmask 158720
        %463 = vst.msk [vmem:[#allocation2 + $0x10] sm:$0xf] %vm462, 0.0
        %464 = vst.msk [vmem:[#allocation2 + $0x18] sm:$0xff] %vm459, 0.0
        %465 = vst.msk [vmem:[#allocation2 + $0x20] sm:$0xff] %vm459, 0.0
        %466 = vst.msk [vmem:[#allocation2 + $0x28] sm:$0xf] %vm462, 0.0
        %467 = vst.msk [vmem:[#allocation2 + $0x30] sm:$0xff] %vm459, 0.0
        %468 = vst.msk [vmem:[#allocation2 + $0x38] sm:$0xff] %vm459, 0.0
        %469 = vst.msk [vmem:[#allocation2 + $0x40] sm:$0xf] %vm462, 0.0
        %470 = vst.msk [vmem:[#allocation2 + $0x48] sm:$0xff] %vm459, 0.0
        %471 = vst.msk [vmem:[#allocation2 + $0x50] sm:$0xff] %vm459, 0.0
        %472 = vst.msk [vmem:[#allocation2 + $0x58] sm:$0xf] %vm462, 0.0
        %v473 = vld [vmem:[%s393] sm:$0xff]
        %v474 = vld [vmem:[%s393 + $0x8] sm:$0xff]
        %v475 = vld [vmem:[%s393 + $0x10] sm:$0xff]
        %v476 = vld [vmem:[%s393 + $0x18] sm:$0xff]
        %v477 = vld [vmem:[%s393 + $0x20] sm:$0xff]
        %v478 = vld [vmem:[%s393 + $0x28] sm:$0xff]
        %v479 = vld [vmem:[%s393 + $0x30] sm:$0xff]
        %v480 = vld [vmem:[%s393 + $0x38] sm:$0xff]
        %489 = vrot.lane.b32.xlu0 %v473, 2
        %v490 = vpop.permute.xlu0 %489
        %491 = vrot.lane.b32.xlu0 %v474, 2
        %v492 = vpop.permute.xlu0 %491
        %493 = vrot.lane.b32.xlu0 %v475, 2
        %v494 = vpop.permute.xlu0 %493
        %495 = vrot.lane.b32.xlu0 %v476, 2
        %v496 = vpop.permute.xlu0 %495
        %497 = vrot.lane.b32.xlu0 %v477, 2
        %v498 = vpop.permute.xlu0 %497
        %499 = vrot.lane.b32.xlu0 %v478, 2
        %v500 = vpop.permute.xlu0 %499
        %501 = vrot.lane.b32.xlu0 %v479, 2
        %v502 = vpop.permute.xlu0 %501
        %503 = vrot.lane.b32.xlu0 %v480, 2
        %v504 = vpop.permute.xlu0 %503
        %vm513 = vcmask 146448
        %514 = vst.msk [vmem:[#allocation2 + $0x2] sm:$0xff] %vm513, %v490
        %515 = vst.msk [vmem:[#allocation2 + $0xa] sm:$0xff] %vm513, %v492
        %516 = vst.msk [vmem:[#allocation2 + $0x1a] sm:$0xff] %vm513, %v494
        %517 = vst.msk [vmem:[#allocation2 + $0x22] sm:$0xff] %vm513, %v496
        %518 = vst.msk [vmem:[#allocation2 + $0x32] sm:$0xff] %vm513, %v498
        %519 = vst.msk [vmem:[#allocation2 + $0x3a] sm:$0xff] %vm513, %v500
        %520 = vst.msk [vmem:[#allocation2 + $0x4a] sm:$0xff] %vm513, %v502
        %521 = vst.msk [vmem:[#allocation2 + $0x52] sm:$0xff] %vm513, %v504
        %v522 = vld [vmem:[%s1] sm:$0x3]
        %v523 = vld [vmem:[#allocation2] sm:$0xff]
        %v524 = vld [vmem:[#allocation2 + $0x8] sm:$0xff]
        %v525 = vld [vmem:[#allocation2 + $0x18] sm:$0xff]
        %v526 = vld [vmem:[#allocation2 + $0x20] sm:$0xff]
        %v527 = vld [vmem:[#allocation2 + $0x30] sm:$0xff]
        %v528 = vld [vmem:[#allocation2 + $0x38] sm:$0xff]
        %v529 = vld [vmem:[#allocation2 + $0x48] sm:$0xff]
        %v530 = vld [vmem:[#allocation2 + $0x50] sm:$0xff]
        %v531 = vcombine.low %v523, %v527
        %v532 = vcombine.high %v523, %v527
        %v534 = vunpack.c.l.s4 1983009808
        %v535 = vunpack.c.0.s8 %v534
        %v536 = vlaneseq
        %v537 = vshrl.u32 %v536, 7
        %v538 = vsub.s32 %v535, %v537
        %v539 = vrot.slane %v531, %v538
        %v541 = vunpack.c.l.s4 1983009808
        %v542 = vunpack.c.0.s8 %v541
        %v543 = vlaneseq
        %v544 = vshrl.u32 %v543, 7
        %v545 = vsub.s32 %v542, %v544
        %v546 = vrot.slane %v532, %v545
        %v547 = vcombine.low %v525, %v529
        %v548 = vcombine.high %v525, %v529
        %v550 = vunpack.c.l.s4 1983009808
        %v551 = vunpack.c.0.s8 %v550
        %v552 = vlaneseq
        %v553 = vshrl.u32 %v552, 7
        %v554 = vsub.s32 %v551, %v553
        %v555 = vrot.slane %v547, %v554
        %v557 = vunpack.c.l.s4 1983009808
        %v558 = vunpack.c.0.s8 %v557
        %v559 = vlaneseq
        %v560 = vshrl.u32 %v559, 7
        %v561 = vsub.s32 %v558, %v560
        %v562 = vrot.slane %v548, %v561
        %v563 = vcombine.low %v539, %v555
        %v564 = vcombine.high %v539, %v555
        %v566 = vunpack.c.l.s4 1934713408
        %v567 = vunpack.c.0.s8 %v566
        %v568 = vlaneseq
        %v569 = vshrl.u32 %v568, 7
        %v570 = vsub.s32 %v567, %v569
        %v571 = vrot.slane %v563, %v570
        %v573 = vunpack.c.l.s4 1934713408
        %v574 = vunpack.c.0.s8 %v573
        %v575 = vlaneseq
        %v576 = vshrl.u32 %v575, 7
        %v577 = vsub.s32 %v574, %v576
        %v578 = vrot.slane %v564, %v577
        %v579 = vcombine.low %v546, %v562
        %v580 = vcombine.high %v546, %v562
        %v582 = vunpack.c.l.s4 1934713408
        %v583 = vunpack.c.0.s8 %v582
        %v584 = vlaneseq
        %v585 = vshrl.u32 %v584, 7
        %v586 = vsub.s32 %v583, %v585
        %v587 = vrot.slane %v579, %v586
        %v589 = vunpack.c.l.s4 1934713408
        %v590 = vunpack.c.0.s8 %v589
        %v591 = vlaneseq
        %v592 = vshrl.u32 %v591, 7
        %v593 = vsub.s32 %v590, %v592
        %v594 = vrot.slane %v580, %v593
        %v595 = vcombine.high %v571, 0.0
        %v596 = vcombine.high %v578, 0.0
        %v597 = vcombine.high %v587, 0.0
        %v598 = vcombine.high %v594, 0.0
        %v599 = vcombine.low %v524, %v528
        %v600 = vcombine.high %v524, %v528
        %v602 = vunpack.c.l.s4 1983009808
        %v603 = vunpack.c.0.s8 %v602
        %v604 = vlaneseq
        %v605 = vshrl.u32 %v604, 7
        %v606 = vsub.s32 %v603, %v605
        %v607 = vrot.slane %v599, %v606
        %v609 = vunpack.c.l.s4 1983009808
        %v610 = vunpack.c.0.s8 %v609
        %v611 = vlaneseq
        %v612 = vshrl.u32 %v611, 7
        %v613 = vsub.s32 %v610, %v612
        %v614 = vrot.slane %v600, %v613
        %v615 = vcombine.low %v526, %v530
        %v616 = vcombine.high %v526, %v530
        %v618 = vunpack.c.l.s4 1983009808
        %v619 = vunpack.c.0.s8 %v618
        %v620 = vlaneseq
        %v621 = vshrl.u32 %v620, 7
        %v622 = vsub.s32 %v619, %v621
        %v623 = vrot.slane %v615, %v622
        %v625 = vunpack.c.l.s4 1983009808
        %v626 = vunpack.c.0.s8 %v625
        %v627 = vlaneseq
        %v628 = vshrl.u32 %v627, 7
        %v629 = vsub.s32 %v626, %v628
        %v630 = vrot.slane %v616, %v629
        %v631 = vcombine.low %v607, %v623
        %v632 = vcombine.high %v607, %v623
        %v634 = vunpack.c.l.s4 1934713408
        %v635 = vunpack.c.0.s8 %v634
        %v636 = vlaneseq
        %v637 = vshrl.u32 %v636, 7
        %v638 = vsub.s32 %v635, %v637
        %v639 = vrot.slane %v631, %v638
        %v641 = vunpack.c.l.s4 1934713408
        %v642 = vunpack.c.0.s8 %v641
        %v643 = vlaneseq
        %v644 = vshrl.u32 %v643, 7
        %v645 = vsub.s32 %v642, %v644
        %v646 = vrot.slane %v632, %v645
        %v647 = vcombine.low %v614, %v630
        %v648 = vcombine.high %v614, %v630
        %v650 = vunpack.c.l.s4 1934713408
        %v651 = vunpack.c.0.s8 %v650
        %v652 = vlaneseq
        %v653 = vshrl.u32 %v652, 7
        %v654 = vsub.s32 %v651, %v653
        %v655 = vrot.slane %v647, %v654
        %v657 = vunpack.c.l.s4 1934713408
        %v658 = vunpack.c.0.s8 %v657
        %v659 = vlaneseq
        %v660 = vshrl.u32 %v659, 7
        %v661 = vsub.s32 %v658, %v660
        %v662 = vrot.slane %v648, %v661
        %v663 = vcombine.high %v639, 0.0
        %v664 = vcombine.high %v646, 0.0
        %v665 = vcombine.high %v655, 0.0
        %v666 = vcombine.high %v662, 0.0
        %668 = vrot.lane.b32.xlu0 %v595, 16
        %v669 = vpop.permute.xlu0 %668
        %672 = vrot.lane.b32.xlu0 %v578, 32
        %v673 = vpop.permute.xlu0 %672
        %676 = vrot.lane.b32.xlu0 %v596, 48
        %v677 = vpop.permute.xlu0 %676
        %680 = vrot.lane.b32.xlu0 %v587, 64
        %v681 = vpop.permute.xlu0 %680
        %684 = vrot.lane.b32.xlu0 %v597, 80
        %v685 = vpop.permute.xlu0 %684
        %688 = vrot.lane.b32.xlu0 %v594, 96
        %v689 = vpop.permute.xlu0 %688
        %692 = vrot.lane.b32.xlu0 %v598, 112
        %v693 = vpop.permute.xlu0 %692
        %696 = vrot.lane.b32.xlu0 %v663, 16
        %v697 = vpop.permute.xlu0 %696
        %700 = vrot.lane.b32.xlu0 %v646, 32
        %v701 = vpop.permute.xlu0 %700
        %704 = vrot.lane.b32.xlu0 %v664, 48
        %v705 = vpop.permute.xlu0 %704
        %708 = vrot.lane.b32.xlu0 %v655, 64
        %v709 = vpop.permute.xlu0 %708
        %712 = vrot.lane.b32.xlu0 %v665, 80
        %v713 = vpop.permute.xlu0 %712
        %716 = vrot.lane.b32.xlu0 %v662, 96
        %v717 = vpop.permute.xlu0 %716
        %720 = vrot.lane.b32.xlu0 %v666, 112
        %v721 = vpop.permute.xlu0 %720
        %vm723 = vcmask 130048
        %v724 = vsel %vm723, %v571, %v669
        %vm725 = vcmask 261120
        %v726 = vsel %vm725, %v724, %v673
        %vm727 = vcmask 392192
        %v728 = vsel %vm727, %v726, %v677
        %vm729 = vcmask 523264
        %v730 = vsel %vm729, %v728, %v681
        %vm731 = vcmask 654336
        %v732 = vsel %vm731, %v730, %v685
        %vm733 = vcmask 785408
        %v734 = vsel %vm733, %v732, %v689
        %vm735 = vcmask 916480
        %v736 = vsel %vm735, %v734, %v693
        %v737 = vsel %vm723, %v639, %v697
        %v738 = vsel %vm725, %v737, %v701
        %v739 = vsel %vm727, %v738, %v705
        %v740 = vsel %vm729, %v739, %v709
        %v741 = vsel %vm731, %v740, %v713
        %v742 = vsel %vm733, %v741, %v717
        %v743 = vsel %vm735, %v742, %v721
        %s744 = scalar_lea.vmem %s1, 2
        %v745 = vld [vmem:[%s744] sm:$0x3]
        %754 = vrot.lane.b32.xlu0 %v523, 127
        %v755 = vpop.permute.xlu0 %754
        %756 = vrot.lane.b32.xlu0 %v524, 127
        %v757 = vpop.permute.xlu0 %756
        %758 = vrot.lane.b32.xlu0 %v525, 127
        %v759 = vpop.permute.xlu0 %758
        %760 = vrot.lane.b32.xlu0 %v526, 127
        %v761 = vpop.permute.xlu0 %760
        %762 = vrot.lane.b32.xlu0 %v527, 127
        %v763 = vpop.permute.xlu0 %762
        %764 = vrot.lane.b32.xlu0 %v528, 127
        %v765 = vpop.permute.xlu0 %764
        %766 = vrot.lane.b32.xlu0 %v529, 127
        %v767 = vpop.permute.xlu0 %766
        %768 = vrot.lane.b32.xlu0 %v530, 127
        %v769 = vpop.permute.xlu0 %768
        %v778 = vcombine.low %v755, %v763
        %v779 = vcombine.high %v755, %v763
        %v781 = vunpack.c.l.s4 1983009808
        %v782 = vunpack.c.0.s8 %v781
        %v783 = vlaneseq
        %v784 = vshrl.u32 %v783, 7
        %v785 = vsub.s32 %v782, %v784
        %v786 = vrot.slane %v778, %v785
        %v788 = vunpack.c.l.s4 1983009808
        %v789 = vunpack.c.0.s8 %v788
        %v790 = vlaneseq
        %v791 = vshrl.u32 %v790, 7
        %v792 = vsub.s32 %v789, %v791
        %v793 = vrot.slane %v779, %v792
        %v794 = vcombine.low %v759, %v767
        %v795 = vcombine.high %v759, %v767
        %v797 = vunpack.c.l.s4 1983009808
        %v798 = vunpack.c.0.s8 %v797
        %v799 = vlaneseq
        %v800 = vshrl.u32 %v799, 7
        %v801 = vsub.s32 %v798, %v800
        %v802 = vrot.slane %v794, %v801
        %v804 = vunpack.c.l.s4 1983009808
        %v805 = vunpack.c.0.s8 %v804
        %v806 = vlaneseq
        %v807 = vshrl.u32 %v806, 7
        %v808 = vsub.s32 %v805, %v807
        %v809 = vrot.slane %v795, %v808
        %v810 = vcombine.low %v786, %v802
        %v811 = vcombine.high %v786, %v802
        %v813 = vunpack.c.l.s4 1934713408
        %v814 = vunpack.c.0.s8 %v813
        %v815 = vlaneseq
        %v816 = vshrl.u32 %v815, 7
        %v817 = vsub.s32 %v814, %v816
        %v818 = vrot.slane %v810, %v817
        %v820 = vunpack.c.l.s4 1934713408
        %v821 = vunpack.c.0.s8 %v820
        %v822 = vlaneseq
        %v823 = vshrl.u32 %v822, 7
        %v824 = vsub.s32 %v821, %v823
        %v825 = vrot.slane %v811, %v824
        %v826 = vcombine.low %v793, %v809
        %v827 = vcombine.high %v793, %v809
        %v829 = vunpack.c.l.s4 1934713408
        %v830 = vunpack.c.0.s8 %v829
        %v831 = vlaneseq
        %v832 = vshrl.u32 %v831, 7
        %v833 = vsub.s32 %v830, %v832
        %v834 = vrot.slane %v826, %v833
        %v836 = vunpack.c.l.s4 1934713408
        %v837 = vunpack.c.0.s8 %v836
        %v838 = vlaneseq
        %v839 = vshrl.u32 %v838, 7
        %v840 = vsub.s32 %v837, %v839
        %v841 = vrot.slane %v827, %v840
        %v842 = vcombine.high %v818, 0.0
        %v843 = vcombine.high %v825, 0.0
        %v844 = vcombine.high %v834, 0.0
        %v845 = vcombine.high %v841, 0.0
        %v846 = vcombine.low %v757, %v765
        %v847 = vcombine.high %v757, %v765
        %v849 = vunpack.c.l.s4 1983009808
        %v850 = vunpack.c.0.s8 %v849
        %v851 = vlaneseq
        %v852 = vshrl.u32 %v851, 7
        %v853 = vsub.s32 %v850, %v852
        %v854 = vrot.slane %v846, %v853
        %v856 = vunpack.c.l.s4 1983009808
        %v857 = vunpack.c.0.s8 %v856
        %v858 = vlaneseq
        %v859 = vshrl.u32 %v858, 7
        %v860 = vsub.s32 %v857, %v859
        %v861 = vrot.slane %v847, %v860
        %v862 = vcombine.low %v761, %v769
        %v863 = vcombine.high %v761, %v769
        %v865 = vunpack.c.l.s4 1983009808
        %v866 = vunpack.c.0.s8 %v865
        %v867 = vlaneseq
        %v868 = vshrl.u32 %v867, 7
        %v869 = vsub.s32 %v866, %v868
        %v870 = vrot.slane %v862, %v869
        %v872 = vunpack.c.l.s4 1983009808
        %v873 = vunpack.c.0.s8 %v872
        %v874 = vlaneseq
        %v875 = vshrl.u32 %v874, 7
        %v876 = vsub.s32 %v873, %v875
        %v877 = vrot.slane %v863, %v876
        %v878 = vcombine.low %v854, %v870
        %v879 = vcombine.high %v854, %v870
        %v881 = vunpack.c.l.s4 1934713408
        %v882 = vunpack.c.0.s8 %v881
        %v883 = vlaneseq
        %v884 = vshrl.u32 %v883, 7
        %v885 = vsub.s32 %v882, %v884
        %v886 = vrot.slane %v878, %v885
        %v888 = vunpack.c.l.s4 1934713408
        %v889 = vunpack.c.0.s8 %v888
        %v890 = vlaneseq
        %v891 = vshrl.u32 %v890, 7
        %v892 = vsub.s32 %v889, %v891
        %v893 = vrot.slane %v879, %v892
        %v894 = vcombine.low %v861, %v877
        %v895 = vcombine.high %v861, %v877
        %v897 = vunpack.c.l.s4 1934713408
        %v898 = vunpack.c.0.s8 %v897
        %v899 = vlaneseq
        %v900 = vshrl.u32 %v899, 7
        %v901 = vsub.s32 %v898, %v900
        %v902 = vrot.slane %v894, %v901
        %v904 = vunpack.c.l.s4 1934713408
        %v905 = vunpack.c.0.s8 %v904
        %v906 = vlaneseq
        %v907 = vshrl.u32 %v906, 7
        %v908 = vsub.s32 %v905, %v907
        %v909 = vrot.slane %v895, %v908
        %v910 = vcombine.high %v886, 0.0
        %v911 = vcombine.high %v893, 0.0
        %v912 = vcombine.high %v902, 0.0
        %v913 = vcombine.high %v909, 0.0
        %915 = vrot.lane.b32.xlu0 %v842, 16
        %v916 = vpop.permute.xlu0 %915
        %919 = vrot.lane.b32.xlu0 %v825, 32
        %v920 = vpop.permute.xlu0 %919
        %923 = vrot.lane.b32.xlu0 %v843, 48
        %v924 = vpop.permute.xlu0 %923
        %927 = vrot.lane.b32.xlu0 %v834, 64
        %v928 = vpop.permute.xlu0 %927
        %931 = vrot.lane.b32.xlu0 %v844, 80
        %v932 = vpop.permute.xlu0 %931
        %935 = vrot.lane.b32.xlu0 %v841, 96
        %v936 = vpop.permute.xlu0 %935
        %939 = vrot.lane.b32.xlu0 %v845, 112
        %v940 = vpop.permute.xlu0 %939
        %943 = vrot.lane.b32.xlu0 %v910, 16
        %v944 = vpop.permute.xlu0 %943
        %947 = vrot.lane.b32.xlu0 %v893, 32
        %v948 = vpop.permute.xlu0 %947
        %951 = vrot.lane.b32.xlu0 %v911, 48
        %v952 = vpop.permute.xlu0 %951
        %955 = vrot.lane.b32.xlu0 %v902, 64
        %v956 = vpop.permute.xlu0 %955
        %959 = vrot.lane.b32.xlu0 %v912, 80
        %v960 = vpop.permute.xlu0 %959
        %963 = vrot.lane.b32.xlu0 %v909, 96
        %v964 = vpop.permute.xlu0 %963
        %967 = vrot.lane.b32.xlu0 %v913, 112
        %v968 = vpop.permute.xlu0 %967
        %v970 = vsel %vm723, %v818, %v916
        %v971 = vsel %vm725, %v970, %v920
        %v972 = vsel %vm727, %v971, %v924
        %v973 = vsel %vm729, %v972, %v928
        %v974 = vsel %vm731, %v973, %v932
        %v975 = vsel %vm733, %v974, %v936
        %v976 = vsel %vm735, %v975, %v940
        %v977 = vsel %vm723, %v886, %v944
        %v978 = vsel %vm725, %v977, %v948
        %v979 = vsel %vm727, %v978, %v952
        %v980 = vsel %vm729, %v979, %v956
        %v981 = vsel %vm731, %v980, %v960
        %v982 = vsel %vm733, %v981, %v964
        %v983 = vsel %vm735, %v982, %v968
        %vm984 = vcmask 31744
        %v986 = vsel %vm984, %v745, 0
        %vm988 = vcmask 1043456
        %v990 = vsel %vm988, %v976, 0
        %v993 = vsel %vm988, %v983, 0
        %995 = vmatprep.subr.mxu0 %v993
        %996 = vmatpush1.msra.mxu0 %v990
        %997 = vmatprep.subr.mxu0 0.0
        %998 = vmatpush1.msra.mxu0 0.0
        %999 = vmatprep.subr.mxu0 0.0
        %1000 = vmatpush1.msra.mxu0 0.0
        %1001 = vmatprep.subr.mxu0 0.0
        %1002 = vmatpush1.msra.mxu0 0.0
        %1003 = vmatprep.subr.mxu0 0.0
        %1004 = vmatpush1.msra.mxu0 0.0
        %1005 = vmatprep.subr.mxu0 0.0
        %1006 = vmatpush1.msra.mxu0 0.0
        %1007 = vmatprep.subr.mxu0 0.0
        %1008 = vmatpush1.msra.mxu0 0.0
        %1009 = vmatprep.subr.mxu0 0.0
        %1010 = vmatpush1.msra.mxu0 0.0
        %1011 = vmatprep.subr.mxu0 0.0
        %1012 = vmatpush1.msra.mxu0 0.0
        %1013 = vmatprep.subr.mxu0 0.0
        %1014 = vmatpush1.msra.mxu0 0.0
        %1015 = vmatprep.subr.mxu0 0.0
        %1016 = vmatpush1.msra.mxu0 0.0
        %1017 = vmatprep.subr.mxu0 0.0
        %1018 = vmatpush1.msra.mxu0 0.0
        %1019 = vmatprep.subr.mxu0 0.0
        %1020 = vmatpush1.msra.mxu0 0.0
        %1021 = vmatprep.subr.mxu0 0.0
        %1022 = vmatpush1.msra.mxu0 0.0
        %1023 = vmatprep.subr.mxu0 0.0
        %1024 = vmatpush1.msra.mxu0 0.0
        %1025 = vmatprep.subr.mxu0 0.0
        %1026 = vmatpush1.msra.mxu0 0.0
        %1027 = vmatprep.subr.mxu0 0.0
        %1028 = vmatpush1.msra.mxu0 0.0
        %1029 = vmatprep.subr.mxu0 0.0
        %1030 = vmatpush1.msra.mxu0 0.0
        %1031 = vmatprep.subr.mxu0 0.0
        %1032 = vmatpush1.msra.mxu0 0.0
        %1033 = vmatprep.subr.mxu0 0.0
        %1034 = vmatpush1.msra.mxu0 0.0
        %1035 = vmatprep.subr.mxu0 0.0
        %1036 = vmatpush1.msra.mxu0 0.0
        %1037 = vmatprep.subr.mxu0 0.0
        %1038 = vmatpush1.msra.mxu0 0.0
        %1039 = vmatprep.subr.mxu0 0.0
        %1040 = vmatpush1.msra.mxu0 0.0
        %1041 = vmatprep.subr.mxu0 0.0
        %1042 = vmatpush1.msra.mxu0 0.0
        %1043 = vmatprep.subr.mxu0 0.0
        %1044 = vmatpush1.msra.mxu0 0.0
        %1045 = vmatprep.subr.mxu0 0.0
        %1046 = vmatpush1.msra.mxu0 0.0
        %1047 = vmatprep.subr.mxu0 0.0
        %1048 = vmatpush1.msra.mxu0 0.0
        %1049 = vmatprep.subr.mxu0 0.0
        %1050 = vmatpush1.msra.mxu0 0.0
        %1051 = vmatprep.subr.mxu0 0.0
        %1052 = vmatpush1.msra.mxu0 0.0
        %1053 = vmatprep.subr.mxu0 0.0
        %1054 = vmatpush1.msra.mxu0 0.0
        %1055 = vmatprep.subr.mxu0 0.0
        %1056 = vmatpush1.msra.mxu0 0.0
        %1057 = vmatprep.subr.mxu0 0.0
        %1058 = vmatpush1.msra.mxu0 0.0
        %1059 = vmatprep.mubr.f32.mxu0 0.0
        %1060 = vmatmul.mubr.f32.gmra.mrb[0].mxu0 %v986
        %v1061 = vpop.f32.mrb[0].mxu0
        %v1062 = vadd.f32 0.0, %v1061
        %v1063 = vpop.f32.mrb[0].mxu0
        %v1064 = vadd.f32 0.0, %v1063
        %1065 = vdwg.mxu0
        %v1067 = vsel %vm984, %v522, 0
        %v1070 = vsel %vm988, %v736, 0
        %v1073 = vsel %vm988, %v743, 0
        %1075 = vmatprep.subr.mxu0 %v1073
        %1076 = vmatpush1.msra.mxu0 %v1070
        %1077 = vmatprep.subr.mxu0 0.0
        %1078 = vmatpush1.msra.mxu0 0.0
        %1079 = vmatprep.subr.mxu0 0.0
        %1080 = vmatpush1.msra.mxu0 0.0
        %1081 = vmatprep.subr.mxu0 0.0
        %1082 = vmatpush1.msra.mxu0 0.0
        %1083 = vmatprep.subr.mxu0 0.0
        %1084 = vmatpush1.msra.mxu0 0.0
        %1085 = vmatprep.subr.mxu0 0.0
        %1086 = vmatpush1.msra.mxu0 0.0
        %1087 = vmatprep.subr.mxu0 0.0
        %1088 = vmatpush1.msra.mxu0 0.0
        %1089 = vmatprep.subr.mxu0 0.0
        %1090 = vmatpush1.msra.mxu0 0.0
        %1091 = vmatprep.subr.mxu0 0.0
        %1092 = vmatpush1.msra.mxu0 0.0
        %1093 = vmatprep.subr.mxu0 0.0
        %1094 = vmatpush1.msra.mxu0 0.0
        %1095 = vmatprep.subr.mxu0 0.0
        %1096 = vmatpush1.msra.mxu0 0.0
        %1097 = vmatprep.subr.mxu0 0.0
        %1098 = vmatpush1.msra.mxu0 0.0
        %1099 = vmatprep.subr.mxu0 0.0
        %1100 = vmatpush1.msra.mxu0 0.0
        %1101 = vmatprep.subr.mxu0 0.0
        %1102 = vmatpush1.msra.mxu0 0.0
        %1103 = vmatprep.subr.mxu0 0.0
        %1104 = vmatpush1.msra.mxu0 0.0
        %1105 = vmatprep.subr.mxu0 0.0
        %1106 = vmatpush1.msra.mxu0 0.0
        %1107 = vmatprep.subr.mxu0 0.0
        %1108 = vmatpush1.msra.mxu0 0.0
        %1109 = vmatprep.subr.mxu0 0.0
        %1110 = vmatpush1.msra.mxu0 0.0
        %1111 = vmatprep.subr.mxu0 0.0
        %1112 = vmatpush1.msra.mxu0 0.0
        %1113 = vmatprep.subr.mxu0 0.0
        %1114 = vmatpush1.msra.mxu0 0.0
        %1115 = vmatprep.subr.mxu0 0.0
        %1116 = vmatpush1.msra.mxu0 0.0
        %1117 = vmatprep.subr.mxu0 0.0
        %1118 = vmatpush1.msra.mxu0 0.0
        %1119 = vmatprep.subr.mxu0 0.0
        %1120 = vmatpush1.msra.mxu0 0.0
        %1121 = vmatprep.subr.mxu0 0.0
        %1122 = vmatpush1.msra.mxu0 0.0
        %1123 = vmatprep.subr.mxu0 0.0
        %1124 = vmatpush1.msra.mxu0 0.0
        %1125 = vmatprep.subr.mxu0 0.0
        %1126 = vmatpush1.msra.mxu0 0.0
        %1127 = vmatprep.subr.mxu0 0.0
        %1128 = vmatpush1.msra.mxu0 0.0
        %1129 = vmatprep.subr.mxu0 0.0
        %1130 = vmatpush1.msra.mxu0 0.0
        %1131 = vmatprep.subr.mxu0 0.0
        %1132 = vmatpush1.msra.mxu0 0.0
        %1133 = vmatprep.subr.mxu0 0.0
        %1134 = vmatpush1.msra.mxu0 0.0
        %1135 = vmatprep.subr.mxu0 0.0
        %1136 = vmatpush1.msra.mxu0 0.0
        %1137 = vmatprep.subr.mxu0 0.0
        %1138 = vmatpush1.msra.mxu0 0.0
        %1139 = vmatprep.mubr.f32.mxu0 0.0
        %1140 = vmatmul.mubr.f32.gmra.mrb[0].mxu0 %v1067
        %v1141 = vpop.f32.mrb[0].mxu0
        %v1142 = vadd.f32 %v1062, %v1141
        %v1143 = vpop.f32.mrb[0].mxu0
        %v1144 = vadd.f32 %v1064, %v1143
        %1145 = vdwg.mxu0
        %s1146 = scalar_lea.vmem %s1, 4
        %v1147 = vld [vmem:[%s1146] sm:$0x3]
        %v1148 = vld [vmem:[#allocation2] sm:$0xff]
        %v1149 = vld [vmem:[#allocation2 + $0x8] sm:$0xff]
        %v1150 = vld [vmem:[#allocation2 + $0x18] sm:$0xff]
        %v1151 = vld [vmem:[#allocation2 + $0x20] sm:$0xff]
        %v1152 = vld [vmem:[#allocation2 + $0x30] sm:$0xff]
        %v1153 = vld [vmem:[#allocation2 + $0x38] sm:$0xff]
        %v1154 = vld [vmem:[#allocation2 + $0x48] sm:$0xff]
        %v1155 = vld [vmem:[#allocation2 + $0x50] sm:$0xff]
        %1164 = vrot.lane.b32.xlu0 %v1148, 126
        %v1165 = vpop.permute.xlu0 %1164
        %1166 = vrot.lane.b32.xlu0 %v1149, 126
        %v1167 = vpop.permute.xlu0 %1166
        %1168 = vrot.lane.b32.xlu0 %v1150, 126
        %v1169 = vpop.permute.xlu0 %1168
        %1170 = vrot.lane.b32.xlu0 %v1151, 126
        %v1171 = vpop.permute.xlu0 %1170
        %1172 = vrot.lane.b32.xlu0 %v1152, 126
        %v1173 = vpop.permute.xlu0 %1172
        %1174 = vrot.lane.b32.xlu0 %v1153, 126
        %v1175 = vpop.permute.xlu0 %1174
        %1176 = vrot.lane.b32.xlu0 %v1154, 126
        %v1177 = vpop.permute.xlu0 %1176
        %1178 = vrot.lane.b32.xlu0 %v1155, 126
        %v1179 = vpop.permute.xlu0 %1178
        %v1188 = vcombine.low %v1165, %v1173
        %v1189 = vcombine.high %v1165, %v1173
        %v1191 = vunpack.c.l.s4 1983009808
        %v1192 = vunpack.c.0.s8 %v1191
        %v1193 = vlaneseq
        %v1194 = vshrl.u32 %v1193, 7
        %v1195 = vsub.s32 %v1192, %v1194
        %v1196 = vrot.slane %v1188, %v1195
        %v1198 = vunpack.c.l.s4 1983009808
        %v1199 = vunpack.c.0.s8 %v1198
        %v1200 = vlaneseq
        %v1201 = vshrl.u32 %v1200, 7
        %v1202 = vsub.s32 %v1199, %v1201
        %v1203 = vrot.slane %v1189, %v1202
        %v1204 = vcombine.low %v1169, %v1177
        %v1205 = vcombine.high %v1169, %v1177
        %v1207 = vunpack.c.l.s4 1983009808
        %v1208 = vunpack.c.0.s8 %v1207
        %v1209 = vlaneseq
        %v1210 = vshrl.u32 %v1209, 7
        %v1211 = vsub.s32 %v1208, %v1210
        %v1212 = vrot.slane %v1204, %v1211
        %v1214 = vunpack.c.l.s4 1983009808
        %v1215 = vunpack.c.0.s8 %v1214
        %v1216 = vlaneseq
        %v1217 = vshrl.u32 %v1216, 7
        %v1218 = vsub.s32 %v1215, %v1217
        %v1219 = vrot.slane %v1205, %v1218
        %v1220 = vcombine.low %v1196, %v1212
        %v1221 = vcombine.high %v1196, %v1212
        %v1223 = vunpack.c.l.s4 1934713408
        %v1224 = vunpack.c.0.s8 %v1223
        %v1225 = vlaneseq
        %v1226 = vshrl.u32 %v1225, 7
        %v1227 = vsub.s32 %v1224, %v1226
        %v1228 = vrot.slane %v1220, %v1227
        %v1230 = vunpack.c.l.s4 1934713408
        %v1231 = vunpack.c.0.s8 %v1230
        %v1232 = vlaneseq
        %v1233 = vshrl.u32 %v1232, 7
        %v1234 = vsub.s32 %v1231, %v1233
        %v1235 = vrot.slane %v1221, %v1234
        %v1236 = vcombine.low %v1203, %v1219
        %v1237 = vcombine.high %v1203, %v1219
        %v1239 = vunpack.c.l.s4 1934713408
        %v1240 = vunpack.c.0.s8 %v1239
        %v1241 = vlaneseq
        %v1242 = vshrl.u32 %v1241, 7
        %v1243 = vsub.s32 %v1240, %v1242
        %v1244 = vrot.slane %v1236, %v1243
        %v1246 = vunpack.c.l.s4 1934713408
        %v1247 = vunpack.c.0.s8 %v1246
        %v1248 = vlaneseq
        %v1249 = vshrl.u32 %v1248, 7
        %v1250 = vsub.s32 %v1247, %v1249
        %v1251 = vrot.slane %v1237, %v1250
        %v1252 = vcombine.high %v1228, 0.0
        %v1253 = vcombine.high %v1235, 0.0
        %v1254 = vcombine.high %v1244, 0.0
        %v1255 = vcombine.high %v1251, 0.0
        %v1256 = vcombine.low %v1167, %v1175
        %v1257 = vcombine.high %v1167, %v1175
        %v1259 = vunpack.c.l.s4 1983009808
        %v1260 = vunpack.c.0.s8 %v1259
        %v1261 = vlaneseq
        %v1262 = vshrl.u32 %v1261, 7
        %v1263 = vsub.s32 %v1260, %v1262
        %v1264 = vrot.slane %v1256, %v1263
        %v1266 = vunpack.c.l.s4 1983009808
        %v1267 = vunpack.c.0.s8 %v1266
        %v1268 = vlaneseq
        %v1269 = vshrl.u32 %v1268, 7
        %v1270 = vsub.s32 %v1267, %v1269
        %v1271 = vrot.slane %v1257, %v1270
        %v1272 = vcombine.low %v1171, %v1179
        %v1273 = vcombine.high %v1171, %v1179
        %v1275 = vunpack.c.l.s4 1983009808
        %v1276 = vunpack.c.0.s8 %v1275
        %v1277 = vlaneseq
        %v1278 = vshrl.u32 %v1277, 7
        %v1279 = vsub.s32 %v1276, %v1278
        %v1280 = vrot.slane %v1272, %v1279
        %v1282 = vunpack.c.l.s4 1983009808
        %v1283 = vunpack.c.0.s8 %v1282
        %v1284 = vlaneseq
        %v1285 = vshrl.u32 %v1284, 7
        %v1286 = vsub.s32 %v1283, %v1285
        %v1287 = vrot.slane %v1273, %v1286
        %v1288 = vcombine.low %v1264, %v1280
        %v1289 = vcombine.high %v1264, %v1280
        %v1291 = vunpack.c.l.s4 1934713408
        %v1292 = vunpack.c.0.s8 %v1291
        %v1293 = vlaneseq
        %v1294 = vshrl.u32 %v1293, 7
        %v1295 = vsub.s32 %v1292, %v1294
        %v1296 = vrot.slane %v1288, %v1295
        %v1298 = vunpack.c.l.s4 1934713408
        %v1299 = vunpack.c.0.s8 %v1298
        %v1300 = vlaneseq
        %v1301 = vshrl.u32 %v1300, 7
        %v1302 = vsub.s32 %v1299, %v1301
        %v1303 = vrot.slane %v1289, %v1302
        %v1304 = vcombine.low %v1271, %v1287
        %v1305 = vcombine.high %v1271, %v1287
        %v1307 = vunpack.c.l.s4 1934713408
        %v1308 = vunpack.c.0.s8 %v1307
        %v1309 = vlaneseq
        %v1310 = vshrl.u32 %v1309, 7
        %v1311 = vsub.s32 %v1308, %v1310
        %v1312 = vrot.slane %v1304, %v1311
        %v1314 = vunpack.c.l.s4 1934713408
        %v1315 = vunpack.c.0.s8 %v1314
        %v1316 = vlaneseq
        %v1317 = vshrl.u32 %v1316, 7
        %v1318 = vsub.s32 %v1315, %v1317
        %v1319 = vrot.slane %v1305, %v1318
        %v1320 = vcombine.high %v1296, 0.0
        %v1321 = vcombine.high %v1303, 0.0
        %v1322 = vcombine.high %v1312, 0.0
        %v1323 = vcombine.high %v1319, 0.0
        %1325 = vrot.lane.b32.xlu0 %v1252, 16
        %v1326 = vpop.permute.xlu0 %1325
        %1329 = vrot.lane.b32.xlu0 %v1235, 32
        %v1330 = vpop.permute.xlu0 %1329
        %1333 = vrot.lane.b32.xlu0 %v1253, 48
        %v1334 = vpop.permute.xlu0 %1333
        %1337 = vrot.lane.b32.xlu0 %v1244, 64
        %v1338 = vpop.permute.xlu0 %1337
        %1341 = vrot.lane.b32.xlu0 %v1254, 80
        %v1342 = vpop.permute.xlu0 %1341
        %1345 = vrot.lane.b32.xlu0 %v1251, 96
        %v1346 = vpop.permute.xlu0 %1345
        %1349 = vrot.lane.b32.xlu0 %v1255, 112
        %v1350 = vpop.permute.xlu0 %1349
        %1353 = vrot.lane.b32.xlu0 %v1320, 16
        %v1354 = vpop.permute.xlu0 %1353
        %1357 = vrot.lane.b32.xlu0 %v1303, 32
        %v1358 = vpop.permute.xlu0 %1357
        %1361 = vrot.lane.b32.xlu0 %v1321, 48
        %v1362 = vpop.permute.xlu0 %1361
        %1365 = vrot.lane.b32.xlu0 %v1312, 64
        %v1366 = vpop.permute.xlu0 %1365
        %1369 = vrot.lane.b32.xlu0 %v1322, 80
        %v1370 = vpop.permute.xlu0 %1369
        %1373 = vrot.lane.b32.xlu0 %v1319, 96
        %v1374 = vpop.permute.xlu0 %1373
        %1377 = vrot.lane.b32.xlu0 %v1323, 112
        %v1378 = vpop.permute.xlu0 %1377
        %v1380 = vsel %vm723, %v1228, %v1326
        %v1381 = vsel %vm725, %v1380, %v1330
        %v1382 = vsel %vm727, %v1381, %v1334
        %v1383 = vsel %vm729, %v1382, %v1338
        %v1384 = vsel %vm731, %v1383, %v1342
        %v1385 = vsel %vm733, %v1384, %v1346
        %v1386 = vsel %vm735, %v1385, %v1350
        %v1387 = vsel %vm723, %v1296, %v1354
        %v1388 = vsel %vm725, %v1387, %v1358
        %v1389 = vsel %vm727, %v1388, %v1362
        %v1390 = vsel %vm729, %v1389, %v1366
        %v1391 = vsel %vm731, %v1390, %v1370
        %v1392 = vsel %vm733, %v1391, %v1374
        %v1393 = vsel %vm735, %v1392, %v1378
        %v1395 = vsel %vm984, %v1147, 0
        %v1398 = vsel %vm988, %v1386, 0
        %v1401 = vsel %vm988, %v1393, 0
        %1403 = vmatprep.subr.mxu0 %v1401
        %1404 = vmatpush1.msra.mxu0 %v1398
        %1405 = vmatprep.subr.mxu0 0.0
        %1406 = vmatpush1.msra.mxu0 0.0
        %1407 = vmatprep.subr.mxu0 0.0
        %1408 = vmatpush1.msra.mxu0 0.0
        %1409 = vmatprep.subr.mxu0 0.0
        %1410 = vmatpush1.msra.mxu0 0.0
        %1411 = vmatprep.subr.mxu0 0.0
        %1412 = vmatpush1.msra.mxu0 0.0
        %1413 = vmatprep.subr.mxu0 0.0
        %1414 = vmatpush1.msra.mxu0 0.0
        %1415 = vmatprep.subr.mxu0 0.0
        %1416 = vmatpush1.msra.mxu0 0.0
        %1417 = vmatprep.subr.mxu0 0.0
        %1418 = vmatpush1.msra.mxu0 0.0
        %1419 = vmatprep.subr.mxu0 0.0
        %1420 = vmatpush1.msra.mxu0 0.0
        %1421 = vmatprep.subr.mxu0 0.0
        %1422 = vmatpush1.msra.mxu0 0.0
        %1423 = vmatprep.subr.mxu0 0.0
        %1424 = vmatpush1.msra.mxu0 0.0
        %1425 = vmatprep.subr.mxu0 0.0
        %1426 = vmatpush1.msra.mxu0 0.0
        %1427 = vmatprep.subr.mxu0 0.0
        %1428 = vmatpush1.msra.mxu0 0.0
        %1429 = vmatprep.subr.mxu0 0.0
        %1430 = vmatpush1.msra.mxu0 0.0
        %1431 = vmatprep.subr.mxu0 0.0
        %1432 = vmatpush1.msra.mxu0 0.0
        %1433 = vmatprep.subr.mxu0 0.0
        %1434 = vmatpush1.msra.mxu0 0.0
        %1435 = vmatprep.subr.mxu0 0.0
        %1436 = vmatpush1.msra.mxu0 0.0
        %1437 = vmatprep.subr.mxu0 0.0
        %1438 = vmatpush1.msra.mxu0 0.0
        %1439 = vmatprep.subr.mxu0 0.0
        %1440 = vmatpush1.msra.mxu0 0.0
        %1441 = vmatprep.subr.mxu0 0.0
        %1442 = vmatpush1.msra.mxu0 0.0
        %1443 = vmatprep.subr.mxu0 0.0
        %1444 = vmatpush1.msra.mxu0 0.0
        %1445 = vmatprep.subr.mxu0 0.0
        %1446 = vmatpush1.msra.mxu0 0.0
        %1447 = vmatprep.subr.mxu0 0.0
        %1448 = vmatpush1.msra.mxu0 0.0
        %1449 = vmatprep.subr.mxu0 0.0
        %1450 = vmatpush1.msra.mxu0 0.0
        %1451 = vmatprep.subr.mxu0 0.0
        %1452 = vmatpush1.msra.mxu0 0.0
        %1453 = vmatprep.subr.mxu0 0.0
        %1454 = vmatpush1.msra.mxu0 0.0
        %1455 = vmatprep.subr.mxu0 0.0
        %1456 = vmatpush1.msra.mxu0 0.0
        %1457 = vmatprep.subr.mxu0 0.0
        %1458 = vmatpush1.msra.mxu0 0.0
        %1459 = vmatprep.subr.mxu0 0.0
        %1460 = vmatpush1.msra.mxu0 0.0
        %1461 = vmatprep.subr.mxu0 0.0
        %1462 = vmatpush1.msra.mxu0 0.0
        %1463 = vmatprep.subr.mxu0 0.0
        %1464 = vmatpush1.msra.mxu0 0.0
        %1465 = vmatprep.subr.mxu0 0.0
        %1466 = vmatpush1.msra.mxu0 0.0
        %1467 = vmatprep.mubr.f32.mxu0 0.0
        %1468 = vmatmul.mubr.f32.gmra.mrb[0].mxu0 %v1395
        %v1469 = vpop.f32.mrb[0].mxu0
        %v1470 = vadd.f32 0.0, %v1469
        %v1471 = vpop.f32.mrb[0].mxu0
        %v1472 = vadd.f32 0.0, %v1471
        %1473 = vdwg.mxu0
        %v1474 = vadd.f32 %v1142, %v1470
        %v1475 = vadd.f32 %v1144, %v1472
        %s1476 = scalar_lea.vmem %s1, 6
        %v1477 = vld [vmem:[%s1476] sm:$0x3]
        %v1478 = vld [vmem:[#allocation2] sm:$0xff]
        %v1479 = vld [vmem:[#allocation2 + $0x8] sm:$0xff]
        %v1480 = vld [vmem:[#allocation2 + $0x18] sm:$0xff]
        %v1481 = vld [vmem:[#allocation2 + $0x20] sm:$0xff]
        %v1482 = vld [vmem:[#allocation2 + $0x30] sm:$0xff]
        %v1483 = vld [vmem:[#allocation2 + $0x38] sm:$0xff]
        %v1484 = vld [vmem:[#allocation2 + $0x48] sm:$0xff]
        %v1485 = vld [vmem:[#allocation2 + $0x50] sm:$0xff]
        %1494 = vrot.lane.b32.xlu0 %v1478, 125
        %v1495 = vpop.permute.xlu0 %1494
        %1496 = vrot.lane.b32.xlu0 %v1479, 125
        %v1497 = vpop.permute.xlu0 %1496
        %1498 = vrot.lane.b32.xlu0 %v1480, 125
        %v1499 = vpop.permute.xlu0 %1498
        %1500 = vrot.lane.b32.xlu0 %v1481, 125
        %v1501 = vpop.permute.xlu0 %1500
        %1502 = vrot.lane.b32.xlu0 %v1482, 125
        %v1503 = vpop.permute.xlu0 %1502
        %1504 = vrot.lane.b32.xlu0 %v1483, 125
        %v1505 = vpop.permute.xlu0 %1504
        %1506 = vrot.lane.b32.xlu0 %v1484, 125
        %v1507 = vpop.permute.xlu0 %1506
        %1508 = vrot.lane.b32.xlu0 %v1485, 125
        %v1509 = vpop.permute.xlu0 %1508
        %v1518 = vcombine.low %v1495, %v1503
        %v1519 = vcombine.high %v1495, %v1503
        %v1521 = vunpack.c.l.s4 1983009808
        %v1522 = vunpack.c.0.s8 %v1521
        %v1523 = vlaneseq
        %v1524 = vshrl.u32 %v1523, 7
        %v1525 = vsub.s32 %v1522, %v1524
        %v1526 = vrot.slane %v1518, %v1525
        %v1528 = vunpack.c.l.s4 1983009808
        %v1529 = vunpack.c.0.s8 %v1528
        %v1530 = vlaneseq
        %v1531 = vshrl.u32 %v1530, 7
        %v1532 = vsub.s32 %v1529, %v1531
        %v1533 = vrot.slane %v1519, %v1532
        %v1534 = vcombine.low %v1499, %v1507
        %v1535 = vcombine.high %v1499, %v1507
        %v1537 = vunpack.c.l.s4 1983009808
        %v1538 = vunpack.c.0.s8 %v1537
        %v1539 = vlaneseq
        %v1540 = vshrl.u32 %v1539, 7
        %v1541 = vsub.s32 %v1538, %v1540
        %v1542 = vrot.slane %v1534, %v1541
        %v1544 = vunpack.c.l.s4 1983009808
        %v1545 = vunpack.c.0.s8 %v1544
        %v1546 = vlaneseq
        %v1547 = vshrl.u32 %v1546, 7
        %v1548 = vsub.s32 %v1545, %v1547
        %v1549 = vrot.slane %v1535, %v1548
        %v1550 = vcombine.low %v1526, %v1542
        %v1551 = vcombine.high %v1526, %v1542
        %v1553 = vunpack.c.l.s4 1934713408
        %v1554 = vunpack.c.0.s8 %v1553
        %v1555 = vlaneseq
        %v1556 = vshrl.u32 %v1555, 7
        %v1557 = vsub.s32 %v1554, %v1556
        %v1558 = vrot.slane %v1550, %v1557
        %v1560 = vunpack.c.l.s4 1934713408
        %v1561 = vunpack.c.0.s8 %v1560
        %v1562 = vlaneseq
        %v1563 = vshrl.u32 %v1562, 7
        %v1564 = vsub.s32 %v1561, %v1563
        %v1565 = vrot.slane %v1551, %v1564
        %v1566 = vcombine.low %v1533, %v1549
        %v1567 = vcombine.high %v1533, %v1549
        %v1569 = vunpack.c.l.s4 1934713408
        %v1570 = vunpack.c.0.s8 %v1569
        %v1571 = vlaneseq
        %v1572 = vshrl.u32 %v1571, 7
        %v1573 = vsub.s32 %v1570, %v1572
        %v1574 = vrot.slane %v1566, %v1573
        %v1576 = vunpack.c.l.s4 1934713408
        %v1577 = vunpack.c.0.s8 %v1576
        %v1578 = vlaneseq
        %v1579 = vshrl.u32 %v1578, 7
        %v1580 = vsub.s32 %v1577, %v1579
        %v1581 = vrot.slane %v1567, %v1580
        %v1582 = vcombine.high %v1558, 0.0
        %v1583 = vcombine.high %v1565, 0.0
        %v1584 = vcombine.high %v1574, 0.0
        %v1585 = vcombine.high %v1581, 0.0
        %v1586 = vcombine.low %v1497, %v1505
        %v1587 = vcombine.high %v1497, %v1505
        %v1589 = vunpack.c.l.s4 1983009808
        %v1590 = vunpack.c.0.s8 %v1589
        %v1591 = vlaneseq
        %v1592 = vshrl.u32 %v1591, 7
        %v1593 = vsub.s32 %v1590, %v1592
        %v1594 = vrot.slane %v1586, %v1593
        %v1596 = vunpack.c.l.s4 1983009808
        %v1597 = vunpack.c.0.s8 %v1596
        %v1598 = vlaneseq
        %v1599 = vshrl.u32 %v1598, 7
        %v1600 = vsub.s32 %v1597, %v1599
        %v1601 = vrot.slane %v1587, %v1600
        %v1602 = vcombine.low %v1501, %v1509
        %v1603 = vcombine.high %v1501, %v1509
        %v1605 = vunpack.c.l.s4 1983009808
        %v1606 = vunpack.c.0.s8 %v1605
        %v1607 = vlaneseq
        %v1608 = vshrl.u32 %v1607, 7
        %v1609 = vsub.s32 %v1606, %v1608
        %v1610 = vrot.slane %v1602, %v1609
        %v1612 = vunpack.c.l.s4 1983009808
        %v1613 = vunpack.c.0.s8 %v1612
        %v1614 = vlaneseq
        %v1615 = vshrl.u32 %v1614, 7
        %v1616 = vsub.s32 %v1613, %v1615
        %v1617 = vrot.slane %v1603, %v1616
        %v1618 = vcombine.low %v1594, %v1610
        %v1619 = vcombine.high %v1594, %v1610
        %v1621 = vunpack.c.l.s4 1934713408
        %v1622 = vunpack.c.0.s8 %v1621
        %v1623 = vlaneseq
        %v1624 = vshrl.u32 %v1623, 7
        %v1625 = vsub.s32 %v1622, %v1624
        %v1626 = vrot.slane %v1618, %v1625
        %v1628 = vunpack.c.l.s4 1934713408
        %v1629 = vunpack.c.0.s8 %v1628
        %v1630 = vlaneseq
        %v1631 = vshrl.u32 %v1630, 7
        %v1632 = vsub.s32 %v1629, %v1631
        %v1633 = vrot.slane %v1619, %v1632
        %v1634 = vcombine.low %v1601, %v1617
        %v1635 = vcombine.high %v1601, %v1617
        %v1637 = vunpack.c.l.s4 1934713408
        %v1638 = vunpack.c.0.s8 %v1637
        %v1639 = vlaneseq
        %v1640 = vshrl.u32 %v1639, 7
        %v1641 = vsub.s32 %v1638, %v1640
        %v1642 = vrot.slane %v1634, %v1641
        %v1644 = vunpack.c.l.s4 1934713408
        %v1645 = vunpack.c.0.s8 %v1644
        %v1646 = vlaneseq
        %v1647 = vshrl.u32 %v1646, 7
        %v1648 = vsub.s32 %v1645, %v1647
        %v1649 = vrot.slane %v1635, %v1648
        %v1650 = vcombine.high %v1626, 0.0
        %v1651 = vcombine.high %v1633, 0.0
        %v1652 = vcombine.high %v1642, 0.0
        %v1653 = vcombine.high %v1649, 0.0
        %1655 = vrot.lane.b32.xlu0 %v1582, 16
        %v1656 = vpop.permute.xlu0 %1655
        %1659 = vrot.lane.b32.xlu0 %v1565, 32
        %v1660 = vpop.permute.xlu0 %1659
        %1663 = vrot.lane.b32.xlu0 %v1583, 48
        %v1664 = vpop.permute.xlu0 %1663
        %1667 = vrot.lane.b32.xlu0 %v1574, 64
        %v1668 = vpop.permute.xlu0 %1667
        %1671 = vrot.lane.b32.xlu0 %v1584, 80
        %v1672 = vpop.permute.xlu0 %1671
        %1675 = vrot.lane.b32.xlu0 %v1581, 96
        %v1676 = vpop.permute.xlu0 %1675
        %1679 = vrot.lane.b32.xlu0 %v1585, 112
        %v1680 = vpop.permute.xlu0 %1679
        %1683 = vrot.lane.b32.xlu0 %v1650, 16
        %v1684 = vpop.permute.xlu0 %1683
        %1687 = vrot.lane.b32.xlu0 %v1633, 32
        %v1688 = vpop.permute.xlu0 %1687
        %1691 = vrot.lane.b32.xlu0 %v1651, 48
        %v1692 = vpop.permute.xlu0 %1691
        %1695 = vrot.lane.b32.xlu0 %v1642, 64
        %v1696 = vpop.permute.xlu0 %1695
        %1699 = vrot.lane.b32.xlu0 %v1652, 80
        %v1700 = vpop.permute.xlu0 %1699
        %1703 = vrot.lane.b32.xlu0 %v1649, 96
        %v1704 = vpop.permute.xlu0 %1703
        %1707 = vrot.lane.b32.xlu0 %v1653, 112
        %v1708 = vpop.permute.xlu0 %1707
        %v1710 = vsel %vm723, %v1558, %v1656
        %v1711 = vsel %vm725, %v1710, %v1660
        %v1712 = vsel %vm727, %v1711, %v1664
        %v1713 = vsel %vm729, %v1712, %v1668
        %v1714 = vsel %vm731, %v1713, %v1672
        %v1715 = vsel %vm733, %v1714, %v1676
        %v1716 = vsel %vm735, %v1715, %v1680
        %v1717 = vsel %vm723, %v1626, %v1684
        %v1718 = vsel %vm725, %v1717, %v1688
        %v1719 = vsel %vm727, %v1718, %v1692
        %v1720 = vsel %vm729, %v1719, %v1696
        %v1721 = vsel %vm731, %v1720, %v1700
        %v1722 = vsel %vm733, %v1721, %v1704
        %v1723 = vsel %vm735, %v1722, %v1708
        %v1725 = vsel %vm984, %v1477, 0
        %v1728 = vsel %vm988, %v1716, 0
        %v1731 = vsel %vm988, %v1723, 0
        %1733 = vmatprep.subr.mxu0 %v1731
        %1734 = vmatpush1.msra.mxu0 %v1728
        %1735 = vmatprep.subr.mxu0 0.0
        %1736 = vmatpush1.msra.mxu0 0.0
        %1737 = vmatprep.subr.mxu0 0.0
        %1738 = vmatpush1.msra.mxu0 0.0
        %1739 = vmatprep.subr.mxu0 0.0
        %1740 = vmatpush1.msra.mxu0 0.0
        %1741 = vmatprep.subr.mxu0 0.0
        %1742 = vmatpush1.msra.mxu0 0.0
        %1743 = vmatprep.subr.mxu0 0.0
        %1744 = vmatpush1.msra.mxu0 0.0
        %1745 = vmatprep.subr.mxu0 0.0
        %1746 = vmatpush1.msra.mxu0 0.0
        %1747 = vmatprep.subr.mxu0 0.0
        %1748 = vmatpush1.msra.mxu0 0.0
        %1749 = vmatprep.subr.mxu0 0.0
        %1750 = vmatpush1.msra.mxu0 0.0
        %1751 = vmatprep.subr.mxu0 0.0
        %1752 = vmatpush1.msra.mxu0 0.0
        %1753 = vmatprep.subr.mxu0 0.0
        %1754 = vmatpush1.msra.mxu0 0.0
        %1755 = vmatprep.subr.mxu0 0.0
        %1756 = vmatpush1.msra.mxu0 0.0
        %1757 = vmatprep.subr.mxu0 0.0
        %1758 = vmatpush1.msra.mxu0 0.0
        %1759 = vmatprep.subr.mxu0 0.0
        %1760 = vmatpush1.msra.mxu0 0.0
        %1761 = vmatprep.subr.mxu0 0.0
        %1762 = vmatpush1.msra.mxu0 0.0
        %1763 = vmatprep.subr.mxu0 0.0
        %1764 = vmatpush1.msra.mxu0 0.0
        %1765 = vmatprep.subr.mxu0 0.0
        %1766 = vmatpush1.msra.mxu0 0.0
        %1767 = vmatprep.subr.mxu0 0.0
        %1768 = vmatpush1.msra.mxu0 0.0
        %1769 = vmatprep.subr.mxu0 0.0
        %1770 = vmatpush1.msra.mxu0 0.0
        %1771 = vmatprep.subr.mxu0 0.0
        %1772 = vmatpush1.msra.mxu0 0.0
        %1773 = vmatprep.subr.mxu0 0.0
        %1774 = vmatpush1.msra.mxu0 0.0
        %1775 = vmatprep.subr.mxu0 0.0
        %1776 = vmatpush1.msra.mxu0 0.0
        %1777 = vmatprep.subr.mxu0 0.0
        %1778 = vmatpush1.msra.mxu0 0.0
        %1779 = vmatprep.subr.mxu0 0.0
        %1780 = vmatpush1.msra.mxu0 0.0
        %1781 = vmatprep.subr.mxu0 0.0
        %1782 = vmatpush1.msra.mxu0 0.0
        %1783 = vmatprep.subr.mxu0 0.0
        %1784 = vmatpush1.msra.mxu0 0.0
        %1785 = vmatprep.subr.mxu0 0.0
        %1786 = vmatpush1.msra.mxu0 0.0
        %1787 = vmatprep.subr.mxu0 0.0
        %1788 = vmatpush1.msra.mxu0 0.0
        %1789 = vmatprep.subr.mxu0 0.0
        %1790 = vmatpush1.msra.mxu0 0.0
        %1791 = vmatprep.subr.mxu0 0.0
        %1792 = vmatpush1.msra.mxu0 0.0
        %1793 = vmatprep.subr.mxu0 0.0
        %1794 = vmatpush1.msra.mxu0 0.0
        %1795 = vmatprep.subr.mxu0 0.0
        %1796 = vmatpush1.msra.mxu0 0.0
        %1797 = vmatprep.mubr.f32.mxu0 0.0
        %1798 = vmatmul.mubr.f32.gmra.mrb[0].mxu0 %v1725
        %v1799 = vpop.f32.mrb[0].mxu0
        %v1800 = vadd.f32 0.0, %v1799
        %v1801 = vpop.f32.mrb[0].mxu0
        %v1802 = vadd.f32 0.0, %v1801
        %1803 = vdwg.mxu0
        %v1804 = vadd.f32 %v1474, %v1800
        %v1805 = vadd.f32 %v1475, %v1802
        %s1806 = scalar_lea.vmem %s1, 8
        %v1807 = vld [vmem:[%s1806] sm:$0x3]
        %v1808 = vld [vmem:[#allocation2] sm:$0xff]
        %v1809 = vld [vmem:[#allocation2 + $0x8] sm:$0xff]
        %v1810 = vld [vmem:[#allocation2 + $0x18] sm:$0xff]
        %v1811 = vld [vmem:[#allocation2 + $0x20] sm:$0xff]
        %v1812 = vld [vmem:[#allocation2 + $0x30] sm:$0xff]
        %v1813 = vld [vmem:[#allocation2 + $0x38] sm:$0xff]
        %v1814 = vld [vmem:[#allocation2 + $0x48] sm:$0xff]
        %v1815 = vld [vmem:[#allocation2 + $0x50] sm:$0xff]
        %1824 = vrot.lane.b32.xlu0 %v1808, 124
        %v1825 = vpop.permute.xlu0 %1824
        %1826 = vrot.lane.b32.xlu0 %v1809, 124
        %v1827 = vpop.permute.xlu0 %1826
        %1828 = vrot.lane.b32.xlu0 %v1810, 124
        %v1829 = vpop.permute.xlu0 %1828
        %1830 = vrot.lane.b32.xlu0 %v1811, 124
        %v1831 = vpop.permute.xlu0 %1830
        %1832 = vrot.lane.b32.xlu0 %v1812, 124
        %v1833 = vpop.permute.xlu0 %1832
        %1834 = vrot.lane.b32.xlu0 %v1813, 124
        %v1835 = vpop.permute.xlu0 %1834
        %1836 = vrot.lane.b32.xlu0 %v1814, 124
        %v1837 = vpop.permute.xlu0 %1836
        %1838 = vrot.lane.b32.xlu0 %v1815, 124
        %v1839 = vpop.permute.xlu0 %1838
        %v1848 = vcombine.low %v1825, %v1833
        %v1849 = vcombine.high %v1825, %v1833
        %v1851 = vunpack.c.l.s4 1983009808
        %v1852 = vunpack.c.0.s8 %v1851
        %v1853 = vlaneseq
        %v1854 = vshrl.u32 %v1853, 7
        %v1855 = vsub.s32 %v1852, %v1854
        %v1856 = vrot.slane %v1848, %v1855
        %v1858 = vunpack.c.l.s4 1983009808
        %v1859 = vunpack.c.0.s8 %v1858
        %v1860 = vlaneseq
        %v1861 = vshrl.u32 %v1860, 7
        %v1862 = vsub.s32 %v1859, %v1861
        %v1863 = vrot.slane %v1849, %v1862
        %v1864 = vcombine.low %v1829, %v1837
        %v1865 = vcombine.high %v1829, %v1837
        %v1867 = vunpack.c.l.s4 1983009808
        %v1868 = vunpack.c.0.s8 %v1867
        %v1869 = vlaneseq
        %v1870 = vshrl.u32 %v1869, 7
        %v1871 = vsub.s32 %v1868, %v1870
        %v1872 = vrot.slane %v1864, %v1871
        %v1874 = vunpack.c.l.s4 1983009808
        %v1875 = vunpack.c.0.s8 %v1874
        %v1876 = vlaneseq
        %v1877 = vshrl.u32 %v1876, 7
        %v1878 = vsub.s32 %v1875, %v1877
        %v1879 = vrot.slane %v1865, %v1878
        %v1880 = vcombine.low %v1856, %v1872
        %v1881 = vcombine.high %v1856, %v1872
        %v1883 = vunpack.c.l.s4 1934713408
        %v1884 = vunpack.c.0.s8 %v1883
        %v1885 = vlaneseq
        %v1886 = vshrl.u32 %v1885, 7
        %v1887 = vsub.s32 %v1884, %v1886
        %v1888 = vrot.slane %v1880, %v1887
        %v1890 = vunpack.c.l.s4 1934713408
        %v1891 = vunpack.c.0.s8 %v1890
        %v1892 = vlaneseq
        %v1893 = vshrl.u32 %v1892, 7
        %v1894 = vsub.s32 %v1891, %v1893
        %v1895 = vrot.slane %v1881, %v1894
        %v1896 = vcombine.low %v1863, %v1879
        %v1897 = vcombine.high %v1863, %v1879
        %v1899 = vunpack.c.l.s4 1934713408
        %v1900 = vunpack.c.0.s8 %v1899
        %v1901 = vlaneseq
        %v1902 = vshrl.u32 %v1901, 7
        %v1903 = vsub.s32 %v1900, %v1902
        %v1904 = vrot.slane %v1896, %v1903
        %v1906 = vunpack.c.l.s4 1934713408
        %v1907 = vunpack.c.0.s8 %v1906
        %v1908 = vlaneseq
        %v1909 = vshrl.u32 %v1908, 7
        %v1910 = vsub.s32 %v1907, %v1909
        %v1911 = vrot.slane %v1897, %v1910
        %v1912 = vcombine.high %v1888, 0.0
        %v1913 = vcombine.high %v1895, 0.0
        %v1914 = vcombine.high %v1904, 0.0
        %v1915 = vcombine.high %v1911, 0.0
        %v1916 = vcombine.low %v1827, %v1835
        %v1917 = vcombine.high %v1827, %v1835
        %v1919 = vunpack.c.l.s4 1983009808
        %v1920 = vunpack.c.0.s8 %v1919
        %v1921 = vlaneseq
        %v1922 = vshrl.u32 %v1921, 7
        %v1923 = vsub.s32 %v1920, %v1922
        %v1924 = vrot.slane %v1916, %v1923
        %v1926 = vunpack.c.l.s4 1983009808
        %v1927 = vunpack.c.0.s8 %v1926
        %v1928 = vlaneseq
        %v1929 = vshrl.u32 %v1928, 7
        %v1930 = vsub.s32 %v1927, %v1929
        %v1931 = vrot.slane %v1917, %v1930
        %v1932 = vcombine.low %v1831, %v1839
        %v1933 = vcombine.high %v1831, %v1839
        %v1935 = vunpack.c.l.s4 1983009808
        %v1936 = vunpack.c.0.s8 %v1935
        %v1937 = vlaneseq
        %v1938 = vshrl.u32 %v1937, 7
        %v1939 = vsub.s32 %v1936, %v1938
        %v1940 = vrot.slane %v1932, %v1939
        %v1942 = vunpack.c.l.s4 1983009808
        %v1943 = vunpack.c.0.s8 %v1942
        %v1944 = vlaneseq
        %v1945 = vshrl.u32 %v1944, 7
        %v1946 = vsub.s32 %v1943, %v1945
        %v1947 = vrot.slane %v1933, %v1946
        %v1948 = vcombine.low %v1924, %v1940
        %v1949 = vcombine.high %v1924, %v1940
        %v1951 = vunpack.c.l.s4 1934713408
        %v1952 = vunpack.c.0.s8 %v1951
        %v1953 = vlaneseq
        %v1954 = vshrl.u32 %v1953, 7
        %v1955 = vsub.s32 %v1952, %v1954
        %v1956 = vrot.slane %v1948, %v1955
        %v1958 = vunpack.c.l.s4 1934713408
        %v1959 = vunpack.c.0.s8 %v1958
        %v1960 = vlaneseq
        %v1961 = vshrl.u32 %v1960, 7
        %v1962 = vsub.s32 %v1959, %v1961
        %v1963 = vrot.slane %v1949, %v1962
        %v1964 = vcombine.low %v1931, %v1947
        %v1965 = vcombine.high %v1931, %v1947
        %v1967 = vunpack.c.l.s4 1934713408
        %v1968 = vunpack.c.0.s8 %v1967
        %v1969 = vlaneseq
        %v1970 = vshrl.u32 %v1969, 7
        %v1971 = vsub.s32 %v1968, %v1970
        %v1972 = vrot.slane %v1964, %v1971
        %v1974 = vunpack.c.l.s4 1934713408
        %v1975 = vunpack.c.0.s8 %v1974
        %v1976 = vlaneseq
        %v1977 = vshrl.u32 %v1976, 7
        %v1978 = vsub.s32 %v1975, %v1977
        %v1979 = vrot.slane %v1965, %v1978
        %v1980 = vcombine.high %v1956, 0.0
        %v1981 = vcombine.high %v1963, 0.0
        %v1982 = vcombine.high %v1972, 0.0
        %v1983 = vcombine.high %v1979, 0.0
        %1985 = vrot.lane.b32.xlu0 %v1912, 16
        %v1986 = vpop.permute.xlu0 %1985
        %1989 = vrot.lane.b32.xlu0 %v1895, 32
        %v1990 = vpop.permute.xlu0 %1989
        %1993 = vrot.lane.b32.xlu0 %v1913, 48
        %v1994 = vpop.permute.xlu0 %1993
        %1997 = vrot.lane.b32.xlu0 %v1904, 64
        %v1998 = vpop.permute.xlu0 %1997
        %2001 = vrot.lane.b32.xlu0 %v1914, 80
        %v2002 = vpop.permute.xlu0 %2001
        %2005 = vrot.lane.b32.xlu0 %v1911, 96
        %v2006 = vpop.permute.xlu0 %2005
        %2009 = vrot.lane.b32.xlu0 %v1915, 112
        %v2010 = vpop.permute.xlu0 %2009
        %2013 = vrot.lane.b32.xlu0 %v1980, 16
        %v2014 = vpop.permute.xlu0 %2013
        %2017 = vrot.lane.b32.xlu0 %v1963, 32
        %v2018 = vpop.permute.xlu0 %2017
        %2021 = vrot.lane.b32.xlu0 %v1981, 48
        %v2022 = vpop.permute.xlu0 %2021
        %2025 = vrot.lane.b32.xlu0 %v1972, 64
        %v2026 = vpop.permute.xlu0 %2025
        %2029 = vrot.lane.b32.xlu0 %v1982, 80
        %v2030 = vpop.permute.xlu0 %2029
        %2033 = vrot.lane.b32.xlu0 %v1979, 96
        %v2034 = vpop.permute.xlu0 %2033
        %2037 = vrot.lane.b32.xlu0 %v1983, 112
        %v2038 = vpop.permute.xlu0 %2037
        %v2040 = vsel %vm723, %v1888, %v1986
        %v2041 = vsel %vm725, %v2040, %v1990
        %v2042 = vsel %vm727, %v2041, %v1994
        %v2043 = vsel %vm729, %v2042, %v1998
        %v2044 = vsel %vm731, %v2043, %v2002
        %v2045 = vsel %vm733, %v2044, %v2006
        %v2046 = vsel %vm735, %v2045, %v2010
        %v2047 = vsel %vm723, %v1956, %v2014
        %v2048 = vsel %vm725, %v2047, %v2018
        %v2049 = vsel %vm727, %v2048, %v2022
        %v2050 = vsel %vm729, %v2049, %v2026
        %v2051 = vsel %vm731, %v2050, %v2030
        %v2052 = vsel %vm733, %v2051, %v2034
        %v2053 = vsel %vm735, %v2052, %v2038
        %v2055 = vsel %vm984, %v1807, 0
        %v2058 = vsel %vm988, %v2046, 0
        %v2061 = vsel %vm988, %v2053, 0
        %2063 = vmatprep.subr.mxu0 %v2061
        %2064 = vmatpush1.msra.mxu0 %v2058
        %2065 = vmatprep.subr.mxu0 0.0
        %2066 = vmatpush1.msra.mxu0 0.0
        %2067 = vmatprep.subr.mxu0 0.0
        %2068 = vmatpush1.msra.mxu0 0.0
        %2069 = vmatprep.subr.mxu0 0.0
        %2070 = vmatpush1.msra.mxu0 0.0
        %2071 = vmatprep.subr.mxu0 0.0
        %2072 = vmatpush1.msra.mxu0 0.0
        %2073 = vmatprep.subr.mxu0 0.0
        %2074 = vmatpush1.msra.mxu0 0.0
        %2075 = vmatprep.subr.mxu0 0.0
        %2076 = vmatpush1.msra.mxu0 0.0
        %2077 = vmatprep.subr.mxu0 0.0
        %2078 = vmatpush1.msra.mxu0 0.0
        %2079 = vmatprep.subr.mxu0 0.0
        %2080 = vmatpush1.msra.mxu0 0.0
        %2081 = vmatprep.subr.mxu0 0.0
        %2082 = vmatpush1.msra.mxu0 0.0
        %2083 = vmatprep.subr.mxu0 0.0
        %2084 = vmatpush1.msra.mxu0 0.0
        %2085 = vmatprep.subr.mxu0 0.0
        %2086 = vmatpush1.msra.mxu0 0.0
        %2087 = vmatprep.subr.mxu0 0.0
        %2088 = vmatpush1.msra.mxu0 0.0
        %2089 = vmatprep.subr.mxu0 0.0
        %2090 = vmatpush1.msra.mxu0 0.0
        %2091 = vmatprep.subr.mxu0 0.0
        %2092 = vmatpush1.msra.mxu0 0.0
        %2093 = vmatprep.subr.mxu0 0.0
        %2094 = vmatpush1.msra.mxu0 0.0
        %2095 = vmatprep.subr.mxu0 0.0
        %2096 = vmatpush1.msra.mxu0 0.0
        %2097 = vmatprep.subr.mxu0 0.0
        %2098 = vmatpush1.msra.mxu0 0.0
        %2099 = vmatprep.subr.mxu0 0.0
        %2100 = vmatpush1.msra.mxu0 0.0
        %2101 = vmatprep.subr.mxu0 0.0
        %2102 = vmatpush1.msra.mxu0 0.0
        %2103 = vmatprep.subr.mxu0 0.0
        %2104 = vmatpush1.msra.mxu0 0.0
        %2105 = vmatprep.subr.mxu0 0.0
        %2106 = vmatpush1.msra.mxu0 0.0
        %2107 = vmatprep.subr.mxu0 0.0
        %2108 = vmatpush1.msra.mxu0 0.0
        %2109 = vmatprep.subr.mxu0 0.0
        %2110 = vmatpush1.msra.mxu0 0.0
        %2111 = vmatprep.subr.mxu0 0.0
        %2112 = vmatpush1.msra.mxu0 0.0
        %2113 = vmatprep.subr.mxu0 0.0
        %2114 = vmatpush1.msra.mxu0 0.0
        %2115 = vmatprep.subr.mxu0 0.0
        %2116 = vmatpush1.msra.mxu0 0.0
        %2117 = vmatprep.subr.mxu0 0.0
        %2118 = vmatpush1.msra.mxu0 0.0
        %2119 = vmatprep.subr.mxu0 0.0
        %2120 = vmatpush1.msra.mxu0 0.0
        %2121 = vmatprep.subr.mxu0 0.0
        %2122 = vmatpush1.msra.mxu0 0.0
        %2123 = vmatprep.subr.mxu0 0.0
        %2124 = vmatpush1.msra.mxu0 0.0
        %2125 = vmatprep.subr.mxu0 0.0
        %2126 = vmatpush1.msra.mxu0 0.0
        %2127 = vmatprep.mubr.f32.mxu0 0.0
        %2128 = vmatmul.mubr.f32.gmra.mrb[0].mxu0 %v2055
        %v2129 = vpop.f32.mrb[0].mxu0
        %v2130 = vadd.f32 0.0, %v2129
        %v2131 = vpop.f32.mrb[0].mxu0
        %v2132 = vadd.f32 0.0, %v2131
        %2133 = vdwg.mxu0
        %v2134 = vadd.f32 %v1804, %v2130
        %v2135 = vadd.f32 %v1805, %v2132
        %s2136 = scalar_lea.vmem %s1, 10
        %v2137 = vld [vmem:[%s2136] sm:$0x3]
        %v2138 = vld [vmem:[#allocation2 + $0x1] sm:$0xff]
        %v2139 = vld [vmem:[#allocation2 + $0x9] sm:$0xff]
        %v2140 = vld [vmem:[#allocation2 + $0x19] sm:$0xff]
        %v2141 = vld [vmem:[#allocation2 + $0x21] sm:$0xff]
        %v2142 = vld [vmem:[#allocation2 + $0x31] sm:$0xff]
        %v2143 = vld [vmem:[#allocation2 + $0x39] sm:$0xff]
        %v2144 = vld [vmem:[#allocation2 + $0x49] sm:$0xff]
        %v2145 = vld [vmem:[#allocation2 + $0x51] sm:$0xff]
        %v2146 = vcombine.low %v2138, %v2142
        %v2147 = vcombine.high %v2138, %v2142
        %v2149 = vunpack.c.l.s4 1983009808
        %v2150 = vunpack.c.0.s8 %v2149
        %v2151 = vlaneseq
        %v2152 = vshrl.u32 %v2151, 7
        %v2153 = vsub.s32 %v2150, %v2152
        %v2154 = vrot.slane %v2146, %v2153
        %v2156 = vunpack.c.l.s4 1983009808
        %v2157 = vunpack.c.0.s8 %v2156
        %v2158 = vlaneseq
        %v2159 = vshrl.u32 %v2158, 7
        %v2160 = vsub.s32 %v2157, %v2159
        %v2161 = vrot.slane %v2147, %v2160
        %v2162 = vcombine.low %v2140, %v2144
        %v2163 = vcombine.high %v2140, %v2144
        %v2165 = vunpack.c.l.s4 1983009808
        %v2166 = vunpack.c.0.s8 %v2165
        %v2167 = vlaneseq
        %v2168 = vshrl.u32 %v2167, 7
        %v2169 = vsub.s32 %v2166, %v2168
        %v2170 = vrot.slane %v2162, %v2169
        %v2172 = vunpack.c.l.s4 1983009808
        %v2173 = vunpack.c.0.s8 %v2172
        %v2174 = vlaneseq
        %v2175 = vshrl.u32 %v2174, 7
        %v2176 = vsub.s32 %v2173, %v2175
        %v2177 = vrot.slane %v2163, %v2176
        %v2178 = vcombine.low %v2154, %v2170
        %v2179 = vcombine.high %v2154, %v2170
        %v2181 = vunpack.c.l.s4 1934713408
        %v2182 = vunpack.c.0.s8 %v2181
        %v2183 = vlaneseq
        %v2184 = vshrl.u32 %v2183, 7
        %v2185 = vsub.s32 %v2182, %v2184
        %v2186 = vrot.slane %v2178, %v2185
        %v2188 = vunpack.c.l.s4 1934713408
        %v2189 = vunpack.c.0.s8 %v2188
        %v2190 = vlaneseq
        %v2191 = vshrl.u32 %v2190, 7
        %v2192 = vsub.s32 %v2189, %v2191
        %v2193 = vrot.slane %v2179, %v2192
        %v2194 = vcombine.low %v2161, %v2177
        %v2195 = vcombine.high %v2161, %v2177
        %v2197 = vunpack.c.l.s4 1934713408
        %v2198 = vunpack.c.0.s8 %v2197
        %v2199 = vlaneseq
        %v2200 = vshrl.u32 %v2199, 7
        %v2201 = vsub.s32 %v2198, %v2200
        %v2202 = vrot.slane %v2194, %v2201
        %v2204 = vunpack.c.l.s4 1934713408
        %v2205 = vunpack.c.0.s8 %v2204
        %v2206 = vlaneseq
        %v2207 = vshrl.u32 %v2206, 7
        %v2208 = vsub.s32 %v2205, %v2207
        %v2209 = vrot.slane %v2195, %v2208
        %v2210 = vcombine.high %v2186, 0.0
        %v2211 = vcombine.high %v2193, 0.0
        %v2212 = vcombine.high %v2202, 0.0
        %v2213 = vcombine.high %v2209, 0.0
        %v2214 = vcombine.low %v2139, %v2143
        %v2215 = vcombine.high %v2139, %v2143
        %v2217 = vunpack.c.l.s4 1983009808
        %v2218 = vunpack.c.0.s8 %v2217
        %v2219 = vlaneseq
        %v2220 = vshrl.u32 %v2219, 7
        %v2221 = vsub.s32 %v2218, %v2220
        %v2222 = vrot.slane %v2214, %v2221
        %v2224 = vunpack.c.l.s4 1983009808
        %v2225 = vunpack.c.0.s8 %v2224
        %v2226 = vlaneseq
        %v2227 = vshrl.u32 %v2226, 7
        %v2228 = vsub.s32 %v2225, %v2227
        %v2229 = vrot.slane %v2215, %v2228
        %v2230 = vcombine.low %v2141, %v2145
        %v2231 = vcombine.high %v2141, %v2145
        %v2233 = vunpack.c.l.s4 1983009808
        %v2234 = vunpack.c.0.s8 %v2233
        %v2235 = vlaneseq
        %v2236 = vshrl.u32 %v2235, 7
        %v2237 = vsub.s32 %v2234, %v2236
        %v2238 = vrot.slane %v2230, %v2237
        %v2240 = vunpack.c.l.s4 1983009808
        %v2241 = vunpack.c.0.s8 %v2240
        %v2242 = vlaneseq
        %v2243 = vshrl.u32 %v2242, 7
        %v2244 = vsub.s32 %v2241, %v2243
        %v2245 = vrot.slane %v2231, %v2244
        %v2246 = vcombine.low %v2222, %v2238
        %v2247 = vcombine.high %v2222, %v2238
        %v2249 = vunpack.c.l.s4 1934713408
        %v2250 = vunpack.c.0.s8 %v2249
        %v2251 = vlaneseq
        %v2252 = vshrl.u32 %v2251, 7
        %v2253 = vsub.s32 %v2250, %v2252
        %v2254 = vrot.slane %v2246, %v2253
        %v2256 = vunpack.c.l.s4 1934713408
        %v2257 = vunpack.c.0.s8 %v2256
        %v2258 = vlaneseq
        %v2259 = vshrl.u32 %v2258, 7
        %v2260 = vsub.s32 %v2257, %v2259
        %v2261 = vrot.slane %v2247, %v2260
        %v2262 = vcombine.low %v2229, %v2245
        %v2263 = vcombine.high %v2229, %v2245
        %v2265 = vunpack.c.l.s4 1934713408
        %v2266 = vunpack.c.0.s8 %v2265
        %v2267 = vlaneseq
        %v2268 = vshrl.u32 %v2267, 7
        %v2269 = vsub.s32 %v2266, %v2268
        %v2270 = vrot.slane %v2262, %v2269
        %v2272 = vunpack.c.l.s4 1934713408
        %v2273 = vunpack.c.0.s8 %v2272
        %v2274 = vlaneseq
        %v2275 = vshrl.u32 %v2274, 7
        %v2276 = vsub.s32 %v2273, %v2275
        %v2277 = vrot.slane %v2263, %v2276
        %v2278 = vcombine.high %v2254, 0.0
        %v2279 = vcombine.high %v2261, 0.0
        %v2280 = vcombine.high %v2270, 0.0
        %v2281 = vcombine.high %v2277, 0.0
        %2283 = vrot.lane.b32.xlu0 %v2210, 16
        %v2284 = vpop.permute.xlu0 %2283
        %2287 = vrot.lane.b32.xlu0 %v2193, 32
        %v2288 = vpop.permute.xlu0 %2287
        %2291 = vrot.lane.b32.xlu0 %v2211, 48
        %v2292 = vpop.permute.xlu0 %2291
        %2295 = vrot.lane.b32.xlu0 %v2202, 64
        %v2296 = vpop.permute.xlu0 %2295
        %2299 = vrot.lane.b32.xlu0 %v2212, 80
        %v2300 = vpop.permute.xlu0 %2299
        %2303 = vrot.lane.b32.xlu0 %v2209, 96
        %v2304 = vpop.permute.xlu0 %2303
        %2307 = vrot.lane.b32.xlu0 %v2213, 112
        %v2308 = vpop.permute.xlu0 %2307
        %2311 = vrot.lane.b32.xlu0 %v2278, 16
        %v2312 = vpop.permute.xlu0 %2311
        %2315 = vrot.lane.b32.xlu0 %v2261, 32
        %v2316 = vpop.permute.xlu0 %2315
        %2319 = vrot.lane.b32.xlu0 %v2279, 48
        %v2320 = vpop.permute.xlu0 %2319
        %2323 = vrot.lane.b32.xlu0 %v2270, 64
        %v2324 = vpop.permute.xlu0 %2323
        %2327 = vrot.lane.b32.xlu0 %v2280, 80
        %v2328 = vpop.permute.xlu0 %2327
        %2331 = vrot.lane.b32.xlu0 %v2277, 96
        %v2332 = vpop.permute.xlu0 %2331
        %2335 = vrot.lane.b32.xlu0 %v2281, 112
        %v2336 = vpop.permute.xlu0 %2335
        %v2338 = vsel %vm723, %v2186, %v2284
        %v2339 = vsel %vm725, %v2338, %v2288
        %v2340 = vsel %vm727, %v2339, %v2292
        %v2341 = vsel %vm729, %v2340, %v2296
        %v2342 = vsel %vm731, %v2341, %v2300
        %v2343 = vsel %vm733, %v2342, %v2304
        %v2344 = vsel %vm735, %v2343, %v2308
        %v2345 = vsel %vm723, %v2254, %v2312
        %v2346 = vsel %vm725, %v2345, %v2316
        %v2347 = vsel %vm727, %v2346, %v2320
        %v2348 = vsel %vm729, %v2347, %v2324
        %v2349 = vsel %vm731, %v2348, %v2328
        %v2350 = vsel %vm733, %v2349, %v2332
        %v2351 = vsel %vm735, %v2350, %v2336
        %v2353 = vsel %vm984, %v2137, 0
        %v2356 = vsel %vm988, %v2344, 0
        %v2359 = vsel %vm988, %v2351, 0
        %2361 = vmatprep.subr.mxu0 %v2359
        %2362 = vmatpush1.msra.mxu0 %v2356
        %2363 = vmatprep.subr.mxu0 0.0
        %2364 = vmatpush1.msra.mxu0 0.0
        %2365 = vmatprep.subr.mxu0 0.0
        %2366 = vmatpush1.msra.mxu0 0.0
        %2367 = vmatprep.subr.mxu0 0.0
        %2368 = vmatpush1.msra.mxu0 0.0
        %2369 = vmatprep.subr.mxu0 0.0
        %2370 = vmatpush1.msra.mxu0 0.0
        %2371 = vmatprep.subr.mxu0 0.0
        %2372 = vmatpush1.msra.mxu0 0.0
        %2373 = vmatprep.subr.mxu0 0.0
        %2374 = vmatpush1.msra.mxu0 0.0
        %2375 = vmatprep.subr.mxu0 0.0
        %2376 = vmatpush1.msra.mxu0 0.0
        %2377 = vmatprep.subr.mxu0 0.0
        %2378 = vmatpush1.msra.mxu0 0.0
        %2379 = vmatprep.subr.mxu0 0.0
        %2380 = vmatpush1.msra.mxu0 0.0
        %2381 = vmatprep.subr.mxu0 0.0
        %2382 = vmatpush1.msra.mxu0 0.0
        %2383 = vmatprep.subr.mxu0 0.0
        %2384 = vmatpush1.msra.mxu0 0.0
        %2385 = vmatprep.subr.mxu0 0.0
        %2386 = vmatpush1.msra.mxu0 0.0
        %2387 = vmatprep.subr.mxu0 0.0
        %2388 = vmatpush1.msra.mxu0 0.0
        %2389 = vmatprep.subr.mxu0 0.0
        %2390 = vmatpush1.msra.mxu0 0.0
        %2391 = vmatprep.subr.mxu0 0.0
        %2392 = vmatpush1.msra.mxu0 0.0
        %2393 = vmatprep.subr.mxu0 0.0
        %2394 = vmatpush1.msra.mxu0 0.0
        %2395 = vmatprep.subr.mxu0 0.0
        %2396 = vmatpush1.msra.mxu0 0.0
        %2397 = vmatprep.subr.mxu0 0.0
        %2398 = vmatpush1.msra.mxu0 0.0
        %2399 = vmatprep.subr.mxu0 0.0
        %2400 = vmatpush1.msra.mxu0 0.0
        %2401 = vmatprep.subr.mxu0 0.0
        %2402 = vmatpush1.msra.mxu0 0.0
        %2403 = vmatprep.subr.mxu0 0.0
        %2404 = vmatpush1.msra.mxu0 0.0
        %2405 = vmatprep.subr.mxu0 0.0
        %2406 = vmatpush1.msra.mxu0 0.0
        %2407 = vmatprep.subr.mxu0 0.0
        %2408 = vmatpush1.msra.mxu0 0.0
        %2409 = vmatprep.subr.mxu0 0.0
        %2410 = vmatpush1.msra.mxu0 0.0
        %2411 = vmatprep.subr.mxu0 0.0
        %2412 = vmatpush1.msra.mxu0 0.0
        %2413 = vmatprep.subr.mxu0 0.0
        %2414 = vmatpush1.msra.mxu0 0.0
        %2415 = vmatprep.subr.mxu0 0.0
        %2416 = vmatpush1.msra.mxu0 0.0
        %2417 = vmatprep.subr.mxu0 0.0
        %2418 = vmatpush1.msra.mxu0 0.0
        %2419 = vmatprep.subr.mxu0 0.0
        %2420 = vmatpush1.msra.mxu0 0.0
        %2421 = vmatprep.subr.mxu0 0.0
        %2422 = vmatpush1.msra.mxu0 0.0
        %2423 = vmatprep.subr.mxu0 0.0
        %2424 = vmatpush1.msra.mxu0 0.0
        %2425 = vmatprep.mubr.f32.mxu0 0.0
        %2426 = vmatmul.mubr.f32.gmra.mrb[0].mxu0 %v2353
        %v2427 = vpop.f32.mrb[0].mxu0
        %v2428 = vadd.f32 0.0, %v2427
        %v2429 = vpop.f32.mrb[0].mxu0
        %v2430 = vadd.f32 0.0, %v2429
        %2431 = vdwg.mxu0
        %v2432 = vadd.f32 %v2134, %v2428
        %v2433 = vadd.f32 %v2135, %v2430
        %s2434 = scalar_lea.vmem %s1, 12
        %v2435 = vld [vmem:[%s2434] sm:$0x3]
        %v2436 = vld [vmem:[#allocation2 + $0x1] sm:$0xff]
        %v2437 = vld [vmem:[#allocation2 + $0x9] sm:$0xff]
        %v2438 = vld [vmem:[#allocation2 + $0x19] sm:$0xff]
        %v2439 = vld [vmem:[#allocation2 + $0x21] sm:$0xff]
        %v2440 = vld [vmem:[#allocation2 + $0x31] sm:$0xff]
        %v2441 = vld [vmem:[#allocation2 + $0x39] sm:$0xff]
        %v2442 = vld [vmem:[#allocation2 + $0x49] sm:$0xff]
        %v2443 = vld [vmem:[#allocation2 + $0x51] sm:$0xff]
        %2452 = vrot.lane.b32.xlu0 %v2436, 127
        %v2453 = vpop.permute.xlu0 %2452
        %2454 = vrot.lane.b32.xlu0 %v2437, 127
        %v2455 = vpop.permute.xlu0 %2454
        %2456 = vrot.lane.b32.xlu0 %v2438, 127
        %v2457 = vpop.permute.xlu0 %2456
        %2458 = vrot.lane.b32.xlu0 %v2439, 127
        %v2459 = vpop.permute.xlu0 %2458
        %2460 = vrot.lane.b32.xlu0 %v2440, 127
        %v2461 = vpop.permute.xlu0 %2460
        %2462 = vrot.lane.b32.xlu0 %v2441, 127
        %v2463 = vpop.permute.xlu0 %2462
        %2464 = vrot.lane.b32.xlu0 %v2442, 127
        %v2465 = vpop.permute.xlu0 %2464
        %2466 = vrot.lane.b32.xlu0 %v2443, 127
        %v2467 = vpop.permute.xlu0 %2466
        %v2476 = vcombine.low %v2453, %v2461
        %v2477 = vcombine.high %v2453, %v2461
        %v2479 = vunpack.c.l.s4 1983009808
        %v2480 = vunpack.c.0.s8 %v2479
        %v2481 = vlaneseq
        %v2482 = vshrl.u32 %v2481, 7
        %v2483 = vsub.s32 %v2480, %v2482
        %v2484 = vrot.slane %v2476, %v2483
        %v2486 = vunpack.c.l.s4 1983009808
        %v2487 = vunpack.c.0.s8 %v2486
        %v2488 = vlaneseq
        %v2489 = vshrl.u32 %v2488, 7
        %v2490 = vsub.s32 %v2487, %v2489
        %v2491 = vrot.slane %v2477, %v2490
        %v2492 = vcombine.low %v2457, %v2465
        %v2493 = vcombine.high %v2457, %v2465
        %v2495 = vunpack.c.l.s4 1983009808
        %v2496 = vunpack.c.0.s8 %v2495
        %v2497 = vlaneseq
        %v2498 = vshrl.u32 %v2497, 7
        %v2499 = vsub.s32 %v2496, %v2498
        %v2500 = vrot.slane %v2492, %v2499
        %v2502 = vunpack.c.l.s4 1983009808
        %v2503 = vunpack.c.0.s8 %v2502
        %v2504 = vlaneseq
        %v2505 = vshrl.u32 %v2504, 7
        %v2506 = vsub.s32 %v2503, %v2505
        %v2507 = vrot.slane %v2493, %v2506
        %v2508 = vcombine.low %v2484, %v2500
        %v2509 = vcombine.high %v2484, %v2500
        %v2511 = vunpack.c.l.s4 1934713408
        %v2512 = vunpack.c.0.s8 %v2511
        %v2513 = vlaneseq
        %v2514 = vshrl.u32 %v2513, 7
        %v2515 = vsub.s32 %v2512, %v2514
        %v2516 = vrot.slane %v2508, %v2515
        %v2518 = vunpack.c.l.s4 1934713408
        %v2519 = vunpack.c.0.s8 %v2518
        %v2520 = vlaneseq
        %v2521 = vshrl.u32 %v2520, 7
        %v2522 = vsub.s32 %v2519, %v2521
        %v2523 = vrot.slane %v2509, %v2522
        %v2524 = vcombine.low %v2491, %v2507
        %v2525 = vcombine.high %v2491, %v2507
        %v2527 = vunpack.c.l.s4 1934713408
        %v2528 = vunpack.c.0.s8 %v2527
        %v2529 = vlaneseq
        %v2530 = vshrl.u32 %v2529, 7
        %v2531 = vsub.s32 %v2528, %v2530
        %v2532 = vrot.slane %v2524, %v2531
        %v2534 = vunpack.c.l.s4 1934713408
        %v2535 = vunpack.c.0.s8 %v2534
        %v2536 = vlaneseq
        %v2537 = vshrl.u32 %v2536, 7
        %v2538 = vsub.s32 %v2535, %v2537
        %v2539 = vrot.slane %v2525, %v2538
        %v2540 = vcombine.high %v2516, 0.0
        %v2541 = vcombine.high %v2523, 0.0
        %v2542 = vcombine.high %v2532, 0.0
        %v2543 = vcombine.high %v2539, 0.0
        %v2544 = vcombine.low %v2455, %v2463
        %v2545 = vcombine.high %v2455, %v2463
        %v2547 = vunpack.c.l.s4 1983009808
        %v2548 = vunpack.c.0.s8 %v2547
        %v2549 = vlaneseq
        %v2550 = vshrl.u32 %v2549, 7
        %v2551 = vsub.s32 %v2548, %v2550
        %v2552 = vrot.slane %v2544, %v2551
        %v2554 = vunpack.c.l.s4 1983009808
        %v2555 = vunpack.c.0.s8 %v2554
        %v2556 = vlaneseq
        %v2557 = vshrl.u32 %v2556, 7
        %v2558 = vsub.s32 %v2555, %v2557
        %v2559 = vrot.slane %v2545, %v2558
        %v2560 = vcombine.low %v2459, %v2467
        %v2561 = vcombine.high %v2459, %v2467
        %v2563 = vunpack.c.l.s4 1983009808
        %v2564 = vunpack.c.0.s8 %v2563
        %v2565 = vlaneseq
        %v2566 = vshrl.u32 %v2565, 7
        %v2567 = vsub.s32 %v2564, %v2566
        %v2568 = vrot.slane %v2560, %v2567
        %v2570 = vunpack.c.l.s4 1983009808
        %v2571 = vunpack.c.0.s8 %v2570
        %v2572 = vlaneseq
        %v2573 = vshrl.u32 %v2572, 7
        %v2574 = vsub.s32 %v2571, %v2573
        %v2575 = vrot.slane %v2561, %v2574
        %v2576 = vcombine.low %v2552, %v2568
        %v2577 = vcombine.high %v2552, %v2568
        %v2579 = vunpack.c.l.s4 1934713408
        %v2580 = vunpack.c.0.s8 %v2579
        %v2581 = vlaneseq
        %v2582 = vshrl.u32 %v2581, 7
        %v2583 = vsub.s32 %v2580, %v2582
        %v2584 = vrot.slane %v2576, %v2583
        %v2586 = vunpack.c.l.s4 1934713408
        %v2587 = vunpack.c.0.s8 %v2586
        %v2588 = vlaneseq
        %v2589 = vshrl.u32 %v2588, 7
        %v2590 = vsub.s32 %v2587, %v2589
        %v2591 = vrot.slane %v2577, %v2590
        %v2592 = vcombine.low %v2559, %v2575
        %v2593 = vcombine.high %v2559, %v2575
        %v2595 = vunpack.c.l.s4 1934713408
        %v2596 = vunpack.c.0.s8 %v2595
        %v2597 = vlaneseq
        %v2598 = vshrl.u32 %v2597, 7
        %v2599 = vsub.s32 %v2596, %v2598
        %v2600 = vrot.slane %v2592, %v2599
        %v2602 = vunpack.c.l.s4 1934713408
        %v2603 = vunpack.c.0.s8 %v2602
        %v2604 = vlaneseq
        %v2605 = vshrl.u32 %v2604, 7
        %v2606 = vsub.s32 %v2603, %v2605
        %v2607 = vrot.slane %v2593, %v2606
        %v2608 = vcombine.high %v2584, 0.0
        %v2609 = vcombine.high %v2591, 0.0
        %v2610 = vcombine.high %v2600, 0.0
        %v2611 = vcombine.high %v2607, 0.0
        %2613 = vrot.lane.b32.xlu0 %v2540, 16
        %v2614 = vpop.permute.xlu0 %2613
        %2617 = vrot.lane.b32.xlu0 %v2523, 32
        %v2618 = vpop.permute.xlu0 %2617
        %2621 = vrot.lane.b32.xlu0 %v2541, 48
        %v2622 = vpop.permute.xlu0 %2621
        %2625 = vrot.lane.b32.xlu0 %v2532, 64
        %v2626 = vpop.permute.xlu0 %2625
        %2629 = vrot.lane.b32.xlu0 %v2542, 80
        %v2630 = vpop.permute.xlu0 %2629
        %2633 = vrot.lane.b32.xlu0 %v2539, 96
        %v2634 = vpop.permute.xlu0 %2633
        %2637 = vrot.lane.b32.xlu0 %v2543, 112
        %v2638 = vpop.permute.xlu0 %2637
        %2641 = vrot.lane.b32.xlu0 %v2608, 16
        %v2642 = vpop.permute.xlu0 %2641
        %2645 = vrot.lane.b32.xlu0 %v2591, 32
        %v2646 = vpop.permute.xlu0 %2645
        %2649 = vrot.lane.b32.xlu0 %v2609, 48
        %v2650 = vpop.permute.xlu0 %2649
        %2653 = vrot.lane.b32.xlu0 %v2600, 64
        %v2654 = vpop.permute.xlu0 %2653
        %2657 = vrot.lane.b32.xlu0 %v2610, 80
        %v2658 = vpop.permute.xlu0 %2657
        %2661 = vrot.lane.b32.xlu0 %v2607, 96
        %v2662 = vpop.permute.xlu0 %2661
        %2665 = vrot.lane.b32.xlu0 %v2611, 112
        %v2666 = vpop.permute.xlu0 %2665
        %v2668 = vsel %vm723, %v2516, %v2614
        %v2669 = vsel %vm725, %v2668, %v2618
        %v2670 = vsel %vm727, %v2669, %v2622
        %v2671 = vsel %vm729, %v2670, %v2626
        %v2672 = vsel %vm731, %v2671, %v2630
        %v2673 = vsel %vm733, %v2672, %v2634
        %v2674 = vsel %vm735, %v2673, %v2638
        %v2675 = vsel %vm723, %v2584, %v2642
        %v2676 = vsel %vm725, %v2675, %v2646
        %v2677 = vsel %vm727, %v2676, %v2650
        %v2678 = vsel %vm729, %v2677, %v2654
        %v2679 = vsel %vm731, %v2678, %v2658
        %v2680 = vsel %vm733, %v2679, %v2662
        %v2681 = vsel %vm735, %v2680, %v2666
        %v2683 = vsel %vm984, %v2435, 0
        %v2686 = vsel %vm988, %v2674, 0
        %v2689 = vsel %vm988, %v2681, 0
        %2691 = vmatprep.subr.mxu0 %v2689
        %2692 = vmatpush1.msra.mxu0 %v2686
        %2693 = vmatprep.subr.mxu0 0.0
        %2694 = vmatpush1.msra.mxu0 0.0
        %2695 = vmatprep.subr.mxu0 0.0
        %2696 = vmatpush1.msra.mxu0 0.0
        %2697 = vmatprep.subr.mxu0 0.0
        %2698 = vmatpush1.msra.mxu0 0.0
        %2699 = vmatprep.subr.mxu0 0.0
        %2700 = vmatpush1.msra.mxu0 0.0
        %2701 = vmatprep.subr.mxu0 0.0
        %2702 = vmatpush1.msra.mxu0 0.0
        %2703 = vmatprep.subr.mxu0 0.0
        %2704 = vmatpush1.msra.mxu0 0.0
        %2705 = vmatprep.subr.mxu0 0.0
        %2706 = vmatpush1.msra.mxu0 0.0
        %2707 = vmatprep.subr.mxu0 0.0
        %2708 = vmatpush1.msra.mxu0 0.0
        %2709 = vmatprep.subr.mxu0 0.0
        %2710 = vmatpush1.msra.mxu0 0.0
        %2711 = vmatprep.subr.mxu0 0.0
        %2712 = vmatpush1.msra.mxu0 0.0
        %2713 = vmatprep.subr.mxu0 0.0
        %2714 = vmatpush1.msra.mxu0 0.0
        %2715 = vmatprep.subr.mxu0 0.0
        %2716 = vmatpush1.msra.mxu0 0.0
        %2717 = vmatprep.subr.mxu0 0.0
        %2718 = vmatpush1.msra.mxu0 0.0
        %2719 = vmatprep.subr.mxu0 0.0
        %2720 = vmatpush1.msra.mxu0 0.0
        %2721 = vmatprep.subr.mxu0 0.0
        %2722 = vmatpush1.msra.mxu0 0.0
        %2723 = vmatprep.subr.mxu0 0.0
        %2724 = vmatpush1.msra.mxu0 0.0
        %2725 = vmatprep.subr.mxu0 0.0
        %2726 = vmatpush1.msra.mxu0 0.0
        %2727 = vmatprep.subr.mxu0 0.0
        %2728 = vmatpush1.msra.mxu0 0.0
        %2729 = vmatprep.subr.mxu0 0.0
        %2730 = vmatpush1.msra.mxu0 0.0
        %2731 = vmatprep.subr.mxu0 0.0
        %2732 = vmatpush1.msra.mxu0 0.0
        %2733 = vmatprep.subr.mxu0 0.0
        %2734 = vmatpush1.msra.mxu0 0.0
        %2735 = vmatprep.subr.mxu0 0.0
        %2736 = vmatpush1.msra.mxu0 0.0
        %2737 = vmatprep.subr.mxu0 0.0
        %2738 = vmatpush1.msra.mxu0 0.0
        %2739 = vmatprep.subr.mxu0 0.0
        %2740 = vmatpush1.msra.mxu0 0.0
        %2741 = vmatprep.subr.mxu0 0.0
        %2742 = vmatpush1.msra.mxu0 0.0
        %2743 = vmatprep.subr.mxu0 0.0
        %2744 = vmatpush1.msra.mxu0 0.0
        %2745 = vmatprep.subr.mxu0 0.0
        %2746 = vmatpush1.msra.mxu0 0.0
        %2747 = vmatprep.subr.mxu0 0.0
        %2748 = vmatpush1.msra.mxu0 0.0
        %2749 = vmatprep.subr.mxu0 0.0
        %2750 = vmatpush1.msra.mxu0 0.0
        %2751 = vmatprep.subr.mxu0 0.0
        %2752 = vmatpush1.msra.mxu0 0.0
        %2753 = vmatprep.subr.mxu0 0.0
        %2754 = vmatpush1.msra.mxu0 0.0
        %2755 = vmatprep.mubr.f32.mxu0 0.0
        %2756 = vmatmul.mubr.f32.gmra.mrb[0].mxu0 %v2683
        %v2757 = vpop.f32.mrb[0].mxu0
        %v2758 = vadd.f32 0.0, %v2757
        %v2759 = vpop.f32.mrb[0].mxu0
        %v2760 = vadd.f32 0.0, %v2759
        %2761 = vdwg.mxu0
        %v2762 = vadd.f32 %v2432, %v2758
        %v2763 = vadd.f32 %v2433, %v2760
        %s2764 = scalar_lea.vmem %s1, 14
        %v2765 = vld [vmem:[%s2764] sm:$0x3]
        %v2766 = vld [vmem:[#allocation2 + $0x1] sm:$0xff]
        %v2767 = vld [vmem:[#allocation2 + $0x9] sm:$0xff]
        %v2768 = vld [vmem:[#allocation2 + $0x19] sm:$0xff]
        %v2769 = vld [vmem:[#allocation2 + $0x21] sm:$0xff]
        %v2770 = vld [vmem:[#allocation2 + $0x31] sm:$0xff]
        %v2771 = vld [vmem:[#allocation2 + $0x39] sm:$0xff]
        %v2772 = vld [vmem:[#allocation2 + $0x49] sm:$0xff]
        %v2773 = vld [vmem:[#allocation2 + $0x51] sm:$0xff]
        %2782 = vrot.lane.b32.xlu0 %v2766, 126
        %v2783 = vpop.permute.xlu0 %2782
        %2784 = vrot.lane.b32.xlu0 %v2767, 126
        %v2785 = vpop.permute.xlu0 %2784
        %2786 = vrot.lane.b32.xlu0 %v2768, 126
        %v2787 = vpop.permute.xlu0 %2786
        %2788 = vrot.lane.b32.xlu0 %v2769, 126
        %v2789 = vpop.permute.xlu0 %2788
        %2790 = vrot.lane.b32.xlu0 %v2770, 126
        %v2791 = vpop.permute.xlu0 %2790
        %2792 = vrot.lane.b32.xlu0 %v2771, 126
        %v2793 = vpop.permute.xlu0 %2792
        %2794 = vrot.lane.b32.xlu0 %v2772, 126
        %v2795 = vpop.permute.xlu0 %2794
        %2796 = vrot.lane.b32.xlu0 %v2773, 126
        %v2797 = vpop.permute.xlu0 %2796
        %v2806 = vcombine.low %v2783, %v2791
        %v2807 = vcombine.high %v2783, %v2791
        %v2809 = vunpack.c.l.s4 1983009808
        %v2810 = vunpack.c.0.s8 %v2809
        %v2811 = vlaneseq
        %v2812 = vshrl.u32 %v2811, 7
        %v2813 = vsub.s32 %v2810, %v2812
        %v2814 = vrot.slane %v2806, %v2813
        %v2816 = vunpack.c.l.s4 1983009808
        %v2817 = vunpack.c.0.s8 %v2816
        %v2818 = vlaneseq
        %v2819 = vshrl.u32 %v2818, 7
        %v2820 = vsub.s32 %v2817, %v2819
        %v2821 = vrot.slane %v2807, %v2820
        %v2822 = vcombine.low %v2787, %v2795
        %v2823 = vcombine.high %v2787, %v2795
        %v2825 = vunpack.c.l.s4 1983009808
        %v2826 = vunpack.c.0.s8 %v2825
        %v2827 = vlaneseq
        %v2828 = vshrl.u32 %v2827, 7
        %v2829 = vsub.s32 %v2826, %v2828
        %v2830 = vrot.slane %v2822, %v2829
        %v2832 = vunpack.c.l.s4 1983009808
        %v2833 = vunpack.c.0.s8 %v2832
        %v2834 = vlaneseq
        %v2835 = vshrl.u32 %v2834, 7
        %v2836 = vsub.s32 %v2833, %v2835
        %v2837 = vrot.slane %v2823, %v2836
        %v2838 = vcombine.low %v2814, %v2830
        %v2839 = vcombine.high %v2814, %v2830
        %v2841 = vunpack.c.l.s4 1934713408
        %v2842 = vunpack.c.0.s8 %v2841
        %v2843 = vlaneseq
        %v2844 = vshrl.u32 %v2843, 7
        %v2845 = vsub.s32 %v2842, %v2844
        %v2846 = vrot.slane %v2838, %v2845
        %v2848 = vunpack.c.l.s4 1934713408
        %v2849 = vunpack.c.0.s8 %v2848
        %v2850 = vlaneseq
        %v2851 = vshrl.u32 %v2850, 7
        %v2852 = vsub.s32 %v2849, %v2851
        %v2853 = vrot.slane %v2839, %v2852
        %v2854 = vcombine.low %v2821, %v2837
        %v2855 = vcombine.high %v2821, %v2837
        %v2857 = vunpack.c.l.s4 1934713408
        %v2858 = vunpack.c.0.s8 %v2857
        %v2859 = vlaneseq
        %v2860 = vshrl.u32 %v2859, 7
        %v2861 = vsub.s32 %v2858, %v2860
        %v2862 = vrot.slane %v2854, %v2861
        %v2864 = vunpack.c.l.s4 1934713408
        %v2865 = vunpack.c.0.s8 %v2864
        %v2866 = vlaneseq
        %v2867 = vshrl.u32 %v2866, 7
        %v2868 = vsub.s32 %v2865, %v2867
        %v2869 = vrot.slane %v2855, %v2868
        %v2870 = vcombine.high %v2846, 0.0
        %v2871 = vcombine.high %v2853, 0.0
        %v2872 = vcombine.high %v2862, 0.0
        %v2873 = vcombine.high %v2869, 0.0
        %v2874 = vcombine.low %v2785, %v2793
        %v2875 = vcombine.high %v2785, %v2793
        %v2877 = vunpack.c.l.s4 1983009808
        %v2878 = vunpack.c.0.s8 %v2877
        %v2879 = vlaneseq
        %v2880 = vshrl.u32 %v2879, 7
        %v2881 = vsub.s32 %v2878, %v2880
        %v2882 = vrot.slane %v2874, %v2881
        %v2884 = vunpack.c.l.s4 1983009808
        %v2885 = vunpack.c.0.s8 %v2884
        %v2886 = vlaneseq
        %v2887 = vshrl.u32 %v2886, 7
        %v2888 = vsub.s32 %v2885, %v2887
        %v2889 = vrot.slane %v2875, %v2888
        %v2890 = vcombine.low %v2789, %v2797
        %v2891 = vcombine.high %v2789, %v2797
        %v2893 = vunpack.c.l.s4 1983009808
        %v2894 = vunpack.c.0.s8 %v2893
        %v2895 = vlaneseq
        %v2896 = vshrl.u32 %v2895, 7
        %v2897 = vsub.s32 %v2894, %v2896
        %v2898 = vrot.slane %v2890, %v2897
        %v2900 = vunpack.c.l.s4 1983009808
        %v2901 = vunpack.c.0.s8 %v2900
        %v2902 = vlaneseq
        %v2903 = vshrl.u32 %v2902, 7
        %v2904 = vsub.s32 %v2901, %v2903
        %v2905 = vrot.slane %v2891, %v2904
        %v2906 = vcombine.low %v2882, %v2898
        %v2907 = vcombine.high %v2882, %v2898
        %v2909 = vunpack.c.l.s4 1934713408
        %v2910 = vunpack.c.0.s8 %v2909
        %v2911 = vlaneseq
        %v2912 = vshrl.u32 %v2911, 7
        %v2913 = vsub.s32 %v2910, %v2912
        %v2914 = vrot.slane %v2906, %v2913
        %v2916 = vunpack.c.l.s4 1934713408
        %v2917 = vunpack.c.0.s8 %v2916
        %v2918 = vlaneseq
        %v2919 = vshrl.u32 %v2918, 7
        %v2920 = vsub.s32 %v2917, %v2919
        %v2921 = vrot.slane %v2907, %v2920
        %v2922 = vcombine.low %v2889, %v2905
        %v2923 = vcombine.high %v2889, %v2905
        %v2925 = vunpack.c.l.s4 1934713408
        %v2926 = vunpack.c.0.s8 %v2925
        %v2927 = vlaneseq
        %v2928 = vshrl.u32 %v2927, 7
        %v2929 = vsub.s32 %v2926, %v2928
        %v2930 = vrot.slane %v2922, %v2929
        %v2932 = vunpack.c.l.s4 1934713408
        %v2933 = vunpack.c.0.s8 %v2932
        %v2934 = vlaneseq
        %v2935 = vshrl.u32 %v2934, 7
        %v2936 = vsub.s32 %v2933, %v2935
        %v2937 = vrot.slane %v2923, %v2936
        %v2938 = vcombine.high %v2914, 0.0
        %v2939 = vcombine.high %v2921, 0.0
        %v2940 = vcombine.high %v2930, 0.0
        %v2941 = vcombine.high %v2937, 0.0
        %2943 = vrot.lane.b32.xlu0 %v2870, 16
        %v2944 = vpop.permute.xlu0 %2943
        %2947 = vrot.lane.b32.xlu0 %v2853, 32
        %v2948 = vpop.permute.xlu0 %2947
        %2951 = vrot.lane.b32.xlu0 %v2871, 48
        %v2952 = vpop.permute.xlu0 %2951
        %2955 = vrot.lane.b32.xlu0 %v2862, 64
        %v2956 = vpop.permute.xlu0 %2955
        %2959 = vrot.lane.b32.xlu0 %v2872, 80
        %v2960 = vpop.permute.xlu0 %2959
        %2963 = vrot.lane.b32.xlu0 %v2869, 96
        %v2964 = vpop.permute.xlu0 %2963
        %2967 = vrot.lane.b32.xlu0 %v2873, 112
        %v2968 = vpop.permute.xlu0 %2967
        %2971 = vrot.lane.b32.xlu0 %v2938, 16
        %v2972 = vpop.permute.xlu0 %2971
        %2975 = vrot.lane.b32.xlu0 %v2921, 32
        %v2976 = vpop.permute.xlu0 %2975
        %2979 = vrot.lane.b32.xlu0 %v2939, 48
        %v2980 = vpop.permute.xlu0 %2979
        %2983 = vrot.lane.b32.xlu0 %v2930, 64
        %v2984 = vpop.permute.xlu0 %2983
        %2987 = vrot.lane.b32.xlu0 %v2940, 80
        %v2988 = vpop.permute.xlu0 %2987
        %2991 = vrot.lane.b32.xlu0 %v2937, 96
        %v2992 = vpop.permute.xlu0 %2991
        %2995 = vrot.lane.b32.xlu0 %v2941, 112
        %v2996 = vpop.permute.xlu0 %2995
        %v2998 = vsel %vm723, %v2846, %v2944
        %v2999 = vsel %vm725, %v2998, %v2948
        %v3000 = vsel %vm727, %v2999, %v2952
        %v3001 = vsel %vm729, %v3000, %v2956
        %v3002 = vsel %vm731, %v3001, %v2960
        %v3003 = vsel %vm733, %v3002, %v2964
        %v3004 = vsel %vm735, %v3003, %v2968
        %v3005 = vsel %vm723, %v2914, %v2972
        %v3006 = vsel %vm725, %v3005, %v2976
        %v3007 = vsel %vm727, %v3006, %v2980
        %v3008 = vsel %vm729, %v3007, %v2984
        %v3009 = vsel %vm731, %v3008, %v2988
        %v3010 = vsel %vm733, %v3009, %v2992
        %v3011 = vsel %vm735, %v3010, %v2996
        %v3013 = vsel %vm984, %v2765, 0
        %v3016 = vsel %vm988, %v3004, 0
        %v3019 = vsel %vm988, %v3011, 0
        %3021 = vmatprep.subr.mxu0 %v3019
        %3022 = vmatpush1.msra.mxu0 %v3016
        %3023 = vmatprep.subr.mxu0 0.0
        %3024 = vmatpush1.msra.mxu0 0.0
        %3025 = vmatprep.subr.mxu0 0.0
        %3026 = vmatpush1.msra.mxu0 0.0
        %3027 = vmatprep.subr.mxu0 0.0
        %3028 = vmatpush1.msra.mxu0 0.0
        %3029 = vmatprep.subr.mxu0 0.0
        %3030 = vmatpush1.msra.mxu0 0.0
        %3031 = vmatprep.subr.mxu0 0.0
        %3032 = vmatpush1.msra.mxu0 0.0
        %3033 = vmatprep.subr.mxu0 0.0
        %3034 = vmatpush1.msra.mxu0 0.0
        %3035 = vmatprep.subr.mxu0 0.0
        %3036 = vmatpush1.msra.mxu0 0.0
        %3037 = vmatprep.subr.mxu0 0.0
        %3038 = vmatpush1.msra.mxu0 0.0
        %3039 = vmatprep.subr.mxu0 0.0
        %3040 = vmatpush1.msra.mxu0 0.0
        %3041 = vmatprep.subr.mxu0 0.0
        %3042 = vmatpush1.msra.mxu0 0.0
        %3043 = vmatprep.subr.mxu0 0.0
        %3044 = vmatpush1.msra.mxu0 0.0
        %3045 = vmatprep.subr.mxu0 0.0
        %3046 = vmatpush1.msra.mxu0 0.0
        %3047 = vmatprep.subr.mxu0 0.0
        %3048 = vmatpush1.msra.mxu0 0.0
        %3049 = vmatprep.subr.mxu0 0.0
        %3050 = vmatpush1.msra.mxu0 0.0
        %3051 = vmatprep.subr.mxu0 0.0
        %3052 = vmatpush1.msra.mxu0 0.0
        %3053 = vmatprep.subr.mxu0 0.0
        %3054 = vmatpush1.msra.mxu0 0.0
        %3055 = vmatprep.subr.mxu0 0.0
        %3056 = vmatpush1.msra.mxu0 0.0
        %3057 = vmatprep.subr.mxu0 0.0
        %3058 = vmatpush1.msra.mxu0 0.0
        %3059 = vmatprep.subr.mxu0 0.0
        %3060 = vmatpush1.msra.mxu0 0.0
        %3061 = vmatprep.subr.mxu0 0.0
        %3062 = vmatpush1.msra.mxu0 0.0
        %3063 = vmatprep.subr.mxu0 0.0
        %3064 = vmatpush1.msra.mxu0 0.0
        %3065 = vmatprep.subr.mxu0 0.0
        %3066 = vmatpush1.msra.mxu0 0.0
        %3067 = vmatprep.subr.mxu0 0.0
        %3068 = vmatpush1.msra.mxu0 0.0
        %3069 = vmatprep.subr.mxu0 0.0
        %3070 = vmatpush1.msra.mxu0 0.0
        %3071 = vmatprep.subr.mxu0 0.0
        %3072 = vmatpush1.msra.mxu0 0.0
        %3073 = vmatprep.subr.mxu0 0.0
        %3074 = vmatpush1.msra.mxu0 0.0
        %3075 = vmatprep.subr.mxu0 0.0
        %3076 = vmatpush1.msra.mxu0 0.0
        %3077 = vmatprep.subr.mxu0 0.0
        %3078 = vmatpush1.msra.mxu0 0.0
        %3079 = vmatprep.subr.mxu0 0.0
        %3080 = vmatpush1.msra.mxu0 0.0
        %3081 = vmatprep.subr.mxu0 0.0
        %3082 = vmatpush1.msra.mxu0 0.0
        %3083 = vmatprep.subr.mxu0 0.0
        %3084 = vmatpush1.msra.mxu0 0.0
        %3085 = vmatprep.mubr.f32.mxu0 0.0
        %3086 = vmatmul.mubr.f32.gmra.mrb[0].mxu0 %v3013
        %v3087 = vpop.f32.mrb[0].mxu0
        %v3088 = vadd.f32 0.0, %v3087
        %v3089 = vpop.f32.mrb[0].mxu0
        %v3090 = vadd.f32 0.0, %v3089
        %3091 = vdwg.mxu0
        %v3092 = vadd.f32 %v2762, %v3088
        %v3093 = vadd.f32 %v2763, %v3090
        %s3094 = scalar_lea.vmem %s1, 16
        %v3095 = vld [vmem:[%s3094] sm:$0x3]
        %v3096 = vld [vmem:[#allocation2 + $0x1] sm:$0xff]
        %v3097 = vld [vmem:[#allocation2 + $0x9] sm:$0xff]
        %v3098 = vld [vmem:[#allocation2 + $0x19] sm:$0xff]
        %v3099 = vld [vmem:[#allocation2 + $0x21] sm:$0xff]
        %v3100 = vld [vmem:[#allocation2 + $0x31] sm:$0xff]
        %v3101 = vld [vmem:[#allocation2 + $0x39] sm:$0xff]
        %v3102 = vld [vmem:[#allocation2 + $0x49] sm:$0xff]
        %v3103 = vld [vmem:[#allocation2 + $0x51] sm:$0xff]
        %3112 = vrot.lane.b32.xlu0 %v3096, 125
        %v3113 = vpop.permute.xlu0 %3112
        %3114 = vrot.lane.b32.xlu0 %v3097, 125
        %v3115 = vpop.permute.xlu0 %3114
        %3116 = vrot.lane.b32.xlu0 %v3098, 125
        %v3117 = vpop.permute.xlu0 %3116
        %3118 = vrot.lane.b32.xlu0 %v3099, 125
        %v3119 = vpop.permute.xlu0 %3118
        %3120 = vrot.lane.b32.xlu0 %v3100, 125
        %v3121 = vpop.permute.xlu0 %3120
        %3122 = vrot.lane.b32.xlu0 %v3101, 125
        %v3123 = vpop.permute.xlu0 %3122
        %3124 = vrot.lane.b32.xlu0 %v3102, 125
        %v3125 = vpop.permute.xlu0 %3124
        %3126 = vrot.lane.b32.xlu0 %v3103, 125
        %v3127 = vpop.permute.xlu0 %3126
        %v3136 = vcombine.low %v3113, %v3121
        %v3137 = vcombine.high %v3113, %v3121
        %v3139 = vunpack.c.l.s4 1983009808
        %v3140 = vunpack.c.0.s8 %v3139
        %v3141 = vlaneseq
        %v3142 = vshrl.u32 %v3141, 7
        %v3143 = vsub.s32 %v3140, %v3142
        %v3144 = vrot.slane %v3136, %v3143
        %v3146 = vunpack.c.l.s4 1983009808
        %v3147 = vunpack.c.0.s8 %v3146
        %v3148 = vlaneseq
        %v3149 = vshrl.u32 %v3148, 7
        %v3150 = vsub.s32 %v3147, %v3149
        %v3151 = vrot.slane %v3137, %v3150
        %v3152 = vcombine.low %v3117, %v3125
        %v3153 = vcombine.high %v3117, %v3125
        %v3155 = vunpack.c.l.s4 1983009808
        %v3156 = vunpack.c.0.s8 %v3155
        %v3157 = vlaneseq
        %v3158 = vshrl.u32 %v3157, 7
        %v3159 = vsub.s32 %v3156, %v3158
        %v3160 = vrot.slane %v3152, %v3159
        %v3162 = vunpack.c.l.s4 1983009808
        %v3163 = vunpack.c.0.s8 %v3162
        %v3164 = vlaneseq
        %v3165 = vshrl.u32 %v3164, 7
        %v3166 = vsub.s32 %v3163, %v3165
        %v3167 = vrot.slane %v3153, %v3166
        %v3168 = vcombine.low %v3144, %v3160
        %v3169 = vcombine.high %v3144, %v3160
        %v3171 = vunpack.c.l.s4 1934713408
        %v3172 = vunpack.c.0.s8 %v3171
        %v3173 = vlaneseq
        %v3174 = vshrl.u32 %v3173, 7
        %v3175 = vsub.s32 %v3172, %v3174
        %v3176 = vrot.slane %v3168, %v3175
        %v3178 = vunpack.c.l.s4 1934713408
        %v3179 = vunpack.c.0.s8 %v3178
        %v3180 = vlaneseq
        %v3181 = vshrl.u32 %v3180, 7
        %v3182 = vsub.s32 %v3179, %v3181
        %v3183 = vrot.slane %v3169, %v3182
        %v3184 = vcombine.low %v3151, %v3167
        %v3185 = vcombine.high %v3151, %v3167
        %v3187 = vunpack.c.l.s4 1934713408
        %v3188 = vunpack.c.0.s8 %v3187
        %v3189 = vlaneseq
        %v3190 = vshrl.u32 %v3189, 7
        %v3191 = vsub.s32 %v3188, %v3190
        %v3192 = vrot.slane %v3184, %v3191
        %v3194 = vunpack.c.l.s4 1934713408
        %v3195 = vunpack.c.0.s8 %v3194
        %v3196 = vlaneseq
        %v3197 = vshrl.u32 %v3196, 7
        %v3198 = vsub.s32 %v3195, %v3197
        %v3199 = vrot.slane %v3185, %v3198
        %v3200 = vcombine.high %v3176, 0.0
        %v3201 = vcombine.high %v3183, 0.0
        %v3202 = vcombine.high %v3192, 0.0
        %v3203 = vcombine.high %v3199, 0.0
        %v3204 = vcombine.low %v3115, %v3123
        %v3205 = vcombine.high %v3115, %v3123
        %v3207 = vunpack.c.l.s4 1983009808
        %v3208 = vunpack.c.0.s8 %v3207
        %v3209 = vlaneseq
        %v3210 = vshrl.u32 %v3209, 7
        %v3211 = vsub.s32 %v3208, %v3210
        %v3212 = vrot.slane %v3204, %v3211
        %v3214 = vunpack.c.l.s4 1983009808
        %v3215 = vunpack.c.0.s8 %v3214
        %v3216 = vlaneseq
        %v3217 = vshrl.u32 %v3216, 7
        %v3218 = vsub.s32 %v3215, %v3217
        %v3219 = vrot.slane %v3205, %v3218
        %v3220 = vcombine.low %v3119, %v3127
        %v3221 = vcombine.high %v3119, %v3127
        %v3223 = vunpack.c.l.s4 1983009808
        %v3224 = vunpack.c.0.s8 %v3223
        %v3225 = vlaneseq
        %v3226 = vshrl.u32 %v3225, 7
        %v3227 = vsub.s32 %v3224, %v3226
        %v3228 = vrot.slane %v3220, %v3227
        %v3230 = vunpack.c.l.s4 1983009808
        %v3231 = vunpack.c.0.s8 %v3230
        %v3232 = vlaneseq
        %v3233 = vshrl.u32 %v3232, 7
        %v3234 = vsub.s32 %v3231, %v3233
        %v3235 = vrot.slane %v3221, %v3234
        %v3236 = vcombine.low %v3212, %v3228
        %v3237 = vcombine.high %v3212, %v3228
        %v3239 = vunpack.c.l.s4 1934713408
        %v3240 = vunpack.c.0.s8 %v3239
        %v3241 = vlaneseq
        %v3242 = vshrl.u32 %v3241, 7
        %v3243 = vsub.s32 %v3240, %v3242
        %v3244 = vrot.slane %v3236, %v3243
        %v3246 = vunpack.c.l.s4 1934713408
        %v3247 = vunpack.c.0.s8 %v3246
        %v3248 = vlaneseq
        %v3249 = vshrl.u32 %v3248, 7
        %v3250 = vsub.s32 %v3247, %v3249
        %v3251 = vrot.slane %v3237, %v3250
        %v3252 = vcombine.low %v3219, %v3235
        %v3253 = vcombine.high %v3219, %v3235
        %v3255 = vunpack.c.l.s4 1934713408
        %v3256 = vunpack.c.0.s8 %v3255
        %v3257 = vlaneseq
        %v3258 = vshrl.u32 %v3257, 7
        %v3259 = vsub.s32 %v3256, %v3258
        %v3260 = vrot.slane %v3252, %v3259
        %v3262 = vunpack.c.l.s4 1934713408
        %v3263 = vunpack.c.0.s8 %v3262
        %v3264 = vlaneseq
        %v3265 = vshrl.u32 %v3264, 7
        %v3266 = vsub.s32 %v3263, %v3265
        %v3267 = vrot.slane %v3253, %v3266
        %v3268 = vcombine.high %v3244, 0.0
        %v3269 = vcombine.high %v3251, 0.0
        %v3270 = vcombine.high %v3260, 0.0
        %v3271 = vcombine.high %v3267, 0.0
        %3273 = vrot.lane.b32.xlu0 %v3200, 16
        %v3274 = vpop.permute.xlu0 %3273
        %3277 = vrot.lane.b32.xlu0 %v3183, 32
        %v3278 = vpop.permute.xlu0 %3277
        %3281 = vrot.lane.b32.xlu0 %v3201, 48
        %v3282 = vpop.permute.xlu0 %3281
        %3285 = vrot.lane.b32.xlu0 %v3192, 64
        %v3286 = vpop.permute.xlu0 %3285
        %3289 = vrot.lane.b32.xlu0 %v3202, 80
        %v3290 = vpop.permute.xlu0 %3289
        %3293 = vrot.lane.b32.xlu0 %v3199, 96
        %v3294 = vpop.permute.xlu0 %3293
        %3297 = vrot.lane.b32.xlu0 %v3203, 112
        %v3298 = vpop.permute.xlu0 %3297
        %3301 = vrot.lane.b32.xlu0 %v3268, 16
        %v3302 = vpop.permute.xlu0 %3301
        %3305 = vrot.lane.b32.xlu0 %v3251, 32
        %v3306 = vpop.permute.xlu0 %3305
        %3309 = vrot.lane.b32.xlu0 %v3269, 48
        %v3310 = vpop.permute.xlu0 %3309
        %3313 = vrot.lane.b32.xlu0 %v3260, 64
        %v3314 = vpop.permute.xlu0 %3313
        %3317 = vrot.lane.b32.xlu0 %v3270, 80
        %v3318 = vpop.permute.xlu0 %3317
        %3321 = vrot.lane.b32.xlu0 %v3267, 96
        %v3322 = vpop.permute.xlu0 %3321
        %3325 = vrot.lane.b32.xlu0 %v3271, 112
        %v3326 = vpop.permute.xlu0 %3325
        %v3328 = vsel %vm723, %v3176, %v3274
        %v3329 = vsel %vm725, %v3328, %v3278
        %v3330 = vsel %vm727, %v3329, %v3282
        %v3331 = vsel %vm729, %v3330, %v3286
        %v3332 = vsel %vm731, %v3331, %v3290
        %v3333 = vsel %vm733, %v3332, %v3294
        %v3334 = vsel %vm735, %v3333, %v3298
        %v3335 = vsel %vm723, %v3244, %v3302
        %v3336 = vsel %vm725, %v3335, %v3306
        %v3337 = vsel %vm727, %v3336, %v3310
        %v3338 = vsel %vm729, %v3337, %v3314
        %v3339 = vsel %vm731, %v3338, %v3318
        %v3340 = vsel %vm733, %v3339, %v3322
        %v3341 = vsel %vm735, %v3340, %v3326
        %v3343 = vsel %vm984, %v3095, 0
        %v3346 = vsel %vm988, %v3334, 0
        %v3349 = vsel %vm988, %v3341, 0
        %3351 = vmatprep.subr.mxu0 %v3349
        %3352 = vmatpush1.msra.mxu0 %v3346
        %3353 = vmatprep.subr.mxu0 0.0
        %3354 = vmatpush1.msra.mxu0 0.0
        %3355 = vmatprep.subr.mxu0 0.0
        %3356 = vmatpush1.msra.mxu0 0.0
        %3357 = vmatprep.subr.mxu0 0.0
        %3358 = vmatpush1.msra.mxu0 0.0
        %3359 = vmatprep.subr.mxu0 0.0
        %3360 = vmatpush1.msra.mxu0 0.0
        %3361 = vmatprep.subr.mxu0 0.0
        %3362 = vmatpush1.msra.mxu0 0.0
        %3363 = vmatprep.subr.mxu0 0.0
        %3364 = vmatpush1.msra.mxu0 0.0
        %3365 = vmatprep.subr.mxu0 0.0
        %3366 = vmatpush1.msra.mxu0 0.0
        %3367 = vmatprep.subr.mxu0 0.0
        %3368 = vmatpush1.msra.mxu0 0.0
        %3369 = vmatprep.subr.mxu0 0.0
        %3370 = vmatpush1.msra.mxu0 0.0
        %3371 = vmatprep.subr.mxu0 0.0
        %3372 = vmatpush1.msra.mxu0 0.0
        %3373 = vmatprep.subr.mxu0 0.0
        %3374 = vmatpush1.msra.mxu0 0.0
        %3375 = vmatprep.subr.mxu0 0.0
        %3376 = vmatpush1.msra.mxu0 0.0
        %3377 = vmatprep.subr.mxu0 0.0
        %3378 = vmatpush1.msra.mxu0 0.0
        %3379 = vmatprep.subr.mxu0 0.0
        %3380 = vmatpush1.msra.mxu0 0.0
        %3381 = vmatprep.subr.mxu0 0.0
        %3382 = vmatpush1.msra.mxu0 0.0
        %3383 = vmatprep.subr.mxu0 0.0
        %3384 = vmatpush1.msra.mxu0 0.0
        %3385 = vmatprep.subr.mxu0 0.0
        %3386 = vmatpush1.msra.mxu0 0.0
        %3387 = vmatprep.subr.mxu0 0.0
        %3388 = vmatpush1.msra.mxu0 0.0
        %3389 = vmatprep.subr.mxu0 0.0
        %3390 = vmatpush1.msra.mxu0 0.0
        %3391 = vmatprep.subr.mxu0 0.0
        %3392 = vmatpush1.msra.mxu0 0.0
        %3393 = vmatprep.subr.mxu0 0.0
        %3394 = vmatpush1.msra.mxu0 0.0
        %3395 = vmatprep.subr.mxu0 0.0
        %3396 = vmatpush1.msra.mxu0 0.0
        %3397 = vmatprep.subr.mxu0 0.0
        %3398 = vmatpush1.msra.mxu0 0.0
        %3399 = vmatprep.subr.mxu0 0.0
        %3400 = vmatpush1.msra.mxu0 0.0
        %3401 = vmatprep.subr.mxu0 0.0
        %3402 = vmatpush1.msra.mxu0 0.0
        %3403 = vmatprep.subr.mxu0 0.0
        %3404 = vmatpush1.msra.mxu0 0.0
        %3405 = vmatprep.subr.mxu0 0.0
        %3406 = vmatpush1.msra.mxu0 0.0
        %3407 = vmatprep.subr.mxu0 0.0
        %3408 = vmatpush1.msra.mxu0 0.0
        %3409 = vmatprep.subr.mxu0 0.0
        %3410 = vmatpush1.msra.mxu0 0.0
        %3411 = vmatprep.subr.mxu0 0.0
        %3412 = vmatpush1.msra.mxu0 0.0
        %3413 = vmatprep.subr.mxu0 0.0
        %3414 = vmatpush1.msra.mxu0 0.0
        %3415 = vmatprep.mubr.f32.mxu0 0.0
        %3416 = vmatmul.mubr.f32.gmra.mrb[0].mxu0 %v3343
        %v3417 = vpop.f32.mrb[0].mxu0
        %v3418 = vadd.f32 0.0, %v3417
        %v3419 = vpop.f32.mrb[0].mxu0
        %v3420 = vadd.f32 0.0, %v3419
        %3421 = vdwg.mxu0
        %v3422 = vadd.f32 %v3092, %v3418
        %v3423 = vadd.f32 %v3093, %v3420
        %s3424 = scalar_lea.vmem %s1, 18
        %v3425 = vld [vmem:[%s3424] sm:$0x3]
        %v3426 = vld [vmem:[#allocation2 + $0x1] sm:$0xff]
        %v3427 = vld [vmem:[#allocation2 + $0x9] sm:$0xff]
        %v3428 = vld [vmem:[#allocation2 + $0x19] sm:$0xff]
        %v3429 = vld [vmem:[#allocation2 + $0x21] sm:$0xff]
        %v3430 = vld [vmem:[#allocation2 + $0x31] sm:$0xff]
        %v3431 = vld [vmem:[#allocation2 + $0x39] sm:$0xff]
        %v3432 = vld [vmem:[#allocation2 + $0x49] sm:$0xff]
        %v3433 = vld [vmem:[#allocation2 + $0x51] sm:$0xff]
        %3442 = vrot.lane.b32.xlu0 %v3426, 124
        %v3443 = vpop.permute.xlu0 %3442
        %3444 = vrot.lane.b32.xlu0 %v3427, 124
        %v3445 = vpop.permute.xlu0 %3444
        %3446 = vrot.lane.b32.xlu0 %v3428, 124
        %v3447 = vpop.permute.xlu0 %3446
        %3448 = vrot.lane.b32.xlu0 %v3429, 124
        %v3449 = vpop.permute.xlu0 %3448
        %3450 = vrot.lane.b32.xlu0 %v3430, 124
        %v3451 = vpop.permute.xlu0 %3450
        %3452 = vrot.lane.b32.xlu0 %v3431, 124
        %v3453 = vpop.permute.xlu0 %3452
        %3454 = vrot.lane.b32.xlu0 %v3432, 124
        %v3455 = vpop.permute.xlu0 %3454
        %3456 = vrot.lane.b32.xlu0 %v3433, 124
        %v3457 = vpop.permute.xlu0 %3456
        %v3466 = vcombine.low %v3443, %v3451
        %v3467 = vcombine.high %v3443, %v3451
        %v3469 = vunpack.c.l.s4 1983009808
        %v3470 = vunpack.c.0.s8 %v3469
        %v3471 = vlaneseq
        %v3472 = vshrl.u32 %v3471, 7
        %v3473 = vsub.s32 %v3470, %v3472
        %v3474 = vrot.slane %v3466, %v3473
        %v3476 = vunpack.c.l.s4 1983009808
        %v3477 = vunpack.c.0.s8 %v3476
        %v3478 = vlaneseq
        %v3479 = vshrl.u32 %v3478, 7
        %v3480 = vsub.s32 %v3477, %v3479
        %v3481 = vrot.slane %v3467, %v3480
        %v3482 = vcombine.low %v3447, %v3455
        %v3483 = vcombine.high %v3447, %v3455
        %v3485 = vunpack.c.l.s4 1983009808
        %v3486 = vunpack.c.0.s8 %v3485
        %v3487 = vlaneseq
        %v3488 = vshrl.u32 %v3487, 7
        %v3489 = vsub.s32 %v3486, %v3488
        %v3490 = vrot.slane %v3482, %v3489
        %v3492 = vunpack.c.l.s4 1983009808
        %v3493 = vunpack.c.0.s8 %v3492
        %v3494 = vlaneseq
        %v3495 = vshrl.u32 %v3494, 7
        %v3496 = vsub.s32 %v3493, %v3495
        %v3497 = vrot.slane %v3483, %v3496
        %v3498 = vcombine.low %v3474, %v3490
        %v3499 = vcombine.high %v3474, %v3490
        %v3501 = vunpack.c.l.s4 1934713408
        %v3502 = vunpack.c.0.s8 %v3501
        %v3503 = vlaneseq
        %v3504 = vshrl.u32 %v3503, 7
        %v3505 = vsub.s32 %v3502, %v3504
        %v3506 = vrot.slane %v3498, %v3505
        %v3508 = vunpack.c.l.s4 1934713408
        %v3509 = vunpack.c.0.s8 %v3508
        %v3510 = vlaneseq
        %v3511 = vshrl.u32 %v3510, 7
        %v3512 = vsub.s32 %v3509, %v3511
        %v3513 = vrot.slane %v3499, %v3512
        %v3514 = vcombine.low %v3481, %v3497
        %v3515 = vcombine.high %v3481, %v3497
        %v3517 = vunpack.c.l.s4 1934713408
        %v3518 = vunpack.c.0.s8 %v3517
        %v3519 = vlaneseq
        %v3520 = vshrl.u32 %v3519, 7
        %v3521 = vsub.s32 %v3518, %v3520
        %v3522 = vrot.slane %v3514, %v3521
        %v3524 = vunpack.c.l.s4 1934713408
        %v3525 = vunpack.c.0.s8 %v3524
        %v3526 = vlaneseq
        %v3527 = vshrl.u32 %v3526, 7
        %v3528 = vsub.s32 %v3525, %v3527
        %v3529 = vrot.slane %v3515, %v3528
        %v3530 = vcombine.high %v3506, 0.0
        %v3531 = vcombine.high %v3513, 0.0
        %v3532 = vcombine.high %v3522, 0.0
        %v3533 = vcombine.high %v3529, 0.0
        %v3534 = vcombine.low %v3445, %v3453
        %v3535 = vcombine.high %v3445, %v3453
        %v3537 = vunpack.c.l.s4 1983009808
        %v3538 = vunpack.c.0.s8 %v3537
        %v3539 = vlaneseq
        %v3540 = vshrl.u32 %v3539, 7
        %v3541 = vsub.s32 %v3538, %v3540
        %v3542 = vrot.slane %v3534, %v3541
        %v3544 = vunpack.c.l.s4 1983009808
        %v3545 = vunpack.c.0.s8 %v3544
        %v3546 = vlaneseq
        %v3547 = vshrl.u32 %v3546, 7
        %v3548 = vsub.s32 %v3545, %v3547
        %v3549 = vrot.slane %v3535, %v3548
        %v3550 = vcombine.low %v3449, %v3457
        %v3551 = vcombine.high %v3449, %v3457
        %v3553 = vunpack.c.l.s4 1983009808
        %v3554 = vunpack.c.0.s8 %v3553
        %v3555 = vlaneseq
        %v3556 = vshrl.u32 %v3555, 7
        %v3557 = vsub.s32 %v3554, %v3556
        %v3558 = vrot.slane %v3550, %v3557
        %v3560 = vunpack.c.l.s4 1983009808
        %v3561 = vunpack.c.0.s8 %v3560
        %v3562 = vlaneseq
        %v3563 = vshrl.u32 %v3562, 7
        %v3564 = vsub.s32 %v3561, %v3563
        %v3565 = vrot.slane %v3551, %v3564
        %v3566 = vcombine.low %v3542, %v3558
        %v3567 = vcombine.high %v3542, %v3558
        %v3569 = vunpack.c.l.s4 1934713408
        %v3570 = vunpack.c.0.s8 %v3569
        %v3571 = vlaneseq
        %v3572 = vshrl.u32 %v3571, 7
        %v3573 = vsub.s32 %v3570, %v3572
        %v3574 = vrot.slane %v3566, %v3573
        %v3576 = vunpack.c.l.s4 1934713408
        %v3577 = vunpack.c.0.s8 %v3576
        %v3578 = vlaneseq
        %v3579 = vshrl.u32 %v3578, 7
        %v3580 = vsub.s32 %v3577, %v3579
        %v3581 = vrot.slane %v3567, %v3580
        %v3582 = vcombine.low %v3549, %v3565
        %v3583 = vcombine.high %v3549, %v3565
        %v3585 = vunpack.c.l.s4 1934713408
        %v3586 = vunpack.c.0.s8 %v3585
        %v3587 = vlaneseq
        %v3588 = vshrl.u32 %v3587, 7
        %v3589 = vsub.s32 %v3586, %v3588
        %v3590 = vrot.slane %v3582, %v3589
        %v3592 = vunpack.c.l.s4 1934713408
        %v3593 = vunpack.c.0.s8 %v3592
        %v3594 = vlaneseq
        %v3595 = vshrl.u32 %v3594, 7
        %v3596 = vsub.s32 %v3593, %v3595
        %v3597 = vrot.slane %v3583, %v3596
        %v3598 = vcombine.high %v3574, 0.0
        %v3599 = vcombine.high %v3581, 0.0
        %v3600 = vcombine.high %v3590, 0.0
        %v3601 = vcombine.high %v3597, 0.0
        %3603 = vrot.lane.b32.xlu0 %v3530, 16
        %v3604 = vpop.permute.xlu0 %3603
        %3607 = vrot.lane.b32.xlu0 %v3513, 32
        %v3608 = vpop.permute.xlu0 %3607
        %3611 = vrot.lane.b32.xlu0 %v3531, 48
        %v3612 = vpop.permute.xlu0 %3611
        %3615 = vrot.lane.b32.xlu0 %v3522, 64
        %v3616 = vpop.permute.xlu0 %3615
        %3619 = vrot.lane.b32.xlu0 %v3532, 80
        %v3620 = vpop.permute.xlu0 %3619
        %3623 = vrot.lane.b32.xlu0 %v3529, 96
        %v3624 = vpop.permute.xlu0 %3623
        %3627 = vrot.lane.b32.xlu0 %v3533, 112
        %v3628 = vpop.permute.xlu0 %3627
        %3631 = vrot.lane.b32.xlu0 %v3598, 16
        %v3632 = vpop.permute.xlu0 %3631
        %3635 = vrot.lane.b32.xlu0 %v3581, 32
        %v3636 = vpop.permute.xlu0 %3635
        %3639 = vrot.lane.b32.xlu0 %v3599, 48
        %v3640 = vpop.permute.xlu0 %3639
        %3643 = vrot.lane.b32.xlu0 %v3590, 64
        %v3644 = vpop.permute.xlu0 %3643
        %3647 = vrot.lane.b32.xlu0 %v3600, 80
        %v3648 = vpop.permute.xlu0 %3647
        %3651 = vrot.lane.b32.xlu0 %v3597, 96
        %v3652 = vpop.permute.xlu0 %3651
        %3655 = vrot.lane.b32.xlu0 %v3601, 112
        %v3656 = vpop.permute.xlu0 %3655
        %v3658 = vsel %vm723, %v3506, %v3604
        %v3659 = vsel %vm725, %v3658, %v3608
        %v3660 = vsel %vm727, %v3659, %v3612
        %v3661 = vsel %vm729, %v3660, %v3616
        %v3662 = vsel %vm731, %v3661, %v3620
        %v3663 = vsel %vm733, %v3662, %v3624
        %v3664 = vsel %vm735, %v3663, %v3628
        %v3665 = vsel %vm723, %v3574, %v3632
        %v3666 = vsel %vm725, %v3665, %v3636
        %v3667 = vsel %vm727, %v3666, %v3640
        %v3668 = vsel %vm729, %v3667, %v3644
        %v3669 = vsel %vm731, %v3668, %v3648
        %v3670 = vsel %vm733, %v3669, %v3652
        %v3671 = vsel %vm735, %v3670, %v3656
        %v3673 = vsel %vm984, %v3425, 0
        %v3676 = vsel %vm988, %v3664, 0
        %v3679 = vsel %vm988, %v3671, 0
        %3681 = vmatprep.subr.mxu0 %v3679
        %3682 = vmatpush1.msra.mxu0 %v3676
        %3683 = vmatprep.subr.mxu0 0.0
        %3684 = vmatpush1.msra.mxu0 0.0
        %3685 = vmatprep.subr.mxu0 0.0
        %3686 = vmatpush1.msra.mxu0 0.0
        %3687 = vmatprep.subr.mxu0 0.0
        %3688 = vmatpush1.msra.mxu0 0.0
        %3689 = vmatprep.subr.mxu0 0.0
        %3690 = vmatpush1.msra.mxu0 0.0
        %3691 = vmatprep.subr.mxu0 0.0
        %3692 = vmatpush1.msra.mxu0 0.0
        %3693 = vmatprep.subr.mxu0 0.0
        %3694 = vmatpush1.msra.mxu0 0.0
        %3695 = vmatprep.subr.mxu0 0.0
        %3696 = vmatpush1.msra.mxu0 0.0
        %3697 = vmatprep.subr.mxu0 0.0
        %3698 = vmatpush1.msra.mxu0 0.0
        %3699 = vmatprep.subr.mxu0 0.0
        %3700 = vmatpush1.msra.mxu0 0.0
        %3701 = vmatprep.subr.mxu0 0.0
        %3702 = vmatpush1.msra.mxu0 0.0
        %3703 = vmatprep.subr.mxu0 0.0
        %3704 = vmatpush1.msra.mxu0 0.0
        %3705 = vmatprep.subr.mxu0 0.0
        %3706 = vmatpush1.msra.mxu0 0.0
        %3707 = vmatprep.subr.mxu0 0.0
        %3708 = vmatpush1.msra.mxu0 0.0
        %3709 = vmatprep.subr.mxu0 0.0
        %3710 = vmatpush1.msra.mxu0 0.0
        %3711 = vmatprep.subr.mxu0 0.0
        %3712 = vmatpush1.msra.mxu0 0.0
        %3713 = vmatprep.subr.mxu0 0.0
        %3714 = vmatpush1.msra.mxu0 0.0
        %3715 = vmatprep.subr.mxu0 0.0
        %3716 = vmatpush1.msra.mxu0 0.0
        %3717 = vmatprep.subr.mxu0 0.0
        %3718 = vmatpush1.msra.mxu0 0.0
        %3719 = vmatprep.subr.mxu0 0.0
        %3720 = vmatpush1.msra.mxu0 0.0
        %3721 = vmatprep.subr.mxu0 0.0
        %3722 = vmatpush1.msra.mxu0 0.0
        %3723 = vmatprep.subr.mxu0 0.0
        %3724 = vmatpush1.msra.mxu0 0.0
        %3725 = vmatprep.subr.mxu0 0.0
        %3726 = vmatpush1.msra.mxu0 0.0
        %3727 = vmatprep.subr.mxu0 0.0
        %3728 = vmatpush1.msra.mxu0 0.0
        %3729 = vmatprep.subr.mxu0 0.0
        %3730 = vmatpush1.msra.mxu0 0.0
        %3731 = vmatprep.subr.mxu0 0.0
        %3732 = vmatpush1.msra.mxu0 0.0
        %3733 = vmatprep.subr.mxu0 0.0
        %3734 = vmatpush1.msra.mxu0 0.0
        %3735 = vmatprep.subr.mxu0 0.0
        %3736 = vmatpush1.msra.mxu0 0.0
        %3737 = vmatprep.subr.mxu0 0.0
        %3738 = vmatpush1.msra.mxu0 0.0
        %3739 = vmatprep.subr.mxu0 0.0
        %3740 = vmatpush1.msra.mxu0 0.0
        %3741 = vmatprep.subr.mxu0 0.0
        %3742 = vmatpush1.msra.mxu0 0.0
        %3743 = vmatprep.subr.mxu0 0.0
        %3744 = vmatpush1.msra.mxu0 0.0
        %3745 = vmatprep.mubr.f32.mxu0 0.0
        %3746 = vmatmul.mubr.f32.gmra.mrb[0].mxu0 %v3673
        %v3747 = vpop.f32.mrb[0].mxu0
        %v3748 = vadd.f32 0.0, %v3747
        %v3749 = vpop.f32.mrb[0].mxu0
        %v3750 = vadd.f32 0.0, %v3749
        %3751 = vdwg.mxu0
        %v3752 = vadd.f32 %v3422, %v3748
        %v3753 = vadd.f32 %v3423, %v3750
        %s3754 = scalar_lea.vmem %s1, 20
        %v3755 = vld [vmem:[%s3754] sm:$0x3]
        %v3756 = vld [vmem:[#allocation2 + $0x2] sm:$0xff]
        %v3757 = vld [vmem:[#allocation2 + $0xa] sm:$0xff]
        %v3758 = vld [vmem:[#allocation2 + $0x1a] sm:$0xff]
        %v3759 = vld [vmem:[#allocation2 + $0x22] sm:$0xff]
        %v3760 = vld [vmem:[#allocation2 + $0x32] sm:$0xff]
        %v3761 = vld [vmem:[#allocation2 + $0x3a] sm:$0xff]
        %v3762 = vld [vmem:[#allocation2 + $0x4a] sm:$0xff]
        %v3763 = vld [vmem:[#allocation2 + $0x52] sm:$0xff]
        %v3764 = vcombine.low %v3756, %v3760
        %v3765 = vcombine.high %v3756, %v3760
        %v3767 = vunpack.c.l.s4 1983009808
        %v3768 = vunpack.c.0.s8 %v3767
        %v3769 = vlaneseq
        %v3770 = vshrl.u32 %v3769, 7
        %v3771 = vsub.s32 %v3768, %v3770
        %v3772 = vrot.slane %v3764, %v3771
        %v3774 = vunpack.c.l.s4 1983009808
        %v3775 = vunpack.c.0.s8 %v3774
        %v3776 = vlaneseq
        %v3777 = vshrl.u32 %v3776, 7
        %v3778 = vsub.s32 %v3775, %v3777
        %v3779 = vrot.slane %v3765, %v3778
        %v3780 = vcombine.low %v3758, %v3762
        %v3781 = vcombine.high %v3758, %v3762
        %v3783 = vunpack.c.l.s4 1983009808
        %v3784 = vunpack.c.0.s8 %v3783
        %v3785 = vlaneseq
        %v3786 = vshrl.u32 %v3785, 7
        %v3787 = vsub.s32 %v3784, %v3786
        %v3788 = vrot.slane %v3780, %v3787
        %v3790 = vunpack.c.l.s4 1983009808
        %v3791 = vunpack.c.0.s8 %v3790
        %v3792 = vlaneseq
        %v3793 = vshrl.u32 %v3792, 7
        %v3794 = vsub.s32 %v3791, %v3793
        %v3795 = vrot.slane %v3781, %v3794
        %v3796 = vcombine.low %v3772, %v3788
        %v3797 = vcombine.high %v3772, %v3788
        %v3799 = vunpack.c.l.s4 1934713408
        %v3800 = vunpack.c.0.s8 %v3799
        %v3801 = vlaneseq
        %v3802 = vshrl.u32 %v3801, 7
        %v3803 = vsub.s32 %v3800, %v3802
        %v3804 = vrot.slane %v3796, %v3803
        %v3806 = vunpack.c.l.s4 1934713408
        %v3807 = vunpack.c.0.s8 %v3806
        %v3808 = vlaneseq
        %v3809 = vshrl.u32 %v3808, 7
        %v3810 = vsub.s32 %v3807, %v3809
        %v3811 = vrot.slane %v3797, %v3810
        %v3812 = vcombine.low %v3779, %v3795
        %v3813 = vcombine.high %v3779, %v3795
        %v3815 = vunpack.c.l.s4 1934713408
        %v3816 = vunpack.c.0.s8 %v3815
        %v3817 = vlaneseq
        %v3818 = vshrl.u32 %v3817, 7
        %v3819 = vsub.s32 %v3816, %v3818
        %v3820 = vrot.slane %v3812, %v3819
        %v3822 = vunpack.c.l.s4 1934713408
        %v3823 = vunpack.c.0.s8 %v3822
        %v3824 = vlaneseq
        %v3825 = vshrl.u32 %v3824, 7
        %v3826 = vsub.s32 %v3823, %v3825
        %v3827 = vrot.slane %v3813, %v3826
        %v3828 = vcombine.high %v3804, 0.0
        %v3829 = vcombine.high %v3811, 0.0
        %v3830 = vcombine.high %v3820, 0.0
        %v3831 = vcombine.high %v3827, 0.0
        %v3832 = vcombine.low %v3757, %v3761
        %v3833 = vcombine.high %v3757, %v3761
        %v3835 = vunpack.c.l.s4 1983009808
        %v3836 = vunpack.c.0.s8 %v3835
        %v3837 = vlaneseq
        %v3838 = vshrl.u32 %v3837, 7
        %v3839 = vsub.s32 %v3836, %v3838
        %v3840 = vrot.slane %v3832, %v3839
        %v3842 = vunpack.c.l.s4 1983009808
        %v3843 = vunpack.c.0.s8 %v3842
        %v3844 = vlaneseq
        %v3845 = vshrl.u32 %v3844, 7
        %v3846 = vsub.s32 %v3843, %v3845
        %v3847 = vrot.slane %v3833, %v3846
        %v3848 = vcombine.low %v3759, %v3763
        %v3849 = vcombine.high %v3759, %v3763
        %v3851 = vunpack.c.l.s4 1983009808
        %v3852 = vunpack.c.0.s8 %v3851
        %v3853 = vlaneseq
        %v3854 = vshrl.u32 %v3853, 7
        %v3855 = vsub.s32 %v3852, %v3854
        %v3856 = vrot.slane %v3848, %v3855
        %v3858 = vunpack.c.l.s4 1983009808
        %v3859 = vunpack.c.0.s8 %v3858
        %v3860 = vlaneseq
        %v3861 = vshrl.u32 %v3860, 7
        %v3862 = vsub.s32 %v3859, %v3861
        %v3863 = vrot.slane %v3849, %v3862
        %v3864 = vcombine.low %v3840, %v3856
        %v3865 = vcombine.high %v3840, %v3856
        %v3867 = vunpack.c.l.s4 1934713408
        %v3868 = vunpack.c.0.s8 %v3867
        %v3869 = vlaneseq
        %v3870 = vshrl.u32 %v3869, 7
        %v3871 = vsub.s32 %v3868, %v3870
        %v3872 = vrot.slane %v3864, %v3871
        %v3874 = vunpack.c.l.s4 1934713408
        %v3875 = vunpack.c.0.s8 %v3874
        %v3876 = vlaneseq
        %v3877 = vshrl.u32 %v3876, 7
        %v3878 = vsub.s32 %v3875, %v3877
        %v3879 = vrot.slane %v3865, %v3878
        %v3880 = vcombine.low %v3847, %v3863
        %v3881 = vcombine.high %v3847, %v3863
        %v3883 = vunpack.c.l.s4 1934713408
        %v3884 = vunpack.c.0.s8 %v3883
        %v3885 = vlaneseq
        %v3886 = vshrl.u32 %v3885, 7
        %v3887 = vsub.s32 %v3884, %v3886
        %v3888 = vrot.slane %v3880, %v3887
        %v3890 = vunpack.c.l.s4 1934713408
        %v3891 = vunpack.c.0.s8 %v3890
        %v3892 = vlaneseq
        %v3893 = vshrl.u32 %v3892, 7
        %v3894 = vsub.s32 %v3891, %v3893
        %v3895 = vrot.slane %v3881, %v3894
        %v3896 = vcombine.high %v3872, 0.0
        %v3897 = vcombine.high %v3879, 0.0
        %v3898 = vcombine.high %v3888, 0.0
        %v3899 = vcombine.high %v3895, 0.0
        %3901 = vrot.lane.b32.xlu0 %v3828, 16
        %v3902 = vpop.permute.xlu0 %3901
        %3905 = vrot.lane.b32.xlu0 %v3811, 32
        %v3906 = vpop.permute.xlu0 %3905
        %3909 = vrot.lane.b32.xlu0 %v3829, 48
        %v3910 = vpop.permute.xlu0 %3909
        %3913 = vrot.lane.b32.xlu0 %v3820, 64
        %v3914 = vpop.permute.xlu0 %3913
        %3917 = vrot.lane.b32.xlu0 %v3830, 80
        %v3918 = vpop.permute.xlu0 %3917
        %3921 = vrot.lane.b32.xlu0 %v3827, 96
        %v3922 = vpop.permute.xlu0 %3921
        %3925 = vrot.lane.b32.xlu0 %v3831, 112
        %v3926 = vpop.permute.xlu0 %3925
        %3929 = vrot.lane.b32.xlu0 %v3896, 16
        %v3930 = vpop.permute.xlu0 %3929
        %3933 = vrot.lane.b32.xlu0 %v3879, 32
        %v3934 = vpop.permute.xlu0 %3933
        %3937 = vrot.lane.b32.xlu0 %v3897, 48
        %v3938 = vpop.permute.xlu0 %3937
        %3941 = vrot.lane.b32.xlu0 %v3888, 64
        %v3942 = vpop.permute.xlu0 %3941
        %3945 = vrot.lane.b32.xlu0 %v3898, 80
        %v3946 = vpop.permute.xlu0 %3945
        %3949 = vrot.lane.b32.xlu0 %v3895, 96
        %v3950 = vpop.permute.xlu0 %3949
        %3953 = vrot.lane.b32.xlu0 %v3899, 112
        %v3954 = vpop.permute.xlu0 %3953
        %v3956 = vsel %vm723, %v3804, %v3902
        %v3957 = vsel %vm725, %v3956, %v3906
        %v3958 = vsel %vm727, %v3957, %v3910
        %v3959 = vsel %vm729, %v3958, %v3914
        %v3960 = vsel %vm731, %v3959, %v3918
        %v3961 = vsel %vm733, %v3960, %v3922
        %v3962 = vsel %vm735, %v3961, %v3926
        %v3963 = vsel %vm723, %v3872, %v3930
        %v3964 = vsel %vm725, %v3963, %v3934
        %v3965 = vsel %vm727, %v3964, %v3938
        %v3966 = vsel %vm729, %v3965, %v3942
        %v3967 = vsel %vm731, %v3966, %v3946
        %v3968 = vsel %vm733, %v3967, %v3950
        %v3969 = vsel %vm735, %v3968, %v3954
        %v3971 = vsel %vm984, %v3755, 0
        %v3974 = vsel %vm988, %v3962, 0
        %v3977 = vsel %vm988, %v3969, 0
        %3979 = vmatprep.subr.mxu0 %v3977
        %3980 = vmatpush1.msra.mxu0 %v3974
        %3981 = vmatprep.subr.mxu0 0.0
        %3982 = vmatpush1.msra.mxu0 0.0
        %3983 = vmatprep.subr.mxu0 0.0
        %3984 = vmatpush1.msra.mxu0 0.0
        %3985 = vmatprep.subr.mxu0 0.0
        %3986 = vmatpush1.msra.mxu0 0.0
        %3987 = vmatprep.subr.mxu0 0.0
        %3988 = vmatpush1.msra.mxu0 0.0
        %3989 = vmatprep.subr.mxu0 0.0
        %3990 = vmatpush1.msra.mxu0 0.0
        %3991 = vmatprep.subr.mxu0 0.0
        %3992 = vmatpush1.msra.mxu0 0.0
        %3993 = vmatprep.subr.mxu0 0.0
        %3994 = vmatpush1.msra.mxu0 0.0
        %3995 = vmatprep.subr.mxu0 0.0
        %3996 = vmatpush1.msra.mxu0 0.0
        %3997 = vmatprep.subr.mxu0 0.0
        %3998 = vmatpush1.msra.mxu0 0.0
        %3999 = vmatprep.subr.mxu0 0.0
        %4000 = vmatpush1.msra.mxu0 0.0
        %4001 = vmatprep.subr.mxu0 0.0
        %4002 = vmatpush1.msra.mxu0 0.0
        %4003 = vmatprep.subr.mxu0 0.0
        %4004 = vmatpush1.msra.mxu0 0.0
        %4005 = vmatprep.subr.mxu0 0.0
        %4006 = vmatpush1.msra.mxu0 0.0
        %4007 = vmatprep.subr.mxu0 0.0
        %4008 = vmatpush1.msra.mxu0 0.0
        %4009 = vmatprep.subr.mxu0 0.0
        %4010 = vmatpush1.msra.mxu0 0.0
        %4011 = vmatprep.subr.mxu0 0.0
        %4012 = vmatpush1.msra.mxu0 0.0
        %4013 = vmatprep.subr.mxu0 0.0
        %4014 = vmatpush1.msra.mxu0 0.0
        %4015 = vmatprep.subr.mxu0 0.0
        %4016 = vmatpush1.msra.mxu0 0.0
        %4017 = vmatprep.subr.mxu0 0.0
        %4018 = vmatpush1.msra.mxu0 0.0
        %4019 = vmatprep.subr.mxu0 0.0
        %4020 = vmatpush1.msra.mxu0 0.0
        %4021 = vmatprep.subr.mxu0 0.0
        %4022 = vmatpush1.msra.mxu0 0.0
        %4023 = vmatprep.subr.mxu0 0.0
        %4024 = vmatpush1.msra.mxu0 0.0
        %4025 = vmatprep.subr.mxu0 0.0
        %4026 = vmatpush1.msra.mxu0 0.0
        %4027 = vmatprep.subr.mxu0 0.0
        %4028 = vmatpush1.msra.mxu0 0.0
        %4029 = vmatprep.subr.mxu0 0.0
        %4030 = vmatpush1.msra.mxu0 0.0
        %4031 = vmatprep.subr.mxu0 0.0
        %4032 = vmatpush1.msra.mxu0 0.0
        %4033 = vmatprep.subr.mxu0 0.0
        %4034 = vmatpush1.msra.mxu0 0.0
        %4035 = vmatprep.subr.mxu0 0.0
        %4036 = vmatpush1.msra.mxu0 0.0
        %4037 = vmatprep.subr.mxu0 0.0
        %4038 = vmatpush1.msra.mxu0 0.0
        %4039 = vmatprep.subr.mxu0 0.0
        %4040 = vmatpush1.msra.mxu0 0.0
        %4041 = vmatprep.subr.mxu0 0.0
        %4042 = vmatpush1.msra.mxu0 0.0
        %4043 = vmatprep.mubr.f32.mxu0 0.0
        %4044 = vmatmul.mubr.f32.gmra.mrb[0].mxu0 %v3971
        %v4045 = vpop.f32.mrb[0].mxu0
        %v4046 = vadd.f32 0.0, %v4045
        %v4047 = vpop.f32.mrb[0].mxu0
        %v4048 = vadd.f32 0.0, %v4047
        %4049 = vdwg.mxu0
        %v4050 = vadd.f32 %v3752, %v4046
        %v4051 = vadd.f32 %v3753, %v4048
        %s4052 = scalar_lea.vmem %s1, 22
        %v4053 = vld [vmem:[%s4052] sm:$0x3]
        %v4054 = vld [vmem:[#allocation2 + $0x2] sm:$0xff]
        %v4055 = vld [vmem:[#allocation2 + $0xa] sm:$0xff]
        %v4056 = vld [vmem:[#allocation2 + $0x1a] sm:$0xff]
        %v4057 = vld [vmem:[#allocation2 + $0x22] sm:$0xff]
        %v4058 = vld [vmem:[#allocation2 + $0x32] sm:$0xff]
        %v4059 = vld [vmem:[#allocation2 + $0x3a] sm:$0xff]
        %v4060 = vld [vmem:[#allocation2 + $0x4a] sm:$0xff]
        %v4061 = vld [vmem:[#allocation2 + $0x52] sm:$0xff]
        %4070 = vrot.lane.b32.xlu0 %v4054, 127
        %v4071 = vpop.permute.xlu0 %4070
        %4072 = vrot.lane.b32.xlu0 %v4055, 127
        %v4073 = vpop.permute.xlu0 %4072
        %4074 = vrot.lane.b32.xlu0 %v4056, 127
        %v4075 = vpop.permute.xlu0 %4074
        %4076 = vrot.lane.b32.xlu0 %v4057, 127
        %v4077 = vpop.permute.xlu0 %4076
        %4078 = vrot.lane.b32.xlu0 %v4058, 127
        %v4079 = vpop.permute.xlu0 %4078
        %4080 = vrot.lane.b32.xlu0 %v4059, 127
        %v4081 = vpop.permute.xlu0 %4080
        %4082 = vrot.lane.b32.xlu0 %v4060, 127
        %v4083 = vpop.permute.xlu0 %4082
        %4084 = vrot.lane.b32.xlu0 %v4061, 127
        %v4085 = vpop.permute.xlu0 %4084
        %v4094 = vcombine.low %v4071, %v4079
        %v4095 = vcombine.high %v4071, %v4079
        %v4097 = vunpack.c.l.s4 1983009808
        %v4098 = vunpack.c.0.s8 %v4097
        %v4099 = vlaneseq
        %v4100 = vshrl.u32 %v4099, 7
        %v4101 = vsub.s32 %v4098, %v4100
        %v4102 = vrot.slane %v4094, %v4101
        %v4104 = vunpack.c.l.s4 1983009808
        %v4105 = vunpack.c.0.s8 %v4104
        %v4106 = vlaneseq
        %v4107 = vshrl.u32 %v4106, 7
        %v4108 = vsub.s32 %v4105, %v4107
        %v4109 = vrot.slane %v4095, %v4108
        %v4110 = vcombine.low %v4075, %v4083
        %v4111 = vcombine.high %v4075, %v4083
        %v4113 = vunpack.c.l.s4 1983009808
        %v4114 = vunpack.c.0.s8 %v4113
        %v4115 = vlaneseq
        %v4116 = vshrl.u32 %v4115, 7
        %v4117 = vsub.s32 %v4114, %v4116
        %v4118 = vrot.slane %v4110, %v4117
        %v4120 = vunpack.c.l.s4 1983009808
        %v4121 = vunpack.c.0.s8 %v4120
        %v4122 = vlaneseq
        %v4123 = vshrl.u32 %v4122, 7
        %v4124 = vsub.s32 %v4121, %v4123
        %v4125 = vrot.slane %v4111, %v4124
        %v4126 = vcombine.low %v4102, %v4118
        %v4127 = vcombine.high %v4102, %v4118
        %v4129 = vunpack.c.l.s4 1934713408
        %v4130 = vunpack.c.0.s8 %v4129
        %v4131 = vlaneseq
        %v4132 = vshrl.u32 %v4131, 7
        %v4133 = vsub.s32 %v4130, %v4132
        %v4134 = vrot.slane %v4126, %v4133
        %v4136 = vunpack.c.l.s4 1934713408
        %v4137 = vunpack.c.0.s8 %v4136
        %v4138 = vlaneseq
        %v4139 = vshrl.u32 %v4138, 7
        %v4140 = vsub.s32 %v4137, %v4139
        %v4141 = vrot.slane %v4127, %v4140
        %v4142 = vcombine.low %v4109, %v4125
        %v4143 = vcombine.high %v4109, %v4125
        %v4145 = vunpack.c.l.s4 1934713408
        %v4146 = vunpack.c.0.s8 %v4145
        %v4147 = vlaneseq
        %v4148 = vshrl.u32 %v4147, 7
        %v4149 = vsub.s32 %v4146, %v4148
        %v4150 = vrot.slane %v4142, %v4149
        %v4152 = vunpack.c.l.s4 1934713408
        %v4153 = vunpack.c.0.s8 %v4152
        %v4154 = vlaneseq
        %v4155 = vshrl.u32 %v4154, 7
        %v4156 = vsub.s32 %v4153, %v4155
        %v4157 = vrot.slane %v4143, %v4156
        %v4158 = vcombine.high %v4134, 0.0
        %v4159 = vcombine.high %v4141, 0.0
        %v4160 = vcombine.high %v4150, 0.0
        %v4161 = vcombine.high %v4157, 0.0
        %v4162 = vcombine.low %v4073, %v4081
        %v4163 = vcombine.high %v4073, %v4081
        %v4165 = vunpack.c.l.s4 1983009808
        %v4166 = vunpack.c.0.s8 %v4165
        %v4167 = vlaneseq
        %v4168 = vshrl.u32 %v4167, 7
        %v4169 = vsub.s32 %v4166, %v4168
        %v4170 = vrot.slane %v4162, %v4169
        %v4172 = vunpack.c.l.s4 1983009808
        %v4173 = vunpack.c.0.s8 %v4172
        %v4174 = vlaneseq
        %v4175 = vshrl.u32 %v4174, 7
        %v4176 = vsub.s32 %v4173, %v4175
        %v4177 = vrot.slane %v4163, %v4176
        %v4178 = vcombine.low %v4077, %v4085
        %v4179 = vcombine.high %v4077, %v4085
        %v4181 = vunpack.c.l.s4 1983009808
        %v4182 = vunpack.c.0.s8 %v4181
        %v4183 = vlaneseq
        %v4184 = vshrl.u32 %v4183, 7
        %v4185 = vsub.s32 %v4182, %v4184
        %v4186 = vrot.slane %v4178, %v4185
        %v4188 = vunpack.c.l.s4 1983009808
        %v4189 = vunpack.c.0.s8 %v4188
        %v4190 = vlaneseq
        %v4191 = vshrl.u32 %v4190, 7
        %v4192 = vsub.s32 %v4189, %v4191
        %v4193 = vrot.slane %v4179, %v4192
        %v4194 = vcombine.low %v4170, %v4186
        %v4195 = vcombine.high %v4170, %v4186
        %v4197 = vunpack.c.l.s4 1934713408
        %v4198 = vunpack.c.0.s8 %v4197
        %v4199 = vlaneseq
        %v4200 = vshrl.u32 %v4199, 7
        %v4201 = vsub.s32 %v4198, %v4200
        %v4202 = vrot.slane %v4194, %v4201
        %v4204 = vunpack.c.l.s4 1934713408
        %v4205 = vunpack.c.0.s8 %v4204
        %v4206 = vlaneseq
        %v4207 = vshrl.u32 %v4206, 7
        %v4208 = vsub.s32 %v4205, %v4207
        %v4209 = vrot.slane %v4195, %v4208
        %v4210 = vcombine.low %v4177, %v4193
        %v4211 = vcombine.high %v4177, %v4193
        %v4213 = vunpack.c.l.s4 1934713408
        %v4214 = vunpack.c.0.s8 %v4213
        %v4215 = vlaneseq
        %v4216 = vshrl.u32 %v4215, 7
        %v4217 = vsub.s32 %v4214, %v4216
        %v4218 = vrot.slane %v4210, %v4217
        %v4220 = vunpack.c.l.s4 1934713408
        %v4221 = vunpack.c.0.s8 %v4220
        %v4222 = vlaneseq
        %v4223 = vshrl.u32 %v4222, 7
        %v4224 = vsub.s32 %v4221, %v4223
        %v4225 = vrot.slane %v4211, %v4224
        %v4226 = vcombine.high %v4202, 0.0
        %v4227 = vcombine.high %v4209, 0.0
        %v4228 = vcombine.high %v4218, 0.0
        %v4229 = vcombine.high %v4225, 0.0
        %4231 = vrot.lane.b32.xlu0 %v4158, 16
        %v4232 = vpop.permute.xlu0 %4231
        %4235 = vrot.lane.b32.xlu0 %v4141, 32
        %v4236 = vpop.permute.xlu0 %4235
        %4239 = vrot.lane.b32.xlu0 %v4159, 48
        %v4240 = vpop.permute.xlu0 %4239
        %4243 = vrot.lane.b32.xlu0 %v4150, 64
        %v4244 = vpop.permute.xlu0 %4243
        %4247 = vrot.lane.b32.xlu0 %v4160, 80
        %v4248 = vpop.permute.xlu0 %4247
        %4251 = vrot.lane.b32.xlu0 %v4157, 96
        %v4252 = vpop.permute.xlu0 %4251
        %4255 = vrot.lane.b32.xlu0 %v4161, 112
        %v4256 = vpop.permute.xlu0 %4255
        %4259 = vrot.lane.b32.xlu0 %v4226, 16
        %v4260 = vpop.permute.xlu0 %4259
        %4263 = vrot.lane.b32.xlu0 %v4209, 32
        %v4264 = vpop.permute.xlu0 %4263
        %4267 = vrot.lane.b32.xlu0 %v4227, 48
        %v4268 = vpop.permute.xlu0 %4267
        %4271 = vrot.lane.b32.xlu0 %v4218, 64
        %v4272 = vpop.permute.xlu0 %4271
        %4275 = vrot.lane.b32.xlu0 %v4228, 80
        %v4276 = vpop.permute.xlu0 %4275
        %4279 = vrot.lane.b32.xlu0 %v4225, 96
        %v4280 = vpop.permute.xlu0 %4279
        %4283 = vrot.lane.b32.xlu0 %v4229, 112
        %v4284 = vpop.permute.xlu0 %4283
        %v4286 = vsel %vm723, %v4134, %v4232
        %v4287 = vsel %vm725, %v4286, %v4236
        %v4288 = vsel %vm727, %v4287, %v4240
        %v4289 = vsel %vm729, %v4288, %v4244
        %v4290 = vsel %vm731, %v4289, %v4248
        %v4291 = vsel %vm733, %v4290, %v4252
        %v4292 = vsel %vm735, %v4291, %v4256
        %v4293 = vsel %vm723, %v4202, %v4260
        %v4294 = vsel %vm725, %v4293, %v4264
        %v4295 = vsel %vm727, %v4294, %v4268
        %v4296 = vsel %vm729, %v4295, %v4272
        %v4297 = vsel %vm731, %v4296, %v4276
        %v4298 = vsel %vm733, %v4297, %v4280
        %v4299 = vsel %vm735, %v4298, %v4284
        %v4301 = vsel %vm984, %v4053, 0
        %v4304 = vsel %vm988, %v4292, 0
        %v4307 = vsel %vm988, %v4299, 0
        %4309 = vmatprep.subr.mxu0 %v4307
        %4310 = vmatpush1.msra.mxu0 %v4304
        %4311 = vmatprep.subr.mxu0 0.0
        %4312 = vmatpush1.msra.mxu0 0.0
        %4313 = vmatprep.subr.mxu0 0.0
        %4314 = vmatpush1.msra.mxu0 0.0
        %4315 = vmatprep.subr.mxu0 0.0
        %4316 = vmatpush1.msra.mxu0 0.0
        %4317 = vmatprep.subr.mxu0 0.0
        %4318 = vmatpush1.msra.mxu0 0.0
        %4319 = vmatprep.subr.mxu0 0.0
        %4320 = vmatpush1.msra.mxu0 0.0
        %4321 = vmatprep.subr.mxu0 0.0
        %4322 = vmatpush1.msra.mxu0 0.0
        %4323 = vmatprep.subr.mxu0 0.0
        %4324 = vmatpush1.msra.mxu0 0.0
        %4325 = vmatprep.subr.mxu0 0.0
        %4326 = vmatpush1.msra.mxu0 0.0
        %4327 = vmatprep.subr.mxu0 0.0
        %4328 = vmatpush1.msra.mxu0 0.0
        %4329 = vmatprep.subr.mxu0 0.0
        %4330 = vmatpush1.msra.mxu0 0.0
        %4331 = vmatprep.subr.mxu0 0.0
        %4332 = vmatpush1.msra.mxu0 0.0
        %4333 = vmatprep.subr.mxu0 0.0
        %4334 = vmatpush1.msra.mxu0 0.0
        %4335 = vmatprep.subr.mxu0 0.0
        %4336 = vmatpush1.msra.mxu0 0.0
        %4337 = vmatprep.subr.mxu0 0.0
        %4338 = vmatpush1.msra.mxu0 0.0
        %4339 = vmatprep.subr.mxu0 0.0
        %4340 = vmatpush1.msra.mxu0 0.0
        %4341 = vmatprep.subr.mxu0 0.0
        %4342 = vmatpush1.msra.mxu0 0.0
        %4343 = vmatprep.subr.mxu0 0.0
        %4344 = vmatpush1.msra.mxu0 0.0
        %4345 = vmatprep.subr.mxu0 0.0
        %4346 = vmatpush1.msra.mxu0 0.0
        %4347 = vmatprep.subr.mxu0 0.0
        %4348 = vmatpush1.msra.mxu0 0.0
        %4349 = vmatprep.subr.mxu0 0.0
        %4350 = vmatpush1.msra.mxu0 0.0
        %4351 = vmatprep.subr.mxu0 0.0
        %4352 = vmatpush1.msra.mxu0 0.0
        %4353 = vmatprep.subr.mxu0 0.0
        %4354 = vmatpush1.msra.mxu0 0.0
        %4355 = vmatprep.subr.mxu0 0.0
        %4356 = vmatpush1.msra.mxu0 0.0
        %4357 = vmatprep.subr.mxu0 0.0
        %4358 = vmatpush1.msra.mxu0 0.0
        %4359 = vmatprep.subr.mxu0 0.0
        %4360 = vmatpush1.msra.mxu0 0.0
        %4361 = vmatprep.subr.mxu0 0.0
        %4362 = vmatpush1.msra.mxu0 0.0
        %4363 = vmatprep.subr.mxu0 0.0
        %4364 = vmatpush1.msra.mxu0 0.0
        %4365 = vmatprep.subr.mxu0 0.0
        %4366 = vmatpush1.msra.mxu0 0.0
        %4367 = vmatprep.subr.mxu0 0.0
        %4368 = vmatpush1.msra.mxu0 0.0
        %4369 = vmatprep.subr.mxu0 0.0
        %4370 = vmatpush1.msra.mxu0 0.0
        %4371 = vmatprep.subr.mxu0 0.0
        %4372 = vmatpush1.msra.mxu0 0.0
        %4373 = vmatprep.mubr.f32.mxu0 0.0
        %4374 = vmatmul.mubr.f32.gmra.mrb[0].mxu0 %v4301
        %v4375 = vpop.f32.mrb[0].mxu0
        %v4376 = vadd.f32 0.0, %v4375
        %v4377 = vpop.f32.mrb[0].mxu0
        %v4378 = vadd.f32 0.0, %v4377
        %4379 = vdwg.mxu0
        %v4380 = vadd.f32 %v4050, %v4376
        %v4381 = vadd.f32 %v4051, %v4378
        %s4382 = scalar_lea.vmem %s1, 24
        %v4383 = vld [vmem:[%s4382] sm:$0x3]
        %v4384 = vld [vmem:[#allocation2 + $0x2] sm:$0xff]
        %v4385 = vld [vmem:[#allocation2 + $0xa] sm:$0xff]
        %v4386 = vld [vmem:[#allocation2 + $0x1a] sm:$0xff]
        %v4387 = vld [vmem:[#allocation2 + $0x22] sm:$0xff]
        %v4388 = vld [vmem:[#allocation2 + $0x32] sm:$0xff]
        %v4389 = vld [vmem:[#allocation2 + $0x3a] sm:$0xff]
        %v4390 = vld [vmem:[#allocation2 + $0x4a] sm:$0xff]
        %v4391 = vld [vmem:[#allocation2 + $0x52] sm:$0xff]
        %4400 = vrot.lane.b32.xlu0 %v4384, 126
        %v4401 = vpop.permute.xlu0 %4400
        %4402 = vrot.lane.b32.xlu0 %v4385, 126
        %v4403 = vpop.permute.xlu0 %4402
        %4404 = vrot.lane.b32.xlu0 %v4386, 126
        %v4405 = vpop.permute.xlu0 %4404
        %4406 = vrot.lane.b32.xlu0 %v4387, 126
        %v4407 = vpop.permute.xlu0 %4406
        %4408 = vrot.lane.b32.xlu0 %v4388, 126
        %v4409 = vpop.permute.xlu0 %4408
        %4410 = vrot.lane.b32.xlu0 %v4389, 126
        %v4411 = vpop.permute.xlu0 %4410
        %4412 = vrot.lane.b32.xlu0 %v4390, 126
        %v4413 = vpop.permute.xlu0 %4412
        %4414 = vrot.lane.b32.xlu0 %v4391, 126
        %v4415 = vpop.permute.xlu0 %4414
        %v4424 = vcombine.low %v4401, %v4409
        %v4425 = vcombine.high %v4401, %v4409
        %v4427 = vunpack.c.l.s4 1983009808
        %v4428 = vunpack.c.0.s8 %v4427
        %v4429 = vlaneseq
        %v4430 = vshrl.u32 %v4429, 7
        %v4431 = vsub.s32 %v4428, %v4430
        %v4432 = vrot.slane %v4424, %v4431
        %v4434 = vunpack.c.l.s4 1983009808
        %v4435 = vunpack.c.0.s8 %v4434
        %v4436 = vlaneseq
        %v4437 = vshrl.u32 %v4436, 7
        %v4438 = vsub.s32 %v4435, %v4437
        %v4439 = vrot.slane %v4425, %v4438
        %v4440 = vcombine.low %v4405, %v4413
        %v4441 = vcombine.high %v4405, %v4413
        %v4443 = vunpack.c.l.s4 1983009808
        %v4444 = vunpack.c.0.s8 %v4443
        %v4445 = vlaneseq
        %v4446 = vshrl.u32 %v4445, 7
        %v4447 = vsub.s32 %v4444, %v4446
        %v4448 = vrot.slane %v4440, %v4447
        %v4450 = vunpack.c.l.s4 1983009808
        %v4451 = vunpack.c.0.s8 %v4450
        %v4452 = vlaneseq
        %v4453 = vshrl.u32 %v4452, 7
        %v4454 = vsub.s32 %v4451, %v4453
        %v4455 = vrot.slane %v4441, %v4454
        %v4456 = vcombine.low %v4432, %v4448
        %v4457 = vcombine.high %v4432, %v4448
        %v4459 = vunpack.c.l.s4 1934713408
        %v4460 = vunpack.c.0.s8 %v4459
        %v4461 = vlaneseq
        %v4462 = vshrl.u32 %v4461, 7
        %v4463 = vsub.s32 %v4460, %v4462
        %v4464 = vrot.slane %v4456, %v4463
        %v4466 = vunpack.c.l.s4 1934713408
        %v4467 = vunpack.c.0.s8 %v4466
        %v4468 = vlaneseq
        %v4469 = vshrl.u32 %v4468, 7
        %v4470 = vsub.s32 %v4467, %v4469
        %v4471 = vrot.slane %v4457, %v4470
        %v4472 = vcombine.low %v4439, %v4455
        %v4473 = vcombine.high %v4439, %v4455
        %v4475 = vunpack.c.l.s4 1934713408
        %v4476 = vunpack.c.0.s8 %v4475
        %v4477 = vlaneseq
        %v4478 = vshrl.u32 %v4477, 7
        %v4479 = vsub.s32 %v4476, %v4478
        %v4480 = vrot.slane %v4472, %v4479
        %v4482 = vunpack.c.l.s4 1934713408
        %v4483 = vunpack.c.0.s8 %v4482
        %v4484 = vlaneseq
        %v4485 = vshrl.u32 %v4484, 7
        %v4486 = vsub.s32 %v4483, %v4485
        %v4487 = vrot.slane %v4473, %v4486
        %v4488 = vcombine.high %v4464, 0.0
        %v4489 = vcombine.high %v4471, 0.0
        %v4490 = vcombine.high %v4480, 0.0
        %v4491 = vcombine.high %v4487, 0.0
        %v4492 = vcombine.low %v4403, %v4411
        %v4493 = vcombine.high %v4403, %v4411
        %v4495 = vunpack.c.l.s4 1983009808
        %v4496 = vunpack.c.0.s8 %v4495
        %v4497 = vlaneseq
        %v4498 = vshrl.u32 %v4497, 7
        %v4499 = vsub.s32 %v4496, %v4498
        %v4500 = vrot.slane %v4492, %v4499
        %v4502 = vunpack.c.l.s4 1983009808
        %v4503 = vunpack.c.0.s8 %v4502
        %v4504 = vlaneseq
        %v4505 = vshrl.u32 %v4504, 7
        %v4506 = vsub.s32 %v4503, %v4505
        %v4507 = vrot.slane %v4493, %v4506
        %v4508 = vcombine.low %v4407, %v4415
        %v4509 = vcombine.high %v4407, %v4415
        %v4511 = vunpack.c.l.s4 1983009808
        %v4512 = vunpack.c.0.s8 %v4511
        %v4513 = vlaneseq
        %v4514 = vshrl.u32 %v4513, 7
        %v4515 = vsub.s32 %v4512, %v4514
        %v4516 = vrot.slane %v4508, %v4515
        %v4518 = vunpack.c.l.s4 1983009808
        %v4519 = vunpack.c.0.s8 %v4518
        %v4520 = vlaneseq
        %v4521 = vshrl.u32 %v4520, 7
        %v4522 = vsub.s32 %v4519, %v4521
        %v4523 = vrot.slane %v4509, %v4522
        %v4524 = vcombine.low %v4500, %v4516
        %v4525 = vcombine.high %v4500, %v4516
        %v4527 = vunpack.c.l.s4 1934713408
        %v4528 = vunpack.c.0.s8 %v4527
        %v4529 = vlaneseq
        %v4530 = vshrl.u32 %v4529, 7
        %v4531 = vsub.s32 %v4528, %v4530
        %v4532 = vrot.slane %v4524, %v4531
        %v4534 = vunpack.c.l.s4 1934713408
        %v4535 = vunpack.c.0.s8 %v4534
        %v4536 = vlaneseq
        %v4537 = vshrl.u32 %v4536, 7
        %v4538 = vsub.s32 %v4535, %v4537
        %v4539 = vrot.slane %v4525, %v4538
        %v4540 = vcombine.low %v4507, %v4523
        %v4541 = vcombine.high %v4507, %v4523
        %v4543 = vunpack.c.l.s4 1934713408
        %v4544 = vunpack.c.0.s8 %v4543
        %v4545 = vlaneseq
        %v4546 = vshrl.u32 %v4545, 7
        %v4547 = vsub.s32 %v4544, %v4546
        %v4548 = vrot.slane %v4540, %v4547
        %v4550 = vunpack.c.l.s4 1934713408
        %v4551 = vunpack.c.0.s8 %v4550
        %v4552 = vlaneseq
        %v4553 = vshrl.u32 %v4552, 7
        %v4554 = vsub.s32 %v4551, %v4553
        %v4555 = vrot.slane %v4541, %v4554
        %v4556 = vcombine.high %v4532, 0.0
        %v4557 = vcombine.high %v4539, 0.0
        %v4558 = vcombine.high %v4548, 0.0
        %v4559 = vcombine.high %v4555, 0.0
        %4561 = vrot.lane.b32.xlu0 %v4488, 16
        %v4562 = vpop.permute.xlu0 %4561
        %4565 = vrot.lane.b32.xlu0 %v4471, 32
        %v4566 = vpop.permute.xlu0 %4565
        %4569 = vrot.lane.b32.xlu0 %v4489, 48
        %v4570 = vpop.permute.xlu0 %4569
        %4573 = vrot.lane.b32.xlu0 %v4480, 64
        %v4574 = vpop.permute.xlu0 %4573
        %4577 = vrot.lane.b32.xlu0 %v4490, 80
        %v4578 = vpop.permute.xlu0 %4577
        %4581 = vrot.lane.b32.xlu0 %v4487, 96
        %v4582 = vpop.permute.xlu0 %4581
        %4585 = vrot.lane.b32.xlu0 %v4491, 112
        %v4586 = vpop.permute.xlu0 %4585
        %4589 = vrot.lane.b32.xlu0 %v4556, 16
        %v4590 = vpop.permute.xlu0 %4589
        %4593 = vrot.lane.b32.xlu0 %v4539, 32
        %v4594 = vpop.permute.xlu0 %4593
        %4597 = vrot.lane.b32.xlu0 %v4557, 48
        %v4598 = vpop.permute.xlu0 %4597
        %4601 = vrot.lane.b32.xlu0 %v4548, 64
        %v4602 = vpop.permute.xlu0 %4601
        %4605 = vrot.lane.b32.xlu0 %v4558, 80
        %v4606 = vpop.permute.xlu0 %4605
        %4609 = vrot.lane.b32.xlu0 %v4555, 96
        %v4610 = vpop.permute.xlu0 %4609
        %4613 = vrot.lane.b32.xlu0 %v4559, 112
        %v4614 = vpop.permute.xlu0 %4613
        %v4616 = vsel %vm723, %v4464, %v4562
        %v4617 = vsel %vm725, %v4616, %v4566
        %v4618 = vsel %vm727, %v4617, %v4570
        %v4619 = vsel %vm729, %v4618, %v4574
        %v4620 = vsel %vm731, %v4619, %v4578
        %v4621 = vsel %vm733, %v4620, %v4582
        %v4622 = vsel %vm735, %v4621, %v4586
        %v4623 = vsel %vm723, %v4532, %v4590
        %v4624 = vsel %vm725, %v4623, %v4594
        %v4625 = vsel %vm727, %v4624, %v4598
        %v4626 = vsel %vm729, %v4625, %v4602
        %v4627 = vsel %vm731, %v4626, %v4606
        %v4628 = vsel %vm733, %v4627, %v4610
        %v4629 = vsel %vm735, %v4628, %v4614
        %v4631 = vsel %vm984, %v4383, 0
        %v4634 = vsel %vm988, %v4622, 0
        %v4637 = vsel %vm988, %v4629, 0
        %4639 = vmatprep.subr.mxu0 %v4637
        %4640 = vmatpush1.msra.mxu0 %v4634
        %4641 = vmatprep.subr.mxu0 0.0
        %4642 = vmatpush1.msra.mxu0 0.0
        %4643 = vmatprep.subr.mxu0 0.0
        %4644 = vmatpush1.msra.mxu0 0.0
        %4645 = vmatprep.subr.mxu0 0.0
        %4646 = vmatpush1.msra.mxu0 0.0
        %4647 = vmatprep.subr.mxu0 0.0
        %4648 = vmatpush1.msra.mxu0 0.0
        %4649 = vmatprep.subr.mxu0 0.0
        %4650 = vmatpush1.msra.mxu0 0.0
        %4651 = vmatprep.subr.mxu0 0.0
        %4652 = vmatpush1.msra.mxu0 0.0
        %4653 = vmatprep.subr.mxu0 0.0
        %4654 = vmatpush1.msra.mxu0 0.0
        %4655 = vmatprep.subr.mxu0 0.0
        %4656 = vmatpush1.msra.mxu0 0.0
        %4657 = vmatprep.subr.mxu0 0.0
        %4658 = vmatpush1.msra.mxu0 0.0
        %4659 = vmatprep.subr.mxu0 0.0
        %4660 = vmatpush1.msra.mxu0 0.0
        %4661 = vmatprep.subr.mxu0 0.0
        %4662 = vmatpush1.msra.mxu0 0.0
        %4663 = vmatprep.subr.mxu0 0.0
        %4664 = vmatpush1.msra.mxu0 0.0
        %4665 = vmatprep.subr.mxu0 0.0
        %4666 = vmatpush1.msra.mxu0 0.0
        %4667 = vmatprep.subr.mxu0 0.0
        %4668 = vmatpush1.msra.mxu0 0.0
        %4669 = vmatprep.subr.mxu0 0.0
        %4670 = vmatpush1.msra.mxu0 0.0
        %4671 = vmatprep.subr.mxu0 0.0
        %4672 = vmatpush1.msra.mxu0 0.0
        %4673 = vmatprep.subr.mxu0 0.0
        %4674 = vmatpush1.msra.mxu0 0.0
        %4675 = vmatprep.subr.mxu0 0.0
        %4676 = vmatpush1.msra.mxu0 0.0
        %4677 = vmatprep.subr.mxu0 0.0
        %4678 = vmatpush1.msra.mxu0 0.0
        %4679 = vmatprep.subr.mxu0 0.0
        %4680 = vmatpush1.msra.mxu0 0.0
        %4681 = vmatprep.subr.mxu0 0.0
        %4682 = vmatpush1.msra.mxu0 0.0
        %4683 = vmatprep.subr.mxu0 0.0
        %4684 = vmatpush1.msra.mxu0 0.0
        %4685 = vmatprep.subr.mxu0 0.0
        %4686 = vmatpush1.msra.mxu0 0.0
        %4687 = vmatprep.subr.mxu0 0.0
        %4688 = vmatpush1.msra.mxu0 0.0
        %4689 = vmatprep.subr.mxu0 0.0
        %4690 = vmatpush1.msra.mxu0 0.0
        %4691 = vmatprep.subr.mxu0 0.0
        %4692 = vmatpush1.msra.mxu0 0.0
        %4693 = vmatprep.subr.mxu0 0.0
        %4694 = vmatpush1.msra.mxu0 0.0
        %4695 = vmatprep.subr.mxu0 0.0
        %4696 = vmatpush1.msra.mxu0 0.0
        %4697 = vmatprep.subr.mxu0 0.0
        %4698 = vmatpush1.msra.mxu0 0.0
        %4699 = vmatprep.subr.mxu0 0.0
        %4700 = vmatpush1.msra.mxu0 0.0
        %4701 = vmatprep.subr.mxu0 0.0
        %4702 = vmatpush1.msra.mxu0 0.0
        %4703 = vmatprep.mubr.f32.mxu0 0.0
        %4704 = vmatmul.mubr.f32.gmra.mrb[0].mxu0 %v4631
        %v4705 = vpop.f32.mrb[0].mxu0
        %v4706 = vadd.f32 0.0, %v4705
        %v4707 = vpop.f32.mrb[0].mxu0
        %v4708 = vadd.f32 0.0, %v4707
        %4709 = vdwg.mxu0
        %v4710 = vadd.f32 %v4380, %v4706
        %v4711 = vadd.f32 %v4381, %v4708
        %s4712 = scalar_lea.vmem %s1, 26
        %v4713 = vld [vmem:[%s4712] sm:$0x3]
        %v4714 = vld [vmem:[#allocation2 + $0x2] sm:$0xff]
        %v4715 = vld [vmem:[#allocation2 + $0xa] sm:$0xff]
        %v4716 = vld [vmem:[#allocation2 + $0x1a] sm:$0xff]
        %v4717 = vld [vmem:[#allocation2 + $0x22] sm:$0xff]
        %v4718 = vld [vmem:[#allocation2 + $0x32] sm:$0xff]
        %v4719 = vld [vmem:[#allocation2 + $0x3a] sm:$0xff]
        %v4720 = vld [vmem:[#allocation2 + $0x4a] sm:$0xff]
        %v4721 = vld [vmem:[#allocation2 + $0x52] sm:$0xff]
        %4730 = vrot.lane.b32.xlu0 %v4714, 125
        %v4731 = vpop.permute.xlu0 %4730
        %4732 = vrot.lane.b32.xlu0 %v4715, 125
        %v4733 = vpop.permute.xlu0 %4732
        %4734 = vrot.lane.b32.xlu0 %v4716, 125
        %v4735 = vpop.permute.xlu0 %4734
        %4736 = vrot.lane.b32.xlu0 %v4717, 125
        %v4737 = vpop.permute.xlu0 %4736
        %4738 = vrot.lane.b32.xlu0 %v4718, 125
        %v4739 = vpop.permute.xlu0 %4738
        %4740 = vrot.lane.b32.xlu0 %v4719, 125
        %v4741 = vpop.permute.xlu0 %4740
        %4742 = vrot.lane.b32.xlu0 %v4720, 125
        %v4743 = vpop.permute.xlu0 %4742
        %4744 = vrot.lane.b32.xlu0 %v4721, 125
        %v4745 = vpop.permute.xlu0 %4744
        %v4754 = vcombine.low %v4731, %v4739
        %v4755 = vcombine.high %v4731, %v4739
        %v4757 = vunpack.c.l.s4 1983009808
        %v4758 = vunpack.c.0.s8 %v4757
        %v4759 = vlaneseq
        %v4760 = vshrl.u32 %v4759, 7
        %v4761 = vsub.s32 %v4758, %v4760
        %v4762 = vrot.slane %v4754, %v4761
        %v4764 = vunpack.c.l.s4 1983009808
        %v4765 = vunpack.c.0.s8 %v4764
        %v4766 = vlaneseq
        %v4767 = vshrl.u32 %v4766, 7
        %v4768 = vsub.s32 %v4765, %v4767
        %v4769 = vrot.slane %v4755, %v4768
        %v4770 = vcombine.low %v4735, %v4743
        %v4771 = vcombine.high %v4735, %v4743
        %v4773 = vunpack.c.l.s4 1983009808
        %v4774 = vunpack.c.0.s8 %v4773
        %v4775 = vlaneseq
        %v4776 = vshrl.u32 %v4775, 7
        %v4777 = vsub.s32 %v4774, %v4776
        %v4778 = vrot.slane %v4770, %v4777
        %v4780 = vunpack.c.l.s4 1983009808
        %v4781 = vunpack.c.0.s8 %v4780
        %v4782 = vlaneseq
        %v4783 = vshrl.u32 %v4782, 7
        %v4784 = vsub.s32 %v4781, %v4783
        %v4785 = vrot.slane %v4771, %v4784
        %v4786 = vcombine.low %v4762, %v4778
        %v4787 = vcombine.high %v4762, %v4778
        %v4789 = vunpack.c.l.s4 1934713408
        %v4790 = vunpack.c.0.s8 %v4789
        %v4791 = vlaneseq
        %v4792 = vshrl.u32 %v4791, 7
        %v4793 = vsub.s32 %v4790, %v4792
        %v4794 = vrot.slane %v4786, %v4793
        %v4796 = vunpack.c.l.s4 1934713408
        %v4797 = vunpack.c.0.s8 %v4796
        %v4798 = vlaneseq
        %v4799 = vshrl.u32 %v4798, 7
        %v4800 = vsub.s32 %v4797, %v4799
        %v4801 = vrot.slane %v4787, %v4800
        %v4802 = vcombine.low %v4769, %v4785
        %v4803 = vcombine.high %v4769, %v4785
        %v4805 = vunpack.c.l.s4 1934713408
        %v4806 = vunpack.c.0.s8 %v4805
        %v4807 = vlaneseq
        %v4808 = vshrl.u32 %v4807, 7
        %v4809 = vsub.s32 %v4806, %v4808
        %v4810 = vrot.slane %v4802, %v4809
        %v4812 = vunpack.c.l.s4 1934713408
        %v4813 = vunpack.c.0.s8 %v4812
        %v4814 = vlaneseq
        %v4815 = vshrl.u32 %v4814, 7
        %v4816 = vsub.s32 %v4813, %v4815
        %v4817 = vrot.slane %v4803, %v4816
        %v4818 = vcombine.high %v4794, 0.0
        %v4819 = vcombine.high %v4801, 0.0
        %v4820 = vcombine.high %v4810, 0.0
        %v4821 = vcombine.high %v4817, 0.0
        %v4822 = vcombine.low %v4733, %v4741
        %v4823 = vcombine.high %v4733, %v4741
        %v4825 = vunpack.c.l.s4 1983009808
        %v4826 = vunpack.c.0.s8 %v4825
        %v4827 = vlaneseq
        %v4828 = vshrl.u32 %v4827, 7
        %v4829 = vsub.s32 %v4826, %v4828
        %v4830 = vrot.slane %v4822, %v4829
        %v4832 = vunpack.c.l.s4 1983009808
        %v4833 = vunpack.c.0.s8 %v4832
        %v4834 = vlaneseq
        %v4835 = vshrl.u32 %v4834, 7
        %v4836 = vsub.s32 %v4833, %v4835
        %v4837 = vrot.slane %v4823, %v4836
        %v4838 = vcombine.low %v4737, %v4745
        %v4839 = vcombine.high %v4737, %v4745
        %v4841 = vunpack.c.l.s4 1983009808
        %v4842 = vunpack.c.0.s8 %v4841
        %v4843 = vlaneseq
        %v4844 = vshrl.u32 %v4843, 7
        %v4845 = vsub.s32 %v4842, %v4844
        %v4846 = vrot.slane %v4838, %v4845
        %v4848 = vunpack.c.l.s4 1983009808
        %v4849 = vunpack.c.0.s8 %v4848
        %v4850 = vlaneseq
        %v4851 = vshrl.u32 %v4850, 7
        %v4852 = vsub.s32 %v4849, %v4851
        %v4853 = vrot.slane %v4839, %v4852
        %v4854 = vcombine.low %v4830, %v4846
        %v4855 = vcombine.high %v4830, %v4846
        %v4857 = vunpack.c.l.s4 1934713408
        %v4858 = vunpack.c.0.s8 %v4857
        %v4859 = vlaneseq
        %v4860 = vshrl.u32 %v4859, 7
        %v4861 = vsub.s32 %v4858, %v4860
        %v4862 = vrot.slane %v4854, %v4861
        %v4864 = vunpack.c.l.s4 1934713408
        %v4865 = vunpack.c.0.s8 %v4864
        %v4866 = vlaneseq
        %v4867 = vshrl.u32 %v4866, 7
        %v4868 = vsub.s32 %v4865, %v4867
        %v4869 = vrot.slane %v4855, %v4868
        %v4870 = vcombine.low %v4837, %v4853
        %v4871 = vcombine.high %v4837, %v4853
        %v4873 = vunpack.c.l.s4 1934713408
        %v4874 = vunpack.c.0.s8 %v4873
        %v4875 = vlaneseq
        %v4876 = vshrl.u32 %v4875, 7
        %v4877 = vsub.s32 %v4874, %v4876
        %v4878 = vrot.slane %v4870, %v4877
        %v4880 = vunpack.c.l.s4 1934713408
        %v4881 = vunpack.c.0.s8 %v4880
        %v4882 = vlaneseq
        %v4883 = vshrl.u32 %v4882, 7
        %v4884 = vsub.s32 %v4881, %v4883
        %v4885 = vrot.slane %v4871, %v4884
        %v4886 = vcombine.high %v4862, 0.0
        %v4887 = vcombine.high %v4869, 0.0
        %v4888 = vcombine.high %v4878, 0.0
        %v4889 = vcombine.high %v4885, 0.0
        %4891 = vrot.lane.b32.xlu0 %v4818, 16
        %v4892 = vpop.permute.xlu0 %4891
        %4895 = vrot.lane.b32.xlu0 %v4801, 32
        %v4896 = vpop.permute.xlu0 %4895
        %4899 = vrot.lane.b32.xlu0 %v4819, 48
        %v4900 = vpop.permute.xlu0 %4899
        %4903 = vrot.lane.b32.xlu0 %v4810, 64
        %v4904 = vpop.permute.xlu0 %4903
        %4907 = vrot.lane.b32.xlu0 %v4820, 80
        %v4908 = vpop.permute.xlu0 %4907
        %4911 = vrot.lane.b32.xlu0 %v4817, 96
        %v4912 = vpop.permute.xlu0 %4911
        %4915 = vrot.lane.b32.xlu0 %v4821, 112
        %v4916 = vpop.permute.xlu0 %4915
        %4919 = vrot.lane.b32.xlu0 %v4886, 16
        %v4920 = vpop.permute.xlu0 %4919
        %4923 = vrot.lane.b32.xlu0 %v4869, 32
        %v4924 = vpop.permute.xlu0 %4923
        %4927 = vrot.lane.b32.xlu0 %v4887, 48
        %v4928 = vpop.permute.xlu0 %4927
        %4931 = vrot.lane.b32.xlu0 %v4878, 64
        %v4932 = vpop.permute.xlu0 %4931
        %4935 = vrot.lane.b32.xlu0 %v4888, 80
        %v4936 = vpop.permute.xlu0 %4935
        %4939 = vrot.lane.b32.xlu0 %v4885, 96
        %v4940 = vpop.permute.xlu0 %4939
        %4943 = vrot.lane.b32.xlu0 %v4889, 112
        %v4944 = vpop.permute.xlu0 %4943
        %v4946 = vsel %vm723, %v4794, %v4892
        %v4947 = vsel %vm725, %v4946, %v4896
        %v4948 = vsel %vm727, %v4947, %v4900
        %v4949 = vsel %vm729, %v4948, %v4904
        %v4950 = vsel %vm731, %v4949, %v4908
        %v4951 = vsel %vm733, %v4950, %v4912
        %v4952 = vsel %vm735, %v4951, %v4916
        %v4953 = vsel %vm723, %v4862, %v4920
        %v4954 = vsel %vm725, %v4953, %v4924
        %v4955 = vsel %vm727, %v4954, %v4928
        %v4956 = vsel %vm729, %v4955, %v4932
        %v4957 = vsel %vm731, %v4956, %v4936
        %v4958 = vsel %vm733, %v4957, %v4940
        %v4959 = vsel %vm735, %v4958, %v4944
        %v4961 = vsel %vm984, %v4713, 0
        %v4964 = vsel %vm988, %v4952, 0
        %v4967 = vsel %vm988, %v4959, 0
        %4969 = vmatprep.subr.mxu0 %v4967
        %4970 = vmatpush1.msra.mxu0 %v4964
        %4971 = vmatprep.subr.mxu0 0.0
        %4972 = vmatpush1.msra.mxu0 0.0
        %4973 = vmatprep.subr.mxu0 0.0
        %4974 = vmatpush1.msra.mxu0 0.0
        %4975 = vmatprep.subr.mxu0 0.0
        %4976 = vmatpush1.msra.mxu0 0.0
        %4977 = vmatprep.subr.mxu0 0.0
        %4978 = vmatpush1.msra.mxu0 0.0
        %4979 = vmatprep.subr.mxu0 0.0
        %4980 = vmatpush1.msra.mxu0 0.0
        %4981 = vmatprep.subr.mxu0 0.0
        %4982 = vmatpush1.msra.mxu0 0.0
        %4983 = vmatprep.subr.mxu0 0.0
        %4984 = vmatpush1.msra.mxu0 0.0
        %4985 = vmatprep.subr.mxu0 0.0
        %4986 = vmatpush1.msra.mxu0 0.0
        %4987 = vmatprep.subr.mxu0 0.0
        %4988 = vmatpush1.msra.mxu0 0.0
        %4989 = vmatprep.subr.mxu0 0.0
        %4990 = vmatpush1.msra.mxu0 0.0
        %4991 = vmatprep.subr.mxu0 0.0
        %4992 = vmatpush1.msra.mxu0 0.0
        %4993 = vmatprep.subr.mxu0 0.0
        %4994 = vmatpush1.msra.mxu0 0.0
        %4995 = vmatprep.subr.mxu0 0.0
        %4996 = vmatpush1.msra.mxu0 0.0
        %4997 = vmatprep.subr.mxu0 0.0
        %4998 = vmatpush1.msra.mxu0 0.0
        %4999 = vmatprep.subr.mxu0 0.0
        %5000 = vmatpush1.msra.mxu0 0.0
        %5001 = vmatprep.subr.mxu0 0.0
        %5002 = vmatpush1.msra.mxu0 0.0
        %5003 = vmatprep.subr.mxu0 0.0
        %5004 = vmatpush1.msra.mxu0 0.0
        %5005 = vmatprep.subr.mxu0 0.0
        %5006 = vmatpush1.msra.mxu0 0.0
        %5007 = vmatprep.subr.mxu0 0.0
        %5008 = vmatpush1.msra.mxu0 0.0
        %5009 = vmatprep.subr.mxu0 0.0
        %5010 = vmatpush1.msra.mxu0 0.0
        %5011 = vmatprep.subr.mxu0 0.0
        %5012 = vmatpush1.msra.mxu0 0.0
        %5013 = vmatprep.subr.mxu0 0.0
        %5014 = vmatpush1.msra.mxu0 0.0
        %5015 = vmatprep.subr.mxu0 0.0
        %5016 = vmatpush1.msra.mxu0 0.0
        %5017 = vmatprep.subr.mxu0 0.0
        %5018 = vmatpush1.msra.mxu0 0.0
        %5019 = vmatprep.subr.mxu0 0.0
        %5020 = vmatpush1.msra.mxu0 0.0
        %5021 = vmatprep.subr.mxu0 0.0
        %5022 = vmatpush1.msra.mxu0 0.0
        %5023 = vmatprep.subr.mxu0 0.0
        %5024 = vmatpush1.msra.mxu0 0.0
        %5025 = vmatprep.subr.mxu0 0.0
        %5026 = vmatpush1.msra.mxu0 0.0
        %5027 = vmatprep.subr.mxu0 0.0
        %5028 = vmatpush1.msra.mxu0 0.0
        %5029 = vmatprep.subr.mxu0 0.0
        %5030 = vmatpush1.msra.mxu0 0.0
        %5031 = vmatprep.subr.mxu0 0.0
        %5032 = vmatpush1.msra.mxu0 0.0
        %5033 = vmatprep.mubr.f32.mxu0 0.0
        %5034 = vmatmul.mubr.f32.gmra.mrb[0].mxu0 %v4961
        %v5035 = vpop.f32.mrb[0].mxu0
        %v5036 = vadd.f32 0.0, %v5035
        %v5037 = vpop.f32.mrb[0].mxu0
        %v5038 = vadd.f32 0.0, %v5037
        %5039 = vdwg.mxu0
        %v5040 = vadd.f32 %v4710, %v5036
        %v5041 = vadd.f32 %v4711, %v5038
        %s5042 = scalar_lea.vmem %s1, 28
        %v5043 = vld [vmem:[%s5042] sm:$0x3]
        %v5044 = vld [vmem:[#allocation2 + $0x2] sm:$0xff]
        %v5045 = vld [vmem:[#allocation2 + $0xa] sm:$0xff]
        %v5046 = vld [vmem:[#allocation2 + $0x1a] sm:$0xff]
        %v5047 = vld [vmem:[#allocation2 + $0x22] sm:$0xff]
        %v5048 = vld [vmem:[#allocation2 + $0x32] sm:$0xff]
        %v5049 = vld [vmem:[#allocation2 + $0x3a] sm:$0xff]
        %v5050 = vld [vmem:[#allocation2 + $0x4a] sm:$0xff]
        %v5051 = vld [vmem:[#allocation2 + $0x52] sm:$0xff]
        %5060 = vrot.lane.b32.xlu0 %v5044, 124
        %v5061 = vpop.permute.xlu0 %5060
        %5062 = vrot.lane.b32.xlu0 %v5045, 124
        %v5063 = vpop.permute.xlu0 %5062
        %5064 = vrot.lane.b32.xlu0 %v5046, 124
        %v5065 = vpop.permute.xlu0 %5064
        %5066 = vrot.lane.b32.xlu0 %v5047, 124
        %v5067 = vpop.permute.xlu0 %5066
        %5068 = vrot.lane.b32.xlu0 %v5048, 124
        %v5069 = vpop.permute.xlu0 %5068
        %5070 = vrot.lane.b32.xlu0 %v5049, 124
        %v5071 = vpop.permute.xlu0 %5070
        %5072 = vrot.lane.b32.xlu0 %v5050, 124
        %v5073 = vpop.permute.xlu0 %5072
        %5074 = vrot.lane.b32.xlu0 %v5051, 124
        %v5075 = vpop.permute.xlu0 %5074
        %v5084 = vcombine.low %v5061, %v5069
        %v5085 = vcombine.high %v5061, %v5069
        %v5087 = vunpack.c.l.s4 1983009808
        %v5088 = vunpack.c.0.s8 %v5087
        %v5089 = vlaneseq
        %v5090 = vshrl.u32 %v5089, 7
        %v5091 = vsub.s32 %v5088, %v5090
        %v5092 = vrot.slane %v5084, %v5091
        %v5094 = vunpack.c.l.s4 1983009808
        %v5095 = vunpack.c.0.s8 %v5094
        %v5096 = vlaneseq
        %v5097 = vshrl.u32 %v5096, 7
        %v5098 = vsub.s32 %v5095, %v5097
        %v5099 = vrot.slane %v5085, %v5098
        %v5100 = vcombine.low %v5065, %v5073
        %v5101 = vcombine.high %v5065, %v5073
        %v5103 = vunpack.c.l.s4 1983009808
        %v5104 = vunpack.c.0.s8 %v5103
        %v5105 = vlaneseq
        %v5106 = vshrl.u32 %v5105, 7
        %v5107 = vsub.s32 %v5104, %v5106
        %v5108 = vrot.slane %v5100, %v5107
        %v5110 = vunpack.c.l.s4 1983009808
        %v5111 = vunpack.c.0.s8 %v5110
        %v5112 = vlaneseq
        %v5113 = vshrl.u32 %v5112, 7
        %v5114 = vsub.s32 %v5111, %v5113
        %v5115 = vrot.slane %v5101, %v5114
        %v5116 = vcombine.low %v5092, %v5108
        %v5117 = vcombine.high %v5092, %v5108
        %v5119 = vunpack.c.l.s4 1934713408
        %v5120 = vunpack.c.0.s8 %v5119
        %v5121 = vlaneseq
        %v5122 = vshrl.u32 %v5121, 7
        %v5123 = vsub.s32 %v5120, %v5122
        %v5124 = vrot.slane %v5116, %v5123
        %v5126 = vunpack.c.l.s4 1934713408
        %v5127 = vunpack.c.0.s8 %v5126
        %v5128 = vlaneseq
        %v5129 = vshrl.u32 %v5128, 7
        %v5130 = vsub.s32 %v5127, %v5129
        %v5131 = vrot.slane %v5117, %v5130
        %v5132 = vcombine.low %v5099, %v5115
        %v5133 = vcombine.high %v5099, %v5115
        %v5135 = vunpack.c.l.s4 1934713408
        %v5136 = vunpack.c.0.s8 %v5135
        %v5137 = vlaneseq
        %v5138 = vshrl.u32 %v5137, 7
        %v5139 = vsub.s32 %v5136, %v5138
        %v5140 = vrot.slane %v5132, %v5139
        %v5142 = vunpack.c.l.s4 1934713408
        %v5143 = vunpack.c.0.s8 %v5142
        %v5144 = vlaneseq
        %v5145 = vshrl.u32 %v5144, 7
        %v5146 = vsub.s32 %v5143, %v5145
        %v5147 = vrot.slane %v5133, %v5146
        %v5148 = vcombine.high %v5124, 0.0
        %v5149 = vcombine.high %v5131, 0.0
        %v5150 = vcombine.high %v5140, 0.0
        %v5151 = vcombine.high %v5147, 0.0
        %v5152 = vcombine.low %v5063, %v5071
        %v5153 = vcombine.high %v5063, %v5071
        %v5155 = vunpack.c.l.s4 1983009808
        %v5156 = vunpack.c.0.s8 %v5155
        %v5157 = vlaneseq
        %v5158 = vshrl.u32 %v5157, 7
        %v5159 = vsub.s32 %v5156, %v5158
        %v5160 = vrot.slane %v5152, %v5159
        %v5162 = vunpack.c.l.s4 1983009808
        %v5163 = vunpack.c.0.s8 %v5162
        %v5164 = vlaneseq
        %v5165 = vshrl.u32 %v5164, 7
        %v5166 = vsub.s32 %v5163, %v5165
        %v5167 = vrot.slane %v5153, %v5166
        %v5168 = vcombine.low %v5067, %v5075
        %v5169 = vcombine.high %v5067, %v5075
        %v5171 = vunpack.c.l.s4 1983009808
        %v5172 = vunpack.c.0.s8 %v5171
        %v5173 = vlaneseq
        %v5174 = vshrl.u32 %v5173, 7
        %v5175 = vsub.s32 %v5172, %v5174
        %v5176 = vrot.slane %v5168, %v5175
        %v5178 = vunpack.c.l.s4 1983009808
        %v5179 = vunpack.c.0.s8 %v5178
        %v5180 = vlaneseq
        %v5181 = vshrl.u32 %v5180, 7
        %v5182 = vsub.s32 %v5179, %v5181
        %v5183 = vrot.slane %v5169, %v5182
        %v5184 = vcombine.low %v5160, %v5176
        %v5185 = vcombine.high %v5160, %v5176
        %v5187 = vunpack.c.l.s4 1934713408
        %v5188 = vunpack.c.0.s8 %v5187
        %v5189 = vlaneseq
        %v5190 = vshrl.u32 %v5189, 7
        %v5191 = vsub.s32 %v5188, %v5190
        %v5192 = vrot.slane %v5184, %v5191
        %v5194 = vunpack.c.l.s4 1934713408
        %v5195 = vunpack.c.0.s8 %v5194
        %v5196 = vlaneseq
        %v5197 = vshrl.u32 %v5196, 7
        %v5198 = vsub.s32 %v5195, %v5197
        %v5199 = vrot.slane %v5185, %v5198
        %v5200 = vcombine.low %v5167, %v5183
        %v5201 = vcombine.high %v5167, %v5183
        %v5203 = vunpack.c.l.s4 1934713408
        %v5204 = vunpack.c.0.s8 %v5203
        %v5205 = vlaneseq
        %v5206 = vshrl.u32 %v5205, 7
        %v5207 = vsub.s32 %v5204, %v5206
        %v5208 = vrot.slane %v5200, %v5207
        %v5210 = vunpack.c.l.s4 1934713408
        %v5211 = vunpack.c.0.s8 %v5210
        %v5212 = vlaneseq
        %v5213 = vshrl.u32 %v5212, 7
        %v5214 = vsub.s32 %v5211, %v5213
        %v5215 = vrot.slane %v5201, %v5214
        %v5216 = vcombine.high %v5192, 0.0
        %v5217 = vcombine.high %v5199, 0.0
        %v5218 = vcombine.high %v5208, 0.0
        %v5219 = vcombine.high %v5215, 0.0
        %5221 = vrot.lane.b32.xlu0 %v5148, 16
        %v5222 = vpop.permute.xlu0 %5221
        %5225 = vrot.lane.b32.xlu0 %v5131, 32
        %v5226 = vpop.permute.xlu0 %5225
        %5229 = vrot.lane.b32.xlu0 %v5149, 48
        %v5230 = vpop.permute.xlu0 %5229
        %5233 = vrot.lane.b32.xlu0 %v5140, 64
        %v5234 = vpop.permute.xlu0 %5233
        %5237 = vrot.lane.b32.xlu0 %v5150, 80
        %v5238 = vpop.permute.xlu0 %5237
        %5241 = vrot.lane.b32.xlu0 %v5147, 96
        %v5242 = vpop.permute.xlu0 %5241
        %5245 = vrot.lane.b32.xlu0 %v5151, 112
        %v5246 = vpop.permute.xlu0 %5245
        %5249 = vrot.lane.b32.xlu0 %v5216, 16
        %v5250 = vpop.permute.xlu0 %5249
        %5253 = vrot.lane.b32.xlu0 %v5199, 32
        %v5254 = vpop.permute.xlu0 %5253
        %5257 = vrot.lane.b32.xlu0 %v5217, 48
        %v5258 = vpop.permute.xlu0 %5257
        %5261 = vrot.lane.b32.xlu0 %v5208, 64
        %v5262 = vpop.permute.xlu0 %5261
        %5265 = vrot.lane.b32.xlu0 %v5218, 80
        %v5266 = vpop.permute.xlu0 %5265
        %5269 = vrot.lane.b32.xlu0 %v5215, 96
        %v5270 = vpop.permute.xlu0 %5269
        %5273 = vrot.lane.b32.xlu0 %v5219, 112
        %v5274 = vpop.permute.xlu0 %5273
        %v5276 = vsel %vm723, %v5124, %v5222
        %v5277 = vsel %vm725, %v5276, %v5226
        %v5278 = vsel %vm727, %v5277, %v5230
        %v5279 = vsel %vm729, %v5278, %v5234
        %v5280 = vsel %vm731, %v5279, %v5238
        %v5281 = vsel %vm733, %v5280, %v5242
        %v5282 = vsel %vm735, %v5281, %v5246
        %v5283 = vsel %vm723, %v5192, %v5250
        %v5284 = vsel %vm725, %v5283, %v5254
        %v5285 = vsel %vm727, %v5284, %v5258
        %v5286 = vsel %vm729, %v5285, %v5262
        %v5287 = vsel %vm731, %v5286, %v5266
        %v5288 = vsel %vm733, %v5287, %v5270
        %v5289 = vsel %vm735, %v5288, %v5274
        %v5291 = vsel %vm984, %v5043, 0
        %v5294 = vsel %vm988, %v5282, 0
        %v5297 = vsel %vm988, %v5289, 0
        %5299 = vmatprep.subr.mxu0 %v5297
        %5300 = vmatpush1.msra.mxu0 %v5294
        %5301 = vmatprep.subr.mxu0 0.0
        %5302 = vmatpush1.msra.mxu0 0.0
        %5303 = vmatprep.subr.mxu0 0.0
        %5304 = vmatpush1.msra.mxu0 0.0
        %5305 = vmatprep.subr.mxu0 0.0
        %5306 = vmatpush1.msra.mxu0 0.0
        %5307 = vmatprep.subr.mxu0 0.0
        %5308 = vmatpush1.msra.mxu0 0.0
        %5309 = vmatprep.subr.mxu0 0.0
        %5310 = vmatpush1.msra.mxu0 0.0
        %5311 = vmatprep.subr.mxu0 0.0
        %5312 = vmatpush1.msra.mxu0 0.0
        %5313 = vmatprep.subr.mxu0 0.0
        %5314 = vmatpush1.msra.mxu0 0.0
        %5315 = vmatprep.subr.mxu0 0.0
        %5316 = vmatpush1.msra.mxu0 0.0
        %5317 = vmatprep.subr.mxu0 0.0
        %5318 = vmatpush1.msra.mxu0 0.0
        %5319 = vmatprep.subr.mxu0 0.0
        %5320 = vmatpush1.msra.mxu0 0.0
        %5321 = vmatprep.subr.mxu0 0.0
        %5322 = vmatpush1.msra.mxu0 0.0
        %5323 = vmatprep.subr.mxu0 0.0
        %5324 = vmatpush1.msra.mxu0 0.0
        %5325 = vmatprep.subr.mxu0 0.0
        %5326 = vmatpush1.msra.mxu0 0.0
        %5327 = vmatprep.subr.mxu0 0.0
        %5328 = vmatpush1.msra.mxu0 0.0
        %5329 = vmatprep.subr.mxu0 0.0
        %5330 = vmatpush1.msra.mxu0 0.0
        %5331 = vmatprep.subr.mxu0 0.0
        %5332 = vmatpush1.msra.mxu0 0.0
        %5333 = vmatprep.subr.mxu0 0.0
        %5334 = vmatpush1.msra.mxu0 0.0
        %5335 = vmatprep.subr.mxu0 0.0
        %5336 = vmatpush1.msra.mxu0 0.0
        %5337 = vmatprep.subr.mxu0 0.0
        %5338 = vmatpush1.msra.mxu0 0.0
        %5339 = vmatprep.subr.mxu0 0.0
        %5340 = vmatpush1.msra.mxu0 0.0
        %5341 = vmatprep.subr.mxu0 0.0
        %5342 = vmatpush1.msra.mxu0 0.0
        %5343 = vmatprep.subr.mxu0 0.0
        %5344 = vmatpush1.msra.mxu0 0.0
        %5345 = vmatprep.subr.mxu0 0.0
        %5346 = vmatpush1.msra.mxu0 0.0
        %5347 = vmatprep.subr.mxu0 0.0
        %5348 = vmatpush1.msra.mxu0 0.0
        %5349 = vmatprep.subr.mxu0 0.0
        %5350 = vmatpush1.msra.mxu0 0.0
        %5351 = vmatprep.subr.mxu0 0.0
        %5352 = vmatpush1.msra.mxu0 0.0
        %5353 = vmatprep.subr.mxu0 0.0
        %5354 = vmatpush1.msra.mxu0 0.0
        %5355 = vmatprep.subr.mxu0 0.0
        %5356 = vmatpush1.msra.mxu0 0.0
        %5357 = vmatprep.subr.mxu0 0.0
        %5358 = vmatpush1.msra.mxu0 0.0
        %5359 = vmatprep.subr.mxu0 0.0
        %5360 = vmatpush1.msra.mxu0 0.0
        %5361 = vmatprep.subr.mxu0 0.0
        %5362 = vmatpush1.msra.mxu0 0.0
        %5363 = vmatprep.mubr.f32.mxu0 0.0
        %5364 = vmatmul.mubr.f32.gmra.mrb[0].mxu0 %v5291
        %v5365 = vpop.f32.mrb[0].mxu0
        %v5366 = vadd.f32 0.0, %v5365
        %v5367 = vpop.f32.mrb[0].mxu0
        %v5368 = vadd.f32 0.0, %v5367
        %5369 = vdwg.mxu0
        %v5370 = vadd.f32 %v5040, %v5366
        %v5371 = vadd.f32 %v5041, %v5368
        %s5372 = scalar_lea.vmem %s1, 30
        %v5373 = vld [vmem:[%s5372] sm:$0x3]
        %v5374 = vld [vmem:[#allocation2 + $0x3] sm:$0xff]
        %v5375 = vld [vmem:[#allocation2 + $0xb] sm:$0xff]
        %v5376 = vld [vmem:[#allocation2 + $0x1b] sm:$0xff]
        %v5377 = vld [vmem:[#allocation2 + $0x23] sm:$0xff]
        %v5378 = vld [vmem:[#allocation2 + $0x33] sm:$0xff]
        %v5379 = vld [vmem:[#allocation2 + $0x3b] sm:$0xff]
        %v5380 = vld [vmem:[#allocation2 + $0x4b] sm:$0xff]
        %v5381 = vld [vmem:[#allocation2 + $0x53] sm:$0xff]
        %v5382 = vcombine.low %v5374, %v5378
        %v5383 = vcombine.high %v5374, %v5378
        %v5385 = vunpack.c.l.s4 1983009808
        %v5386 = vunpack.c.0.s8 %v5385
        %v5387 = vlaneseq
        %v5388 = vshrl.u32 %v5387, 7
        %v5389 = vsub.s32 %v5386, %v5388
        %v5390 = vrot.slane %v5382, %v5389
        %v5392 = vunpack.c.l.s4 1983009808
        %v5393 = vunpack.c.0.s8 %v5392
        %v5394 = vlaneseq
        %v5395 = vshrl.u32 %v5394, 7
        %v5396 = vsub.s32 %v5393, %v5395
        %v5397 = vrot.slane %v5383, %v5396
        %v5398 = vcombine.low %v5376, %v5380
        %v5399 = vcombine.high %v5376, %v5380
        %v5401 = vunpack.c.l.s4 1983009808
        %v5402 = vunpack.c.0.s8 %v5401
        %v5403 = vlaneseq
        %v5404 = vshrl.u32 %v5403, 7
        %v5405 = vsub.s32 %v5402, %v5404
        %v5406 = vrot.slane %v5398, %v5405
        %v5408 = vunpack.c.l.s4 1983009808
        %v5409 = vunpack.c.0.s8 %v5408
        %v5410 = vlaneseq
        %v5411 = vshrl.u32 %v5410, 7
        %v5412 = vsub.s32 %v5409, %v5411
        %v5413 = vrot.slane %v5399, %v5412
        %v5414 = vcombine.low %v5390, %v5406
        %v5415 = vcombine.high %v5390, %v5406
        %v5417 = vunpack.c.l.s4 1934713408
        %v5418 = vunpack.c.0.s8 %v5417
        %v5419 = vlaneseq
        %v5420 = vshrl.u32 %v5419, 7
        %v5421 = vsub.s32 %v5418, %v5420
        %v5422 = vrot.slane %v5414, %v5421
        %v5424 = vunpack.c.l.s4 1934713408
        %v5425 = vunpack.c.0.s8 %v5424
        %v5426 = vlaneseq
        %v5427 = vshrl.u32 %v5426, 7
        %v5428 = vsub.s32 %v5425, %v5427
        %v5429 = vrot.slane %v5415, %v5428
        %v5430 = vcombine.low %v5397, %v5413
        %v5431 = vcombine.high %v5397, %v5413
        %v5433 = vunpack.c.l.s4 1934713408
        %v5434 = vunpack.c.0.s8 %v5433
        %v5435 = vlaneseq
        %v5436 = vshrl.u32 %v5435, 7
        %v5437 = vsub.s32 %v5434, %v5436
        %v5438 = vrot.slane %v5430, %v5437
        %v5440 = vunpack.c.l.s4 1934713408
        %v5441 = vunpack.c.0.s8 %v5440
        %v5442 = vlaneseq
        %v5443 = vshrl.u32 %v5442, 7
        %v5444 = vsub.s32 %v5441, %v5443
        %v5445 = vrot.slane %v5431, %v5444
        %v5446 = vcombine.high %v5422, 0.0
        %v5447 = vcombine.high %v5429, 0.0
        %v5448 = vcombine.high %v5438, 0.0
        %v5449 = vcombine.high %v5445, 0.0
        %v5450 = vcombine.low %v5375, %v5379
        %v5451 = vcombine.high %v5375, %v5379
        %v5453 = vunpack.c.l.s4 1983009808
        %v5454 = vunpack.c.0.s8 %v5453
        %v5455 = vlaneseq
        %v5456 = vshrl.u32 %v5455, 7
        %v5457 = vsub.s32 %v5454, %v5456
        %v5458 = vrot.slane %v5450, %v5457
        %v5460 = vunpack.c.l.s4 1983009808
        %v5461 = vunpack.c.0.s8 %v5460
        %v5462 = vlaneseq
        %v5463 = vshrl.u32 %v5462, 7
        %v5464 = vsub.s32 %v5461, %v5463
        %v5465 = vrot.slane %v5451, %v5464
        %v5466 = vcombine.low %v5377, %v5381
        %v5467 = vcombine.high %v5377, %v5381
        %v5469 = vunpack.c.l.s4 1983009808
        %v5470 = vunpack.c.0.s8 %v5469
        %v5471 = vlaneseq
        %v5472 = vshrl.u32 %v5471, 7
        %v5473 = vsub.s32 %v5470, %v5472
        %v5474 = vrot.slane %v5466, %v5473
        %v5476 = vunpack.c.l.s4 1983009808
        %v5477 = vunpack.c.0.s8 %v5476
        %v5478 = vlaneseq
        %v5479 = vshrl.u32 %v5478, 7
        %v5480 = vsub.s32 %v5477, %v5479
        %v5481 = vrot.slane %v5467, %v5480
        %v5482 = vcombine.low %v5458, %v5474
        %v5483 = vcombine.high %v5458, %v5474
        %v5485 = vunpack.c.l.s4 1934713408
        %v5486 = vunpack.c.0.s8 %v5485
        %v5487 = vlaneseq
        %v5488 = vshrl.u32 %v5487, 7
        %v5489 = vsub.s32 %v5486, %v5488
        %v5490 = vrot.slane %v5482, %v5489
        %v5492 = vunpack.c.l.s4 1934713408
        %v5493 = vunpack.c.0.s8 %v5492
        %v5494 = vlaneseq
        %v5495 = vshrl.u32 %v5494, 7
        %v5496 = vsub.s32 %v5493, %v5495
        %v5497 = vrot.slane %v5483, %v5496
        %v5498 = vcombine.low %v5465, %v5481
        %v5499 = vcombine.high %v5465, %v5481
        %v5501 = vunpack.c.l.s4 1934713408
        %v5502 = vunpack.c.0.s8 %v5501
        %v5503 = vlaneseq
        %v5504 = vshrl.u32 %v5503, 7
        %v5505 = vsub.s32 %v5502, %v5504
        %v5506 = vrot.slane %v5498, %v5505
        %v5508 = vunpack.c.l.s4 1934713408
        %v5509 = vunpack.c.0.s8 %v5508
        %v5510 = vlaneseq
        %v5511 = vshrl.u32 %v5510, 7
        %v5512 = vsub.s32 %v5509, %v5511
        %v5513 = vrot.slane %v5499, %v5512
        %v5514 = vcombine.high %v5490, 0.0
        %v5515 = vcombine.high %v5497, 0.0
        %v5516 = vcombine.high %v5506, 0.0
        %v5517 = vcombine.high %v5513, 0.0
        %5519 = vrot.lane.b32.xlu0 %v5446, 16
        %v5520 = vpop.permute.xlu0 %5519
        %5523 = vrot.lane.b32.xlu0 %v5429, 32
        %v5524 = vpop.permute.xlu0 %5523
        %5527 = vrot.lane.b32.xlu0 %v5447, 48
        %v5528 = vpop.permute.xlu0 %5527
        %5531 = vrot.lane.b32.xlu0 %v5438, 64
        %v5532 = vpop.permute.xlu0 %5531
        %5535 = vrot.lane.b32.xlu0 %v5448, 80
        %v5536 = vpop.permute.xlu0 %5535
        %5539 = vrot.lane.b32.xlu0 %v5445, 96
        %v5540 = vpop.permute.xlu0 %5539
        %5543 = vrot.lane.b32.xlu0 %v5449, 112
        %v5544 = vpop.permute.xlu0 %5543
        %5547 = vrot.lane.b32.xlu0 %v5514, 16
        %v5548 = vpop.permute.xlu0 %5547
        %5551 = vrot.lane.b32.xlu0 %v5497, 32
        %v5552 = vpop.permute.xlu0 %5551
        %5555 = vrot.lane.b32.xlu0 %v5515, 48
        %v5556 = vpop.permute.xlu0 %5555
        %5559 = vrot.lane.b32.xlu0 %v5506, 64
        %v5560 = vpop.permute.xlu0 %5559
        %5563 = vrot.lane.b32.xlu0 %v5516, 80
        %v5564 = vpop.permute.xlu0 %5563
        %5567 = vrot.lane.b32.xlu0 %v5513, 96
        %v5568 = vpop.permute.xlu0 %5567
        %5571 = vrot.lane.b32.xlu0 %v5517, 112
        %v5572 = vpop.permute.xlu0 %5571
        %v5574 = vsel %vm723, %v5422, %v5520
        %v5575 = vsel %vm725, %v5574, %v5524
        %v5576 = vsel %vm727, %v5575, %v5528
        %v5577 = vsel %vm729, %v5576, %v5532
        %v5578 = vsel %vm731, %v5577, %v5536
        %v5579 = vsel %vm733, %v5578, %v5540
        %v5580 = vsel %vm735, %v5579, %v5544
        %v5581 = vsel %vm723, %v5490, %v5548
        %v5582 = vsel %vm725, %v5581, %v5552
        %v5583 = vsel %vm727, %v5582, %v5556
        %v5584 = vsel %vm729, %v5583, %v5560
        %v5585 = vsel %vm731, %v5584, %v5564
        %v5586 = vsel %vm733, %v5585, %v5568
        %v5587 = vsel %vm735, %v5586, %v5572
        %v5589 = vsel %vm984, %v5373, 0
        %v5592 = vsel %vm988, %v5580, 0
        %v5595 = vsel %vm988, %v5587, 0
        %5597 = vmatprep.subr.mxu0 %v5595
        %5598 = vmatpush1.msra.mxu0 %v5592
        %5599 = vmatprep.subr.mxu0 0.0
        %5600 = vmatpush1.msra.mxu0 0.0
        %5601 = vmatprep.subr.mxu0 0.0
        %5602 = vmatpush1.msra.mxu0 0.0
        %5603 = vmatprep.subr.mxu0 0.0
        %5604 = vmatpush1.msra.mxu0 0.0
        %5605 = vmatprep.subr.mxu0 0.0
        %5606 = vmatpush1.msra.mxu0 0.0
        %5607 = vmatprep.subr.mxu0 0.0
        %5608 = vmatpush1.msra.mxu0 0.0
        %5609 = vmatprep.subr.mxu0 0.0
        %5610 = vmatpush1.msra.mxu0 0.0
        %5611 = vmatprep.subr.mxu0 0.0
        %5612 = vmatpush1.msra.mxu0 0.0
        %5613 = vmatprep.subr.mxu0 0.0
        %5614 = vmatpush1.msra.mxu0 0.0
        %5615 = vmatprep.subr.mxu0 0.0
        %5616 = vmatpush1.msra.mxu0 0.0
        %5617 = vmatprep.subr.mxu0 0.0
        %5618 = vmatpush1.msra.mxu0 0.0
        %5619 = vmatprep.subr.mxu0 0.0
        %5620 = vmatpush1.msra.mxu0 0.0
        %5621 = vmatprep.subr.mxu0 0.0
        %5622 = vmatpush1.msra.mxu0 0.0
        %5623 = vmatprep.subr.mxu0 0.0
        %5624 = vmatpush1.msra.mxu0 0.0
        %5625 = vmatprep.subr.mxu0 0.0
        %5626 = vmatpush1.msra.mxu0 0.0
        %5627 = vmatprep.subr.mxu0 0.0
        %5628 = vmatpush1.msra.mxu0 0.0
        %5629 = vmatprep.subr.mxu0 0.0
        %5630 = vmatpush1.msra.mxu0 0.0
        %5631 = vmatprep.subr.mxu0 0.0
        %5632 = vmatpush1.msra.mxu0 0.0
        %5633 = vmatprep.subr.mxu0 0.0
        %5634 = vmatpush1.msra.mxu0 0.0
        %5635 = vmatprep.subr.mxu0 0.0
        %5636 = vmatpush1.msra.mxu0 0.0
        %5637 = vmatprep.subr.mxu0 0.0
        %5638 = vmatpush1.msra.mxu0 0.0
        %5639 = vmatprep.subr.mxu0 0.0
        %5640 = vmatpush1.msra.mxu0 0.0
        %5641 = vmatprep.subr.mxu0 0.0
        %5642 = vmatpush1.msra.mxu0 0.0
        %5643 = vmatprep.subr.mxu0 0.0
        %5644 = vmatpush1.msra.mxu0 0.0
        %5645 = vmatprep.subr.mxu0 0.0
        %5646 = vmatpush1.msra.mxu0 0.0
        %5647 = vmatprep.subr.mxu0 0.0
        %5648 = vmatpush1.msra.mxu0 0.0
        %5649 = vmatprep.subr.mxu0 0.0
        %5650 = vmatpush1.msra.mxu0 0.0
        %5651 = vmatprep.subr.mxu0 0.0
        %5652 = vmatpush1.msra.mxu0 0.0
        %5653 = vmatprep.subr.mxu0 0.0
        %5654 = vmatpush1.msra.mxu0 0.0
        %5655 = vmatprep.subr.mxu0 0.0
        %5656 = vmatpush1.msra.mxu0 0.0
        %5657 = vmatprep.subr.mxu0 0.0
        %5658 = vmatpush1.msra.mxu0 0.0
        %5659 = vmatprep.subr.mxu0 0.0
        %5660 = vmatpush1.msra.mxu0 0.0
        %5661 = vmatprep.mubr.f32.mxu0 0.0
        %5662 = vmatmul.mubr.f32.gmra.mrb[0].mxu0 %v5589
        %v5663 = vpop.f32.mrb[0].mxu0
        %v5664 = vadd.f32 0.0, %v5663
        %v5665 = vpop.f32.mrb[0].mxu0
        %v5666 = vadd.f32 0.0, %v5665
        %5667 = vdwg.mxu0
        %v5668 = vadd.f32 %v5370, %v5664
        %v5669 = vadd.f32 %v5371, %v5666
        %s5670 = scalar_lea.vmem %s1, 32
        %v5671 = vld [vmem:[%s5670] sm:$0x3]
        %v5672 = vld [vmem:[#allocation2 + $0x3] sm:$0xff]
        %v5673 = vld [vmem:[#allocation2 + $0xb] sm:$0xff]
        %v5674 = vld [vmem:[#allocation2 + $0x1b] sm:$0xff]
        %v5675 = vld [vmem:[#allocation2 + $0x23] sm:$0xff]
        %v5676 = vld [vmem:[#allocation2 + $0x33] sm:$0xff]
        %v5677 = vld [vmem:[#allocation2 + $0x3b] sm:$0xff]
        %v5678 = vld [vmem:[#allocation2 + $0x4b] sm:$0xff]
        %v5679 = vld [vmem:[#allocation2 + $0x53] sm:$0xff]
        %5688 = vrot.lane.b32.xlu0 %v5672, 127
        %v5689 = vpop.permute.xlu0 %5688
        %5690 = vrot.lane.b32.xlu0 %v5673, 127
        %v5691 = vpop.permute.xlu0 %5690
        %5692 = vrot.lane.b32.xlu0 %v5674, 127
        %v5693 = vpop.permute.xlu0 %5692
        %5694 = vrot.lane.b32.xlu0 %v5675, 127
        %v5695 = vpop.permute.xlu0 %5694
        %5696 = vrot.lane.b32.xlu0 %v5676, 127
        %v5697 = vpop.permute.xlu0 %5696
        %5698 = vrot.lane.b32.xlu0 %v5677, 127
        %v5699 = vpop.permute.xlu0 %5698
        %5700 = vrot.lane.b32.xlu0 %v5678, 127
        %v5701 = vpop.permute.xlu0 %5700
        %5702 = vrot.lane.b32.xlu0 %v5679, 127
        %v5703 = vpop.permute.xlu0 %5702
        %v5712 = vcombine.low %v5689, %v5697
        %v5713 = vcombine.high %v5689, %v5697
        %v5715 = vunpack.c.l.s4 1983009808
        %v5716 = vunpack.c.0.s8 %v5715
        %v5717 = vlaneseq
        %v5718 = vshrl.u32 %v5717, 7
        %v5719 = vsub.s32 %v5716, %v5718
        %v5720 = vrot.slane %v5712, %v5719
        %v5722 = vunpack.c.l.s4 1983009808
        %v5723 = vunpack.c.0.s8 %v5722
        %v5724 = vlaneseq
        %v5725 = vshrl.u32 %v5724, 7
        %v5726 = vsub.s32 %v5723, %v5725
        %v5727 = vrot.slane %v5713, %v5726
        %v5728 = vcombine.low %v5693, %v5701
        %v5729 = vcombine.high %v5693, %v5701
        %v5731 = vunpack.c.l.s4 1983009808
        %v5732 = vunpack.c.0.s8 %v5731
        %v5733 = vlaneseq
        %v5734 = vshrl.u32 %v5733, 7
        %v5735 = vsub.s32 %v5732, %v5734
        %v5736 = vrot.slane %v5728, %v5735
        %v5738 = vunpack.c.l.s4 1983009808
        %v5739 = vunpack.c.0.s8 %v5738
        %v5740 = vlaneseq
        %v5741 = vshrl.u32 %v5740, 7
        %v5742 = vsub.s32 %v5739, %v5741
        %v5743 = vrot.slane %v5729, %v5742
        %v5744 = vcombine.low %v5720, %v5736
        %v5745 = vcombine.high %v5720, %v5736
        %v5747 = vunpack.c.l.s4 1934713408
        %v5748 = vunpack.c.0.s8 %v5747
        %v5749 = vlaneseq
        %v5750 = vshrl.u32 %v5749, 7
        %v5751 = vsub.s32 %v5748, %v5750
        %v5752 = vrot.slane %v5744, %v5751
        %v5754 = vunpack.c.l.s4 1934713408
        %v5755 = vunpack.c.0.s8 %v5754
        %v5756 = vlaneseq
        %v5757 = vshrl.u32 %v5756, 7
        %v5758 = vsub.s32 %v5755, %v5757
        %v5759 = vrot.slane %v5745, %v5758
        %v5760 = vcombine.low %v5727, %v5743
        %v5761 = vcombine.high %v5727, %v5743
        %v5763 = vunpack.c.l.s4 1934713408
        %v5764 = vunpack.c.0.s8 %v5763
        %v5765 = vlaneseq
        %v5766 = vshrl.u32 %v5765, 7
        %v5767 = vsub.s32 %v5764, %v5766
        %v5768 = vrot.slane %v5760, %v5767
        %v5770 = vunpack.c.l.s4 1934713408
        %v5771 = vunpack.c.0.s8 %v5770
        %v5772 = vlaneseq
        %v5773 = vshrl.u32 %v5772, 7
        %v5774 = vsub.s32 %v5771, %v5773
        %v5775 = vrot.slane %v5761, %v5774
        %v5776 = vcombine.high %v5752, 0.0
        %v5777 = vcombine.high %v5759, 0.0
        %v5778 = vcombine.high %v5768, 0.0
        %v5779 = vcombine.high %v5775, 0.0
        %v5780 = vcombine.low %v5691, %v5699
        %v5781 = vcombine.high %v5691, %v5699
        %v5783 = vunpack.c.l.s4 1983009808
        %v5784 = vunpack.c.0.s8 %v5783
        %v5785 = vlaneseq
        %v5786 = vshrl.u32 %v5785, 7
        %v5787 = vsub.s32 %v5784, %v5786
        %v5788 = vrot.slane %v5780, %v5787
        %v5790 = vunpack.c.l.s4 1983009808
        %v5791 = vunpack.c.0.s8 %v5790
        %v5792 = vlaneseq
        %v5793 = vshrl.u32 %v5792, 7
        %v5794 = vsub.s32 %v5791, %v5793
        %v5795 = vrot.slane %v5781, %v5794
        %v5796 = vcombine.low %v5695, %v5703
        %v5797 = vcombine.high %v5695, %v5703
        %v5799 = vunpack.c.l.s4 1983009808
        %v5800 = vunpack.c.0.s8 %v5799
        %v5801 = vlaneseq
        %v5802 = vshrl.u32 %v5801, 7
        %v5803 = vsub.s32 %v5800, %v5802
        %v5804 = vrot.slane %v5796, %v5803
        %v5806 = vunpack.c.l.s4 1983009808
        %v5807 = vunpack.c.0.s8 %v5806
        %v5808 = vlaneseq
        %v5809 = vshrl.u32 %v5808, 7
        %v5810 = vsub.s32 %v5807, %v5809
        %v5811 = vrot.slane %v5797, %v5810
        %v5812 = vcombine.low %v5788, %v5804
        %v5813 = vcombine.high %v5788, %v5804
        %v5815 = vunpack.c.l.s4 1934713408
        %v5816 = vunpack.c.0.s8 %v5815
        %v5817 = vlaneseq
        %v5818 = vshrl.u32 %v5817, 7
        %v5819 = vsub.s32 %v5816, %v5818
        %v5820 = vrot.slane %v5812, %v5819
        %v5822 = vunpack.c.l.s4 1934713408
        %v5823 = vunpack.c.0.s8 %v5822
        %v5824 = vlaneseq
        %v5825 = vshrl.u32 %v5824, 7
        %v5826 = vsub.s32 %v5823, %v5825
        %v5827 = vrot.slane %v5813, %v5826
        %v5828 = vcombine.low %v5795, %v5811
        %v5829 = vcombine.high %v5795, %v5811
        %v5831 = vunpack.c.l.s4 1934713408
        %v5832 = vunpack.c.0.s8 %v5831
        %v5833 = vlaneseq
        %v5834 = vshrl.u32 %v5833, 7
        %v5835 = vsub.s32 %v5832, %v5834
        %v5836 = vrot.slane %v5828, %v5835
        %v5838 = vunpack.c.l.s4 1934713408
        %v5839 = vunpack.c.0.s8 %v5838
        %v5840 = vlaneseq
        %v5841 = vshrl.u32 %v5840, 7
        %v5842 = vsub.s32 %v5839, %v5841
        %v5843 = vrot.slane %v5829, %v5842
        %v5844 = vcombine.high %v5820, 0.0
        %v5845 = vcombine.high %v5827, 0.0
        %v5846 = vcombine.high %v5836, 0.0
        %v5847 = vcombine.high %v5843, 0.0
        %5849 = vrot.lane.b32.xlu0 %v5776, 16
        %v5850 = vpop.permute.xlu0 %5849
        %5853 = vrot.lane.b32.xlu0 %v5759, 32
        %v5854 = vpop.permute.xlu0 %5853
        %5857 = vrot.lane.b32.xlu0 %v5777, 48
        %v5858 = vpop.permute.xlu0 %5857
        %5861 = vrot.lane.b32.xlu0 %v5768, 64
        %v5862 = vpop.permute.xlu0 %5861
        %5865 = vrot.lane.b32.xlu0 %v5778, 80
        %v5866 = vpop.permute.xlu0 %5865
        %5869 = vrot.lane.b32.xlu0 %v5775, 96
        %v5870 = vpop.permute.xlu0 %5869
        %5873 = vrot.lane.b32.xlu0 %v5779, 112
        %v5874 = vpop.permute.xlu0 %5873
        %5877 = vrot.lane.b32.xlu0 %v5844, 16
        %v5878 = vpop.permute.xlu0 %5877
        %5881 = vrot.lane.b32.xlu0 %v5827, 32
        %v5882 = vpop.permute.xlu0 %5881
        %5885 = vrot.lane.b32.xlu0 %v5845, 48
        %v5886 = vpop.permute.xlu0 %5885
        %5889 = vrot.lane.b32.xlu0 %v5836, 64
        %v5890 = vpop.permute.xlu0 %5889
        %5893 = vrot.lane.b32.xlu0 %v5846, 80
        %v5894 = vpop.permute.xlu0 %5893
        %5897 = vrot.lane.b32.xlu0 %v5843, 96
        %v5898 = vpop.permute.xlu0 %5897
        %5901 = vrot.lane.b32.xlu0 %v5847, 112
        %v5902 = vpop.permute.xlu0 %5901
        %v5904 = vsel %vm723, %v5752, %v5850
        %v5905 = vsel %vm725, %v5904, %v5854
        %v5906 = vsel %vm727, %v5905, %v5858
        %v5907 = vsel %vm729, %v5906, %v5862
        %v5908 = vsel %vm731, %v5907, %v5866
        %v5909 = vsel %vm733, %v5908, %v5870
        %v5910 = vsel %vm735, %v5909, %v5874
        %v5911 = vsel %vm723, %v5820, %v5878
        %v5912 = vsel %vm725, %v5911, %v5882
        %v5913 = vsel %vm727, %v5912, %v5886
        %v5914 = vsel %vm729, %v5913, %v5890
        %v5915 = vsel %vm731, %v5914, %v5894
        %v5916 = vsel %vm733, %v5915, %v5898
        %v5917 = vsel %vm735, %v5916, %v5902
        %v5919 = vsel %vm984, %v5671, 0
        %v5922 = vsel %vm988, %v5910, 0
        %v5925 = vsel %vm988, %v5917, 0
        %5927 = vmatprep.subr.mxu0 %v5925
        %5928 = vmatpush1.msra.mxu0 %v5922
        %5929 = vmatprep.subr.mxu0 0.0
        %5930 = vmatpush1.msra.mxu0 0.0
        %5931 = vmatprep.subr.mxu0 0.0
        %5932 = vmatpush1.msra.mxu0 0.0
        %5933 = vmatprep.subr.mxu0 0.0
        %5934 = vmatpush1.msra.mxu0 0.0
        %5935 = vmatprep.subr.mxu0 0.0
        %5936 = vmatpush1.msra.mxu0 0.0
        %5937 = vmatprep.subr.mxu0 0.0
        %5938 = vmatpush1.msra.mxu0 0.0
        %5939 = vmatprep.subr.mxu0 0.0
        %5940 = vmatpush1.msra.mxu0 0.0
        %5941 = vmatprep.subr.mxu0 0.0
        %5942 = vmatpush1.msra.mxu0 0.0
        %5943 = vmatprep.subr.mxu0 0.0
        %5944 = vmatpush1.msra.mxu0 0.0
        %5945 = vmatprep.subr.mxu0 0.0
        %5946 = vmatpush1.msra.mxu0 0.0
        %5947 = vmatprep.subr.mxu0 0.0
        %5948 = vmatpush1.msra.mxu0 0.0
        %5949 = vmatprep.subr.mxu0 0.0
        %5950 = vmatpush1.msra.mxu0 0.0
        %5951 = vmatprep.subr.mxu0 0.0
        %5952 = vmatpush1.msra.mxu0 0.0
        %5953 = vmatprep.subr.mxu0 0.0
        %5954 = vmatpush1.msra.mxu0 0.0
        %5955 = vmatprep.subr.mxu0 0.0
        %5956 = vmatpush1.msra.mxu0 0.0
        %5957 = vmatprep.subr.mxu0 0.0
        %5958 = vmatpush1.msra.mxu0 0.0
        %5959 = vmatprep.subr.mxu0 0.0
        %5960 = vmatpush1.msra.mxu0 0.0
        %5961 = vmatprep.subr.mxu0 0.0
        %5962 = vmatpush1.msra.mxu0 0.0
        %5963 = vmatprep.subr.mxu0 0.0
        %5964 = vmatpush1.msra.mxu0 0.0
        %5965 = vmatprep.subr.mxu0 0.0
        %5966 = vmatpush1.msra.mxu0 0.0
        %5967 = vmatprep.subr.mxu0 0.0
        %5968 = vmatpush1.msra.mxu0 0.0
        %5969 = vmatprep.subr.mxu0 0.0
        %5970 = vmatpush1.msra.mxu0 0.0
        %5971 = vmatprep.subr.mxu0 0.0
        %5972 = vmatpush1.msra.mxu0 0.0
        %5973 = vmatprep.subr.mxu0 0.0
        %5974 = vmatpush1.msra.mxu0 0.0
        %5975 = vmatprep.subr.mxu0 0.0
        %5976 = vmatpush1.msra.mxu0 0.0
        %5977 = vmatprep.subr.mxu0 0.0
        %5978 = vmatpush1.msra.mxu0 0.0
        %5979 = vmatprep.subr.mxu0 0.0
        %5980 = vmatpush1.msra.mxu0 0.0
        %5981 = vmatprep.subr.mxu0 0.0
        %5982 = vmatpush1.msra.mxu0 0.0
        %5983 = vmatprep.subr.mxu0 0.0
        %5984 = vmatpush1.msra.mxu0 0.0
        %5985 = vmatprep.subr.mxu0 0.0
        %5986 = vmatpush1.msra.mxu0 0.0
        %5987 = vmatprep.subr.mxu0 0.0
        %5988 = vmatpush1.msra.mxu0 0.0
        %5989 = vmatprep.subr.mxu0 0.0
        %5990 = vmatpush1.msra.mxu0 0.0
        %5991 = vmatprep.mubr.f32.mxu0 0.0
        %5992 = vmatmul.mubr.f32.gmra.mrb[0].mxu0 %v5919
        %v5993 = vpop.f32.mrb[0].mxu0
        %v5994 = vadd.f32 0.0, %v5993
        %v5995 = vpop.f32.mrb[0].mxu0
        %v5996 = vadd.f32 0.0, %v5995
        %5997 = vdwg.mxu0
        %v5998 = vadd.f32 %v5668, %v5994
        %v5999 = vadd.f32 %v5669, %v5996
        %s6000 = scalar_lea.vmem %s1, 34
        %v6001 = vld [vmem:[%s6000] sm:$0x3]
        %v6002 = vld [vmem:[#allocation2 + $0x3] sm:$0xff]
        %v6003 = vld [vmem:[#allocation2 + $0xb] sm:$0xff]
        %v6004 = vld [vmem:[#allocation2 + $0x1b] sm:$0xff]
        %v6005 = vld [vmem:[#allocation2 + $0x23] sm:$0xff]
        %v6006 = vld [vmem:[#allocation2 + $0x33] sm:$0xff]
        %v6007 = vld [vmem:[#allocation2 + $0x3b] sm:$0xff]
        %v6008 = vld [vmem:[#allocation2 + $0x4b] sm:$0xff]
        %v6009 = vld [vmem:[#allocation2 + $0x53] sm:$0xff]
        %6018 = vrot.lane.b32.xlu0 %v6002, 126
        %v6019 = vpop.permute.xlu0 %6018
        %6020 = vrot.lane.b32.xlu0 %v6003, 126
        %v6021 = vpop.permute.xlu0 %6020
        %6022 = vrot.lane.b32.xlu0 %v6004, 126
        %v6023 = vpop.permute.xlu0 %6022
        %6024 = vrot.lane.b32.xlu0 %v6005, 126
        %v6025 = vpop.permute.xlu0 %6024
        %6026 = vrot.lane.b32.xlu0 %v6006, 126
        %v6027 = vpop.permute.xlu0 %6026
        %6028 = vrot.lane.b32.xlu0 %v6007, 126
        %v6029 = vpop.permute.xlu0 %6028
        %6030 = vrot.lane.b32.xlu0 %v6008, 126
        %v6031 = vpop.permute.xlu0 %6030
        %6032 = vrot.lane.b32.xlu0 %v6009, 126
        %v6033 = vpop.permute.xlu0 %6032
        %v6042 = vcombine.low %v6019, %v6027
        %v6043 = vcombine.high %v6019, %v6027
        %v6045 = vunpack.c.l.s4 1983009808
        %v6046 = vunpack.c.0.s8 %v6045
        %v6047 = vlaneseq
        %v6048 = vshrl.u32 %v6047, 7
        %v6049 = vsub.s32 %v6046, %v6048
        %v6050 = vrot.slane %v6042, %v6049
        %v6052 = vunpack.c.l.s4 1983009808
        %v6053 = vunpack.c.0.s8 %v6052
        %v6054 = vlaneseq
        %v6055 = vshrl.u32 %v6054, 7
        %v6056 = vsub.s32 %v6053, %v6055
        %v6057 = vrot.slane %v6043, %v6056
        %v6058 = vcombine.low %v6023, %v6031
        %v6059 = vcombine.high %v6023, %v6031
        %v6061 = vunpack.c.l.s4 1983009808
        %v6062 = vunpack.c.0.s8 %v6061
        %v6063 = vlaneseq
        %v6064 = vshrl.u32 %v6063, 7
        %v6065 = vsub.s32 %v6062, %v6064
        %v6066 = vrot.slane %v6058, %v6065
        %v6068 = vunpack.c.l.s4 1983009808
        %v6069 = vunpack.c.0.s8 %v6068
        %v6070 = vlaneseq
        %v6071 = vshrl.u32 %v6070, 7
        %v6072 = vsub.s32 %v6069, %v6071
        %v6073 = vrot.slane %v6059, %v6072
        %v6074 = vcombine.low %v6050, %v6066
        %v6075 = vcombine.high %v6050, %v6066
        %v6077 = vunpack.c.l.s4 1934713408
        %v6078 = vunpack.c.0.s8 %v6077
        %v6079 = vlaneseq
        %v6080 = vshrl.u32 %v6079, 7
        %v6081 = vsub.s32 %v6078, %v6080
        %v6082 = vrot.slane %v6074, %v6081
        %v6084 = vunpack.c.l.s4 1934713408
        %v6085 = vunpack.c.0.s8 %v6084
        %v6086 = vlaneseq
        %v6087 = vshrl.u32 %v6086, 7
        %v6088 = vsub.s32 %v6085, %v6087
        %v6089 = vrot.slane %v6075, %v6088
        %v6090 = vcombine.low %v6057, %v6073
        %v6091 = vcombine.high %v6057, %v6073
        %v6093 = vunpack.c.l.s4 1934713408
        %v6094 = vunpack.c.0.s8 %v6093
        %v6095 = vlaneseq
        %v6096 = vshrl.u32 %v6095, 7
        %v6097 = vsub.s32 %v6094, %v6096
        %v6098 = vrot.slane %v6090, %v6097
        %v6100 = vunpack.c.l.s4 1934713408
        %v6101 = vunpack.c.0.s8 %v6100
        %v6102 = vlaneseq
        %v6103 = vshrl.u32 %v6102, 7
        %v6104 = vsub.s32 %v6101, %v6103
        %v6105 = vrot.slane %v6091, %v6104
        %v6106 = vcombine.high %v6082, 0.0
        %v6107 = vcombine.high %v6089, 0.0
        %v6108 = vcombine.high %v6098, 0.0
        %v6109 = vcombine.high %v6105, 0.0
        %v6110 = vcombine.low %v6021, %v6029
        %v6111 = vcombine.high %v6021, %v6029
        %v6113 = vunpack.c.l.s4 1983009808
        %v6114 = vunpack.c.0.s8 %v6113
        %v6115 = vlaneseq
        %v6116 = vshrl.u32 %v6115, 7
        %v6117 = vsub.s32 %v6114, %v6116
        %v6118 = vrot.slane %v6110, %v6117
        %v6120 = vunpack.c.l.s4 1983009808
        %v6121 = vunpack.c.0.s8 %v6120
        %v6122 = vlaneseq
        %v6123 = vshrl.u32 %v6122, 7
        %v6124 = vsub.s32 %v6121, %v6123
        %v6125 = vrot.slane %v6111, %v6124
        %v6126 = vcombine.low %v6025, %v6033
        %v6127 = vcombine.high %v6025, %v6033
        %v6129 = vunpack.c.l.s4 1983009808
        %v6130 = vunpack.c.0.s8 %v6129
        %v6131 = vlaneseq
        %v6132 = vshrl.u32 %v6131, 7
        %v6133 = vsub.s32 %v6130, %v6132
        %v6134 = vrot.slane %v6126, %v6133
        %v6136 = vunpack.c.l.s4 1983009808
        %v6137 = vunpack.c.0.s8 %v6136
        %v6138 = vlaneseq
        %v6139 = vshrl.u32 %v6138, 7
        %v6140 = vsub.s32 %v6137, %v6139
        %v6141 = vrot.slane %v6127, %v6140
        %v6142 = vcombine.low %v6118, %v6134
        %v6143 = vcombine.high %v6118, %v6134
        %v6145 = vunpack.c.l.s4 1934713408
        %v6146 = vunpack.c.0.s8 %v6145
        %v6147 = vlaneseq
        %v6148 = vshrl.u32 %v6147, 7
        %v6149 = vsub.s32 %v6146, %v6148
        %v6150 = vrot.slane %v6142, %v6149
        %v6152 = vunpack.c.l.s4 1934713408
        %v6153 = vunpack.c.0.s8 %v6152
        %v6154 = vlaneseq
        %v6155 = vshrl.u32 %v6154, 7
        %v6156 = vsub.s32 %v6153, %v6155
        %v6157 = vrot.slane %v6143, %v6156
        %v6158 = vcombine.low %v6125, %v6141
        %v6159 = vcombine.high %v6125, %v6141
        %v6161 = vunpack.c.l.s4 1934713408
        %v6162 = vunpack.c.0.s8 %v6161
        %v6163 = vlaneseq
        %v6164 = vshrl.u32 %v6163, 7
        %v6165 = vsub.s32 %v6162, %v6164
        %v6166 = vrot.slane %v6158, %v6165
        %v6168 = vunpack.c.l.s4 1934713408
        %v6169 = vunpack.c.0.s8 %v6168
        %v6170 = vlaneseq
        %v6171 = vshrl.u32 %v6170, 7
        %v6172 = vsub.s32 %v6169, %v6171
        %v6173 = vrot.slane %v6159, %v6172
        %v6174 = vcombine.high %v6150, 0.0
        %v6175 = vcombine.high %v6157, 0.0
        %v6176 = vcombine.high %v6166, 0.0
        %v6177 = vcombine.high %v6173, 0.0
        %6179 = vrot.lane.b32.xlu0 %v6106, 16
        %v6180 = vpop.permute.xlu0 %6179
        %6183 = vrot.lane.b32.xlu0 %v6089, 32
        %v6184 = vpop.permute.xlu0 %6183
        %6187 = vrot.lane.b32.xlu0 %v6107, 48
        %v6188 = vpop.permute.xlu0 %6187
        %6191 = vrot.lane.b32.xlu0 %v6098, 64
        %v6192 = vpop.permute.xlu0 %6191
        %6195 = vrot.lane.b32.xlu0 %v6108, 80
        %v6196 = vpop.permute.xlu0 %6195
        %6199 = vrot.lane.b32.xlu0 %v6105, 96
        %v6200 = vpop.permute.xlu0 %6199
        %6203 = vrot.lane.b32.xlu0 %v6109, 112
        %v6204 = vpop.permute.xlu0 %6203
        %6207 = vrot.lane.b32.xlu0 %v6174, 16
        %v6208 = vpop.permute.xlu0 %6207
        %6211 = vrot.lane.b32.xlu0 %v6157, 32
        %v6212 = vpop.permute.xlu0 %6211
        %6215 = vrot.lane.b32.xlu0 %v6175, 48
        %v6216 = vpop.permute.xlu0 %6215
        %6219 = vrot.lane.b32.xlu0 %v6166, 64
        %v6220 = vpop.permute.xlu0 %6219
        %6223 = vrot.lane.b32.xlu0 %v6176, 80
        %v6224 = vpop.permute.xlu0 %6223
        %6227 = vrot.lane.b32.xlu0 %v6173, 96
        %v6228 = vpop.permute.xlu0 %6227
        %6231 = vrot.lane.b32.xlu0 %v6177, 112
        %v6232 = vpop.permute.xlu0 %6231
        %v6234 = vsel %vm723, %v6082, %v6180
        %v6235 = vsel %vm725, %v6234, %v6184
        %v6236 = vsel %vm727, %v6235, %v6188
        %v6237 = vsel %vm729, %v6236, %v6192
        %v6238 = vsel %vm731, %v6237, %v6196
        %v6239 = vsel %vm733, %v6238, %v6200
        %v6240 = vsel %vm735, %v6239, %v6204
        %v6241 = vsel %vm723, %v6150, %v6208
        %v6242 = vsel %vm725, %v6241, %v6212
        %v6243 = vsel %vm727, %v6242, %v6216
        %v6244 = vsel %vm729, %v6243, %v6220
        %v6245 = vsel %vm731, %v6244, %v6224
        %v6246 = vsel %vm733, %v6245, %v6228
        %v6247 = vsel %vm735, %v6246, %v6232
        %v6249 = vsel %vm984, %v6001, 0
        %v6252 = vsel %vm988, %v6240, 0
        %v6255 = vsel %vm988, %v6247, 0
        %6257 = vmatprep.subr.mxu0 %v6255
        %6258 = vmatpush1.msra.mxu0 %v6252
        %6259 = vmatprep.subr.mxu0 0.0
        %6260 = vmatpush1.msra.mxu0 0.0
        %6261 = vmatprep.subr.mxu0 0.0
        %6262 = vmatpush1.msra.mxu0 0.0
        %6263 = vmatprep.subr.mxu0 0.0
        %6264 = vmatpush1.msra.mxu0 0.0
        %6265 = vmatprep.subr.mxu0 0.0
        %6266 = vmatpush1.msra.mxu0 0.0
        %6267 = vmatprep.subr.mxu0 0.0
        %6268 = vmatpush1.msra.mxu0 0.0
        %6269 = vmatprep.subr.mxu0 0.0
        %6270 = vmatpush1.msra.mxu0 0.0
        %6271 = vmatprep.subr.mxu0 0.0
        %6272 = vmatpush1.msra.mxu0 0.0
        %6273 = vmatprep.subr.mxu0 0.0
        %6274 = vmatpush1.msra.mxu0 0.0
        %6275 = vmatprep.subr.mxu0 0.0
        %6276 = vmatpush1.msra.mxu0 0.0
        %6277 = vmatprep.subr.mxu0 0.0
        %6278 = vmatpush1.msra.mxu0 0.0
        %6279 = vmatprep.subr.mxu0 0.0
        %6280 = vmatpush1.msra.mxu0 0.0
        %6281 = vmatprep.subr.mxu0 0.0
        %6282 = vmatpush1.msra.mxu0 0.0
        %6283 = vmatprep.subr.mxu0 0.0
        %6284 = vmatpush1.msra.mxu0 0.0
        %6285 = vmatprep.subr.mxu0 0.0
        %6286 = vmatpush1.msra.mxu0 0.0
        %6287 = vmatprep.subr.mxu0 0.0
        %6288 = vmatpush1.msra.mxu0 0.0
        %6289 = vmatprep.subr.mxu0 0.0
        %6290 = vmatpush1.msra.mxu0 0.0
        %6291 = vmatprep.subr.mxu0 0.0
        %6292 = vmatpush1.msra.mxu0 0.0
        %6293 = vmatprep.subr.mxu0 0.0
        %6294 = vmatpush1.msra.mxu0 0.0
        %6295 = vmatprep.subr.mxu0 0.0
        %6296 = vmatpush1.msra.mxu0 0.0
        %6297 = vmatprep.subr.mxu0 0.0
        %6298 = vmatpush1.msra.mxu0 0.0
        %6299 = vmatprep.subr.mxu0 0.0
        %6300 = vmatpush1.msra.mxu0 0.0
        %6301 = vmatprep.subr.mxu0 0.0
        %6302 = vmatpush1.msra.mxu0 0.0
        %6303 = vmatprep.subr.mxu0 0.0
        %6304 = vmatpush1.msra.mxu0 0.0
        %6305 = vmatprep.subr.mxu0 0.0
        %6306 = vmatpush1.msra.mxu0 0.0
        %6307 = vmatprep.subr.mxu0 0.0
        %6308 = vmatpush1.msra.mxu0 0.0
        %6309 = vmatprep.subr.mxu0 0.0
        %6310 = vmatpush1.msra.mxu0 0.0
        %6311 = vmatprep.subr.mxu0 0.0
        %6312 = vmatpush1.msra.mxu0 0.0
        %6313 = vmatprep.subr.mxu0 0.0
        %6314 = vmatpush1.msra.mxu0 0.0
        %6315 = vmatprep.subr.mxu0 0.0
        %6316 = vmatpush1.msra.mxu0 0.0
        %6317 = vmatprep.subr.mxu0 0.0
        %6318 = vmatpush1.msra.mxu0 0.0
        %6319 = vmatprep.subr.mxu0 0.0
        %6320 = vmatpush1.msra.mxu0 0.0
        %6321 = vmatprep.mubr.f32.mxu0 0.0
        %6322 = vmatmul.mubr.f32.gmra.mrb[0].mxu0 %v6249
        %v6323 = vpop.f32.mrb[0].mxu0
        %v6324 = vadd.f32 0.0, %v6323
        %v6325 = vpop.f32.mrb[0].mxu0
        %v6326 = vadd.f32 0.0, %v6325
        %6327 = vdwg.mxu0
        %v6328 = vadd.f32 %v5998, %v6324
        %v6329 = vadd.f32 %v5999, %v6326
        %s6330 = scalar_lea.vmem %s1, 36
        %v6331 = vld [vmem:[%s6330] sm:$0x3]
        %v6332 = vld [vmem:[#allocation2 + $0x3] sm:$0xff]
        %v6333 = vld [vmem:[#allocation2 + $0xb] sm:$0xff]
        %v6334 = vld [vmem:[#allocation2 + $0x1b] sm:$0xff]
        %v6335 = vld [vmem:[#allocation2 + $0x23] sm:$0xff]
        %v6336 = vld [vmem:[#allocation2 + $0x33] sm:$0xff]
        %v6337 = vld [vmem:[#allocation2 + $0x3b] sm:$0xff]
        %v6338 = vld [vmem:[#allocation2 + $0x4b] sm:$0xff]
        %v6339 = vld [vmem:[#allocation2 + $0x53] sm:$0xff]
        %6348 = vrot.lane.b32.xlu0 %v6332, 125
        %v6349 = vpop.permute.xlu0 %6348
        %6350 = vrot.lane.b32.xlu0 %v6333, 125
        %v6351 = vpop.permute.xlu0 %6350
        %6352 = vrot.lane.b32.xlu0 %v6334, 125
        %v6353 = vpop.permute.xlu0 %6352
        %6354 = vrot.lane.b32.xlu0 %v6335, 125
        %v6355 = vpop.permute.xlu0 %6354
        %6356 = vrot.lane.b32.xlu0 %v6336, 125
        %v6357 = vpop.permute.xlu0 %6356
        %6358 = vrot.lane.b32.xlu0 %v6337, 125
        %v6359 = vpop.permute.xlu0 %6358
        %6360 = vrot.lane.b32.xlu0 %v6338, 125
        %v6361 = vpop.permute.xlu0 %6360
        %6362 = vrot.lane.b32.xlu0 %v6339, 125
        %v6363 = vpop.permute.xlu0 %6362
        %v6372 = vcombine.low %v6349, %v6357
        %v6373 = vcombine.high %v6349, %v6357
        %v6375 = vunpack.c.l.s4 1983009808
        %v6376 = vunpack.c.0.s8 %v6375
        %v6377 = vlaneseq
        %v6378 = vshrl.u32 %v6377, 7
        %v6379 = vsub.s32 %v6376, %v6378
        %v6380 = vrot.slane %v6372, %v6379
        %v6382 = vunpack.c.l.s4 1983009808
        %v6383 = vunpack.c.0.s8 %v6382
        %v6384 = vlaneseq
        %v6385 = vshrl.u32 %v6384, 7
        %v6386 = vsub.s32 %v6383, %v6385
        %v6387 = vrot.slane %v6373, %v6386
        %v6388 = vcombine.low %v6353, %v6361
        %v6389 = vcombine.high %v6353, %v6361
        %v6391 = vunpack.c.l.s4 1983009808
        %v6392 = vunpack.c.0.s8 %v6391
        %v6393 = vlaneseq
        %v6394 = vshrl.u32 %v6393, 7
        %v6395 = vsub.s32 %v6392, %v6394
        %v6396 = vrot.slane %v6388, %v6395
        %v6398 = vunpack.c.l.s4 1983009808
        %v6399 = vunpack.c.0.s8 %v6398
        %v6400 = vlaneseq
        %v6401 = vshrl.u32 %v6400, 7
        %v6402 = vsub.s32 %v6399, %v6401
        %v6403 = vrot.slane %v6389, %v6402
        %v6404 = vcombine.low %v6380, %v6396
        %v6405 = vcombine.high %v6380, %v6396
        %v6407 = vunpack.c.l.s4 1934713408
        %v6408 = vunpack.c.0.s8 %v6407
        %v6409 = vlaneseq
        %v6410 = vshrl.u32 %v6409, 7
        %v6411 = vsub.s32 %v6408, %v6410
        %v6412 = vrot.slane %v6404, %v6411
        %v6414 = vunpack.c.l.s4 1934713408
        %v6415 = vunpack.c.0.s8 %v6414
        %v6416 = vlaneseq
        %v6417 = vshrl.u32 %v6416, 7
        %v6418 = vsub.s32 %v6415, %v6417
        %v6419 = vrot.slane %v6405, %v6418
        %v6420 = vcombine.low %v6387, %v6403
        %v6421 = vcombine.high %v6387, %v6403
        %v6423 = vunpack.c.l.s4 1934713408
        %v6424 = vunpack.c.0.s8 %v6423
        %v6425 = vlaneseq
        %v6426 = vshrl.u32 %v6425, 7
        %v6427 = vsub.s32 %v6424, %v6426
        %v6428 = vrot.slane %v6420, %v6427
        %v6430 = vunpack.c.l.s4 1934713408
        %v6431 = vunpack.c.0.s8 %v6430
        %v6432 = vlaneseq
        %v6433 = vshrl.u32 %v6432, 7
        %v6434 = vsub.s32 %v6431, %v6433
        %v6435 = vrot.slane %v6421, %v6434
        %v6436 = vcombine.high %v6412, 0.0
        %v6437 = vcombine.high %v6419, 0.0
        %v6438 = vcombine.high %v6428, 0.0
        %v6439 = vcombine.high %v6435, 0.0
        %v6440 = vcombine.low %v6351, %v6359
        %v6441 = vcombine.high %v6351, %v6359
        %v6443 = vunpack.c.l.s4 1983009808
        %v6444 = vunpack.c.0.s8 %v6443
        %v6445 = vlaneseq
        %v6446 = vshrl.u32 %v6445, 7
        %v6447 = vsub.s32 %v6444, %v6446
        %v6448 = vrot.slane %v6440, %v6447
        %v6450 = vunpack.c.l.s4 1983009808
        %v6451 = vunpack.c.0.s8 %v6450
        %v6452 = vlaneseq
        %v6453 = vshrl.u32 %v6452, 7
        %v6454 = vsub.s32 %v6451, %v6453
        %v6455 = vrot.slane %v6441, %v6454
        %v6456 = vcombine.low %v6355, %v6363
        %v6457 = vcombine.high %v6355, %v6363
        %v6459 = vunpack.c.l.s4 1983009808
        %v6460 = vunpack.c.0.s8 %v6459
        %v6461 = vlaneseq
        %v6462 = vshrl.u32 %v6461, 7
        %v6463 = vsub.s32 %v6460, %v6462
        %v6464 = vrot.slane %v6456, %v6463
        %v6466 = vunpack.c.l.s4 1983009808
        %v6467 = vunpack.c.0.s8 %v6466
        %v6468 = vlaneseq
        %v6469 = vshrl.u32 %v6468, 7
        %v6470 = vsub.s32 %v6467, %v6469
        %v6471 = vrot.slane %v6457, %v6470
        %v6472 = vcombine.low %v6448, %v6464
        %v6473 = vcombine.high %v6448, %v6464
        %v6475 = vunpack.c.l.s4 1934713408
        %v6476 = vunpack.c.0.s8 %v6475
        %v6477 = vlaneseq
        %v6478 = vshrl.u32 %v6477, 7
        %v6479 = vsub.s32 %v6476, %v6478
        %v6480 = vrot.slane %v6472, %v6479
        %v6482 = vunpack.c.l.s4 1934713408
        %v6483 = vunpack.c.0.s8 %v6482
        %v6484 = vlaneseq
        %v6485 = vshrl.u32 %v6484, 7
        %v6486 = vsub.s32 %v6483, %v6485
        %v6487 = vrot.slane %v6473, %v6486
        %v6488 = vcombine.low %v6455, %v6471
        %v6489 = vcombine.high %v6455, %v6471
        %v6491 = vunpack.c.l.s4 1934713408
        %v6492 = vunpack.c.0.s8 %v6491
        %v6493 = vlaneseq
        %v6494 = vshrl.u32 %v6493, 7
        %v6495 = vsub.s32 %v6492, %v6494
        %v6496 = vrot.slane %v6488, %v6495
        %v6498 = vunpack.c.l.s4 1934713408
        %v6499 = vunpack.c.0.s8 %v6498
        %v6500 = vlaneseq
        %v6501 = vshrl.u32 %v6500, 7
        %v6502 = vsub.s32 %v6499, %v6501
        %v6503 = vrot.slane %v6489, %v6502
        %v6504 = vcombine.high %v6480, 0.0
        %v6505 = vcombine.high %v6487, 0.0
        %v6506 = vcombine.high %v6496, 0.0
        %v6507 = vcombine.high %v6503, 0.0
        %6509 = vrot.lane.b32.xlu0 %v6436, 16
        %v6510 = vpop.permute.xlu0 %6509
        %6513 = vrot.lane.b32.xlu0 %v6419, 32
        %v6514 = vpop.permute.xlu0 %6513
        %6517 = vrot.lane.b32.xlu0 %v6437, 48
        %v6518 = vpop.permute.xlu0 %6517
        %6521 = vrot.lane.b32.xlu0 %v6428, 64
        %v6522 = vpop.permute.xlu0 %6521
        %6525 = vrot.lane.b32.xlu0 %v6438, 80
        %v6526 = vpop.permute.xlu0 %6525
        %6529 = vrot.lane.b32.xlu0 %v6435, 96
        %v6530 = vpop.permute.xlu0 %6529
        %6533 = vrot.lane.b32.xlu0 %v6439, 112
        %v6534 = vpop.permute.xlu0 %6533
        %6537 = vrot.lane.b32.xlu0 %v6504, 16
        %v6538 = vpop.permute.xlu0 %6537
        %6541 = vrot.lane.b32.xlu0 %v6487, 32
        %v6542 = vpop.permute.xlu0 %6541
        %6545 = vrot.lane.b32.xlu0 %v6505, 48
        %v6546 = vpop.permute.xlu0 %6545
        %6549 = vrot.lane.b32.xlu0 %v6496, 64
        %v6550 = vpop.permute.xlu0 %6549
        %6553 = vrot.lane.b32.xlu0 %v6506, 80
        %v6554 = vpop.permute.xlu0 %6553
        %6557 = vrot.lane.b32.xlu0 %v6503, 96
        %v6558 = vpop.permute.xlu0 %6557
        %6561 = vrot.lane.b32.xlu0 %v6507, 112
        %v6562 = vpop.permute.xlu0 %6561
        %v6564 = vsel %vm723, %v6412, %v6510
        %v6565 = vsel %vm725, %v6564, %v6514
        %v6566 = vsel %vm727, %v6565, %v6518
        %v6567 = vsel %vm729, %v6566, %v6522
        %v6568 = vsel %vm731, %v6567, %v6526
        %v6569 = vsel %vm733, %v6568, %v6530
        %v6570 = vsel %vm735, %v6569, %v6534
        %v6571 = vsel %vm723, %v6480, %v6538
        %v6572 = vsel %vm725, %v6571, %v6542
        %v6573 = vsel %vm727, %v6572, %v6546
        %v6574 = vsel %vm729, %v6573, %v6550
        %v6575 = vsel %vm731, %v6574, %v6554
        %v6576 = vsel %vm733, %v6575, %v6558
        %v6577 = vsel %vm735, %v6576, %v6562
        %v6579 = vsel %vm984, %v6331, 0
        %v6582 = vsel %vm988, %v6570, 0
        %v6585 = vsel %vm988, %v6577, 0
        %6587 = vmatprep.subr.mxu0 %v6585
        %6588 = vmatpush1.msra.mxu0 %v6582
        %6589 = vmatprep.subr.mxu0 0.0
        %6590 = vmatpush1.msra.mxu0 0.0
        %6591 = vmatprep.subr.mxu0 0.0
        %6592 = vmatpush1.msra.mxu0 0.0
        %6593 = vmatprep.subr.mxu0 0.0
        %6594 = vmatpush1.msra.mxu0 0.0
        %6595 = vmatprep.subr.mxu0 0.0
        %6596 = vmatpush1.msra.mxu0 0.0
        %6597 = vmatprep.subr.mxu0 0.0
        %6598 = vmatpush1.msra.mxu0 0.0
        %6599 = vmatprep.subr.mxu0 0.0
        %6600 = vmatpush1.msra.mxu0 0.0
        %6601 = vmatprep.subr.mxu0 0.0
        %6602 = vmatpush1.msra.mxu0 0.0
        %6603 = vmatprep.subr.mxu0 0.0
        %6604 = vmatpush1.msra.mxu0 0.0
        %6605 = vmatprep.subr.mxu0 0.0
        %6606 = vmatpush1.msra.mxu0 0.0
        %6607 = vmatprep.subr.mxu0 0.0
        %6608 = vmatpush1.msra.mxu0 0.0
        %6609 = vmatprep.subr.mxu0 0.0
        %6610 = vmatpush1.msra.mxu0 0.0
        %6611 = vmatprep.subr.mxu0 0.0
        %6612 = vmatpush1.msra.mxu0 0.0
        %6613 = vmatprep.subr.mxu0 0.0
        %6614 = vmatpush1.msra.mxu0 0.0
        %6615 = vmatprep.subr.mxu0 0.0
        %6616 = vmatpush1.msra.mxu0 0.0
        %6617 = vmatprep.subr.mxu0 0.0
        %6618 = vmatpush1.msra.mxu0 0.0
        %6619 = vmatprep.subr.mxu0 0.0
        %6620 = vmatpush1.msra.mxu0 0.0
        %6621 = vmatprep.subr.mxu0 0.0
        %6622 = vmatpush1.msra.mxu0 0.0
        %6623 = vmatprep.subr.mxu0 0.0
        %6624 = vmatpush1.msra.mxu0 0.0
        %6625 = vmatprep.subr.mxu0 0.0
        %6626 = vmatpush1.msra.mxu0 0.0
        %6627 = vmatprep.subr.mxu0 0.0
        %6628 = vmatpush1.msra.mxu0 0.0
        %6629 = vmatprep.subr.mxu0 0.0
        %6630 = vmatpush1.msra.mxu0 0.0
        %6631 = vmatprep.subr.mxu0 0.0
        %6632 = vmatpush1.msra.mxu0 0.0
        %6633 = vmatprep.subr.mxu0 0.0
        %6634 = vmatpush1.msra.mxu0 0.0
        %6635 = vmatprep.subr.mxu0 0.0
        %6636 = vmatpush1.msra.mxu0 0.0
        %6637 = vmatprep.subr.mxu0 0.0
        %6638 = vmatpush1.msra.mxu0 0.0
        %6639 = vmatprep.subr.mxu0 0.0
        %6640 = vmatpush1.msra.mxu0 0.0
        %6641 = vmatprep.subr.mxu0 0.0
        %6642 = vmatpush1.msra.mxu0 0.0
        %6643 = vmatprep.subr.mxu0 0.0
        %6644 = vmatpush1.msra.mxu0 0.0
        %6645 = vmatprep.subr.mxu0 0.0
        %6646 = vmatpush1.msra.mxu0 0.0
        %6647 = vmatprep.subr.mxu0 0.0
        %6648 = vmatpush1.msra.mxu0 0.0
        %6649 = vmatprep.subr.mxu0 0.0
        %6650 = vmatpush1.msra.mxu0 0.0
        %6651 = vmatprep.mubr.f32.mxu0 0.0
        %6652 = vmatmul.mubr.f32.gmra.mrb[0].mxu0 %v6579
        %v6653 = vpop.f32.mrb[0].mxu0
        %v6654 = vadd.f32 0.0, %v6653
        %v6655 = vpop.f32.mrb[0].mxu0
        %v6656 = vadd.f32 0.0, %v6655
        %6657 = vdwg.mxu0
        %v6658 = vadd.f32 %v6328, %v6654
        %v6659 = vadd.f32 %v6329, %v6656
        %s6660 = scalar_lea.vmem %s1, 38
        %v6661 = vld [vmem:[%s6660] sm:$0x3]
        %v6662 = vld [vmem:[#allocation2 + $0x3] sm:$0xff]
        %v6663 = vld [vmem:[#allocation2 + $0xb] sm:$0xff]
        %v6664 = vld [vmem:[#allocation2 + $0x1b] sm:$0xff]
        %v6665 = vld [vmem:[#allocation2 + $0x23] sm:$0xff]
        %v6666 = vld [vmem:[#allocation2 + $0x33] sm:$0xff]
        %v6667 = vld [vmem:[#allocation2 + $0x3b] sm:$0xff]
        %v6668 = vld [vmem:[#allocation2 + $0x4b] sm:$0xff]
        %v6669 = vld [vmem:[#allocation2 + $0x53] sm:$0xff]
        %6678 = vrot.lane.b32.xlu0 %v6662, 124
        %v6679 = vpop.permute.xlu0 %6678
        %6680 = vrot.lane.b32.xlu0 %v6663, 124
        %v6681 = vpop.permute.xlu0 %6680
        %6682 = vrot.lane.b32.xlu0 %v6664, 124
        %v6683 = vpop.permute.xlu0 %6682
        %6684 = vrot.lane.b32.xlu0 %v6665, 124
        %v6685 = vpop.permute.xlu0 %6684
        %6686 = vrot.lane.b32.xlu0 %v6666, 124
        %v6687 = vpop.permute.xlu0 %6686
        %6688 = vrot.lane.b32.xlu0 %v6667, 124
        %v6689 = vpop.permute.xlu0 %6688
        %6690 = vrot.lane.b32.xlu0 %v6668, 124
        %v6691 = vpop.permute.xlu0 %6690
        %6692 = vrot.lane.b32.xlu0 %v6669, 124
        %v6693 = vpop.permute.xlu0 %6692
        %v6702 = vcombine.low %v6679, %v6687
        %v6703 = vcombine.high %v6679, %v6687
        %v6705 = vunpack.c.l.s4 1983009808
        %v6706 = vunpack.c.0.s8 %v6705
        %v6707 = vlaneseq
        %v6708 = vshrl.u32 %v6707, 7
        %v6709 = vsub.s32 %v6706, %v6708
        %v6710 = vrot.slane %v6702, %v6709
        %v6712 = vunpack.c.l.s4 1983009808
        %v6713 = vunpack.c.0.s8 %v6712
        %v6714 = vlaneseq
        %v6715 = vshrl.u32 %v6714, 7
        %v6716 = vsub.s32 %v6713, %v6715
        %v6717 = vrot.slane %v6703, %v6716
        %v6718 = vcombine.low %v6683, %v6691
        %v6719 = vcombine.high %v6683, %v6691
        %v6721 = vunpack.c.l.s4 1983009808
        %v6722 = vunpack.c.0.s8 %v6721
        %v6723 = vlaneseq
        %v6724 = vshrl.u32 %v6723, 7
        %v6725 = vsub.s32 %v6722, %v6724
        %v6726 = vrot.slane %v6718, %v6725
        %v6728 = vunpack.c.l.s4 1983009808
        %v6729 = vunpack.c.0.s8 %v6728
        %v6730 = vlaneseq
        %v6731 = vshrl.u32 %v6730, 7
        %v6732 = vsub.s32 %v6729, %v6731
        %v6733 = vrot.slane %v6719, %v6732
        %v6734 = vcombine.low %v6710, %v6726
        %v6735 = vcombine.high %v6710, %v6726
        %v6737 = vunpack.c.l.s4 1934713408
        %v6738 = vunpack.c.0.s8 %v6737
        %v6739 = vlaneseq
        %v6740 = vshrl.u32 %v6739, 7
        %v6741 = vsub.s32 %v6738, %v6740
        %v6742 = vrot.slane %v6734, %v6741
        %v6744 = vunpack.c.l.s4 1934713408
        %v6745 = vunpack.c.0.s8 %v6744
        %v6746 = vlaneseq
        %v6747 = vshrl.u32 %v6746, 7
        %v6748 = vsub.s32 %v6745, %v6747
        %v6749 = vrot.slane %v6735, %v6748
        %v6750 = vcombine.low %v6717, %v6733
        %v6751 = vcombine.high %v6717, %v6733
        %v6753 = vunpack.c.l.s4 1934713408
        %v6754 = vunpack.c.0.s8 %v6753
        %v6755 = vlaneseq
        %v6756 = vshrl.u32 %v6755, 7
        %v6757 = vsub.s32 %v6754, %v6756
        %v6758 = vrot.slane %v6750, %v6757
        %v6760 = vunpack.c.l.s4 1934713408
        %v6761 = vunpack.c.0.s8 %v6760
        %v6762 = vlaneseq
        %v6763 = vshrl.u32 %v6762, 7
        %v6764 = vsub.s32 %v6761, %v6763
        %v6765 = vrot.slane %v6751, %v6764
        %v6766 = vcombine.high %v6742, 0.0
        %v6767 = vcombine.high %v6749, 0.0
        %v6768 = vcombine.high %v6758, 0.0
        %v6769 = vcombine.high %v6765, 0.0
        %v6770 = vcombine.low %v6681, %v6689
        %v6771 = vcombine.high %v6681, %v6689
        %v6773 = vunpack.c.l.s4 1983009808
        %v6774 = vunpack.c.0.s8 %v6773
        %v6775 = vlaneseq
        %v6776 = vshrl.u32 %v6775, 7
        %v6777 = vsub.s32 %v6774, %v6776
        %v6778 = vrot.slane %v6770, %v6777
        %v6780 = vunpack.c.l.s4 1983009808
        %v6781 = vunpack.c.0.s8 %v6780
        %v6782 = vlaneseq
        %v6783 = vshrl.u32 %v6782, 7
        %v6784 = vsub.s32 %v6781, %v6783
        %v6785 = vrot.slane %v6771, %v6784
        %v6786 = vcombine.low %v6685, %v6693
        %v6787 = vcombine.high %v6685, %v6693
        %v6789 = vunpack.c.l.s4 1983009808
        %v6790 = vunpack.c.0.s8 %v6789
        %v6791 = vlaneseq
        %v6792 = vshrl.u32 %v6791, 7
        %v6793 = vsub.s32 %v6790, %v6792
        %v6794 = vrot.slane %v6786, %v6793
        %v6796 = vunpack.c.l.s4 1983009808
        %v6797 = vunpack.c.0.s8 %v6796
        %v6798 = vlaneseq
        %v6799 = vshrl.u32 %v6798, 7
        %v6800 = vsub.s32 %v6797, %v6799
        %v6801 = vrot.slane %v6787, %v6800
        %v6802 = vcombine.low %v6778, %v6794
        %v6803 = vcombine.high %v6778, %v6794
        %v6805 = vunpack.c.l.s4 1934713408
        %v6806 = vunpack.c.0.s8 %v6805
        %v6807 = vlaneseq
        %v6808 = vshrl.u32 %v6807, 7
        %v6809 = vsub.s32 %v6806, %v6808
        %v6810 = vrot.slane %v6802, %v6809
        %v6812 = vunpack.c.l.s4 1934713408
        %v6813 = vunpack.c.0.s8 %v6812
        %v6814 = vlaneseq
        %v6815 = vshrl.u32 %v6814, 7
        %v6816 = vsub.s32 %v6813, %v6815
        %v6817 = vrot.slane %v6803, %v6816
        %v6818 = vcombine.low %v6785, %v6801
        %v6819 = vcombine.high %v6785, %v6801
        %v6821 = vunpack.c.l.s4 1934713408
        %v6822 = vunpack.c.0.s8 %v6821
        %v6823 = vlaneseq
        %v6824 = vshrl.u32 %v6823, 7
        %v6825 = vsub.s32 %v6822, %v6824
        %v6826 = vrot.slane %v6818, %v6825
        %v6828 = vunpack.c.l.s4 1934713408
        %v6829 = vunpack.c.0.s8 %v6828
        %v6830 = vlaneseq
        %v6831 = vshrl.u32 %v6830, 7
        %v6832 = vsub.s32 %v6829, %v6831
        %v6833 = vrot.slane %v6819, %v6832
        %v6834 = vcombine.high %v6810, 0.0
        %v6835 = vcombine.high %v6817, 0.0
        %v6836 = vcombine.high %v6826, 0.0
        %v6837 = vcombine.high %v6833, 0.0
        %6839 = vrot.lane.b32.xlu0 %v6766, 16
        %v6840 = vpop.permute.xlu0 %6839
        %6843 = vrot.lane.b32.xlu0 %v6749, 32
        %v6844 = vpop.permute.xlu0 %6843
        %6847 = vrot.lane.b32.xlu0 %v6767, 48
        %v6848 = vpop.permute.xlu0 %6847
        %6851 = vrot.lane.b32.xlu0 %v6758, 64
        %v6852 = vpop.permute.xlu0 %6851
        %6855 = vrot.lane.b32.xlu0 %v6768, 80
        %v6856 = vpop.permute.xlu0 %6855
        %6859 = vrot.lane.b32.xlu0 %v6765, 96
        %v6860 = vpop.permute.xlu0 %6859
        %6863 = vrot.lane.b32.xlu0 %v6769, 112
        %v6864 = vpop.permute.xlu0 %6863
        %6867 = vrot.lane.b32.xlu0 %v6834, 16
        %v6868 = vpop.permute.xlu0 %6867
        %6871 = vrot.lane.b32.xlu0 %v6817, 32
        %v6872 = vpop.permute.xlu0 %6871
        %6875 = vrot.lane.b32.xlu0 %v6835, 48
        %v6876 = vpop.permute.xlu0 %6875
        %6879 = vrot.lane.b32.xlu0 %v6826, 64
        %v6880 = vpop.permute.xlu0 %6879
        %6883 = vrot.lane.b32.xlu0 %v6836, 80
        %v6884 = vpop.permute.xlu0 %6883
        %6887 = vrot.lane.b32.xlu0 %v6833, 96
        %v6888 = vpop.permute.xlu0 %6887
        %6891 = vrot.lane.b32.xlu0 %v6837, 112
        %v6892 = vpop.permute.xlu0 %6891
        %v6894 = vsel %vm723, %v6742, %v6840
        %v6895 = vsel %vm725, %v6894, %v6844
        %v6896 = vsel %vm727, %v6895, %v6848
        %v6897 = vsel %vm729, %v6896, %v6852
        %v6898 = vsel %vm731, %v6897, %v6856
        %v6899 = vsel %vm733, %v6898, %v6860
        %v6900 = vsel %vm735, %v6899, %v6864
        %v6901 = vsel %vm723, %v6810, %v6868
        %v6902 = vsel %vm725, %v6901, %v6872
        %v6903 = vsel %vm727, %v6902, %v6876
        %v6904 = vsel %vm729, %v6903, %v6880
        %v6905 = vsel %vm731, %v6904, %v6884
        %v6906 = vsel %vm733, %v6905, %v6888
        %v6907 = vsel %vm735, %v6906, %v6892
        %v6909 = vsel %vm984, %v6661, 0
        %v6912 = vsel %vm988, %v6900, 0
        %v6915 = vsel %vm988, %v6907, 0
        %6917 = vmatprep.subr.mxu0 %v6915
        %6918 = vmatpush1.msra.mxu0 %v6912
        %6919 = vmatprep.subr.mxu0 0.0
        %6920 = vmatpush1.msra.mxu0 0.0
        %6921 = vmatprep.subr.mxu0 0.0
        %6922 = vmatpush1.msra.mxu0 0.0
        %6923 = vmatprep.subr.mxu0 0.0
        %6924 = vmatpush1.msra.mxu0 0.0
        %6925 = vmatprep.subr.mxu0 0.0
        %6926 = vmatpush1.msra.mxu0 0.0
        %6927 = vmatprep.subr.mxu0 0.0
        %6928 = vmatpush1.msra.mxu0 0.0
        %6929 = vmatprep.subr.mxu0 0.0
        %6930 = vmatpush1.msra.mxu0 0.0
        %6931 = vmatprep.subr.mxu0 0.0
        %6932 = vmatpush1.msra.mxu0 0.0
        %6933 = vmatprep.subr.mxu0 0.0
        %6934 = vmatpush1.msra.mxu0 0.0
        %6935 = vmatprep.subr.mxu0 0.0
        %6936 = vmatpush1.msra.mxu0 0.0
        %6937 = vmatprep.subr.mxu0 0.0
        %6938 = vmatpush1.msra.mxu0 0.0
        %6939 = vmatprep.subr.mxu0 0.0
        %6940 = vmatpush1.msra.mxu0 0.0
        %6941 = vmatprep.subr.mxu0 0.0
        %6942 = vmatpush1.msra.mxu0 0.0
        %6943 = vmatprep.subr.mxu0 0.0
        %6944 = vmatpush1.msra.mxu0 0.0
        %6945 = vmatprep.subr.mxu0 0.0
        %6946 = vmatpush1.msra.mxu0 0.0
        %6947 = vmatprep.subr.mxu0 0.0
        %6948 = vmatpush1.msra.mxu0 0.0
        %6949 = vmatprep.subr.mxu0 0.0
        %6950 = vmatpush1.msra.mxu0 0.0
        %6951 = vmatprep.subr.mxu0 0.0
        %6952 = vmatpush1.msra.mxu0 0.0
        %6953 = vmatprep.subr.mxu0 0.0
        %6954 = vmatpush1.msra.mxu0 0.0
        %6955 = vmatprep.subr.mxu0 0.0
        %6956 = vmatpush1.msra.mxu0 0.0
        %6957 = vmatprep.subr.mxu0 0.0
        %6958 = vmatpush1.msra.mxu0 0.0
        %6959 = vmatprep.subr.mxu0 0.0
        %6960 = vmatpush1.msra.mxu0 0.0
        %6961 = vmatprep.subr.mxu0 0.0
        %6962 = vmatpush1.msra.mxu0 0.0
        %6963 = vmatprep.subr.mxu0 0.0
        %6964 = vmatpush1.msra.mxu0 0.0
        %6965 = vmatprep.subr.mxu0 0.0
        %6966 = vmatpush1.msra.mxu0 0.0
        %6967 = vmatprep.subr.mxu0 0.0
        %6968 = vmatpush1.msra.mxu0 0.0
        %6969 = vmatprep.subr.mxu0 0.0
        %6970 = vmatpush1.msra.mxu0 0.0
        %6971 = vmatprep.subr.mxu0 0.0
        %6972 = vmatpush1.msra.mxu0 0.0
        %6973 = vmatprep.subr.mxu0 0.0
        %6974 = vmatpush1.msra.mxu0 0.0
        %6975 = vmatprep.subr.mxu0 0.0
        %6976 = vmatpush1.msra.mxu0 0.0
        %6977 = vmatprep.subr.mxu0 0.0
        %6978 = vmatpush1.msra.mxu0 0.0
        %6979 = vmatprep.subr.mxu0 0.0
        %6980 = vmatpush1.msra.mxu0 0.0
        %6981 = vmatprep.mubr.f32.mxu0 0.0
        %6982 = vmatmul.mubr.f32.gmra.mrb[0].mxu0 %v6909
        %v6983 = vpop.f32.mrb[0].mxu0
        %v6984 = vadd.f32 0.0, %v6983
        %v6985 = vpop.f32.mrb[0].mxu0
        %v6986 = vadd.f32 0.0, %v6985
        %6987 = vdwg.mxu0
        %v6988 = vadd.f32 %v6658, %v6984
        %v6989 = vadd.f32 %v6659, %v6986
        %s6990 = scalar_lea.vmem %s1, 40
        %v6991 = vld [vmem:[%s6990] sm:$0x3]
        %v6992 = vld [vmem:[#allocation2 + $0x4] sm:$0xff]
        %v6993 = vld [vmem:[#allocation2 + $0xc] sm:$0xff]
        %v6994 = vld [vmem:[#allocation2 + $0x1c] sm:$0xff]
        %v6995 = vld [vmem:[#allocation2 + $0x24] sm:$0xff]
        %v6996 = vld [vmem:[#allocation2 + $0x34] sm:$0xff]
        %v6997 = vld [vmem:[#allocation2 + $0x3c] sm:$0xff]
        %v6998 = vld [vmem:[#allocation2 + $0x4c] sm:$0xff]
        %v6999 = vld [vmem:[#allocation2 + $0x54] sm:$0xff]
        %v7000 = vcombine.low %v6992, %v6996
        %v7001 = vcombine.high %v6992, %v6996
        %v7003 = vunpack.c.l.s4 1983009808
        %v7004 = vunpack.c.0.s8 %v7003
        %v7005 = vlaneseq
        %v7006 = vshrl.u32 %v7005, 7
        %v7007 = vsub.s32 %v7004, %v7006
        %v7008 = vrot.slane %v7000, %v7007
        %v7010 = vunpack.c.l.s4 1983009808
        %v7011 = vunpack.c.0.s8 %v7010
        %v7012 = vlaneseq
        %v7013 = vshrl.u32 %v7012, 7
        %v7014 = vsub.s32 %v7011, %v7013
        %v7015 = vrot.slane %v7001, %v7014
        %v7016 = vcombine.low %v6994, %v6998
        %v7017 = vcombine.high %v6994, %v6998
        %v7019 = vunpack.c.l.s4 1983009808
        %v7020 = vunpack.c.0.s8 %v7019
        %v7021 = vlaneseq
        %v7022 = vshrl.u32 %v7021, 7
        %v7023 = vsub.s32 %v7020, %v7022
        %v7024 = vrot.slane %v7016, %v7023
        %v7026 = vunpack.c.l.s4 1983009808
        %v7027 = vunpack.c.0.s8 %v7026
        %v7028 = vlaneseq
        %v7029 = vshrl.u32 %v7028, 7
        %v7030 = vsub.s32 %v7027, %v7029
        %v7031 = vrot.slane %v7017, %v7030
        %v7032 = vcombine.low %v7008, %v7024
        %v7033 = vcombine.high %v7008, %v7024
        %v7035 = vunpack.c.l.s4 1934713408
        %v7036 = vunpack.c.0.s8 %v7035
        %v7037 = vlaneseq
        %v7038 = vshrl.u32 %v7037, 7
        %v7039 = vsub.s32 %v7036, %v7038
        %v7040 = vrot.slane %v7032, %v7039
        %v7042 = vunpack.c.l.s4 1934713408
        %v7043 = vunpack.c.0.s8 %v7042
        %v7044 = vlaneseq
        %v7045 = vshrl.u32 %v7044, 7
        %v7046 = vsub.s32 %v7043, %v7045
        %v7047 = vrot.slane %v7033, %v7046
        %v7048 = vcombine.low %v7015, %v7031
        %v7049 = vcombine.high %v7015, %v7031
        %v7051 = vunpack.c.l.s4 1934713408
        %v7052 = vunpack.c.0.s8 %v7051
        %v7053 = vlaneseq
        %v7054 = vshrl.u32 %v7053, 7
        %v7055 = vsub.s32 %v7052, %v7054
        %v7056 = vrot.slane %v7048, %v7055
        %v7058 = vunpack.c.l.s4 1934713408
        %v7059 = vunpack.c.0.s8 %v7058
        %v7060 = vlaneseq
        %v7061 = vshrl.u32 %v7060, 7
        %v7062 = vsub.s32 %v7059, %v7061
        %v7063 = vrot.slane %v7049, %v7062
        %v7064 = vcombine.high %v7040, 0.0
        %v7065 = vcombine.high %v7047, 0.0
        %v7066 = vcombine.high %v7056, 0.0
        %v7067 = vcombine.high %v7063, 0.0
        %v7068 = vcombine.low %v6993, %v6997
        %v7069 = vcombine.high %v6993, %v6997
        %v7071 = vunpack.c.l.s4 1983009808
        %v7072 = vunpack.c.0.s8 %v7071
        %v7073 = vlaneseq
        %v7074 = vshrl.u32 %v7073, 7
        %v7075 = vsub.s32 %v7072, %v7074
        %v7076 = vrot.slane %v7068, %v7075
        %v7078 = vunpack.c.l.s4 1983009808
        %v7079 = vunpack.c.0.s8 %v7078
        %v7080 = vlaneseq
        %v7081 = vshrl.u32 %v7080, 7
        %v7082 = vsub.s32 %v7079, %v7081
        %v7083 = vrot.slane %v7069, %v7082
        %v7084 = vcombine.low %v6995, %v6999
        %v7085 = vcombine.high %v6995, %v6999
        %v7087 = vunpack.c.l.s4 1983009808
        %v7088 = vunpack.c.0.s8 %v7087
        %v7089 = vlaneseq
        %v7090 = vshrl.u32 %v7089, 7
        %v7091 = vsub.s32 %v7088, %v7090
        %v7092 = vrot.slane %v7084, %v7091
        %v7094 = vunpack.c.l.s4 1983009808
        %v7095 = vunpack.c.0.s8 %v7094
        %v7096 = vlaneseq
        %v7097 = vshrl.u32 %v7096, 7
        %v7098 = vsub.s32 %v7095, %v7097
        %v7099 = vrot.slane %v7085, %v7098
        %v7100 = vcombine.low %v7076, %v7092
        %v7101 = vcombine.high %v7076, %v7092
        %v7103 = vunpack.c.l.s4 1934713408
        %v7104 = vunpack.c.0.s8 %v7103
        %v7105 = vlaneseq
        %v7106 = vshrl.u32 %v7105, 7
        %v7107 = vsub.s32 %v7104, %v7106
        %v7108 = vrot.slane %v7100, %v7107
        %v7110 = vunpack.c.l.s4 1934713408
        %v7111 = vunpack.c.0.s8 %v7110
        %v7112 = vlaneseq
        %v7113 = vshrl.u32 %v7112, 7
        %v7114 = vsub.s32 %v7111, %v7113
        %v7115 = vrot.slane %v7101, %v7114
        %v7116 = vcombine.low %v7083, %v7099
        %v7117 = vcombine.high %v7083, %v7099
        %v7119 = vunpack.c.l.s4 1934713408
        %v7120 = vunpack.c.0.s8 %v7119
        %v7121 = vlaneseq
        %v7122 = vshrl.u32 %v7121, 7
        %v7123 = vsub.s32 %v7120, %v7122
        %v7124 = vrot.slane %v7116, %v7123
        %v7126 = vunpack.c.l.s4 1934713408
        %v7127 = vunpack.c.0.s8 %v7126
        %v7128 = vlaneseq
        %v7129 = vshrl.u32 %v7128, 7
        %v7130 = vsub.s32 %v7127, %v7129
        %v7131 = vrot.slane %v7117, %v7130
        %v7132 = vcombine.high %v7108, 0.0
        %v7133 = vcombine.high %v7115, 0.0
        %v7134 = vcombine.high %v7124, 0.0
        %v7135 = vcombine.high %v7131, 0.0
        %7137 = vrot.lane.b32.xlu0 %v7064, 16
        %v7138 = vpop.permute.xlu0 %7137
        %7141 = vrot.lane.b32.xlu0 %v7047, 32
        %v7142 = vpop.permute.xlu0 %7141
        %7145 = vrot.lane.b32.xlu0 %v7065, 48
        %v7146 = vpop.permute.xlu0 %7145
        %7149 = vrot.lane.b32.xlu0 %v7056, 64
        %v7150 = vpop.permute.xlu0 %7149
        %7153 = vrot.lane.b32.xlu0 %v7066, 80
        %v7154 = vpop.permute.xlu0 %7153
        %7157 = vrot.lane.b32.xlu0 %v7063, 96
        %v7158 = vpop.permute.xlu0 %7157
        %7161 = vrot.lane.b32.xlu0 %v7067, 112
        %v7162 = vpop.permute.xlu0 %7161
        %7165 = vrot.lane.b32.xlu0 %v7132, 16
        %v7166 = vpop.permute.xlu0 %7165
        %7169 = vrot.lane.b32.xlu0 %v7115, 32
        %v7170 = vpop.permute.xlu0 %7169
        %7173 = vrot.lane.b32.xlu0 %v7133, 48
        %v7174 = vpop.permute.xlu0 %7173
        %7177 = vrot.lane.b32.xlu0 %v7124, 64
        %v7178 = vpop.permute.xlu0 %7177
        %7181 = vrot.lane.b32.xlu0 %v7134, 80
        %v7182 = vpop.permute.xlu0 %7181
        %7185 = vrot.lane.b32.xlu0 %v7131, 96
        %v7186 = vpop.permute.xlu0 %7185
        %7189 = vrot.lane.b32.xlu0 %v7135, 112
        %v7190 = vpop.permute.xlu0 %7189
        %v7192 = vsel %vm723, %v7040, %v7138
        %v7193 = vsel %vm725, %v7192, %v7142
        %v7194 = vsel %vm727, %v7193, %v7146
        %v7195 = vsel %vm729, %v7194, %v7150
        %v7196 = vsel %vm731, %v7195, %v7154
        %v7197 = vsel %vm733, %v7196, %v7158
        %v7198 = vsel %vm735, %v7197, %v7162
        %v7199 = vsel %vm723, %v7108, %v7166
        %v7200 = vsel %vm725, %v7199, %v7170
        %v7201 = vsel %vm727, %v7200, %v7174
        %v7202 = vsel %vm729, %v7201, %v7178
        %v7203 = vsel %vm731, %v7202, %v7182
        %v7204 = vsel %vm733, %v7203, %v7186
        %v7205 = vsel %vm735, %v7204, %v7190
        %v7207 = vsel %vm984, %v6991, 0
        %v7210 = vsel %vm988, %v7198, 0
        %v7213 = vsel %vm988, %v7205, 0
        %7215 = vmatprep.subr.mxu0 %v7213
        %7216 = vmatpush1.msra.mxu0 %v7210
        %7217 = vmatprep.subr.mxu0 0.0
        %7218 = vmatpush1.msra.mxu0 0.0
        %7219 = vmatprep.subr.mxu0 0.0
        %7220 = vmatpush1.msra.mxu0 0.0
        %7221 = vmatprep.subr.mxu0 0.0
        %7222 = vmatpush1.msra.mxu0 0.0
        %7223 = vmatprep.subr.mxu0 0.0
        %7224 = vmatpush1.msra.mxu0 0.0
        %7225 = vmatprep.subr.mxu0 0.0
        %7226 = vmatpush1.msra.mxu0 0.0
        %7227 = vmatprep.subr.mxu0 0.0
        %7228 = vmatpush1.msra.mxu0 0.0
        %7229 = vmatprep.subr.mxu0 0.0
        %7230 = vmatpush1.msra.mxu0 0.0
        %7231 = vmatprep.subr.mxu0 0.0
        %7232 = vmatpush1.msra.mxu0 0.0
        %7233 = vmatprep.subr.mxu0 0.0
        %7234 = vmatpush1.msra.mxu0 0.0
        %7235 = vmatprep.subr.mxu0 0.0
        %7236 = vmatpush1.msra.mxu0 0.0
        %7237 = vmatprep.subr.mxu0 0.0
        %7238 = vmatpush1.msra.mxu0 0.0
        %7239 = vmatprep.subr.mxu0 0.0
        %7240 = vmatpush1.msra.mxu0 0.0
        %7241 = vmatprep.subr.mxu0 0.0
        %7242 = vmatpush1.msra.mxu0 0.0
        %7243 = vmatprep.subr.mxu0 0.0
        %7244 = vmatpush1.msra.mxu0 0.0
        %7245 = vmatprep.subr.mxu0 0.0
        %7246 = vmatpush1.msra.mxu0 0.0
        %7247 = vmatprep.subr.mxu0 0.0
        %7248 = vmatpush1.msra.mxu0 0.0
        %7249 = vmatprep.subr.mxu0 0.0
        %7250 = vmatpush1.msra.mxu0 0.0
        %7251 = vmatprep.subr.mxu0 0.0
        %7252 = vmatpush1.msra.mxu0 0.0
        %7253 = vmatprep.subr.mxu0 0.0
        %7254 = vmatpush1.msra.mxu0 0.0
        %7255 = vmatprep.subr.mxu0 0.0
        %7256 = vmatpush1.msra.mxu0 0.0
        %7257 = vmatprep.subr.mxu0 0.0
        %7258 = vmatpush1.msra.mxu0 0.0
        %7259 = vmatprep.subr.mxu0 0.0
        %7260 = vmatpush1.msra.mxu0 0.0
        %7261 = vmatprep.subr.mxu0 0.0
        %7262 = vmatpush1.msra.mxu0 0.0
        %7263 = vmatprep.subr.mxu0 0.0
        %7264 = vmatpush1.msra.mxu0 0.0
        %7265 = vmatprep.subr.mxu0 0.0
        %7266 = vmatpush1.msra.mxu0 0.0
        %7267 = vmatprep.subr.mxu0 0.0
        %7268 = vmatpush1.msra.mxu0 0.0
        %7269 = vmatprep.subr.mxu0 0.0
        %7270 = vmatpush1.msra.mxu0 0.0
        %7271 = vmatprep.subr.mxu0 0.0
        %7272 = vmatpush1.msra.mxu0 0.0
        %7273 = vmatprep.subr.mxu0 0.0
        %7274 = vmatpush1.msra.mxu0 0.0
        %7275 = vmatprep.subr.mxu0 0.0
        %7276 = vmatpush1.msra.mxu0 0.0
        %7277 = vmatprep.subr.mxu0 0.0
        %7278 = vmatpush1.msra.mxu0 0.0
        %7279 = vmatprep.mubr.f32.mxu0 0.0
        %7280 = vmatmul.mubr.f32.gmra.mrb[0].mxu0 %v7207
        %v7281 = vpop.f32.mrb[0].mxu0
        %v7282 = vadd.f32 0.0, %v7281
        %v7283 = vpop.f32.mrb[0].mxu0
        %v7284 = vadd.f32 0.0, %v7283
        %7285 = vdwg.mxu0
        %v7286 = vadd.f32 %v6988, %v7282
        %v7287 = vadd.f32 %v6989, %v7284
        %s7288 = scalar_lea.vmem %s1, 42
        %v7289 = vld [vmem:[%s7288] sm:$0x3]
        %v7290 = vld [vmem:[#allocation2 + $0x4] sm:$0xff]
        %v7291 = vld [vmem:[#allocation2 + $0xc] sm:$0xff]
        %v7292 = vld [vmem:[#allocation2 + $0x1c] sm:$0xff]
        %v7293 = vld [vmem:[#allocation2 + $0x24] sm:$0xff]
        %v7294 = vld [vmem:[#allocation2 + $0x34] sm:$0xff]
        %v7295 = vld [vmem:[#allocation2 + $0x3c] sm:$0xff]
        %v7296 = vld [vmem:[#allocation2 + $0x4c] sm:$0xff]
        %v7297 = vld [vmem:[#allocation2 + $0x54] sm:$0xff]
        %7306 = vrot.lane.b32.xlu0 %v7290, 127
        %v7307 = vpop.permute.xlu0 %7306
        %7308 = vrot.lane.b32.xlu0 %v7291, 127
        %v7309 = vpop.permute.xlu0 %7308
        %7310 = vrot.lane.b32.xlu0 %v7292, 127
        %v7311 = vpop.permute.xlu0 %7310
        %7312 = vrot.lane.b32.xlu0 %v7293, 127
        %v7313 = vpop.permute.xlu0 %7312
        %7314 = vrot.lane.b32.xlu0 %v7294, 127
        %v7315 = vpop.permute.xlu0 %7314
        %7316 = vrot.lane.b32.xlu0 %v7295, 127
        %v7317 = vpop.permute.xlu0 %7316
        %7318 = vrot.lane.b32.xlu0 %v7296, 127
        %v7319 = vpop.permute.xlu0 %7318
        %7320 = vrot.lane.b32.xlu0 %v7297, 127
        %v7321 = vpop.permute.xlu0 %7320
        %v7330 = vcombine.low %v7307, %v7315
        %v7331 = vcombine.high %v7307, %v7315
        %v7333 = vunpack.c.l.s4 1983009808
        %v7334 = vunpack.c.0.s8 %v7333
        %v7335 = vlaneseq
        %v7336 = vshrl.u32 %v7335, 7
        %v7337 = vsub.s32 %v7334, %v7336
        %v7338 = vrot.slane %v7330, %v7337
        %v7340 = vunpack.c.l.s4 1983009808
        %v7341 = vunpack.c.0.s8 %v7340
        %v7342 = vlaneseq
        %v7343 = vshrl.u32 %v7342, 7
        %v7344 = vsub.s32 %v7341, %v7343
        %v7345 = vrot.slane %v7331, %v7344
        %v7346 = vcombine.low %v7311, %v7319
        %v7347 = vcombine.high %v7311, %v7319
        %v7349 = vunpack.c.l.s4 1983009808
        %v7350 = vunpack.c.0.s8 %v7349
        %v7351 = vlaneseq
        %v7352 = vshrl.u32 %v7351, 7
        %v7353 = vsub.s32 %v7350, %v7352
        %v7354 = vrot.slane %v7346, %v7353
        %v7356 = vunpack.c.l.s4 1983009808
        %v7357 = vunpack.c.0.s8 %v7356
        %v7358 = vlaneseq
        %v7359 = vshrl.u32 %v7358, 7
        %v7360 = vsub.s32 %v7357, %v7359
        %v7361 = vrot.slane %v7347, %v7360
        %v7362 = vcombine.low %v7338, %v7354
        %v7363 = vcombine.high %v7338, %v7354
        %v7365 = vunpack.c.l.s4 1934713408
        %v7366 = vunpack.c.0.s8 %v7365
        %v7367 = vlaneseq
        %v7368 = vshrl.u32 %v7367, 7
        %v7369 = vsub.s32 %v7366, %v7368
        %v7370 = vrot.slane %v7362, %v7369
        %v7372 = vunpack.c.l.s4 1934713408
        %v7373 = vunpack.c.0.s8 %v7372
        %v7374 = vlaneseq
        %v7375 = vshrl.u32 %v7374, 7
        %v7376 = vsub.s32 %v7373, %v7375
        %v7377 = vrot.slane %v7363, %v7376
        %v7378 = vcombine.low %v7345, %v7361
        %v7379 = vcombine.high %v7345, %v7361
        %v7381 = vunpack.c.l.s4 1934713408
        %v7382 = vunpack.c.0.s8 %v7381
        %v7383 = vlaneseq
        %v7384 = vshrl.u32 %v7383, 7
        %v7385 = vsub.s32 %v7382, %v7384
        %v7386 = vrot.slane %v7378, %v7385
        %v7388 = vunpack.c.l.s4 1934713408
        %v7389 = vunpack.c.0.s8 %v7388
        %v7390 = vlaneseq
        %v7391 = vshrl.u32 %v7390, 7
        %v7392 = vsub.s32 %v7389, %v7391
        %v7393 = vrot.slane %v7379, %v7392
        %v7394 = vcombine.high %v7370, 0.0
        %v7395 = vcombine.high %v7377, 0.0
        %v7396 = vcombine.high %v7386, 0.0
        %v7397 = vcombine.high %v7393, 0.0
        %v7398 = vcombine.low %v7309, %v7317
        %v7399 = vcombine.high %v7309, %v7317
        %v7401 = vunpack.c.l.s4 1983009808
        %v7402 = vunpack.c.0.s8 %v7401
        %v7403 = vlaneseq
        %v7404 = vshrl.u32 %v7403, 7
        %v7405 = vsub.s32 %v7402, %v7404
        %v7406 = vrot.slane %v7398, %v7405
        %v7408 = vunpack.c.l.s4 1983009808
        %v7409 = vunpack.c.0.s8 %v7408
        %v7410 = vlaneseq
        %v7411 = vshrl.u32 %v7410, 7
        %v7412 = vsub.s32 %v7409, %v7411
        %v7413 = vrot.slane %v7399, %v7412
        %v7414 = vcombine.low %v7313, %v7321
        %v7415 = vcombine.high %v7313, %v7321
        %v7417 = vunpack.c.l.s4 1983009808
        %v7418 = vunpack.c.0.s8 %v7417
        %v7419 = vlaneseq
        %v7420 = vshrl.u32 %v7419, 7
        %v7421 = vsub.s32 %v7418, %v7420
        %v7422 = vrot.slane %v7414, %v7421
        %v7424 = vunpack.c.l.s4 1983009808
        %v7425 = vunpack.c.0.s8 %v7424
        %v7426 = vlaneseq
        %v7427 = vshrl.u32 %v7426, 7
        %v7428 = vsub.s32 %v7425, %v7427
        %v7429 = vrot.slane %v7415, %v7428
        %v7430 = vcombine.low %v7406, %v7422
        %v7431 = vcombine.high %v7406, %v7422
        %v7433 = vunpack.c.l.s4 1934713408
        %v7434 = vunpack.c.0.s8 %v7433
        %v7435 = vlaneseq
        %v7436 = vshrl.u32 %v7435, 7
        %v7437 = vsub.s32 %v7434, %v7436
        %v7438 = vrot.slane %v7430, %v7437
        %v7440 = vunpack.c.l.s4 1934713408
        %v7441 = vunpack.c.0.s8 %v7440
        %v7442 = vlaneseq
        %v7443 = vshrl.u32 %v7442, 7
        %v7444 = vsub.s32 %v7441, %v7443
        %v7445 = vrot.slane %v7431, %v7444
        %v7446 = vcombine.low %v7413, %v7429
        %v7447 = vcombine.high %v7413, %v7429
        %v7449 = vunpack.c.l.s4 1934713408
        %v7450 = vunpack.c.0.s8 %v7449
        %v7451 = vlaneseq
        %v7452 = vshrl.u32 %v7451, 7
        %v7453 = vsub.s32 %v7450, %v7452
        %v7454 = vrot.slane %v7446, %v7453
        %v7456 = vunpack.c.l.s4 1934713408
        %v7457 = vunpack.c.0.s8 %v7456
        %v7458 = vlaneseq
        %v7459 = vshrl.u32 %v7458, 7
        %v7460 = vsub.s32 %v7457, %v7459
        %v7461 = vrot.slane %v7447, %v7460
        %v7462 = vcombine.high %v7438, 0.0
        %v7463 = vcombine.high %v7445, 0.0
        %v7464 = vcombine.high %v7454, 0.0
        %v7465 = vcombine.high %v7461, 0.0
        %7467 = vrot.lane.b32.xlu0 %v7394, 16
        %v7468 = vpop.permute.xlu0 %7467
        %7471 = vrot.lane.b32.xlu0 %v7377, 32
        %v7472 = vpop.permute.xlu0 %7471
        %7475 = vrot.lane.b32.xlu0 %v7395, 48
        %v7476 = vpop.permute.xlu0 %7475
        %7479 = vrot.lane.b32.xlu0 %v7386, 64
        %v7480 = vpop.permute.xlu0 %7479
        %7483 = vrot.lane.b32.xlu0 %v7396, 80
        %v7484 = vpop.permute.xlu0 %7483
        %7487 = vrot.lane.b32.xlu0 %v7393, 96
        %v7488 = vpop.permute.xlu0 %7487
        %7491 = vrot.lane.b32.xlu0 %v7397, 112
        %v7492 = vpop.permute.xlu0 %7491
        %7495 = vrot.lane.b32.xlu0 %v7462, 16
        %v7496 = vpop.permute.xlu0 %7495
        %7499 = vrot.lane.b32.xlu0 %v7445, 32
        %v7500 = vpop.permute.xlu0 %7499
        %7503 = vrot.lane.b32.xlu0 %v7463, 48
        %v7504 = vpop.permute.xlu0 %7503
        %7507 = vrot.lane.b32.xlu0 %v7454, 64
        %v7508 = vpop.permute.xlu0 %7507
        %7511 = vrot.lane.b32.xlu0 %v7464, 80
        %v7512 = vpop.permute.xlu0 %7511
        %7515 = vrot.lane.b32.xlu0 %v7461, 96
        %v7516 = vpop.permute.xlu0 %7515
        %7519 = vrot.lane.b32.xlu0 %v7465, 112
        %v7520 = vpop.permute.xlu0 %7519
        %v7522 = vsel %vm723, %v7370, %v7468
        %v7523 = vsel %vm725, %v7522, %v7472
        %v7524 = vsel %vm727, %v7523, %v7476
        %v7525 = vsel %vm729, %v7524, %v7480
        %v7526 = vsel %vm731, %v7525, %v7484
        %v7527 = vsel %vm733, %v7526, %v7488
        %v7528 = vsel %vm735, %v7527, %v7492
        %v7529 = vsel %vm723, %v7438, %v7496
        %v7530 = vsel %vm725, %v7529, %v7500
        %v7531 = vsel %vm727, %v7530, %v7504
        %v7532 = vsel %vm729, %v7531, %v7508
        %v7533 = vsel %vm731, %v7532, %v7512
        %v7534 = vsel %vm733, %v7533, %v7516
        %v7535 = vsel %vm735, %v7534, %v7520
        %v7537 = vsel %vm984, %v7289, 0
        %v7540 = vsel %vm988, %v7528, 0
        %v7543 = vsel %vm988, %v7535, 0
        %7545 = vmatprep.subr.mxu0 %v7543
        %7546 = vmatpush1.msra.mxu0 %v7540
        %7547 = vmatprep.subr.mxu0 0.0
        %7548 = vmatpush1.msra.mxu0 0.0
        %7549 = vmatprep.subr.mxu0 0.0
        %7550 = vmatpush1.msra.mxu0 0.0
        %7551 = vmatprep.subr.mxu0 0.0
        %7552 = vmatpush1.msra.mxu0 0.0
        %7553 = vmatprep.subr.mxu0 0.0
        %7554 = vmatpush1.msra.mxu0 0.0
        %7555 = vmatprep.subr.mxu0 0.0
        %7556 = vmatpush1.msra.mxu0 0.0
        %7557 = vmatprep.subr.mxu0 0.0
        %7558 = vmatpush1.msra.mxu0 0.0
        %7559 = vmatprep.subr.mxu0 0.0
        %7560 = vmatpush1.msra.mxu0 0.0
        %7561 = vmatprep.subr.mxu0 0.0
        %7562 = vmatpush1.msra.mxu0 0.0
        %7563 = vmatprep.subr.mxu0 0.0
        %7564 = vmatpush1.msra.mxu0 0.0
        %7565 = vmatprep.subr.mxu0 0.0
        %7566 = vmatpush1.msra.mxu0 0.0
        %7567 = vmatprep.subr.mxu0 0.0
        %7568 = vmatpush1.msra.mxu0 0.0
        %7569 = vmatprep.subr.mxu0 0.0
        %7570 = vmatpush1.msra.mxu0 0.0
        %7571 = vmatprep.subr.mxu0 0.0
        %7572 = vmatpush1.msra.mxu0 0.0
        %7573 = vmatprep.subr.mxu0 0.0
        %7574 = vmatpush1.msra.mxu0 0.0
        %7575 = vmatprep.subr.mxu0 0.0
        %7576 = vmatpush1.msra.mxu0 0.0
        %7577 = vmatprep.subr.mxu0 0.0
        %7578 = vmatpush1.msra.mxu0 0.0
        %7579 = vmatprep.subr.mxu0 0.0
        %7580 = vmatpush1.msra.mxu0 0.0
        %7581 = vmatprep.subr.mxu0 0.0
        %7582 = vmatpush1.msra.mxu0 0.0
        %7583 = vmatprep.subr.mxu0 0.0
        %7584 = vmatpush1.msra.mxu0 0.0
        %7585 = vmatprep.subr.mxu0 0.0
        %7586 = vmatpush1.msra.mxu0 0.0
        %7587 = vmatprep.subr.mxu0 0.0
        %7588 = vmatpush1.msra.mxu0 0.0
        %7589 = vmatprep.subr.mxu0 0.0
        %7590 = vmatpush1.msra.mxu0 0.0
        %7591 = vmatprep.subr.mxu0 0.0
        %7592 = vmatpush1.msra.mxu0 0.0
        %7593 = vmatprep.subr.mxu0 0.0
        %7594 = vmatpush1.msra.mxu0 0.0
        %7595 = vmatprep.subr.mxu0 0.0
        %7596 = vmatpush1.msra.mxu0 0.0
        %7597 = vmatprep.subr.mxu0 0.0
        %7598 = vmatpush1.msra.mxu0 0.0
        %7599 = vmatprep.subr.mxu0 0.0
        %7600 = vmatpush1.msra.mxu0 0.0
        %7601 = vmatprep.subr.mxu0 0.0
        %7602 = vmatpush1.msra.mxu0 0.0
        %7603 = vmatprep.subr.mxu0 0.0
        %7604 = vmatpush1.msra.mxu0 0.0
        %7605 = vmatprep.subr.mxu0 0.0
        %7606 = vmatpush1.msra.mxu0 0.0
        %7607 = vmatprep.subr.mxu0 0.0
        %7608 = vmatpush1.msra.mxu0 0.0
        %7609 = vmatprep.mubr.f32.mxu0 0.0
        %7610 = vmatmul.mubr.f32.gmra.mrb[0].mxu0 %v7537
        %v7611 = vpop.f32.mrb[0].mxu0
        %v7612 = vadd.f32 0.0, %v7611
        %v7613 = vpop.f32.mrb[0].mxu0
        %v7614 = vadd.f32 0.0, %v7613
        %7615 = vdwg.mxu0
        %v7616 = vadd.f32 %v7286, %v7612
        %v7617 = vadd.f32 %v7287, %v7614
        %s7618 = scalar_lea.vmem %s1, 44
        %v7619 = vld [vmem:[%s7618] sm:$0x3]
        %v7620 = vld [vmem:[#allocation2 + $0x4] sm:$0xff]
        %v7621 = vld [vmem:[#allocation2 + $0xc] sm:$0xff]
        %v7622 = vld [vmem:[#allocation2 + $0x1c] sm:$0xff]
        %v7623 = vld [vmem:[#allocation2 + $0x24] sm:$0xff]
        %v7624 = vld [vmem:[#allocation2 + $0x34] sm:$0xff]
        %v7625 = vld [vmem:[#allocation2 + $0x3c] sm:$0xff]
        %v7626 = vld [vmem:[#allocation2 + $0x4c] sm:$0xff]
        %v7627 = vld [vmem:[#allocation2 + $0x54] sm:$0xff]
        %7636 = vrot.lane.b32.xlu0 %v7620, 126
        %v7637 = vpop.permute.xlu0 %7636
        %7638 = vrot.lane.b32.xlu0 %v7621, 126
        %v7639 = vpop.permute.xlu0 %7638
        %7640 = vrot.lane.b32.xlu0 %v7622, 126
        %v7641 = vpop.permute.xlu0 %7640
        %7642 = vrot.lane.b32.xlu0 %v7623, 126
        %v7643 = vpop.permute.xlu0 %7642
        %7644 = vrot.lane.b32.xlu0 %v7624, 126
        %v7645 = vpop.permute.xlu0 %7644
        %7646 = vrot.lane.b32.xlu0 %v7625, 126
        %v7647 = vpop.permute.xlu0 %7646
        %7648 = vrot.lane.b32.xlu0 %v7626, 126
        %v7649 = vpop.permute.xlu0 %7648
        %7650 = vrot.lane.b32.xlu0 %v7627, 126
        %v7651 = vpop.permute.xlu0 %7650
        %v7660 = vcombine.low %v7637, %v7645
        %v7661 = vcombine.high %v7637, %v7645
        %v7663 = vunpack.c.l.s4 1983009808
        %v7664 = vunpack.c.0.s8 %v7663
        %v7665 = vlaneseq
        %v7666 = vshrl.u32 %v7665, 7
        %v7667 = vsub.s32 %v7664, %v7666
        %v7668 = vrot.slane %v7660, %v7667
        %v7670 = vunpack.c.l.s4 1983009808
        %v7671 = vunpack.c.0.s8 %v7670
        %v7672 = vlaneseq
        %v7673 = vshrl.u32 %v7672, 7
        %v7674 = vsub.s32 %v7671, %v7673
        %v7675 = vrot.slane %v7661, %v7674
        %v7676 = vcombine.low %v7641, %v7649
        %v7677 = vcombine.high %v7641, %v7649
        %v7679 = vunpack.c.l.s4 1983009808
        %v7680 = vunpack.c.0.s8 %v7679
        %v7681 = vlaneseq
        %v7682 = vshrl.u32 %v7681, 7
        %v7683 = vsub.s32 %v7680, %v7682
        %v7684 = vrot.slane %v7676, %v7683
        %v7686 = vunpack.c.l.s4 1983009808
        %v7687 = vunpack.c.0.s8 %v7686
        %v7688 = vlaneseq
        %v7689 = vshrl.u32 %v7688, 7
        %v7690 = vsub.s32 %v7687, %v7689
        %v7691 = vrot.slane %v7677, %v7690
        %v7692 = vcombine.low %v7668, %v7684
        %v7693 = vcombine.high %v7668, %v7684
        %v7695 = vunpack.c.l.s4 1934713408
        %v7696 = vunpack.c.0.s8 %v7695
        %v7697 = vlaneseq
        %v7698 = vshrl.u32 %v7697, 7
        %v7699 = vsub.s32 %v7696, %v7698
        %v7700 = vrot.slane %v7692, %v7699
        %v7702 = vunpack.c.l.s4 1934713408
        %v7703 = vunpack.c.0.s8 %v7702
        %v7704 = vlaneseq
        %v7705 = vshrl.u32 %v7704, 7
        %v7706 = vsub.s32 %v7703, %v7705
        %v7707 = vrot.slane %v7693, %v7706
        %v7708 = vcombine.low %v7675, %v7691
        %v7709 = vcombine.high %v7675, %v7691
        %v7711 = vunpack.c.l.s4 1934713408
        %v7712 = vunpack.c.0.s8 %v7711
        %v7713 = vlaneseq
        %v7714 = vshrl.u32 %v7713, 7
        %v7715 = vsub.s32 %v7712, %v7714
        %v7716 = vrot.slane %v7708, %v7715
        %v7718 = vunpack.c.l.s4 1934713408
        %v7719 = vunpack.c.0.s8 %v7718
        %v7720 = vlaneseq
        %v7721 = vshrl.u32 %v7720, 7
        %v7722 = vsub.s32 %v7719, %v7721
        %v7723 = vrot.slane %v7709, %v7722
        %v7724 = vcombine.high %v7700, 0.0
        %v7725 = vcombine.high %v7707, 0.0
        %v7726 = vcombine.high %v7716, 0.0
        %v7727 = vcombine.high %v7723, 0.0
        %v7728 = vcombine.low %v7639, %v7647
        %v7729 = vcombine.high %v7639, %v7647
        %v7731 = vunpack.c.l.s4 1983009808
        %v7732 = vunpack.c.0.s8 %v7731
        %v7733 = vlaneseq
        %v7734 = vshrl.u32 %v7733, 7
        %v7735 = vsub.s32 %v7732, %v7734
        %v7736 = vrot.slane %v7728, %v7735
        %v7738 = vunpack.c.l.s4 1983009808
        %v7739 = vunpack.c.0.s8 %v7738
        %v7740 = vlaneseq
        %v7741 = vshrl.u32 %v7740, 7
        %v7742 = vsub.s32 %v7739, %v7741
        %v7743 = vrot.slane %v7729, %v7742
        %v7744 = vcombine.low %v7643, %v7651
        %v7745 = vcombine.high %v7643, %v7651
        %v7747 = vunpack.c.l.s4 1983009808
        %v7748 = vunpack.c.0.s8 %v7747
        %v7749 = vlaneseq
        %v7750 = vshrl.u32 %v7749, 7
        %v7751 = vsub.s32 %v7748, %v7750
        %v7752 = vrot.slane %v7744, %v7751
        %v7754 = vunpack.c.l.s4 1983009808
        %v7755 = vunpack.c.0.s8 %v7754
        %v7756 = vlaneseq
        %v7757 = vshrl.u32 %v7756, 7
        %v7758 = vsub.s32 %v7755, %v7757
        %v7759 = vrot.slane %v7745, %v7758
        %v7760 = vcombine.low %v7736, %v7752
        %v7761 = vcombine.high %v7736, %v7752
        %v7763 = vunpack.c.l.s4 1934713408
        %v7764 = vunpack.c.0.s8 %v7763
        %v7765 = vlaneseq
        %v7766 = vshrl.u32 %v7765, 7
        %v7767 = vsub.s32 %v7764, %v7766
        %v7768 = vrot.slane %v7760, %v7767
        %v7770 = vunpack.c.l.s4 1934713408
        %v7771 = vunpack.c.0.s8 %v7770
        %v7772 = vlaneseq
        %v7773 = vshrl.u32 %v7772, 7
        %v7774 = vsub.s32 %v7771, %v7773
        %v7775 = vrot.slane %v7761, %v7774
        %v7776 = vcombine.low %v7743, %v7759
        %v7777 = vcombine.high %v7743, %v7759
        %v7779 = vunpack.c.l.s4 1934713408
        %v7780 = vunpack.c.0.s8 %v7779
        %v7781 = vlaneseq
        %v7782 = vshrl.u32 %v7781, 7
        %v7783 = vsub.s32 %v7780, %v7782
        %v7784 = vrot.slane %v7776, %v7783
        %v7786 = vunpack.c.l.s4 1934713408
        %v7787 = vunpack.c.0.s8 %v7786
        %v7788 = vlaneseq
        %v7789 = vshrl.u32 %v7788, 7
        %v7790 = vsub.s32 %v7787, %v7789
        %v7791 = vrot.slane %v7777, %v7790
        %v7792 = vcombine.high %v7768, 0.0
        %v7793 = vcombine.high %v7775, 0.0
        %v7794 = vcombine.high %v7784, 0.0
        %v7795 = vcombine.high %v7791, 0.0
        %7797 = vrot.lane.b32.xlu0 %v7724, 16
        %v7798 = vpop.permute.xlu0 %7797
        %7801 = vrot.lane.b32.xlu0 %v7707, 32
        %v7802 = vpop.permute.xlu0 %7801
        %7805 = vrot.lane.b32.xlu0 %v7725, 48
        %v7806 = vpop.permute.xlu0 %7805
        %7809 = vrot.lane.b32.xlu0 %v7716, 64
        %v7810 = vpop.permute.xlu0 %7809
        %7813 = vrot.lane.b32.xlu0 %v7726, 80
        %v7814 = vpop.permute.xlu0 %7813
        %7817 = vrot.lane.b32.xlu0 %v7723, 96
        %v7818 = vpop.permute.xlu0 %7817
        %7821 = vrot.lane.b32.xlu0 %v7727, 112
        %v7822 = vpop.permute.xlu0 %7821
        %7825 = vrot.lane.b32.xlu0 %v7792, 16
        %v7826 = vpop.permute.xlu0 %7825
        %7829 = vrot.lane.b32.xlu0 %v7775, 32
        %v7830 = vpop.permute.xlu0 %7829
        %7833 = vrot.lane.b32.xlu0 %v7793, 48
        %v7834 = vpop.permute.xlu0 %7833
        %7837 = vrot.lane.b32.xlu0 %v7784, 64
        %v7838 = vpop.permute.xlu0 %7837
        %7841 = vrot.lane.b32.xlu0 %v7794, 80
        %v7842 = vpop.permute.xlu0 %7841
        %7845 = vrot.lane.b32.xlu0 %v7791, 96
        %v7846 = vpop.permute.xlu0 %7845
        %7849 = vrot.lane.b32.xlu0 %v7795, 112
        %v7850 = vpop.permute.xlu0 %7849
        %v7852 = vsel %vm723, %v7700, %v7798
        %v7853 = vsel %vm725, %v7852, %v7802
        %v7854 = vsel %vm727, %v7853, %v7806
        %v7855 = vsel %vm729, %v7854, %v7810
        %v7856 = vsel %vm731, %v7855, %v7814
        %v7857 = vsel %vm733, %v7856, %v7818
        %v7858 = vsel %vm735, %v7857, %v7822
        %v7859 = vsel %vm723, %v7768, %v7826
        %v7860 = vsel %vm725, %v7859, %v7830
        %v7861 = vsel %vm727, %v7860, %v7834
        %v7862 = vsel %vm729, %v7861, %v7838
        %v7863 = vsel %vm731, %v7862, %v7842
        %v7864 = vsel %vm733, %v7863, %v7846
        %v7865 = vsel %vm735, %v7864, %v7850
        %v7867 = vsel %vm984, %v7619, 0
        %v7870 = vsel %vm988, %v7858, 0
        %v7873 = vsel %vm988, %v7865, 0
        %7875 = vmatprep.subr.mxu0 %v7873
        %7876 = vmatpush1.msra.mxu0 %v7870
        %7877 = vmatprep.subr.mxu0 0.0
        %7878 = vmatpush1.msra.mxu0 0.0
        %7879 = vmatprep.subr.mxu0 0.0
        %7880 = vmatpush1.msra.mxu0 0.0
        %7881 = vmatprep.subr.mxu0 0.0
        %7882 = vmatpush1.msra.mxu0 0.0
        %7883 = vmatprep.subr.mxu0 0.0
        %7884 = vmatpush1.msra.mxu0 0.0
        %7885 = vmatprep.subr.mxu0 0.0
        %7886 = vmatpush1.msra.mxu0 0.0
        %7887 = vmatprep.subr.mxu0 0.0
        %7888 = vmatpush1.msra.mxu0 0.0
        %7889 = vmatprep.subr.mxu0 0.0
        %7890 = vmatpush1.msra.mxu0 0.0
        %7891 = vmatprep.subr.mxu0 0.0
        %7892 = vmatpush1.msra.mxu0 0.0
        %7893 = vmatprep.subr.mxu0 0.0
        %7894 = vmatpush1.msra.mxu0 0.0
        %7895 = vmatprep.subr.mxu0 0.0
        %7896 = vmatpush1.msra.mxu0 0.0
        %7897 = vmatprep.subr.mxu0 0.0
        %7898 = vmatpush1.msra.mxu0 0.0
        %7899 = vmatprep.subr.mxu0 0.0
        %7900 = vmatpush1.msra.mxu0 0.0
        %7901 = vmatprep.subr.mxu0 0.0
        %7902 = vmatpush1.msra.mxu0 0.0
        %7903 = vmatprep.subr.mxu0 0.0
        %7904 = vmatpush1.msra.mxu0 0.0
        %7905 = vmatprep.subr.mxu0 0.0
        %7906 = vmatpush1.msra.mxu0 0.0
        %7907 = vmatprep.subr.mxu0 0.0
        %7908 = vmatpush1.msra.mxu0 0.0
        %7909 = vmatprep.subr.mxu0 0.0
        %7910 = vmatpush1.msra.mxu0 0.0
        %7911 = vmatprep.subr.mxu0 0.0
        %7912 = vmatpush1.msra.mxu0 0.0
        %7913 = vmatprep.subr.mxu0 0.0
        %7914 = vmatpush1.msra.mxu0 0.0
        %7915 = vmatprep.subr.mxu0 0.0
        %7916 = vmatpush1.msra.mxu0 0.0
        %7917 = vmatprep.subr.mxu0 0.0
        %7918 = vmatpush1.msra.mxu0 0.0
        %7919 = vmatprep.subr.mxu0 0.0
        %7920 = vmatpush1.msra.mxu0 0.0
        %7921 = vmatprep.subr.mxu0 0.0
        %7922 = vmatpush1.msra.mxu0 0.0
        %7923 = vmatprep.subr.mxu0 0.0
        %7924 = vmatpush1.msra.mxu0 0.0
        %7925 = vmatprep.subr.mxu0 0.0
        %7926 = vmatpush1.msra.mxu0 0.0
        %7927 = vmatprep.subr.mxu0 0.0
        %7928 = vmatpush1.msra.mxu0 0.0
        %7929 = vmatprep.subr.mxu0 0.0
        %7930 = vmatpush1.msra.mxu0 0.0
        %7931 = vmatprep.subr.mxu0 0.0
        %7932 = vmatpush1.msra.mxu0 0.0
        %7933 = vmatprep.subr.mxu0 0.0
        %7934 = vmatpush1.msra.mxu0 0.0
        %7935 = vmatprep.subr.mxu0 0.0
        %7936 = vmatpush1.msra.mxu0 0.0
        %7937 = vmatprep.subr.mxu0 0.0
        %7938 = vmatpush1.msra.mxu0 0.0
        %7939 = vmatprep.mubr.f32.mxu0 0.0
        %7940 = vmatmul.mubr.f32.gmra.mrb[0].mxu0 %v7867
        %v7941 = vpop.f32.mrb[0].mxu0
        %v7942 = vadd.f32 0.0, %v7941
        %v7943 = vpop.f32.mrb[0].mxu0
        %v7944 = vadd.f32 0.0, %v7943
        %7945 = vdwg.mxu0
        %v7946 = vadd.f32 %v7616, %v7942
        %v7947 = vadd.f32 %v7617, %v7944
        %s7948 = scalar_lea.vmem %s1, 46
        %v7949 = vld [vmem:[%s7948] sm:$0x3]
        %v7950 = vld [vmem:[#allocation2 + $0x4] sm:$0xff]
        %v7951 = vld [vmem:[#allocation2 + $0xc] sm:$0xff]
        %v7952 = vld [vmem:[#allocation2 + $0x1c] sm:$0xff]
        %v7953 = vld [vmem:[#allocation2 + $0x24] sm:$0xff]
        %v7954 = vld [vmem:[#allocation2 + $0x34] sm:$0xff]
        %v7955 = vld [vmem:[#allocation2 + $0x3c] sm:$0xff]
        %v7956 = vld [vmem:[#allocation2 + $0x4c] sm:$0xff]
        %v7957 = vld [vmem:[#allocation2 + $0x54] sm:$0xff]
        %7966 = vrot.lane.b32.xlu0 %v7950, 125
        %v7967 = vpop.permute.xlu0 %7966
        %7968 = vrot.lane.b32.xlu0 %v7951, 125
        %v7969 = vpop.permute.xlu0 %7968
        %7970 = vrot.lane.b32.xlu0 %v7952, 125
        %v7971 = vpop.permute.xlu0 %7970
        %7972 = vrot.lane.b32.xlu0 %v7953, 125
        %v7973 = vpop.permute.xlu0 %7972
        %7974 = vrot.lane.b32.xlu0 %v7954, 125
        %v7975 = vpop.permute.xlu0 %7974
        %7976 = vrot.lane.b32.xlu0 %v7955, 125
        %v7977 = vpop.permute.xlu0 %7976
        %7978 = vrot.lane.b32.xlu0 %v7956, 125
        %v7979 = vpop.permute.xlu0 %7978
        %7980 = vrot.lane.b32.xlu0 %v7957, 125
        %v7981 = vpop.permute.xlu0 %7980
        %v7990 = vcombine.low %v7967, %v7975
        %v7991 = vcombine.high %v7967, %v7975
        %v7993 = vunpack.c.l.s4 1983009808
        %v7994 = vunpack.c.0.s8 %v7993
        %v7995 = vlaneseq
        %v7996 = vshrl.u32 %v7995, 7
        %v7997 = vsub.s32 %v7994, %v7996
        %v7998 = vrot.slane %v7990, %v7997
        %v8000 = vunpack.c.l.s4 1983009808
        %v8001 = vunpack.c.0.s8 %v8000
        %v8002 = vlaneseq
        %v8003 = vshrl.u32 %v8002, 7
        %v8004 = vsub.s32 %v8001, %v8003
        %v8005 = vrot.slane %v7991, %v8004
        %v8006 = vcombine.low %v7971, %v7979
        %v8007 = vcombine.high %v7971, %v7979
        %v8009 = vunpack.c.l.s4 1983009808
        %v8010 = vunpack.c.0.s8 %v8009
        %v8011 = vlaneseq
        %v8012 = vshrl.u32 %v8011, 7
        %v8013 = vsub.s32 %v8010, %v8012
        %v8014 = vrot.slane %v8006, %v8013
        %v8016 = vunpack.c.l.s4 1983009808
        %v8017 = vunpack.c.0.s8 %v8016
        %v8018 = vlaneseq
        %v8019 = vshrl.u32 %v8018, 7
        %v8020 = vsub.s32 %v8017, %v8019
        %v8021 = vrot.slane %v8007, %v8020
        %v8022 = vcombine.low %v7998, %v8014
        %v8023 = vcombine.high %v7998, %v8014
        %v8025 = vunpack.c.l.s4 1934713408
        %v8026 = vunpack.c.0.s8 %v8025
        %v8027 = vlaneseq
        %v8028 = vshrl.u32 %v8027, 7
        %v8029 = vsub.s32 %v8026, %v8028
        %v8030 = vrot.slane %v8022, %v8029
        %v8032 = vunpack.c.l.s4 1934713408
        %v8033 = vunpack.c.0.s8 %v8032
        %v8034 = vlaneseq
        %v8035 = vshrl.u32 %v8034, 7
        %v8036 = vsub.s32 %v8033, %v8035
        %v8037 = vrot.slane %v8023, %v8036
        %v8038 = vcombine.low %v8005, %v8021
        %v8039 = vcombine.high %v8005, %v8021
        %v8041 = vunpack.c.l.s4 1934713408
        %v8042 = vunpack.c.0.s8 %v8041
        %v8043 = vlaneseq
        %v8044 = vshrl.u32 %v8043, 7
        %v8045 = vsub.s32 %v8042, %v8044
        %v8046 = vrot.slane %v8038, %v8045
        %v8048 = vunpack.c.l.s4 1934713408
        %v8049 = vunpack.c.0.s8 %v8048
        %v8050 = vlaneseq
        %v8051 = vshrl.u32 %v8050, 7
        %v8052 = vsub.s32 %v8049, %v8051
        %v8053 = vrot.slane %v8039, %v8052
        %v8054 = vcombine.high %v8030, 0.0
        %v8055 = vcombine.high %v8037, 0.0
        %v8056 = vcombine.high %v8046, 0.0
        %v8057 = vcombine.high %v8053, 0.0
        %v8058 = vcombine.low %v7969, %v7977
        %v8059 = vcombine.high %v7969, %v7977
        %v8061 = vunpack.c.l.s4 1983009808
        %v8062 = vunpack.c.0.s8 %v8061
        %v8063 = vlaneseq
        %v8064 = vshrl.u32 %v8063, 7
        %v8065 = vsub.s32 %v8062, %v8064
        %v8066 = vrot.slane %v8058, %v8065
        %v8068 = vunpack.c.l.s4 1983009808
        %v8069 = vunpack.c.0.s8 %v8068
        %v8070 = vlaneseq
        %v8071 = vshrl.u32 %v8070, 7
        %v8072 = vsub.s32 %v8069, %v8071
        %v8073 = vrot.slane %v8059, %v8072
        %v8074 = vcombine.low %v7973, %v7981
        %v8075 = vcombine.high %v7973, %v7981
        %v8077 = vunpack.c.l.s4 1983009808
        %v8078 = vunpack.c.0.s8 %v8077
        %v8079 = vlaneseq
        %v8080 = vshrl.u32 %v8079, 7
        %v8081 = vsub.s32 %v8078, %v8080
        %v8082 = vrot.slane %v8074, %v8081
        %v8084 = vunpack.c.l.s4 1983009808
        %v8085 = vunpack.c.0.s8 %v8084
        %v8086 = vlaneseq
        %v8087 = vshrl.u32 %v8086, 7
        %v8088 = vsub.s32 %v8085, %v8087
        %v8089 = vrot.slane %v8075, %v8088
        %v8090 = vcombine.low %v8066, %v8082
        %v8091 = vcombine.high %v8066, %v8082
        %v8093 = vunpack.c.l.s4 1934713408
        %v8094 = vunpack.c.0.s8 %v8093
        %v8095 = vlaneseq
        %v8096 = vshrl.u32 %v8095, 7
        %v8097 = vsub.s32 %v8094, %v8096
        %v8098 = vrot.slane %v8090, %v8097
        %v8100 = vunpack.c.l.s4 1934713408
        %v8101 = vunpack.c.0.s8 %v8100
        %v8102 = vlaneseq
        %v8103 = vshrl.u32 %v8102, 7
        %v8104 = vsub.s32 %v8101, %v8103
        %v8105 = vrot.slane %v8091, %v8104
        %v8106 = vcombine.low %v8073, %v8089
        %v8107 = vcombine.high %v8073, %v8089
        %v8109 = vunpack.c.l.s4 1934713408
        %v8110 = vunpack.c.0.s8 %v8109
        %v8111 = vlaneseq
        %v8112 = vshrl.u32 %v8111, 7
        %v8113 = vsub.s32 %v8110, %v8112
        %v8114 = vrot.slane %v8106, %v8113
        %v8116 = vunpack.c.l.s4 1934713408
        %v8117 = vunpack.c.0.s8 %v8116
        %v8118 = vlaneseq
        %v8119 = vshrl.u32 %v8118, 7
        %v8120 = vsub.s32 %v8117, %v8119
        %v8121 = vrot.slane %v8107, %v8120
        %v8122 = vcombine.high %v8098, 0.0
        %v8123 = vcombine.high %v8105, 0.0
        %v8124 = vcombine.high %v8114, 0.0
        %v8125 = vcombine.high %v8121, 0.0
        %8127 = vrot.lane.b32.xlu0 %v8054, 16
        %v8128 = vpop.permute.xlu0 %8127
        %8131 = vrot.lane.b32.xlu0 %v8037, 32
        %v8132 = vpop.permute.xlu0 %8131
        %8135 = vrot.lane.b32.xlu0 %v8055, 48
        %v8136 = vpop.permute.xlu0 %8135
        %8139 = vrot.lane.b32.xlu0 %v8046, 64
        %v8140 = vpop.permute.xlu0 %8139
        %8143 = vrot.lane.b32.xlu0 %v8056, 80
        %v8144 = vpop.permute.xlu0 %8143
        %8147 = vrot.lane.b32.xlu0 %v8053, 96
        %v8148 = vpop.permute.xlu0 %8147
        %8151 = vrot.lane.b32.xlu0 %v8057, 112
        %v8152 = vpop.permute.xlu0 %8151
        %8155 = vrot.lane.b32.xlu0 %v8122, 16
        %v8156 = vpop.permute.xlu0 %8155
        %8159 = vrot.lane.b32.xlu0 %v8105, 32
        %v8160 = vpop.permute.xlu0 %8159
        %8163 = vrot.lane.b32.xlu0 %v8123, 48
        %v8164 = vpop.permute.xlu0 %8163
        %8167 = vrot.lane.b32.xlu0 %v8114, 64
        %v8168 = vpop.permute.xlu0 %8167
        %8171 = vrot.lane.b32.xlu0 %v8124, 80
        %v8172 = vpop.permute.xlu0 %8171
        %8175 = vrot.lane.b32.xlu0 %v8121, 96
        %v8176 = vpop.permute.xlu0 %8175
        %8179 = vrot.lane.b32.xlu0 %v8125, 112
        %v8180 = vpop.permute.xlu0 %8179
        %v8182 = vsel %vm723, %v8030, %v8128
        %v8183 = vsel %vm725, %v8182, %v8132
        %v8184 = vsel %vm727, %v8183, %v8136
        %v8185 = vsel %vm729, %v8184, %v8140
        %v8186 = vsel %vm731, %v8185, %v8144
        %v8187 = vsel %vm733, %v8186, %v8148
        %v8188 = vsel %vm735, %v8187, %v8152
        %v8189 = vsel %vm723, %v8098, %v8156
        %v8190 = vsel %vm725, %v8189, %v8160
        %v8191 = vsel %vm727, %v8190, %v8164
        %v8192 = vsel %vm729, %v8191, %v8168
        %v8193 = vsel %vm731, %v8192, %v8172
        %v8194 = vsel %vm733, %v8193, %v8176
        %v8195 = vsel %vm735, %v8194, %v8180
        %v8197 = vsel %vm984, %v7949, 0
        %v8200 = vsel %vm988, %v8188, 0
        %v8203 = vsel %vm988, %v8195, 0
        %8205 = vmatprep.subr.mxu0 %v8203
        %8206 = vmatpush1.msra.mxu0 %v8200
        %8207 = vmatprep.subr.mxu0 0.0
        %8208 = vmatpush1.msra.mxu0 0.0
        %8209 = vmatprep.subr.mxu0 0.0
        %8210 = vmatpush1.msra.mxu0 0.0
        %8211 = vmatprep.subr.mxu0 0.0
        %8212 = vmatpush1.msra.mxu0 0.0
        %8213 = vmatprep.subr.mxu0 0.0
        %8214 = vmatpush1.msra.mxu0 0.0
        %8215 = vmatprep.subr.mxu0 0.0
        %8216 = vmatpush1.msra.mxu0 0.0
        %8217 = vmatprep.subr.mxu0 0.0
        %8218 = vmatpush1.msra.mxu0 0.0
        %8219 = vmatprep.subr.mxu0 0.0
        %8220 = vmatpush1.msra.mxu0 0.0
        %8221 = vmatprep.subr.mxu0 0.0
        %8222 = vmatpush1.msra.mxu0 0.0
        %8223 = vmatprep.subr.mxu0 0.0
        %8224 = vmatpush1.msra.mxu0 0.0
        %8225 = vmatprep.subr.mxu0 0.0
        %8226 = vmatpush1.msra.mxu0 0.0
        %8227 = vmatprep.subr.mxu0 0.0
        %8228 = vmatpush1.msra.mxu0 0.0
        %8229 = vmatprep.subr.mxu0 0.0
        %8230 = vmatpush1.msra.mxu0 0.0
        %8231 = vmatprep.subr.mxu0 0.0
        %8232 = vmatpush1.msra.mxu0 0.0
        %8233 = vmatprep.subr.mxu0 0.0
        %8234 = vmatpush1.msra.mxu0 0.0
        %8235 = vmatprep.subr.mxu0 0.0
        %8236 = vmatpush1.msra.mxu0 0.0
        %8237 = vmatprep.subr.mxu0 0.0
        %8238 = vmatpush1.msra.mxu0 0.0
        %8239 = vmatprep.subr.mxu0 0.0
        %8240 = vmatpush1.msra.mxu0 0.0
        %8241 = vmatprep.subr.mxu0 0.0
        %8242 = vmatpush1.msra.mxu0 0.0
        %8243 = vmatprep.subr.mxu0 0.0
        %8244 = vmatpush1.msra.mxu0 0.0
        %8245 = vmatprep.subr.mxu0 0.0
        %8246 = vmatpush1.msra.mxu0 0.0
        %8247 = vmatprep.subr.mxu0 0.0
        %8248 = vmatpush1.msra.mxu0 0.0
        %8249 = vmatprep.subr.mxu0 0.0
        %8250 = vmatpush1.msra.mxu0 0.0
        %8251 = vmatprep.subr.mxu0 0.0
        %8252 = vmatpush1.msra.mxu0 0.0
        %8253 = vmatprep.subr.mxu0 0.0
        %8254 = vmatpush1.msra.mxu0 0.0
        %8255 = vmatprep.subr.mxu0 0.0
        %8256 = vmatpush1.msra.mxu0 0.0
        %8257 = vmatprep.subr.mxu0 0.0
        %8258 = vmatpush1.msra.mxu0 0.0
        %8259 = vmatprep.subr.mxu0 0.0
        %8260 = vmatpush1.msra.mxu0 0.0
        %8261 = vmatprep.subr.mxu0 0.0
        %8262 = vmatpush1.msra.mxu0 0.0
        %8263 = vmatprep.subr.mxu0 0.0
        %8264 = vmatpush1.msra.mxu0 0.0
        %8265 = vmatprep.subr.mxu0 0.0
        %8266 = vmatpush1.msra.mxu0 0.0
        %8267 = vmatprep.subr.mxu0 0.0
        %8268 = vmatpush1.msra.mxu0 0.0
        %8269 = vmatprep.mubr.f32.mxu0 0.0
        %8270 = vmatmul.mubr.f32.gmra.mrb[0].mxu0 %v8197
        %v8271 = vpop.f32.mrb[0].mxu0
        %v8272 = vadd.f32 0.0, %v8271
        %v8273 = vpop.f32.mrb[0].mxu0
        %v8274 = vadd.f32 0.0, %v8273
        %8275 = vdwg.mxu0
        %v8276 = vadd.f32 %v7946, %v8272
        %v8277 = vadd.f32 %v7947, %v8274
        %s8278 = scalar_lea.vmem %s1, 48
        %v8279 = vld [vmem:[%s8278] sm:$0x3]
        %v8280 = vld [vmem:[#allocation2 + $0x4] sm:$0xff]
        %v8281 = vld [vmem:[#allocation2 + $0xc] sm:$0xff]
        %v8282 = vld [vmem:[#allocation2 + $0x1c] sm:$0xff]
        %v8283 = vld [vmem:[#allocation2 + $0x24] sm:$0xff]
        %v8284 = vld [vmem:[#allocation2 + $0x34] sm:$0xff]
        %v8285 = vld [vmem:[#allocation2 + $0x3c] sm:$0xff]
        %v8286 = vld [vmem:[#allocation2 + $0x4c] sm:$0xff]
        %v8287 = vld [vmem:[#allocation2 + $0x54] sm:$0xff]
        %8296 = vrot.lane.b32.xlu0 %v8280, 124
        %v8297 = vpop.permute.xlu0 %8296
        %8298 = vrot.lane.b32.xlu0 %v8281, 124
        %v8299 = vpop.permute.xlu0 %8298
        %8300 = vrot.lane.b32.xlu0 %v8282, 124
        %v8301 = vpop.permute.xlu0 %8300
        %8302 = vrot.lane.b32.xlu0 %v8283, 124
        %v8303 = vpop.permute.xlu0 %8302
        %8304 = vrot.lane.b32.xlu0 %v8284, 124
        %v8305 = vpop.permute.xlu0 %8304
        %8306 = vrot.lane.b32.xlu0 %v8285, 124
        %v8307 = vpop.permute.xlu0 %8306
        %8308 = vrot.lane.b32.xlu0 %v8286, 124
        %v8309 = vpop.permute.xlu0 %8308
        %8310 = vrot.lane.b32.xlu0 %v8287, 124
        %v8311 = vpop.permute.xlu0 %8310
        %v8320 = vcombine.low %v8297, %v8305
        %v8321 = vcombine.high %v8297, %v8305
        %v8323 = vunpack.c.l.s4 1983009808
        %v8324 = vunpack.c.0.s8 %v8323
        %v8325 = vlaneseq
        %v8326 = vshrl.u32 %v8325, 7
        %v8327 = vsub.s32 %v8324, %v8326
        %v8328 = vrot.slane %v8320, %v8327
        %v8330 = vunpack.c.l.s4 1983009808
        %v8331 = vunpack.c.0.s8 %v8330
        %v8332 = vlaneseq
        %v8333 = vshrl.u32 %v8332, 7
        %v8334 = vsub.s32 %v8331, %v8333
        %v8335 = vrot.slane %v8321, %v8334
        %v8336 = vcombine.low %v8301, %v8309
        %v8337 = vcombine.high %v8301, %v8309
        %v8339 = vunpack.c.l.s4 1983009808
        %v8340 = vunpack.c.0.s8 %v8339
        %v8341 = vlaneseq
        %v8342 = vshrl.u32 %v8341, 7
        %v8343 = vsub.s32 %v8340, %v8342
        %v8344 = vrot.slane %v8336, %v8343
        %v8346 = vunpack.c.l.s4 1983009808
        %v8347 = vunpack.c.0.s8 %v8346
        %v8348 = vlaneseq
        %v8349 = vshrl.u32 %v8348, 7
        %v8350 = vsub.s32 %v8347, %v8349
        %v8351 = vrot.slane %v8337, %v8350
        %v8352 = vcombine.low %v8328, %v8344
        %v8353 = vcombine.high %v8328, %v8344
        %v8355 = vunpack.c.l.s4 1934713408
        %v8356 = vunpack.c.0.s8 %v8355
        %v8357 = vlaneseq
        %v8358 = vshrl.u32 %v8357, 7
        %v8359 = vsub.s32 %v8356, %v8358
        %v8360 = vrot.slane %v8352, %v8359
        %v8362 = vunpack.c.l.s4 1934713408
        %v8363 = vunpack.c.0.s8 %v8362
        %v8364 = vlaneseq
        %v8365 = vshrl.u32 %v8364, 7
        %v8366 = vsub.s32 %v8363, %v8365
        %v8367 = vrot.slane %v8353, %v8366
        %v8368 = vcombine.low %v8335, %v8351
        %v8369 = vcombine.high %v8335, %v8351
        %v8371 = vunpack.c.l.s4 1934713408
        %v8372 = vunpack.c.0.s8 %v8371
        %v8373 = vlaneseq
        %v8374 = vshrl.u32 %v8373, 7
        %v8375 = vsub.s32 %v8372, %v8374
        %v8376 = vrot.slane %v8368, %v8375
        %v8378 = vunpack.c.l.s4 1934713408
        %v8379 = vunpack.c.0.s8 %v8378
        %v8380 = vlaneseq
        %v8381 = vshrl.u32 %v8380, 7
        %v8382 = vsub.s32 %v8379, %v8381
        %v8383 = vrot.slane %v8369, %v8382
        %v8384 = vcombine.high %v8360, 0.0
        %v8385 = vcombine.high %v8367, 0.0
        %v8386 = vcombine.high %v8376, 0.0
        %v8387 = vcombine.high %v8383, 0.0
        %v8388 = vcombine.low %v8299, %v8307
        %v8389 = vcombine.high %v8299, %v8307
        %v8391 = vunpack.c.l.s4 1983009808
        %v8392 = vunpack.c.0.s8 %v8391
        %v8393 = vlaneseq
        %v8394 = vshrl.u32 %v8393, 7
        %v8395 = vsub.s32 %v8392, %v8394
        %v8396 = vrot.slane %v8388, %v8395
        %v8398 = vunpack.c.l.s4 1983009808
        %v8399 = vunpack.c.0.s8 %v8398
        %v8400 = vlaneseq
        %v8401 = vshrl.u32 %v8400, 7
        %v8402 = vsub.s32 %v8399, %v8401
        %v8403 = vrot.slane %v8389, %v8402
        %v8404 = vcombine.low %v8303, %v8311
        %v8405 = vcombine.high %v8303, %v8311
        %v8407 = vunpack.c.l.s4 1983009808
        %v8408 = vunpack.c.0.s8 %v8407
        %v8409 = vlaneseq
        %v8410 = vshrl.u32 %v8409, 7
        %v8411 = vsub.s32 %v8408, %v8410
        %v8412 = vrot.slane %v8404, %v8411
        %v8414 = vunpack.c.l.s4 1983009808
        %v8415 = vunpack.c.0.s8 %v8414
        %v8416 = vlaneseq
        %v8417 = vshrl.u32 %v8416, 7
        %v8418 = vsub.s32 %v8415, %v8417
        %v8419 = vrot.slane %v8405, %v8418
        %v8420 = vcombine.low %v8396, %v8412
        %v8421 = vcombine.high %v8396, %v8412
        %v8423 = vunpack.c.l.s4 1934713408
        %v8424 = vunpack.c.0.s8 %v8423
        %v8425 = vlaneseq
        %v8426 = vshrl.u32 %v8425, 7
        %v8427 = vsub.s32 %v8424, %v8426
        %v8428 = vrot.slane %v8420, %v8427
        %v8430 = vunpack.c.l.s4 1934713408
        %v8431 = vunpack.c.0.s8 %v8430
        %v8432 = vlaneseq
        %v8433 = vshrl.u32 %v8432, 7
        %v8434 = vsub.s32 %v8431, %v8433
        %v8435 = vrot.slane %v8421, %v8434
        %v8436 = vcombine.low %v8403, %v8419
        %v8437 = vcombine.high %v8403, %v8419
        %v8439 = vunpack.c.l.s4 1934713408
        %v8440 = vunpack.c.0.s8 %v8439
        %v8441 = vlaneseq
        %v8442 = vshrl.u32 %v8441, 7
        %v8443 = vsub.s32 %v8440, %v8442
        %v8444 = vrot.slane %v8436, %v8443
        %v8446 = vunpack.c.l.s4 1934713408
        %v8447 = vunpack.c.0.s8 %v8446
        %v8448 = vlaneseq
        %v8449 = vshrl.u32 %v8448, 7
        %v8450 = vsub.s32 %v8447, %v8449
        %v8451 = vrot.slane %v8437, %v8450
        %v8452 = vcombine.high %v8428, 0.0
        %v8453 = vcombine.high %v8435, 0.0
        %v8454 = vcombine.high %v8444, 0.0
        %v8455 = vcombine.high %v8451, 0.0
        %8457 = vrot.lane.b32.xlu0 %v8384, 16
        %v8458 = vpop.permute.xlu0 %8457
        %8461 = vrot.lane.b32.xlu0 %v8367, 32
        %v8462 = vpop.permute.xlu0 %8461
        %8465 = vrot.lane.b32.xlu0 %v8385, 48
        %v8466 = vpop.permute.xlu0 %8465
        %8469 = vrot.lane.b32.xlu0 %v8376, 64
        %v8470 = vpop.permute.xlu0 %8469
        %8473 = vrot.lane.b32.xlu0 %v8386, 80
        %v8474 = vpop.permute.xlu0 %8473
        %8477 = vrot.lane.b32.xlu0 %v8383, 96
        %v8478 = vpop.permute.xlu0 %8477
        %8481 = vrot.lane.b32.xlu0 %v8387, 112
        %v8482 = vpop.permute.xlu0 %8481
        %8485 = vrot.lane.b32.xlu0 %v8452, 16
        %v8486 = vpop.permute.xlu0 %8485
        %8489 = vrot.lane.b32.xlu0 %v8435, 32
        %v8490 = vpop.permute.xlu0 %8489
        %8493 = vrot.lane.b32.xlu0 %v8453, 48
        %v8494 = vpop.permute.xlu0 %8493
        %8497 = vrot.lane.b32.xlu0 %v8444, 64
        %v8498 = vpop.permute.xlu0 %8497
        %8501 = vrot.lane.b32.xlu0 %v8454, 80
        %v8502 = vpop.permute.xlu0 %8501
        %8505 = vrot.lane.b32.xlu0 %v8451, 96
        %v8506 = vpop.permute.xlu0 %8505
        %8509 = vrot.lane.b32.xlu0 %v8455, 112
        %v8510 = vpop.permute.xlu0 %8509
        %v8512 = vsel %vm723, %v8360, %v8458
        %v8513 = vsel %vm725, %v8512, %v8462
        %v8514 = vsel %vm727, %v8513, %v8466
        %v8515 = vsel %vm729, %v8514, %v8470
        %v8516 = vsel %vm731, %v8515, %v8474
        %v8517 = vsel %vm733, %v8516, %v8478
        %v8518 = vsel %vm735, %v8517, %v8482
        %v8519 = vsel %vm723, %v8428, %v8486
        %v8520 = vsel %vm725, %v8519, %v8490
        %v8521 = vsel %vm727, %v8520, %v8494
        %v8522 = vsel %vm729, %v8521, %v8498
        %v8523 = vsel %vm731, %v8522, %v8502
        %v8524 = vsel %vm733, %v8523, %v8506
        %v8525 = vsel %vm735, %v8524, %v8510
        %v8527 = vsel %vm984, %v8279, 0
        %v8530 = vsel %vm988, %v8518, 0
        %v8533 = vsel %vm988, %v8525, 0
        %8535 = vmatprep.subr.mxu0 %v8533
        %8536 = vmatpush1.msra.mxu0 %v8530
        %8537 = vmatprep.subr.mxu0 0.0
        %8538 = vmatpush1.msra.mxu0 0.0
        %8539 = vmatprep.subr.mxu0 0.0
        %8540 = vmatpush1.msra.mxu0 0.0
        %8541 = vmatprep.subr.mxu0 0.0
        %8542 = vmatpush1.msra.mxu0 0.0
        %8543 = vmatprep.subr.mxu0 0.0
        %8544 = vmatpush1.msra.mxu0 0.0
        %8545 = vmatprep.subr.mxu0 0.0
        %8546 = vmatpush1.msra.mxu0 0.0
        %8547 = vmatprep.subr.mxu0 0.0
        %8548 = vmatpush1.msra.mxu0 0.0
        %8549 = vmatprep.subr.mxu0 0.0
        %8550 = vmatpush1.msra.mxu0 0.0
        %8551 = vmatprep.subr.mxu0 0.0
        %8552 = vmatpush1.msra.mxu0 0.0
        %8553 = vmatprep.subr.mxu0 0.0
        %8554 = vmatpush1.msra.mxu0 0.0
        %8555 = vmatprep.subr.mxu0 0.0
        %8556 = vmatpush1.msra.mxu0 0.0
        %8557 = vmatprep.subr.mxu0 0.0
        %8558 = vmatpush1.msra.mxu0 0.0
        %8559 = vmatprep.subr.mxu0 0.0
        %8560 = vmatpush1.msra.mxu0 0.0
        %8561 = vmatprep.subr.mxu0 0.0
        %8562 = vmatpush1.msra.mxu0 0.0
        %8563 = vmatprep.subr.mxu0 0.0
        %8564 = vmatpush1.msra.mxu0 0.0
        %8565 = vmatprep.subr.mxu0 0.0
        %8566 = vmatpush1.msra.mxu0 0.0
        %8567 = vmatprep.subr.mxu0 0.0
        %8568 = vmatpush1.msra.mxu0 0.0
        %8569 = vmatprep.subr.mxu0 0.0
        %8570 = vmatpush1.msra.mxu0 0.0
        %8571 = vmatprep.subr.mxu0 0.0
        %8572 = vmatpush1.msra.mxu0 0.0
        %8573 = vmatprep.subr.mxu0 0.0
        %8574 = vmatpush1.msra.mxu0 0.0
        %8575 = vmatprep.subr.mxu0 0.0
        %8576 = vmatpush1.msra.mxu0 0.0
        %8577 = vmatprep.subr.mxu0 0.0
        %8578 = vmatpush1.msra.mxu0 0.0
        %8579 = vmatprep.subr.mxu0 0.0
        %8580 = vmatpush1.msra.mxu0 0.0
        %8581 = vmatprep.subr.mxu0 0.0
        %8582 = vmatpush1.msra.mxu0 0.0
        %8583 = vmatprep.subr.mxu0 0.0
        %8584 = vmatpush1.msra.mxu0 0.0
        %8585 = vmatprep.subr.mxu0 0.0
        %8586 = vmatpush1.msra.mxu0 0.0
        %8587 = vmatprep.subr.mxu0 0.0
        %8588 = vmatpush1.msra.mxu0 0.0
        %8589 = vmatprep.subr.mxu0 0.0
        %8590 = vmatpush1.msra.mxu0 0.0
        %8591 = vmatprep.subr.mxu0 0.0
        %8592 = vmatpush1.msra.mxu0 0.0
        %8593 = vmatprep.subr.mxu0 0.0
        %8594 = vmatpush1.msra.mxu0 0.0
        %8595 = vmatprep.subr.mxu0 0.0
        %8596 = vmatpush1.msra.mxu0 0.0
        %8597 = vmatprep.subr.mxu0 0.0
        %8598 = vmatpush1.msra.mxu0 0.0
        %8599 = vmatprep.mubr.f32.mxu0 0.0
        %8600 = vmatmul.mubr.f32.gmra.mrb[0].mxu0 %v8527
        %v8601 = vpop.f32.mrb[0].mxu0
        %v8602 = vadd.f32 0.0, %v8601
        %v8603 = vpop.f32.mrb[0].mxu0
        %v8604 = vadd.f32 0.0, %v8603
        %8605 = vdwg.mxu0
        %v8606 = vadd.f32 %v8276, %v8602
        %v8607 = vadd.f32 %v8277, %v8604
        %v8608 = vld [vmem:[%s4] sm:$0x3]
        %8610 = vset.pattern.permute.xlu0 0
        %8611 = vperm.xlu0 %8610, %v8608
        %v8612 = vpop.permute.xlu0 %8611
        %v8614 = vmul.f32 %v8606, %v8612
        %v8615 = vmul.f32 %v8607, %v8612
        %v8616 = vld [vmem:[%s5] sm:$0x3]
        %8618 = vset.pattern.permute.xlu0 0
        %8619 = vperm.xlu0 %8618, %v8616
        %v8620 = vpop.permute.xlu0 %8619
        %v8622 = vadd.f32 %v8614, %v8620
        %v8623 = vadd.f32 %v8615, %v8620
        %v8624 = vxor.u32 %v8622, 2147483648
        %v8625 = vxor.u32 %v8623, 2147483648
        %v8626 = vmul.f32 %v8624, 1.442695
        %v8627 = vpow.pop %v8626
        %v8628 = vmul.f32 %v8625, 1.442695
        %v8629 = vpow.pop %v8628
        %v8630 = vadd.f32 %v8627, 1.0
        %v8631 = vadd.f32 %v8629, 1.0
        %v8632 = vrcp.pop %v8630
        %v8633 = vmul.f32 1.0, %v8632
        %v8634 = vrcp.pop %v8631
        %v8635 = vmul.f32 1.0, %v8634
        %v8636 = vmul.f32 %v8622, %v8633
        %v8637 = vmul.f32 %v8623, %v8635
        %v8640 = vcombine.low %v8636, %v8637
        %v8642 = vunpack.c.l.s4 1983009808
        %v8643 = vunpack.c.0.s8 %v8642
        %v8644 = vlaneseq
        %v8645 = vshrl.u32 %v8644, 7
        %v8646 = vsub.s32 %v8643, %v8645
        %v8647 = vrot.slane %v8640, %v8646
        %8649 = vst [vmem:[%s448] sm:$0xf] %v8647
        %v8650 = vld [vmem:[%s2] sm:$0xff]
        %v8651 = vld [vmem:[%s2 + $0x8] sm:$0x3]
        %s8652 = scalar_lea.vmem %s2, 16
        %v8653 = vld [vmem:[%s8652] sm:$0xff]
        %v8654 = vld [vmem:[%s8652 + $0x8] sm:$0x3]
        %v8656 = vsel %vm984, %v8653, 0
        %v8659 = vsel %vm984, %v8654, 0
        %8661 = vmatprep.subr.mxu0 %v3019
        %8662 = vmatpush1.msra.mxu0 %v3016
        %8663 = vmatprep.subr.mxu0 0.0
        %8664 = vmatpush1.msra.mxu0 0.0
        %8665 = vmatprep.subr.mxu0 0.0
        %8666 = vmatpush1.msra.mxu0 0.0
        %8667 = vmatprep.subr.mxu0 0.0
        %8668 = vmatpush1.msra.mxu0 0.0
        %8669 = vmatprep.subr.mxu0 0.0
        %8670 = vmatpush1.msra.mxu0 0.0
        %8671 = vmatprep.subr.mxu0 0.0
        %8672 = vmatpush1.msra.mxu0 0.0
        %8673 = vmatprep.subr.mxu0 0.0
        %8674 = vmatpush1.msra.mxu0 0.0
        %8675 = vmatprep.subr.mxu0 0.0
        %8676 = vmatpush1.msra.mxu0 0.0
        %8677 = vmatprep.subr.mxu0 0.0
        %8678 = vmatpush1.msra.mxu0 0.0
        %8679 = vmatprep.subr.mxu0 0.0
        %8680 = vmatpush1.msra.mxu0 0.0
        %8681 = vmatprep.subr.mxu0 0.0
        %8682 = vmatpush1.msra.mxu0 0.0
        %8683 = vmatprep.subr.mxu0 0.0
        %8684 = vmatpush1.msra.mxu0 0.0
        %8685 = vmatprep.subr.mxu0 0.0
        %8686 = vmatpush1.msra.mxu0 0.0
        %8687 = vmatprep.subr.mxu0 0.0
        %8688 = vmatpush1.msra.mxu0 0.0
        %8689 = vmatprep.subr.mxu0 0.0
        %8690 = vmatpush1.msra.mxu0 0.0
        %8691 = vmatprep.subr.mxu0 0.0
        %8692 = vmatpush1.msra.mxu0 0.0
        %8693 = vmatprep.subr.mxu0 0.0
        %8694 = vmatpush1.msra.mxu0 0.0
        %8695 = vmatprep.subr.mxu0 0.0
        %8696 = vmatpush1.msra.mxu0 0.0
        %8697 = vmatprep.subr.mxu0 0.0
        %8698 = vmatpush1.msra.mxu0 0.0
        %8699 = vmatprep.subr.mxu0 0.0
        %8700 = vmatpush1.msra.mxu0 0.0
        %8701 = vmatprep.subr.mxu0 0.0
        %8702 = vmatpush1.msra.mxu0 0.0
        %8703 = vmatprep.subr.mxu0 0.0
        %8704 = vmatpush1.msra.mxu0 0.0
        %8705 = vmatprep.subr.mxu0 0.0
        %8706 = vmatpush1.msra.mxu0 0.0
        %8707 = vmatprep.subr.mxu0 0.0
        %8708 = vmatpush1.msra.mxu0 0.0
        %8709 = vmatprep.subr.mxu0 0.0
        %8710 = vmatpush1.msra.mxu0 0.0
        %8711 = vmatprep.subr.mxu0 0.0
        %8712 = vmatpush1.msra.mxu0 0.0
        %8713 = vmatprep.subr.mxu0 0.0
        %8714 = vmatpush1.msra.mxu0 0.0
        %8715 = vmatprep.subr.mxu0 0.0
        %8716 = vmatpush1.msra.mxu0 0.0
        %8717 = vmatprep.subr.mxu0 0.0
        %8718 = vmatpush1.msra.mxu0 0.0
        %8719 = vmatprep.subr.mxu0 0.0
        %8720 = vmatpush1.msra.mxu0 0.0
        %8721 = vmatprep.subr.mxu0 0.0
        %8722 = vmatpush1.msra.mxu0 0.0
        %8723 = vmatprep.subr.mxu0 0.0
        %8724 = vmatpush1.msra.mxu0 0.0
        %8725 = vmatprep.mubr.f32.mxu0 0.0
        %8726 = vmatmul.mubr.f32.gmra.mrb[0].mxu0 %v8656
        %v8727 = vpop.f32.mrb[0].mxu0
        %v8728 = vadd.f32 0.0, %v8727
        %v8729 = vpop.f32.mrb[0].mxu0
        %v8730 = vadd.f32 0.0, %v8729
        %8731 = vmatprep.mubr.f32.mxu0 0.0
        %8732 = vmatmul.mubr.f32.gmra.mrb[0].mxu0 %v8659
        %v8733 = vpop.f32.mrb[0].mxu0
        %v8734 = vadd.f32 0.0, %v8733
        %v8735 = vpop.f32.mrb[0].mxu0
        %v8736 = vadd.f32 0.0, %v8735
        %8737 = vdwg.mxu0
        %v8739 = vsel %vm984, %v8650, 0
        %v8742 = vsel %vm984, %v8651, 0
        %8744 = vmatprep.subr.mxu0 %v2689
        %8745 = vmatpush1.msra.mxu0 %v2686
        %8746 = vmatprep.subr.mxu0 0.0
        %8747 = vmatpush1.msra.mxu0 0.0
        %8748 = vmatprep.subr.mxu0 0.0
        %8749 = vmatpush1.msra.mxu0 0.0
        %8750 = vmatprep.subr.mxu0 0.0
        %8751 = vmatpush1.msra.mxu0 0.0
        %8752 = vmatprep.subr.mxu0 0.0
        %8753 = vmatpush1.msra.mxu0 0.0
        %8754 = vmatprep.subr.mxu0 0.0
        %8755 = vmatpush1.msra.mxu0 0.0
        %8756 = vmatprep.subr.mxu0 0.0
        %8757 = vmatpush1.msra.mxu0 0.0
        %8758 = vmatprep.subr.mxu0 0.0
        %8759 = vmatpush1.msra.mxu0 0.0
        %8760 = vmatprep.subr.mxu0 0.0
        %8761 = vmatpush1.msra.mxu0 0.0
        %8762 = vmatprep.subr.mxu0 0.0
        %8763 = vmatpush1.msra.mxu0 0.0
        %8764 = vmatprep.subr.mxu0 0.0
        %8765 = vmatpush1.msra.mxu0 0.0
        %8766 = vmatprep.subr.mxu0 0.0
        %8767 = vmatpush1.msra.mxu0 0.0
        %8768 = vmatprep.subr.mxu0 0.0
        %8769 = vmatpush1.msra.mxu0 0.0
        %8770 = vmatprep.subr.mxu0 0.0
        %8771 = vmatpush1.msra.mxu0 0.0
        %8772 = vmatprep.subr.mxu0 0.0
        %8773 = vmatpush1.msra.mxu0 0.0
        %8774 = vmatprep.subr.mxu0 0.0
        %8775 = vmatpush1.msra.mxu0 0.0
        %8776 = vmatprep.subr.mxu0 0.0
        %8777 = vmatpush1.msra.mxu0 0.0
        %8778 = vmatprep.subr.mxu0 0.0
        %8779 = vmatpush1.msra.mxu0 0.0
        %8780 = vmatprep.subr.mxu0 0.0
        %8781 = vmatpush1.msra.mxu0 0.0
        %8782 = vmatprep.subr.mxu0 0.0
        %8783 = vmatpush1.msra.mxu0 0.0
        %8784 = vmatprep.subr.mxu0 0.0
        %8785 = vmatpush1.msra.mxu0 0.0
        %8786 = vmatprep.subr.mxu0 0.0
        %8787 = vmatpush1.msra.mxu0 0.0
        %8788 = vmatprep.subr.mxu0 0.0
        %8789 = vmatpush1.msra.mxu0 0.0
        %8790 = vmatprep.subr.mxu0 0.0
        %8791 = vmatpush1.msra.mxu0 0.0
        %8792 = vmatprep.subr.mxu0 0.0
        %8793 = vmatpush1.msra.mxu0 0.0
        %8794 = vmatprep.subr.mxu0 0.0
        %8795 = vmatpush1.msra.mxu0 0.0
        %8796 = vmatprep.subr.mxu0 0.0
        %8797 = vmatpush1.msra.mxu0 0.0
        %8798 = vmatprep.subr.mxu0 0.0
        %8799 = vmatpush1.msra.mxu0 0.0
        %8800 = vmatprep.subr.mxu0 0.0
        %8801 = vmatpush1.msra.mxu0 0.0
        %8802 = vmatprep.subr.mxu0 0.0
        %8803 = vmatpush1.msra.mxu0 0.0
        %8804 = vmatprep.subr.mxu0 0.0
        %8805 = vmatpush1.msra.mxu0 0.0
        %8806 = vmatprep.subr.mxu0 0.0
        %8807 = vmatpush1.msra.mxu0 0.0
        %8808 = vmatprep.mubr.f32.mxu0 0.0
        %8809 = vmatmul.mubr.f32.gmra.mrb[0].mxu0 %v8739
        %v8810 = vpop.f32.mrb[0].mxu0
        %v8811 = vadd.f32 %v8728, %v8810
        %v8812 = vpop.f32.mrb[0].mxu0
        %v8813 = vadd.f32 %v8730, %v8812
        %8814 = vmatprep.mubr.f32.mxu0 0.0
        %8815 = vmatmul.mubr.f32.gmra.mrb[0].mxu0 %v8742
        %v8816 = vpop.f32.mrb[0].mxu0
        %v8817 = vadd.f32 %v8734, %v8816
        %v8818 = vpop.f32.mrb[0].mxu0
        %v8819 = vadd.f32 %v8736, %v8818
        %8820 = vdwg.mxu0
        %s8821 = scalar_lea.vmem %s2, 32
        %v8822 = vld [vmem:[%s8821] sm:$0xff]
        %v8823 = vld [vmem:[%s8821 + $0x8] sm:$0x3]
        %v8825 = vsel %vm984, %v8822, 0
        %v8828 = vsel %vm984, %v8823, 0
        %8830 = vmatprep.subr.mxu0 %v3349
        %8831 = vmatpush1.msra.mxu0 %v3346
        %8832 = vmatprep.subr.mxu0 0.0
        %8833 = vmatpush1.msra.mxu0 0.0
        %8834 = vmatprep.subr.mxu0 0.0
        %8835 = vmatpush1.msra.mxu0 0.0
        %8836 = vmatprep.subr.mxu0 0.0
        %8837 = vmatpush1.msra.mxu0 0.0
        %8838 = vmatprep.subr.mxu0 0.0
        %8839 = vmatpush1.msra.mxu0 0.0
        %8840 = vmatprep.subr.mxu0 0.0
        %8841 = vmatpush1.msra.mxu0 0.0
        %8842 = vmatprep.subr.mxu0 0.0
        %8843 = vmatpush1.msra.mxu0 0.0
        %8844 = vmatprep.subr.mxu0 0.0
        %8845 = vmatpush1.msra.mxu0 0.0
        %8846 = vmatprep.subr.mxu0 0.0
        %8847 = vmatpush1.msra.mxu0 0.0
        %8848 = vmatprep.subr.mxu0 0.0
        %8849 = vmatpush1.msra.mxu0 0.0
        %8850 = vmatprep.subr.mxu0 0.0
        %8851 = vmatpush1.msra.mxu0 0.0
        %8852 = vmatprep.subr.mxu0 0.0
        %8853 = vmatpush1.msra.mxu0 0.0
        %8854 = vmatprep.subr.mxu0 0.0
        %8855 = vmatpush1.msra.mxu0 0.0
        %8856 = vmatprep.subr.mxu0 0.0
        %8857 = vmatpush1.msra.mxu0 0.0
        %8858 = vmatprep.subr.mxu0 0.0
        %8859 = vmatpush1.msra.mxu0 0.0
        %8860 = vmatprep.subr.mxu0 0.0
        %8861 = vmatpush1.msra.mxu0 0.0
        %8862 = vmatprep.subr.mxu0 0.0
        %8863 = vmatpush1.msra.mxu0 0.0
        %8864 = vmatprep.subr.mxu0 0.0
        %8865 = vmatpush1.msra.mxu0 0.0
        %8866 = vmatprep.subr.mxu0 0.0
        %8867 = vmatpush1.msra.mxu0 0.0
        %8868 = vmatprep.subr.mxu0 0.0
        %8869 = vmatpush1.msra.mxu0 0.0
        %8870 = vmatprep.subr.mxu0 0.0
        %8871 = vmatpush1.msra.mxu0 0.0
        %8872 = vmatprep.subr.mxu0 0.0
        %8873 = vmatpush1.msra.mxu0 0.0
        %8874 = vmatprep.subr.mxu0 0.0
        %8875 = vmatpush1.msra.mxu0 0.0
        %8876 = vmatprep.subr.mxu0 0.0
        %8877 = vmatpush1.msra.mxu0 0.0
        %8878 = vmatprep.subr.mxu0 0.0
        %8879 = vmatpush1.msra.mxu0 0.0
        %8880 = vmatprep.subr.mxu0 0.0
        %8881 = vmatpush1.msra.mxu0 0.0
        %8882 = vmatprep.subr.mxu0 0.0
        %8883 = vmatpush1.msra.mxu0 0.0
        %8884 = vmatprep.subr.mxu0 0.0
        %8885 = vmatpush1.msra.mxu0 0.0
        %8886 = vmatprep.subr.mxu0 0.0
        %8887 = vmatpush1.msra.mxu0 0.0
        %8888 = vmatprep.subr.mxu0 0.0
        %8889 = vmatpush1.msra.mxu0 0.0
        %8890 = vmatprep.subr.mxu0 0.0
        %8891 = vmatpush1.msra.mxu0 0.0
        %8892 = vmatprep.subr.mxu0 0.0
        %8893 = vmatpush1.msra.mxu0 0.0
        %8894 = vmatprep.mubr.f32.mxu0 0.0
        %8895 = vmatmul.mubr.f32.gmra.mrb[0].mxu0 %v8825
        %v8896 = vpop.f32.mrb[0].mxu0
        %v8897 = vadd.f32 0.0, %v8896
        %v8898 = vpop.f32.mrb[0].mxu0
        %v8899 = vadd.f32 0.0, %v8898
        %8900 = vmatprep.mubr.f32.mxu0 0.0
        %8901 = vmatmul.mubr.f32.gmra.mrb[0].mxu0 %v8828
        %v8902 = vpop.f32.mrb[0].mxu0
        %v8903 = vadd.f32 0.0, %v8902
        %v8904 = vpop.f32.mrb[0].mxu0
        %v8905 = vadd.f32 0.0, %v8904
        %8906 = vdwg.mxu0
        %v8907 = vadd.f32 %v8811, %v8897
        %v8908 = vadd.f32 %v8813, %v8899
        %v8909 = vadd.f32 %v8817, %v8903
        %v8910 = vadd.f32 %v8819, %v8905
        %s8911 = scalar_lea.vmem %s2, 48
        %v8912 = vld [vmem:[%s8911] sm:$0xff]
        %v8913 = vld [vmem:[%s8911 + $0x8] sm:$0x3]
        %v8915 = vsel %vm984, %v8912, 0
        %v8918 = vsel %vm984, %v8913, 0
        %8920 = vmatprep.subr.mxu0 %v4307
        %8921 = vmatpush1.msra.mxu0 %v4304
        %8922 = vmatprep.subr.mxu0 0.0
        %8923 = vmatpush1.msra.mxu0 0.0
        %8924 = vmatprep.subr.mxu0 0.0
        %8925 = vmatpush1.msra.mxu0 0.0
        %8926 = vmatprep.subr.mxu0 0.0
        %8927 = vmatpush1.msra.mxu0 0.0
        %8928 = vmatprep.subr.mxu0 0.0
        %8929 = vmatpush1.msra.mxu0 0.0
        %8930 = vmatprep.subr.mxu0 0.0
        %8931 = vmatpush1.msra.mxu0 0.0
        %8932 = vmatprep.subr.mxu0 0.0
        %8933 = vmatpush1.msra.mxu0 0.0
        %8934 = vmatprep.subr.mxu0 0.0
        %8935 = vmatpush1.msra.mxu0 0.0
        %8936 = vmatprep.subr.mxu0 0.0
        %8937 = vmatpush1.msra.mxu0 0.0
        %8938 = vmatprep.subr.mxu0 0.0
        %8939 = vmatpush1.msra.mxu0 0.0
        %8940 = vmatprep.subr.mxu0 0.0
        %8941 = vmatpush1.msra.mxu0 0.0
        %8942 = vmatprep.subr.mxu0 0.0
        %8943 = vmatpush1.msra.mxu0 0.0
        %8944 = vmatprep.subr.mxu0 0.0
        %8945 = vmatpush1.msra.mxu0 0.0
        %8946 = vmatprep.subr.mxu0 0.0
        %8947 = vmatpush1.msra.mxu0 0.0
        %8948 = vmatprep.subr.mxu0 0.0
        %8949 = vmatpush1.msra.mxu0 0.0
        %8950 = vmatprep.subr.mxu0 0.0
        %8951 = vmatpush1.msra.mxu0 0.0
        %8952 = vmatprep.subr.mxu0 0.0
        %8953 = vmatpush1.msra.mxu0 0.0
        %8954 = vmatprep.subr.mxu0 0.0
        %8955 = vmatpush1.msra.mxu0 0.0
        %8956 = vmatprep.subr.mxu0 0.0
        %8957 = vmatpush1.msra.mxu0 0.0
        %8958 = vmatprep.subr.mxu0 0.0
        %8959 = vmatpush1.msra.mxu0 0.0
        %8960 = vmatprep.subr.mxu0 0.0
        %8961 = vmatpush1.msra.mxu0 0.0
        %8962 = vmatprep.subr.mxu0 0.0
        %8963 = vmatpush1.msra.mxu0 0.0
        %8964 = vmatprep.subr.mxu0 0.0
        %8965 = vmatpush1.msra.mxu0 0.0
        %8966 = vmatprep.subr.mxu0 0.0
        %8967 = vmatpush1.msra.mxu0 0.0
        %8968 = vmatprep.subr.mxu0 0.0
        %8969 = vmatpush1.msra.mxu0 0.0
        %8970 = vmatprep.subr.mxu0 0.0
        %8971 = vmatpush1.msra.mxu0 0.0
        %8972 = vmatprep.subr.mxu0 0.0
        %8973 = vmatpush1.msra.mxu0 0.0
        %8974 = vmatprep.subr.mxu0 0.0
        %8975 = vmatpush1.msra.mxu0 0.0
        %8976 = vmatprep.subr.mxu0 0.0
        %8977 = vmatpush1.msra.mxu0 0.0
        %8978 = vmatprep.subr.mxu0 0.0
        %8979 = vmatpush1.msra.mxu0 0.0
        %8980 = vmatprep.subr.mxu0 0.0
        %8981 = vmatpush1.msra.mxu0 0.0
        %8982 = vmatprep.subr.mxu0 0.0
        %8983 = vmatpush1.msra.mxu0 0.0
        %8984 = vmatprep.mubr.f32.mxu0 0.0
        %8985 = vmatmul.mubr.f32.gmra.mrb[0].mxu0 %v8915
        %v8986 = vpop.f32.mrb[0].mxu0
        %v8987 = vadd.f32 0.0, %v8986
        %v8988 = vpop.f32.mrb[0].mxu0
        %v8989 = vadd.f32 0.0, %v8988
        %8990 = vmatprep.mubr.f32.mxu0 0.0
        %8991 = vmatmul.mubr.f32.gmra.mrb[0].mxu0 %v8918
        %v8992 = vpop.f32.mrb[0].mxu0
        %v8993 = vadd.f32 0.0, %v8992
        %v8994 = vpop.f32.mrb[0].mxu0
        %v8995 = vadd.f32 0.0, %v8994
        %8996 = vdwg.mxu0
        %v8997 = vadd.f32 %v8907, %v8987
        %v8998 = vadd.f32 %v8908, %v8989
        %v8999 = vadd.f32 %v8909, %v8993
        %v9000 = vadd.f32 %v8910, %v8995
        %s9001 = scalar_lea.vmem %s2, 64
        %v9002 = vld [vmem:[%s9001] sm:$0xff]
        %v9003 = vld [vmem:[%s9001 + $0x8] sm:$0x3]
        %v9005 = vsel %vm984, %v9002, 0
        %v9008 = vsel %vm984, %v9003, 0
        %9010 = vmatprep.subr.mxu0 %v4637
        %9011 = vmatpush1.msra.mxu0 %v4634
        %9012 = vmatprep.subr.mxu0 0.0
        %9013 = vmatpush1.msra.mxu0 0.0
        %9014 = vmatprep.subr.mxu0 0.0
        %9015 = vmatpush1.msra.mxu0 0.0
        %9016 = vmatprep.subr.mxu0 0.0
        %9017 = vmatpush1.msra.mxu0 0.0
        %9018 = vmatprep.subr.mxu0 0.0
        %9019 = vmatpush1.msra.mxu0 0.0
        %9020 = vmatprep.subr.mxu0 0.0
        %9021 = vmatpush1.msra.mxu0 0.0
        %9022 = vmatprep.subr.mxu0 0.0
        %9023 = vmatpush1.msra.mxu0 0.0
        %9024 = vmatprep.subr.mxu0 0.0
        %9025 = vmatpush1.msra.mxu0 0.0
        %9026 = vmatprep.subr.mxu0 0.0
        %9027 = vmatpush1.msra.mxu0 0.0
        %9028 = vmatprep.subr.mxu0 0.0
        %9029 = vmatpush1.msra.mxu0 0.0
        %9030 = vmatprep.subr.mxu0 0.0
        %9031 = vmatpush1.msra.mxu0 0.0
        %9032 = vmatprep.subr.mxu0 0.0
        %9033 = vmatpush1.msra.mxu0 0.0
        %9034 = vmatprep.subr.mxu0 0.0
        %9035 = vmatpush1.msra.mxu0 0.0
        %9036 = vmatprep.subr.mxu0 0.0
        %9037 = vmatpush1.msra.mxu0 0.0
        %9038 = vmatprep.subr.mxu0 0.0
        %9039 = vmatpush1.msra.mxu0 0.0
        %9040 = vmatprep.subr.mxu0 0.0
        %9041 = vmatpush1.msra.mxu0 0.0
        %9042 = vmatprep.subr.mxu0 0.0
        %9043 = vmatpush1.msra.mxu0 0.0
        %9044 = vmatprep.subr.mxu0 0.0
        %9045 = vmatpush1.msra.mxu0 0.0
        %9046 = vmatprep.subr.mxu0 0.0
        %9047 = vmatpush1.msra.mxu0 0.0
        %9048 = vmatprep.subr.mxu0 0.0
        %9049 = vmatpush1.msra.mxu0 0.0
        %9050 = vmatprep.subr.mxu0 0.0
        %9051 = vmatpush1.msra.mxu0 0.0
        %9052 = vmatprep.subr.mxu0 0.0
        %9053 = vmatpush1.msra.mxu0 0.0
        %9054 = vmatprep.subr.mxu0 0.0
        %9055 = vmatpush1.msra.mxu0 0.0
        %9056 = vmatprep.subr.mxu0 0.0
        %9057 = vmatpush1.msra.mxu0 0.0
        %9058 = vmatprep.subr.mxu0 0.0
        %9059 = vmatpush1.msra.mxu0 0.0
        %9060 = vmatprep.subr.mxu0 0.0
        %9061 = vmatpush1.msra.mxu0 0.0
        %9062 = vmatprep.subr.mxu0 0.0
        %9063 = vmatpush1.msra.mxu0 0.0
        %9064 = vmatprep.subr.mxu0 0.0
        %9065 = vmatpush1.msra.mxu0 0.0
        %9066 = vmatprep.subr.mxu0 0.0
        %9067 = vmatpush1.msra.mxu0 0.0
        %9068 = vmatprep.subr.mxu0 0.0
        %9069 = vmatpush1.msra.mxu0 0.0
        %9070 = vmatprep.subr.mxu0 0.0
        %9071 = vmatpush1.msra.mxu0 0.0
        %9072 = vmatprep.subr.mxu0 0.0
        %9073 = vmatpush1.msra.mxu0 0.0
        %9074 = vmatprep.mubr.f32.mxu0 0.0
        %9075 = vmatmul.mubr.f32.gmra.mrb[0].mxu0 %v9005
        %v9076 = vpop.f32.mrb[0].mxu0
        %v9077 = vadd.f32 0.0, %v9076
        %v9078 = vpop.f32.mrb[0].mxu0
        %v9079 = vadd.f32 0.0, %v9078
        %9080 = vmatprep.mubr.f32.mxu0 0.0
        %9081 = vmatmul.mubr.f32.gmra.mrb[0].mxu0 %v9008
        %v9082 = vpop.f32.mrb[0].mxu0
        %v9083 = vadd.f32 0.0, %v9082
        %v9084 = vpop.f32.mrb[0].mxu0
        %v9085 = vadd.f32 0.0, %v9084
        %9086 = vdwg.mxu0
        %v9087 = vadd.f32 %v8997, %v9077
        %v9088 = vadd.f32 %v8998, %v9079
        %v9089 = vadd.f32 %v8999, %v9083
        %v9090 = vadd.f32 %v9000, %v9085
        %s9091 = scalar_lea.vmem %s2, 80
        %v9092 = vld [vmem:[%s9091] sm:$0xff]
        %v9093 = vld [vmem:[%s9091 + $0x8] sm:$0x3]
        %v9095 = vsel %vm984, %v9092, 0
        %v9098 = vsel %vm984, %v9093, 0
        %9100 = vmatprep.subr.mxu0 %v4967
        %9101 = vmatpush1.msra.mxu0 %v4964
        %9102 = vmatprep.subr.mxu0 0.0
        %9103 = vmatpush1.msra.mxu0 0.0
        %9104 = vmatprep.subr.mxu0 0.0
        %9105 = vmatpush1.msra.mxu0 0.0
        %9106 = vmatprep.subr.mxu0 0.0
        %9107 = vmatpush1.msra.mxu0 0.0
        %9108 = vmatprep.subr.mxu0 0.0
        %9109 = vmatpush1.msra.mxu0 0.0
        %9110 = vmatprep.subr.mxu0 0.0
        %9111 = vmatpush1.msra.mxu0 0.0
        %9112 = vmatprep.subr.mxu0 0.0
        %9113 = vmatpush1.msra.mxu0 0.0
        %9114 = vmatprep.subr.mxu0 0.0
        %9115 = vmatpush1.msra.mxu0 0.0
        %9116 = vmatprep.subr.mxu0 0.0
        %9117 = vmatpush1.msra.mxu0 0.0
        %9118 = vmatprep.subr.mxu0 0.0
        %9119 = vmatpush1.msra.mxu0 0.0
        %9120 = vmatprep.subr.mxu0 0.0
        %9121 = vmatpush1.msra.mxu0 0.0
        %9122 = vmatprep.subr.mxu0 0.0
        %9123 = vmatpush1.msra.mxu0 0.0
        %9124 = vmatprep.subr.mxu0 0.0
        %9125 = vmatpush1.msra.mxu0 0.0
        %9126 = vmatprep.subr.mxu0 0.0
        %9127 = vmatpush1.msra.mxu0 0.0
        %9128 = vmatprep.subr.mxu0 0.0
        %9129 = vmatpush1.msra.mxu0 0.0
        %9130 = vmatprep.subr.mxu0 0.0
        %9131 = vmatpush1.msra.mxu0 0.0
        %9132 = vmatprep.subr.mxu0 0.0
        %9133 = vmatpush1.msra.mxu0 0.0
        %9134 = vmatprep.subr.mxu0 0.0
        %9135 = vmatpush1.msra.mxu0 0.0
        %9136 = vmatprep.subr.mxu0 0.0
        %9137 = vmatpush1.msra.mxu0 0.0
        %9138 = vmatprep.subr.mxu0 0.0
        %9139 = vmatpush1.msra.mxu0 0.0
        %9140 = vmatprep.subr.mxu0 0.0
        %9141 = vmatpush1.msra.mxu0 0.0
        %9142 = vmatprep.subr.mxu0 0.0
        %9143 = vmatpush1.msra.mxu0 0.0
        %9144 = vmatprep.subr.mxu0 0.0
        %9145 = vmatpush1.msra.mxu0 0.0
        %9146 = vmatprep.subr.mxu0 0.0
        %9147 = vmatpush1.msra.mxu0 0.0
        %9148 = vmatprep.subr.mxu0 0.0
        %9149 = vmatpush1.msra.mxu0 0.0
        %9150 = vmatprep.subr.mxu0 0.0
        %9151 = vmatpush1.msra.mxu0 0.0
        %9152 = vmatprep.subr.mxu0 0.0
        %9153 = vmatpush1.msra.mxu0 0.0
        %9154 = vmatprep.subr.mxu0 0.0
        %9155 = vmatpush1.msra.mxu0 0.0
        %9156 = vmatprep.subr.mxu0 0.0
        %9157 = vmatpush1.msra.mxu0 0.0
        %9158 = vmatprep.subr.mxu0 0.0
        %9159 = vmatpush1.msra.mxu0 0.0
        %9160 = vmatprep.subr.mxu0 0.0
        %9161 = vmatpush1.msra.mxu0 0.0
        %9162 = vmatprep.subr.mxu0 0.0
        %9163 = vmatpush1.msra.mxu0 0.0
        %9164 = vmatprep.mubr.f32.mxu0 0.0
        %9165 = vmatmul.mubr.f32.gmra.mrb[0].mxu0 %v9095
        %v9166 = vpop.f32.mrb[0].mxu0
        %v9167 = vadd.f32 0.0, %v9166
        %v9168 = vpop.f32.mrb[0].mxu0
        %v9169 = vadd.f32 0.0, %v9168
        %9170 = vmatprep.mubr.f32.mxu0 0.0
        %9171 = vmatmul.mubr.f32.gmra.mrb[0].mxu0 %v9098
        %v9172 = vpop.f32.mrb[0].mxu0
        %v9173 = vadd.f32 0.0, %v9172
        %v9174 = vpop.f32.mrb[0].mxu0
        %v9175 = vadd.f32 0.0, %v9174
        %9176 = vdwg.mxu0
        %v9177 = vadd.f32 %v9087, %v9167
        %v9178 = vadd.f32 %v9088, %v9169
        %v9179 = vadd.f32 %v9089, %v9173
        %v9180 = vadd.f32 %v9090, %v9175
        %s9181 = scalar_lea.vmem %s2, 96
        %v9182 = vld [vmem:[%s9181] sm:$0xff]
        %v9183 = vld [vmem:[%s9181 + $0x8] sm:$0x3]
        %v9185 = vsel %vm984, %v9182, 0
        %v9188 = vsel %vm984, %v9183, 0
        %9190 = vmatprep.subr.mxu0 %v5925
        %9191 = vmatpush1.msra.mxu0 %v5922
        %9192 = vmatprep.subr.mxu0 0.0
        %9193 = vmatpush1.msra.mxu0 0.0
        %9194 = vmatprep.subr.mxu0 0.0
        %9195 = vmatpush1.msra.mxu0 0.0
        %9196 = vmatprep.subr.mxu0 0.0
        %9197 = vmatpush1.msra.mxu0 0.0
        %9198 = vmatprep.subr.mxu0 0.0
        %9199 = vmatpush1.msra.mxu0 0.0
        %9200 = vmatprep.subr.mxu0 0.0
        %9201 = vmatpush1.msra.mxu0 0.0
        %9202 = vmatprep.subr.mxu0 0.0
        %9203 = vmatpush1.msra.mxu0 0.0
        %9204 = vmatprep.subr.mxu0 0.0
        %9205 = vmatpush1.msra.mxu0 0.0
        %9206 = vmatprep.subr.mxu0 0.0
        %9207 = vmatpush1.msra.mxu0 0.0
        %9208 = vmatprep.subr.mxu0 0.0
        %9209 = vmatpush1.msra.mxu0 0.0
        %9210 = vmatprep.subr.mxu0 0.0
        %9211 = vmatpush1.msra.mxu0 0.0
        %9212 = vmatprep.subr.mxu0 0.0
        %9213 = vmatpush1.msra.mxu0 0.0
        %9214 = vmatprep.subr.mxu0 0.0
        %9215 = vmatpush1.msra.mxu0 0.0
        %9216 = vmatprep.subr.mxu0 0.0
        %9217 = vmatpush1.msra.mxu0 0.0
        %9218 = vmatprep.subr.mxu0 0.0
        %9219 = vmatpush1.msra.mxu0 0.0
        %9220 = vmatprep.subr.mxu0 0.0
        %9221 = vmatpush1.msra.mxu0 0.0
        %9222 = vmatprep.subr.mxu0 0.0
        %9223 = vmatpush1.msra.mxu0 0.0
        %9224 = vmatprep.subr.mxu0 0.0
        %9225 = vmatpush1.msra.mxu0 0.0
        %9226 = vmatprep.subr.mxu0 0.0
        %9227 = vmatpush1.msra.mxu0 0.0
        %9228 = vmatprep.subr.mxu0 0.0
        %9229 = vmatpush1.msra.mxu0 0.0
        %9230 = vmatprep.subr.mxu0 0.0
        %9231 = vmatpush1.msra.mxu0 0.0
        %9232 = vmatprep.subr.mxu0 0.0
        %9233 = vmatpush1.msra.mxu0 0.0
        %9234 = vmatprep.subr.mxu0 0.0
        %9235 = vmatpush1.msra.mxu0 0.0
        %9236 = vmatprep.subr.mxu0 0.0
        %9237 = vmatpush1.msra.mxu0 0.0
        %9238 = vmatprep.subr.mxu0 0.0
        %9239 = vmatpush1.msra.mxu0 0.0
        %9240 = vmatprep.subr.mxu0 0.0
        %9241 = vmatpush1.msra.mxu0 0.0
        %9242 = vmatprep.subr.mxu0 0.0
        %9243 = vmatpush1.msra.mxu0 0.0
        %9244 = vmatprep.subr.mxu0 0.0
        %9245 = vmatpush1.msra.mxu0 0.0
        %9246 = vmatprep.subr.mxu0 0.0
        %9247 = vmatpush1.msra.mxu0 0.0
        %9248 = vmatprep.subr.mxu0 0.0
        %9249 = vmatpush1.msra.mxu0 0.0
        %9250 = vmatprep.subr.mxu0 0.0
        %9251 = vmatpush1.msra.mxu0 0.0
        %9252 = vmatprep.subr.mxu0 0.0
        %9253 = vmatpush1.msra.mxu0 0.0
        %9254 = vmatprep.mubr.f32.mxu0 0.0
        %9255 = vmatmul.mubr.f32.gmra.mrb[0].mxu0 %v9185
        %v9256 = vpop.f32.mrb[0].mxu0
        %v9257 = vadd.f32 0.0, %v9256
        %v9258 = vpop.f32.mrb[0].mxu0
        %v9259 = vadd.f32 0.0, %v9258
        %9260 = vmatprep.mubr.f32.mxu0 0.0
        %9261 = vmatmul.mubr.f32.gmra.mrb[0].mxu0 %v9188
        %v9262 = vpop.f32.mrb[0].mxu0
        %v9263 = vadd.f32 0.0, %v9262
        %v9264 = vpop.f32.mrb[0].mxu0
        %v9265 = vadd.f32 0.0, %v9264
        %9266 = vdwg.mxu0
        %v9267 = vadd.f32 %v9177, %v9257
        %v9268 = vadd.f32 %v9178, %v9259
        %v9269 = vadd.f32 %v9179, %v9263
        %v9270 = vadd.f32 %v9180, %v9265
        %s9271 = scalar_lea.vmem %s2, 112
        %v9272 = vld [vmem:[%s9271] sm:$0xff]
        %v9273 = vld [vmem:[%s9271 + $0x8] sm:$0x3]
        %v9275 = vsel %vm984, %v9272, 0
        %v9278 = vsel %vm984, %v9273, 0
        %9280 = vmatprep.subr.mxu0 %v6255
        %9281 = vmatpush1.msra.mxu0 %v6252
        %9282 = vmatprep.subr.mxu0 0.0
        %9283 = vmatpush1.msra.mxu0 0.0
        %9284 = vmatprep.subr.mxu0 0.0
        %9285 = vmatpush1.msra.mxu0 0.0
        %9286 = vmatprep.subr.mxu0 0.0
        %9287 = vmatpush1.msra.mxu0 0.0
        %9288 = vmatprep.subr.mxu0 0.0
        %9289 = vmatpush1.msra.mxu0 0.0
        %9290 = vmatprep.subr.mxu0 0.0
        %9291 = vmatpush1.msra.mxu0 0.0
        %9292 = vmatprep.subr.mxu0 0.0
        %9293 = vmatpush1.msra.mxu0 0.0
        %9294 = vmatprep.subr.mxu0 0.0
        %9295 = vmatpush1.msra.mxu0 0.0
        %9296 = vmatprep.subr.mxu0 0.0
        %9297 = vmatpush1.msra.mxu0 0.0
        %9298 = vmatprep.subr.mxu0 0.0
        %9299 = vmatpush1.msra.mxu0 0.0
        %9300 = vmatprep.subr.mxu0 0.0
        %9301 = vmatpush1.msra.mxu0 0.0
        %9302 = vmatprep.subr.mxu0 0.0
        %9303 = vmatpush1.msra.mxu0 0.0
        %9304 = vmatprep.subr.mxu0 0.0
        %9305 = vmatpush1.msra.mxu0 0.0
        %9306 = vmatprep.subr.mxu0 0.0
        %9307 = vmatpush1.msra.mxu0 0.0
        %9308 = vmatprep.subr.mxu0 0.0
        %9309 = vmatpush1.msra.mxu0 0.0
        %9310 = vmatprep.subr.mxu0 0.0
        %9311 = vmatpush1.msra.mxu0 0.0
        %9312 = vmatprep.subr.mxu0 0.0
        %9313 = vmatpush1.msra.mxu0 0.0
        %9314 = vmatprep.subr.mxu0 0.0
        %9315 = vmatpush1.msra.mxu0 0.0
        %9316 = vmatprep.subr.mxu0 0.0
        %9317 = vmatpush1.msra.mxu0 0.0
        %9318 = vmatprep.subr.mxu0 0.0
        %9319 = vmatpush1.msra.mxu0 0.0
        %9320 = vmatprep.subr.mxu0 0.0
        %9321 = vmatpush1.msra.mxu0 0.0
        %9322 = vmatprep.subr.mxu0 0.0
        %9323 = vmatpush1.msra.mxu0 0.0
        %9324 = vmatprep.subr.mxu0 0.0
        %9325 = vmatpush1.msra.mxu0 0.0
        %9326 = vmatprep.subr.mxu0 0.0
        %9327 = vmatpush1.msra.mxu0 0.0
        %9328 = vmatprep.subr.mxu0 0.0
        %9329 = vmatpush1.msra.mxu0 0.0
        %9330 = vmatprep.subr.mxu0 0.0
        %9331 = vmatpush1.msra.mxu0 0.0
        %9332 = vmatprep.subr.mxu0 0.0
        %9333 = vmatpush1.msra.mxu0 0.0
        %9334 = vmatprep.subr.mxu0 0.0
        %9335 = vmatpush1.msra.mxu0 0.0
        %9336 = vmatprep.subr.mxu0 0.0
        %9337 = vmatpush1.msra.mxu0 0.0
        %9338 = vmatprep.subr.mxu0 0.0
        %9339 = vmatpush1.msra.mxu0 0.0
        %9340 = vmatprep.subr.mxu0 0.0
        %9341 = vmatpush1.msra.mxu0 0.0
        %9342 = vmatprep.subr.mxu0 0.0
        %9343 = vmatpush1.msra.mxu0 0.0
        %9344 = vmatprep.mubr.f32.mxu0 0.0
        %9345 = vmatmul.mubr.f32.gmra.mrb[0].mxu0 %v9275
        %v9346 = vpop.f32.mrb[0].mxu0
        %v9347 = vadd.f32 0.0, %v9346
        %v9348 = vpop.f32.mrb[0].mxu0
        %v9349 = vadd.f32 0.0, %v9348
        %9350 = vmatprep.mubr.f32.mxu0 0.0
        %9351 = vmatmul.mubr.f32.gmra.mrb[0].mxu0 %v9278
        %v9352 = vpop.f32.mrb[0].mxu0
        %v9353 = vadd.f32 0.0, %v9352
        %v9354 = vpop.f32.mrb[0].mxu0
        %v9355 = vadd.f32 0.0, %v9354
        %9356 = vdwg.mxu0
        %v9357 = vadd.f32 %v9267, %v9347
        %v9358 = vadd.f32 %v9268, %v9349
        %v9359 = vadd.f32 %v9269, %v9353
        %v9360 = vadd.f32 %v9270, %v9355
        %s9361 = scalar_lea.vmem %s2, 128
        %v9362 = vld [vmem:[%s9361] sm:$0xff]
        %v9363 = vld [vmem:[%s9361 + $0x8] sm:$0x3]
        %v9365 = vsel %vm984, %v9362, 0
        %v9368 = vsel %vm984, %v9363, 0
        %9370 = vmatprep.subr.mxu0 %v6585
        %9371 = vmatpush1.msra.mxu0 %v6582
        %9372 = vmatprep.subr.mxu0 0.0
        %9373 = vmatpush1.msra.mxu0 0.0
        %9374 = vmatprep.subr.mxu0 0.0
        %9375 = vmatpush1.msra.mxu0 0.0
        %9376 = vmatprep.subr.mxu0 0.0
        %9377 = vmatpush1.msra.mxu0 0.0
        %9378 = vmatprep.subr.mxu0 0.0
        %9379 = vmatpush1.msra.mxu0 0.0
        %9380 = vmatprep.subr.mxu0 0.0
        %9381 = vmatpush1.msra.mxu0 0.0
        %9382 = vmatprep.subr.mxu0 0.0
        %9383 = vmatpush1.msra.mxu0 0.0
        %9384 = vmatprep.subr.mxu0 0.0
        %9385 = vmatpush1.msra.mxu0 0.0
        %9386 = vmatprep.subr.mxu0 0.0
        %9387 = vmatpush1.msra.mxu0 0.0
        %9388 = vmatprep.subr.mxu0 0.0
        %9389 = vmatpush1.msra.mxu0 0.0
        %9390 = vmatprep.subr.mxu0 0.0
        %9391 = vmatpush1.msra.mxu0 0.0
        %9392 = vmatprep.subr.mxu0 0.0
        %9393 = vmatpush1.msra.mxu0 0.0
        %9394 = vmatprep.subr.mxu0 0.0
        %9395 = vmatpush1.msra.mxu0 0.0
        %9396 = vmatprep.subr.mxu0 0.0
        %9397 = vmatpush1.msra.mxu0 0.0
        %9398 = vmatprep.subr.mxu0 0.0
        %9399 = vmatpush1.msra.mxu0 0.0
        %9400 = vmatprep.subr.mxu0 0.0
        %9401 = vmatpush1.msra.mxu0 0.0
        %9402 = vmatprep.subr.mxu0 0.0
        %9403 = vmatpush1.msra.mxu0 0.0
        %9404 = vmatprep.subr.mxu0 0.0
        %9405 = vmatpush1.msra.mxu0 0.0
        %9406 = vmatprep.subr.mxu0 0.0
        %9407 = vmatpush1.msra.mxu0 0.0
        %9408 = vmatprep.subr.mxu0 0.0
        %9409 = vmatpush1.msra.mxu0 0.0
        %9410 = vmatprep.subr.mxu0 0.0
        %9411 = vmatpush1.msra.mxu0 0.0
        %9412 = vmatprep.subr.mxu0 0.0
        %9413 = vmatpush1.msra.mxu0 0.0
        %9414 = vmatprep.subr.mxu0 0.0
        %9415 = vmatpush1.msra.mxu0 0.0
        %9416 = vmatprep.subr.mxu0 0.0
        %9417 = vmatpush1.msra.mxu0 0.0
        %9418 = vmatprep.subr.mxu0 0.0
        %9419 = vmatpush1.msra.mxu0 0.0
        %9420 = vmatprep.subr.mxu0 0.0
        %9421 = vmatpush1.msra.mxu0 0.0
        %9422 = vmatprep.subr.mxu0 0.0
        %9423 = vmatpush1.msra.mxu0 0.0
        %9424 = vmatprep.subr.mxu0 0.0
        %9425 = vmatpush1.msra.mxu0 0.0
        %9426 = vmatprep.subr.mxu0 0.0
        %9427 = vmatpush1.msra.mxu0 0.0
        %9428 = vmatprep.subr.mxu0 0.0
        %9429 = vmatpush1.msra.mxu0 0.0
        %9430 = vmatprep.subr.mxu0 0.0
        %9431 = vmatpush1.msra.mxu0 0.0
        %9432 = vmatprep.subr.mxu0 0.0
        %9433 = vmatpush1.msra.mxu0 0.0
        %9434 = vmatprep.mubr.f32.mxu0 0.0
        %9435 = vmatmul.mubr.f32.gmra.mrb[0].mxu0 %v9365
        %v9436 = vpop.f32.mrb[0].mxu0
        %v9437 = vadd.f32 0.0, %v9436
        %v9438 = vpop.f32.mrb[0].mxu0
        %v9439 = vadd.f32 0.0, %v9438
        %9440 = vmatprep.mubr.f32.mxu0 0.0
        %9441 = vmatmul.mubr.f32.gmra.mrb[0].mxu0 %v9368
        %v9442 = vpop.f32.mrb[0].mxu0
        %v9443 = vadd.f32 0.0, %v9442
        %v9444 = vpop.f32.mrb[0].mxu0
        %v9445 = vadd.f32 0.0, %v9444
        %9446 = vdwg.mxu0
        %v9447 = vadd.f32 %v9357, %v9437
        %v9448 = vadd.f32 %v9358, %v9439
        %v9449 = vadd.f32 %v9359, %v9443
        %v9450 = vadd.f32 %v9360, %v9445
        %v9451 = vld [vmem:[%s6] sm:$0xff]
        %v9452 = vld [vmem:[%s6 + $0x8] sm:$0x3]
        %9454 = vset.pattern.permute.xlu0 0
        %9455 = vperm.xlu0 %9454, %v9451
        %v9456 = vpop.permute.xlu0 %9455
        %9459 = vset.pattern.permute.xlu0 0
        %9460 = vperm.xlu0 %9459, %v9452
        %v9461 = vpop.permute.xlu0 %9460
        %v9463 = vmul.f32 %v9447, %v9456
        %v9464 = vmul.f32 %v9448, %v9456
        %v9465 = vmul.f32 %v9449, %v9461
        %v9466 = vmul.f32 %v9450, %v9461
        %v9467 = vld [vmem:[%s7] sm:$0xff]
        %v9468 = vld [vmem:[%s7 + $0x8] sm:$0x3]
        %9470 = vset.pattern.permute.xlu0 0
        %9471 = vperm.xlu0 %9470, %v9467
        %v9472 = vpop.permute.xlu0 %9471
        %9475 = vset.pattern.permute.xlu0 0
        %9476 = vperm.xlu0 %9475, %v9468
        %v9477 = vpop.permute.xlu0 %9476
        %v9479 = vadd.f32 %v9463, %v9472
        %v9480 = vadd.f32 %v9464, %v9472
        %v9481 = vadd.f32 %v9465, %v9477
        %v9482 = vadd.f32 %v9466, %v9477
        %v9483 = vtanh.pop %v9479
        %v9484 = vtanh.pop %v9480
        %v9485 = vtanh.pop %v9481
        %v9486 = vtanh.pop %v9482
        %9487 = vst [vmem:[%s453] sm:$0xff] %v9483
        %9488 = vst [vmem:[%s453 + $0x8] sm:$0xff] %v9484
        %9489 = vst [vmem:[%s453 + $0x10] sm:$0x3] %v9485
        %9490 = vst [vmem:[%s453 + $0x18] sm:$0x3] %v9486
        %v9491 = vld [vmem:[%s3] sm:$0xff]
        %v9492 = vld [vmem:[%s3 + $0x8] sm:$0x3]
        %s9493 = scalar_lea.vmem %s3, 16
        %v9494 = vld [vmem:[%s9493] sm:$0xff]
        %v9495 = vld [vmem:[%s9493 + $0x8] sm:$0x3]
        %v9497 = vsel %vm984, %v9494, 0
        %v9500 = vsel %vm984, %v9495, 0
        %9502 = vmatprep.subr.mxu0 %v3019
        %9503 = vmatpush1.msra.mxu0 %v3016
        %9504 = vmatprep.subr.mxu0 0.0
        %9505 = vmatpush1.msra.mxu0 0.0
        %9506 = vmatprep.subr.mxu0 0.0
        %9507 = vmatpush1.msra.mxu0 0.0
        %9508 = vmatprep.subr.mxu0 0.0
        %9509 = vmatpush1.msra.mxu0 0.0
        %9510 = vmatprep.subr.mxu0 0.0
        %9511 = vmatpush1.msra.mxu0 0.0
        %9512 = vmatprep.subr.mxu0 0.0
        %9513 = vmatpush1.msra.mxu0 0.0
        %9514 = vmatprep.subr.mxu0 0.0
        %9515 = vmatpush1.msra.mxu0 0.0
        %9516 = vmatprep.subr.mxu0 0.0
        %9517 = vmatpush1.msra.mxu0 0.0
        %9518 = vmatprep.subr.mxu0 0.0
        %9519 = vmatpush1.msra.mxu0 0.0
        %9520 = vmatprep.subr.mxu0 0.0
        %9521 = vmatpush1.msra.mxu0 0.0
        %9522 = vmatprep.subr.mxu0 0.0
        %9523 = vmatpush1.msra.mxu0 0.0
        %9524 = vmatprep.subr.mxu0 0.0
        %9525 = vmatpush1.msra.mxu0 0.0
        %9526 = vmatprep.subr.mxu0 0.0
        %9527 = vmatpush1.msra.mxu0 0.0
        %9528 = vmatprep.subr.mxu0 0.0
        %9529 = vmatpush1.msra.mxu0 0.0
        %9530 = vmatprep.subr.mxu0 0.0
        %9531 = vmatpush1.msra.mxu0 0.0
        %9532 = vmatprep.subr.mxu0 0.0
        %9533 = vmatpush1.msra.mxu0 0.0
        %9534 = vmatprep.subr.mxu0 0.0
        %9535 = vmatpush1.msra.mxu0 0.0
        %9536 = vmatprep.subr.mxu0 0.0
        %9537 = vmatpush1.msra.mxu0 0.0
        %9538 = vmatprep.subr.mxu0 0.0
        %9539 = vmatpush1.msra.mxu0 0.0
        %9540 = vmatprep.subr.mxu0 0.0
        %9541 = vmatpush1.msra.mxu0 0.0
        %9542 = vmatprep.subr.mxu0 0.0
        %9543 = vmatpush1.msra.mxu0 0.0
        %9544 = vmatprep.subr.mxu0 0.0
        %9545 = vmatpush1.msra.mxu0 0.0
        %9546 = vmatprep.subr.mxu0 0.0
        %9547 = vmatpush1.msra.mxu0 0.0
        %9548 = vmatprep.subr.mxu0 0.0
        %9549 = vmatpush1.msra.mxu0 0.0
        %9550 = vmatprep.subr.mxu0 0.0
        %9551 = vmatpush1.msra.mxu0 0.0
        %9552 = vmatprep.subr.mxu0 0.0
        %9553 = vmatpush1.msra.mxu0 0.0
        %9554 = vmatprep.subr.mxu0 0.0
        %9555 = vmatpush1.msra.mxu0 0.0
        %9556 = vmatprep.subr.mxu0 0.0
        %9557 = vmatpush1.msra.mxu0 0.0
        %9558 = vmatprep.subr.mxu0 0.0
        %9559 = vmatpush1.msra.mxu0 0.0
        %9560 = vmatprep.subr.mxu0 0.0
        %9561 = vmatpush1.msra.mxu0 0.0
        %9562 = vmatprep.subr.mxu0 0.0
        %9563 = vmatpush1.msra.mxu0 0.0
        %9564 = vmatprep.subr.mxu0 0.0
        %9565 = vmatpush1.msra.mxu0 0.0
        %9566 = vmatprep.mubr.f32.mxu0 0.0
        %9567 = vmatmul.mubr.f32.gmra.mrb[0].mxu0 %v9497
        %v9568 = vpop.f32.mrb[0].mxu0
        %v9569 = vadd.f32 0.0, %v9568
        %v9570 = vpop.f32.mrb[0].mxu0
        %v9571 = vadd.f32 0.0, %v9570
        %9572 = vmatprep.mubr.f32.mxu0 0.0
        %9573 = vmatmul.mubr.f32.gmra.mrb[0].mxu0 %v9500
        %v9574 = vpop.f32.mrb[0].mxu0
        %v9575 = vadd.f32 0.0, %v9574
        %v9576 = vpop.f32.mrb[0].mxu0
        %v9577 = vadd.f32 0.0, %v9576
        %9578 = vdwg.mxu0
        %v9580 = vsel %vm984, %v9491, 0
        %v9583 = vsel %vm984, %v9492, 0
        %9585 = vmatprep.subr.mxu0 %v2689
        %9586 = vmatpush1.msra.mxu0 %v2686
        %9587 = vmatprep.subr.mxu0 0.0
        %9588 = vmatpush1.msra.mxu0 0.0
        %9589 = vmatprep.subr.mxu0 0.0
        %9590 = vmatpush1.msra.mxu0 0.0
        %9591 = vmatprep.subr.mxu0 0.0
        %9592 = vmatpush1.msra.mxu0 0.0
        %9593 = vmatprep.subr.mxu0 0.0
        %9594 = vmatpush1.msra.mxu0 0.0
        %9595 = vmatprep.subr.mxu0 0.0
        %9596 = vmatpush1.msra.mxu0 0.0
        %9597 = vmatprep.subr.mxu0 0.0
        %9598 = vmatpush1.msra.mxu0 0.0
        %9599 = vmatprep.subr.mxu0 0.0
        %9600 = vmatpush1.msra.mxu0 0.0
        %9601 = vmatprep.subr.mxu0 0.0
        %9602 = vmatpush1.msra.mxu0 0.0
        %9603 = vmatprep.subr.mxu0 0.0
        %9604 = vmatpush1.msra.mxu0 0.0
        %9605 = vmatprep.subr.mxu0 0.0
        %9606 = vmatpush1.msra.mxu0 0.0
        %9607 = vmatprep.subr.mxu0 0.0
        %9608 = vmatpush1.msra.mxu0 0.0
        %9609 = vmatprep.subr.mxu0 0.0
        %9610 = vmatpush1.msra.mxu0 0.0
        %9611 = vmatprep.subr.mxu0 0.0
        %9612 = vmatpush1.msra.mxu0 0.0
        %9613 = vmatprep.subr.mxu0 0.0
        %9614 = vmatpush1.msra.mxu0 0.0
        %9615 = vmatprep.subr.mxu0 0.0
        %9616 = vmatpush1.msra.mxu0 0.0
        %9617 = vmatprep.subr.mxu0 0.0
        %9618 = vmatpush1.msra.mxu0 0.0
        %9619 = vmatprep.subr.mxu0 0.0
        %9620 = vmatpush1.msra.mxu0 0.0
        %9621 = vmatprep.subr.mxu0 0.0
        %9622 = vmatpush1.msra.mxu0 0.0
        %9623 = vmatprep.subr.mxu0 0.0
        %9624 = vmatpush1.msra.mxu0 0.0
        %9625 = vmatprep.subr.mxu0 0.0
        %9626 = vmatpush1.msra.mxu0 0.0
        %9627 = vmatprep.subr.mxu0 0.0
        %9628 = vmatpush1.msra.mxu0 0.0
        %9629 = vmatprep.subr.mxu0 0.0
        %9630 = vmatpush1.msra.mxu0 0.0
        %9631 = vmatprep.subr.mxu0 0.0
        %9632 = vmatpush1.msra.mxu0 0.0
        %9633 = vmatprep.subr.mxu0 0.0
        %9634 = vmatpush1.msra.mxu0 0.0
        %9635 = vmatprep.subr.mxu0 0.0
        %9636 = vmatpush1.msra.mxu0 0.0
        %9637 = vmatprep.subr.mxu0 0.0
        %9638 = vmatpush1.msra.mxu0 0.0
        %9639 = vmatprep.subr.mxu0 0.0
        %9640 = vmatpush1.msra.mxu0 0.0
        %9641 = vmatprep.subr.mxu0 0.0
        %9642 = vmatpush1.msra.mxu0 0.0
        %9643 = vmatprep.subr.mxu0 0.0
        %9644 = vmatpush1.msra.mxu0 0.0
        %9645 = vmatprep.subr.mxu0 0.0
        %9646 = vmatpush1.msra.mxu0 0.0
        %9647 = vmatprep.subr.mxu0 0.0
        %9648 = vmatpush1.msra.mxu0 0.0
        %9649 = vmatprep.mubr.f32.mxu0 0.0
        %9650 = vmatmul.mubr.f32.gmra.mrb[0].mxu0 %v9580
        %v9651 = vpop.f32.mrb[0].mxu0
        %v9652 = vadd.f32 %v9569, %v9651
        %v9653 = vpop.f32.mrb[0].mxu0
        %v9654 = vadd.f32 %v9571, %v9653
        %9655 = vmatprep.mubr.f32.mxu0 0.0
        %9656 = vmatmul.mubr.f32.gmra.mrb[0].mxu0 %v9583
        %v9657 = vpop.f32.mrb[0].mxu0
        %v9658 = vadd.f32 %v9575, %v9657
        %v9659 = vpop.f32.mrb[0].mxu0
        %v9660 = vadd.f32 %v9577, %v9659
        %9661 = vdwg.mxu0
        %s9662 = scalar_lea.vmem %s3, 32
        %v9663 = vld [vmem:[%s9662] sm:$0xff]
        %v9664 = vld [vmem:[%s9662 + $0x8] sm:$0x3]
        %v9666 = vsel %vm984, %v9663, 0
        %v9669 = vsel %vm984, %v9664, 0
        %9671 = vmatprep.subr.mxu0 %v3349
        %9672 = vmatpush1.msra.mxu0 %v3346
        %9673 = vmatprep.subr.mxu0 0.0
        %9674 = vmatpush1.msra.mxu0 0.0
        %9675 = vmatprep.subr.mxu0 0.0
        %9676 = vmatpush1.msra.mxu0 0.0
        %9677 = vmatprep.subr.mxu0 0.0
        %9678 = vmatpush1.msra.mxu0 0.0
        %9679 = vmatprep.subr.mxu0 0.0
        %9680 = vmatpush1.msra.mxu0 0.0
        %9681 = vmatprep.subr.mxu0 0.0
        %9682 = vmatpush1.msra.mxu0 0.0
        %9683 = vmatprep.subr.mxu0 0.0
        %9684 = vmatpush1.msra.mxu0 0.0
        %9685 = vmatprep.subr.mxu0 0.0
        %9686 = vmatpush1.msra.mxu0 0.0
        %9687 = vmatprep.subr.mxu0 0.0
        %9688 = vmatpush1.msra.mxu0 0.0
        %9689 = vmatprep.subr.mxu0 0.0
        %9690 = vmatpush1.msra.mxu0 0.0
        %9691 = vmatprep.subr.mxu0 0.0
        %9692 = vmatpush1.msra.mxu0 0.0
        %9693 = vmatprep.subr.mxu0 0.0
        %9694 = vmatpush1.msra.mxu0 0.0
        %9695 = vmatprep.subr.mxu0 0.0
        %9696 = vmatpush1.msra.mxu0 0.0
        %9697 = vmatprep.subr.mxu0 0.0
        %9698 = vmatpush1.msra.mxu0 0.0
        %9699 = vmatprep.subr.mxu0 0.0
        %9700 = vmatpush1.msra.mxu0 0.0
        %9701 = vmatprep.subr.mxu0 0.0
        %9702 = vmatpush1.msra.mxu0 0.0
        %9703 = vmatprep.subr.mxu0 0.0
        %9704 = vmatpush1.msra.mxu0 0.0
        %9705 = vmatprep.subr.mxu0 0.0
        %9706 = vmatpush1.msra.mxu0 0.0
        %9707 = vmatprep.subr.mxu0 0.0
        %9708 = vmatpush1.msra.mxu0 0.0
        %9709 = vmatprep.subr.mxu0 0.0
        %9710 = vmatpush1.msra.mxu0 0.0
        %9711 = vmatprep.subr.mxu0 0.0
        %9712 = vmatpush1.msra.mxu0 0.0
        %9713 = vmatprep.subr.mxu0 0.0
        %9714 = vmatpush1.msra.mxu0 0.0
        %9715 = vmatprep.subr.mxu0 0.0
        %9716 = vmatpush1.msra.mxu0 0.0
        %9717 = vmatprep.subr.mxu0 0.0
        %9718 = vmatpush1.msra.mxu0 0.0
        %9719 = vmatprep.subr.mxu0 0.0
        %9720 = vmatpush1.msra.mxu0 0.0
        %9721 = vmatprep.subr.mxu0 0.0
        %9722 = vmatpush1.msra.mxu0 0.0
        %9723 = vmatprep.subr.mxu0 0.0
        %9724 = vmatpush1.msra.mxu0 0.0
        %9725 = vmatprep.subr.mxu0 0.0
        %9726 = vmatpush1.msra.mxu0 0.0
        %9727 = vmatprep.subr.mxu0 0.0
        %9728 = vmatpush1.msra.mxu0 0.0
        %9729 = vmatprep.subr.mxu0 0.0
        %9730 = vmatpush1.msra.mxu0 0.0
        %9731 = vmatprep.subr.mxu0 0.0
        %9732 = vmatpush1.msra.mxu0 0.0
        %9733 = vmatprep.subr.mxu0 0.0
        %9734 = vmatpush1.msra.mxu0 0.0
        %9735 = vmatprep.mubr.f32.mxu0 0.0
        %9736 = vmatmul.mubr.f32.gmra.mrb[0].mxu0 %v9666
        %v9737 = vpop.f32.mrb[0].mxu0
        %v9738 = vadd.f32 0.0, %v9737
        %v9739 = vpop.f32.mrb[0].mxu0
        %v9740 = vadd.f32 0.0, %v9739
        %9741 = vmatprep.mubr.f32.mxu0 0.0
        %9742 = vmatmul.mubr.f32.gmra.mrb[0].mxu0 %v9669
        %v9743 = vpop.f32.mrb[0].mxu0
        %v9744 = vadd.f32 0.0, %v9743
        %v9745 = vpop.f32.mrb[0].mxu0
        %v9746 = vadd.f32 0.0, %v9745
        %9747 = vdwg.mxu0
        %v9748 = vadd.f32 %v9652, %v9738
        %v9749 = vadd.f32 %v9654, %v9740
        %v9750 = vadd.f32 %v9658, %v9744
        %v9751 = vadd.f32 %v9660, %v9746
        %s9752 = scalar_lea.vmem %s3, 48
        %v9753 = vld [vmem:[%s9752] sm:$0xff]
        %v9754 = vld [vmem:[%s9752 + $0x8] sm:$0x3]
        %v9756 = vsel %vm984, %v9753, 0
        %v9759 = vsel %vm984, %v9754, 0
        %9761 = vmatprep.subr.mxu0 %v4307
        %9762 = vmatpush1.msra.mxu0 %v4304
        %9763 = vmatprep.subr.mxu0 0.0
        %9764 = vmatpush1.msra.mxu0 0.0
        %9765 = vmatprep.subr.mxu0 0.0
        %9766 = vmatpush1.msra.mxu0 0.0
        %9767 = vmatprep.subr.mxu0 0.0
        %9768 = vmatpush1.msra.mxu0 0.0
        %9769 = vmatprep.subr.mxu0 0.0
        %9770 = vmatpush1.msra.mxu0 0.0
        %9771 = vmatprep.subr.mxu0 0.0
        %9772 = vmatpush1.msra.mxu0 0.0
        %9773 = vmatprep.subr.mxu0 0.0
        %9774 = vmatpush1.msra.mxu0 0.0
        %9775 = vmatprep.subr.mxu0 0.0
        %9776 = vmatpush1.msra.mxu0 0.0
        %9777 = vmatprep.subr.mxu0 0.0
        %9778 = vmatpush1.msra.mxu0 0.0
        %9779 = vmatprep.subr.mxu0 0.0
        %9780 = vmatpush1.msra.mxu0 0.0
        %9781 = vmatprep.subr.mxu0 0.0
        %9782 = vmatpush1.msra.mxu0 0.0
        %9783 = vmatprep.subr.mxu0 0.0
        %9784 = vmatpush1.msra.mxu0 0.0
        %9785 = vmatprep.subr.mxu0 0.0
        %9786 = vmatpush1.msra.mxu0 0.0
        %9787 = vmatprep.subr.mxu0 0.0
        %9788 = vmatpush1.msra.mxu0 0.0
        %9789 = vmatprep.subr.mxu0 0.0
        %9790 = vmatpush1.msra.mxu0 0.0
        %9791 = vmatprep.subr.mxu0 0.0
        %9792 = vmatpush1.msra.mxu0 0.0
        %9793 = vmatprep.subr.mxu0 0.0
        %9794 = vmatpush1.msra.mxu0 0.0
        %9795 = vmatprep.subr.mxu0 0.0
        %9796 = vmatpush1.msra.mxu0 0.0
        %9797 = vmatprep.subr.mxu0 0.0
        %9798 = vmatpush1.msra.mxu0 0.0
        %9799 = vmatprep.subr.mxu0 0.0
        %9800 = vmatpush1.msra.mxu0 0.0
        %9801 = vmatprep.subr.mxu0 0.0
        %9802 = vmatpush1.msra.mxu0 0.0
        %9803 = vmatprep.subr.mxu0 0.0
        %9804 = vmatpush1.msra.mxu0 0.0
        %9805 = vmatprep.subr.mxu0 0.0
        %9806 = vmatpush1.msra.mxu0 0.0
        %9807 = vmatprep.subr.mxu0 0.0
        %9808 = vmatpush1.msra.mxu0 0.0
        %9809 = vmatprep.subr.mxu0 0.0
        %9810 = vmatpush1.msra.mxu0 0.0
        %9811 = vmatprep.subr.mxu0 0.0
        %9812 = vmatpush1.msra.mxu0 0.0
        %9813 = vmatprep.subr.mxu0 0.0
        %9814 = vmatpush1.msra.mxu0 0.0
        %9815 = vmatprep.subr.mxu0 0.0
        %9816 = vmatpush1.msra.mxu0 0.0
        %9817 = vmatprep.subr.mxu0 0.0
        %9818 = vmatpush1.msra.mxu0 0.0
        %9819 = vmatprep.subr.mxu0 0.0
        %9820 = vmatpush1.msra.mxu0 0.0
        %9821 = vmatprep.subr.mxu0 0.0
        %9822 = vmatpush1.msra.mxu0 0.0
        %9823 = vmatprep.subr.mxu0 0.0
        %9824 = vmatpush1.msra.mxu0 0.0
        %9825 = vmatprep.mubr.f32.mxu0 0.0
        %9826 = vmatmul.mubr.f32.gmra.mrb[0].mxu0 %v9756
        %v9827 = vpop.f32.mrb[0].mxu0
        %v9828 = vadd.f32 0.0, %v9827
        %v9829 = vpop.f32.mrb[0].mxu0
        %v9830 = vadd.f32 0.0, %v9829
        %9831 = vmatprep.mubr.f32.mxu0 0.0
        %9832 = vmatmul.mubr.f32.gmra.mrb[0].mxu0 %v9759
        %v9833 = vpop.f32.mrb[0].mxu0
        %v9834 = vadd.f32 0.0, %v9833
        %v9835 = vpop.f32.mrb[0].mxu0
        %v9836 = vadd.f32 0.0, %v9835
        %9837 = vdwg.mxu0
        %v9838 = vadd.f32 %v9748, %v9828
        %v9839 = vadd.f32 %v9749, %v9830
        %v9840 = vadd.f32 %v9750, %v9834
        %v9841 = vadd.f32 %v9751, %v9836
        %s9842 = scalar_lea.vmem %s3, 64
        %v9843 = vld [vmem:[%s9842] sm:$0xff]
        %v9844 = vld [vmem:[%s9842 + $0x8] sm:$0x3]
        %v9846 = vsel %vm984, %v9843, 0
        %v9849 = vsel %vm984, %v9844, 0
        %9851 = vmatprep.subr.mxu0 %v4637
        %9852 = vmatpush1.msra.mxu0 %v4634
        %9853 = vmatprep.subr.mxu0 0.0
        %9854 = vmatpush1.msra.mxu0 0.0
        %9855 = vmatprep.subr.mxu0 0.0
        %9856 = vmatpush1.msra.mxu0 0.0
        %9857 = vmatprep.subr.mxu0 0.0
        %9858 = vmatpush1.msra.mxu0 0.0
        %9859 = vmatprep.subr.mxu0 0.0
        %9860 = vmatpush1.msra.mxu0 0.0
        %9861 = vmatprep.subr.mxu0 0.0
        %9862 = vmatpush1.msra.mxu0 0.0
        %9863 = vmatprep.subr.mxu0 0.0
        %9864 = vmatpush1.msra.mxu0 0.0
        %9865 = vmatprep.subr.mxu0 0.0
        %9866 = vmatpush1.msra.mxu0 0.0
        %9867 = vmatprep.subr.mxu0 0.0
        %9868 = vmatpush1.msra.mxu0 0.0
        %9869 = vmatprep.subr.mxu0 0.0
        %9870 = vmatpush1.msra.mxu0 0.0
        %9871 = vmatprep.subr.mxu0 0.0
        %9872 = vmatpush1.msra.mxu0 0.0
        %9873 = vmatprep.subr.mxu0 0.0
        %9874 = vmatpush1.msra.mxu0 0.0
        %9875 = vmatprep.subr.mxu0 0.0
        %9876 = vmatpush1.msra.mxu0 0.0
        %9877 = vmatprep.subr.mxu0 0.0
        %9878 = vmatpush1.msra.mxu0 0.0
        %9879 = vmatprep.subr.mxu0 0.0
        %9880 = vmatpush1.msra.mxu0 0.0
        %9881 = vmatprep.subr.mxu0 0.0
        %9882 = vmatpush1.msra.mxu0 0.0
        %9883 = vmatprep.subr.mxu0 0.0
        %9884 = vmatpush1.msra.mxu0 0.0
        %9885 = vmatprep.subr.mxu0 0.0
        %9886 = vmatpush1.msra.mxu0 0.0
        %9887 = vmatprep.subr.mxu0 0.0
        %9888 = vmatpush1.msra.mxu0 0.0
        %9889 = vmatprep.subr.mxu0 0.0
        %9890 = vmatpush1.msra.mxu0 0.0
        %9891 = vmatprep.subr.mxu0 0.0
        %9892 = vmatpush1.msra.mxu0 0.0
        %9893 = vmatprep.subr.mxu0 0.0
        %9894 = vmatpush1.msra.mxu0 0.0
        %9895 = vmatprep.subr.mxu0 0.0
        %9896 = vmatpush1.msra.mxu0 0.0
        %9897 = vmatprep.subr.mxu0 0.0
        %9898 = vmatpush1.msra.mxu0 0.0
        %9899 = vmatprep.subr.mxu0 0.0
        %9900 = vmatpush1.msra.mxu0 0.0
        %9901 = vmatprep.subr.mxu0 0.0
        %9902 = vmatpush1.msra.mxu0 0.0
        %9903 = vmatprep.subr.mxu0 0.0
        %9904 = vmatpush1.msra.mxu0 0.0
        %9905 = vmatprep.subr.mxu0 0.0
        %9906 = vmatpush1.msra.mxu0 0.0
        %9907 = vmatprep.subr.mxu0 0.0
        %9908 = vmatpush1.msra.mxu0 0.0
        %9909 = vmatprep.subr.mxu0 0.0
        %9910 = vmatpush1.msra.mxu0 0.0
        %9911 = vmatprep.subr.mxu0 0.0
        %9912 = vmatpush1.msra.mxu0 0.0
        %9913 = vmatprep.subr.mxu0 0.0
        %9914 = vmatpush1.msra.mxu0 0.0
        %9915 = vmatprep.mubr.f32.mxu0 0.0
        %9916 = vmatmul.mubr.f32.gmra.mrb[0].mxu0 %v9846
        %v9917 = vpop.f32.mrb[0].mxu0
        %v9918 = vadd.f32 0.0, %v9917
        %v9919 = vpop.f32.mrb[0].mxu0
        %v9920 = vadd.f32 0.0, %v9919
        %9921 = vmatprep.mubr.f32.mxu0 0.0
        %9922 = vmatmul.mubr.f32.gmra.mrb[0].mxu0 %v9849
        %v9923 = vpop.f32.mrb[0].mxu0
        %v9924 = vadd.f32 0.0, %v9923
        %v9925 = vpop.f32.mrb[0].mxu0
        %v9926 = vadd.f32 0.0, %v9925
        %9927 = vdwg.mxu0
        %v9928 = vadd.f32 %v9838, %v9918
        %v9929 = vadd.f32 %v9839, %v9920
        %v9930 = vadd.f32 %v9840, %v9924
        %v9931 = vadd.f32 %v9841, %v9926
        %s9932 = scalar_lea.vmem %s3, 80
        %v9933 = vld [vmem:[%s9932] sm:$0xff]
        %v9934 = vld [vmem:[%s9932 + $0x8] sm:$0x3]
        %v9936 = vsel %vm984, %v9933, 0
        %v9939 = vsel %vm984, %v9934, 0
        %9941 = vmatprep.subr.mxu0 %v4967
        %9942 = vmatpush1.msra.mxu0 %v4964
        %9943 = vmatprep.subr.mxu0 0.0
        %9944 = vmatpush1.msra.mxu0 0.0
        %9945 = vmatprep.subr.mxu0 0.0
        %9946 = vmatpush1.msra.mxu0 0.0
        %9947 = vmatprep.subr.mxu0 0.0
        %9948 = vmatpush1.msra.mxu0 0.0
        %9949 = vmatprep.subr.mxu0 0.0
        %9950 = vmatpush1.msra.mxu0 0.0
        %9951 = vmatprep.subr.mxu0 0.0
        %9952 = vmatpush1.msra.mxu0 0.0
        %9953 = vmatprep.subr.mxu0 0.0
        %9954 = vmatpush1.msra.mxu0 0.0
        %9955 = vmatprep.subr.mxu0 0.0
        %9956 = vmatpush1.msra.mxu0 0.0
        %9957 = vmatprep.subr.mxu0 0.0
        %9958 = vmatpush1.msra.mxu0 0.0
        %9959 = vmatprep.subr.mxu0 0.0
        %9960 = vmatpush1.msra.mxu0 0.0
        %9961 = vmatprep.subr.mxu0 0.0
        %9962 = vmatpush1.msra.mxu0 0.0
        %9963 = vmatprep.subr.mxu0 0.0
        %9964 = vmatpush1.msra.mxu0 0.0
        %9965 = vmatprep.subr.mxu0 0.0
        %9966 = vmatpush1.msra.mxu0 0.0
        %9967 = vmatprep.subr.mxu0 0.0
        %9968 = vmatpush1.msra.mxu0 0.0
        %9969 = vmatprep.subr.mxu0 0.0
        %9970 = vmatpush1.msra.mxu0 0.0
        %9971 = vmatprep.subr.mxu0 0.0
        %9972 = vmatpush1.msra.mxu0 0.0
        %9973 = vmatprep.subr.mxu0 0.0
        %9974 = vmatpush1.msra.mxu0 0.0
        %9975 = vmatprep.subr.mxu0 0.0
        %9976 = vmatpush1.msra.mxu0 0.0
        %9977 = vmatprep.subr.mxu0 0.0
        %9978 = vmatpush1.msra.mxu0 0.0
        %9979 = vmatprep.subr.mxu0 0.0
        %9980 = vmatpush1.msra.mxu0 0.0
        %9981 = vmatprep.subr.mxu0 0.0
        %9982 = vmatpush1.msra.mxu0 0.0
        %9983 = vmatprep.subr.mxu0 0.0
        %9984 = vmatpush1.msra.mxu0 0.0
        %9985 = vmatprep.subr.mxu0 0.0
        %9986 = vmatpush1.msra.mxu0 0.0
        %9987 = vmatprep.subr.mxu0 0.0
        %9988 = vmatpush1.msra.mxu0 0.0
        %9989 = vmatprep.subr.mxu0 0.0
        %9990 = vmatpush1.msra.mxu0 0.0
        %9991 = vmatprep.subr.mxu0 0.0
        %9992 = vmatpush1.msra.mxu0 0.0
        %9993 = vmatprep.subr.mxu0 0.0
        %9994 = vmatpush1.msra.mxu0 0.0
        %9995 = vmatprep.subr.mxu0 0.0
        %9996 = vmatpush1.msra.mxu0 0.0
        %9997 = vmatprep.subr.mxu0 0.0
        %9998 = vmatpush1.msra.mxu0 0.0
        %9999 = vmatprep.subr.mxu0 0.0
        %10000 = vmatpush1.msra.mxu0 0.0
        %10001 = vmatprep.subr.mxu0 0.0
        %10002 = vmatpush1.msra.mxu0 0.0
        %10003 = vmatprep.subr.mxu0 0.0
        %10004 = vmatpush1.msra.mxu0 0.0
        %10005 = vmatprep.mubr.f32.mxu0 0.0
        %10006 = vmatmul.mubr.f32.gmra.mrb[0].mxu0 %v9936
        %v10007 = vpop.f32.mrb[0].mxu0
        %v10008 = vadd.f32 0.0, %v10007
        %v10009 = vpop.f32.mrb[0].mxu0
        %v10010 = vadd.f32 0.0, %v10009
        %10011 = vmatprep.mubr.f32.mxu0 0.0
        %10012 = vmatmul.mubr.f32.gmra.mrb[0].mxu0 %v9939
        %v10013 = vpop.f32.mrb[0].mxu0
        %v10014 = vadd.f32 0.0, %v10013
        %v10015 = vpop.f32.mrb[0].mxu0
        %v10016 = vadd.f32 0.0, %v10015
        %10017 = vdwg.mxu0
        %v10018 = vadd.f32 %v9928, %v10008
        %v10019 = vadd.f32 %v9929, %v10010
        %v10020 = vadd.f32 %v9930, %v10014
        %v10021 = vadd.f32 %v9931, %v10016
        %s10022 = scalar_lea.vmem %s3, 96
        %v10023 = vld [vmem:[%s10022] sm:$0xff]
        %v10024 = vld [vmem:[%s10022 + $0x8] sm:$0x3]
        %v10026 = vsel %vm984, %v10023, 0
        %v10029 = vsel %vm984, %v10024, 0
        %10031 = vmatprep.subr.mxu0 %v5925
        %10032 = vmatpush1.msra.mxu0 %v5922
        %10033 = vmatprep.subr.mxu0 0.0
        %10034 = vmatpush1.msra.mxu0 0.0
        %10035 = vmatprep.subr.mxu0 0.0
        %10036 = vmatpush1.msra.mxu0 0.0
        %10037 = vmatprep.subr.mxu0 0.0
        %10038 = vmatpush1.msra.mxu0 0.0
        %10039 = vmatprep.subr.mxu0 0.0
        %10040 = vmatpush1.msra.mxu0 0.0
        %10041 = vmatprep.subr.mxu0 0.0
        %10042 = vmatpush1.msra.mxu0 0.0
        %10043 = vmatprep.subr.mxu0 0.0
        %10044 = vmatpush1.msra.mxu0 0.0
        %10045 = vmatprep.subr.mxu0 0.0
        %10046 = vmatpush1.msra.mxu0 0.0
        %10047 = vmatprep.subr.mxu0 0.0
        %10048 = vmatpush1.msra.mxu0 0.0
        %10049 = vmatprep.subr.mxu0 0.0
        %10050 = vmatpush1.msra.mxu0 0.0
        %10051 = vmatprep.subr.mxu0 0.0
        %10052 = vmatpush1.msra.mxu0 0.0
        %10053 = vmatprep.subr.mxu0 0.0
        %10054 = vmatpush1.msra.mxu0 0.0
        %10055 = vmatprep.subr.mxu0 0.0
        %10056 = vmatpush1.msra.mxu0 0.0
        %10057 = vmatprep.subr.mxu0 0.0
        %10058 = vmatpush1.msra.mxu0 0.0
        %10059 = vmatprep.subr.mxu0 0.0
        %10060 = vmatpush1.msra.mxu0 0.0
        %10061 = vmatprep.subr.mxu0 0.0
        %10062 = vmatpush1.msra.mxu0 0.0
        %10063 = vmatprep.subr.mxu0 0.0
        %10064 = vmatpush1.msra.mxu0 0.0
        %10065 = vmatprep.subr.mxu0 0.0
        %10066 = vmatpush1.msra.mxu0 0.0
        %10067 = vmatprep.subr.mxu0 0.0
        %10068 = vmatpush1.msra.mxu0 0.0
        %10069 = vmatprep.subr.mxu0 0.0
        %10070 = vmatpush1.msra.mxu0 0.0
        %10071 = vmatprep.subr.mxu0 0.0
        %10072 = vmatpush1.msra.mxu0 0.0
        %10073 = vmatprep.subr.mxu0 0.0
        %10074 = vmatpush1.msra.mxu0 0.0
        %10075 = vmatprep.subr.mxu0 0.0
        %10076 = vmatpush1.msra.mxu0 0.0
        %10077 = vmatprep.subr.mxu0 0.0
        %10078 = vmatpush1.msra.mxu0 0.0
        %10079 = vmatprep.subr.mxu0 0.0
        %10080 = vmatpush1.msra.mxu0 0.0
        %10081 = vmatprep.subr.mxu0 0.0
        %10082 = vmatpush1.msra.mxu0 0.0
        %10083 = vmatprep.subr.mxu0 0.0
        %10084 = vmatpush1.msra.mxu0 0.0
        %10085 = vmatprep.subr.mxu0 0.0
        %10086 = vmatpush1.msra.mxu0 0.0
        %10087 = vmatprep.subr.mxu0 0.0
        %10088 = vmatpush1.msra.mxu0 0.0
        %10089 = vmatprep.subr.mxu0 0.0
        %10090 = vmatpush1.msra.mxu0 0.0
        %10091 = vmatprep.subr.mxu0 0.0
        %10092 = vmatpush1.msra.mxu0 0.0
        %10093 = vmatprep.subr.mxu0 0.0
        %10094 = vmatpush1.msra.mxu0 0.0
        %10095 = vmatprep.mubr.f32.mxu0 0.0
        %10096 = vmatmul.mubr.f32.gmra.mrb[0].mxu0 %v10026
        %v10097 = vpop.f32.mrb[0].mxu0
        %v10098 = vadd.f32 0.0, %v10097
        %v10099 = vpop.f32.mrb[0].mxu0
        %v10100 = vadd.f32 0.0, %v10099
        %10101 = vmatprep.mubr.f32.mxu0 0.0
        %10102 = vmatmul.mubr.f32.gmra.mrb[0].mxu0 %v10029
        %v10103 = vpop.f32.mrb[0].mxu0
        %v10104 = vadd.f32 0.0, %v10103
        %v10105 = vpop.f32.mrb[0].mxu0
        %v10106 = vadd.f32 0.0, %v10105
        %10107 = vdwg.mxu0
        %v10108 = vadd.f32 %v10018, %v10098
        %v10109 = vadd.f32 %v10019, %v10100
        %v10110 = vadd.f32 %v10020, %v10104
        %v10111 = vadd.f32 %v10021, %v10106
        %s10112 = scalar_lea.vmem %s3, 112
        %v10113 = vld [vmem:[%s10112] sm:$0xff]
        %v10114 = vld [vmem:[%s10112 + $0x8] sm:$0x3]
        %v10116 = vsel %vm984, %v10113, 0
        %v10119 = vsel %vm984, %v10114, 0
        %10121 = vmatprep.subr.mxu0 %v6255
        %10122 = vmatpush1.msra.mxu0 %v6252
        %10123 = vmatprep.subr.mxu0 0.0
        %10124 = vmatpush1.msra.mxu0 0.0
        %10125 = vmatprep.subr.mxu0 0.0
        %10126 = vmatpush1.msra.mxu0 0.0
        %10127 = vmatprep.subr.mxu0 0.0
        %10128 = vmatpush1.msra.mxu0 0.0
        %10129 = vmatprep.subr.mxu0 0.0
        %10130 = vmatpush1.msra.mxu0 0.0
        %10131 = vmatprep.subr.mxu0 0.0
        %10132 = vmatpush1.msra.mxu0 0.0
        %10133 = vmatprep.subr.mxu0 0.0
        %10134 = vmatpush1.msra.mxu0 0.0
        %10135 = vmatprep.subr.mxu0 0.0
        %10136 = vmatpush1.msra.mxu0 0.0
        %10137 = vmatprep.subr.mxu0 0.0
        %10138 = vmatpush1.msra.mxu0 0.0
        %10139 = vmatprep.subr.mxu0 0.0
        %10140 = vmatpush1.msra.mxu0 0.0
        %10141 = vmatprep.subr.mxu0 0.0
        %10142 = vmatpush1.msra.mxu0 0.0
        %10143 = vmatprep.subr.mxu0 0.0
        %10144 = vmatpush1.msra.mxu0 0.0
        %10145 = vmatprep.subr.mxu0 0.0
        %10146 = vmatpush1.msra.mxu0 0.0
        %10147 = vmatprep.subr.mxu0 0.0
        %10148 = vmatpush1.msra.mxu0 0.0
        %10149 = vmatprep.subr.mxu0 0.0
        %10150 = vmatpush1.msra.mxu0 0.0
        %10151 = vmatprep.subr.mxu0 0.0
        %10152 = vmatpush1.msra.mxu0 0.0
        %10153 = vmatprep.subr.mxu0 0.0
        %10154 = vmatpush1.msra.mxu0 0.0
        %10155 = vmatprep.subr.mxu0 0.0
        %10156 = vmatpush1.msra.mxu0 0.0
        %10157 = vmatprep.subr.mxu0 0.0
        %10158 = vmatpush1.msra.mxu0 0.0
        %10159 = vmatprep.subr.mxu0 0.0
        %10160 = vmatpush1.msra.mxu0 0.0
        %10161 = vmatprep.subr.mxu0 0.0
        %10162 = vmatpush1.msra.mxu0 0.0
        %10163 = vmatprep.subr.mxu0 0.0
        %10164 = vmatpush1.msra.mxu0 0.0
        %10165 = vmatprep.subr.mxu0 0.0
        %10166 = vmatpush1.msra.mxu0 0.0
        %10167 = vmatprep.subr.mxu0 0.0
        %10168 = vmatpush1.msra.mxu0 0.0
        %10169 = vmatprep.subr.mxu0 0.0
        %10170 = vmatpush1.msra.mxu0 0.0
        %10171 = vmatprep.subr.mxu0 0.0
        %10172 = vmatpush1.msra.mxu0 0.0
        %10173 = vmatprep.subr.mxu0 0.0
        %10174 = vmatpush1.msra.mxu0 0.0
        %10175 = vmatprep.subr.mxu0 0.0
        %10176 = vmatpush1.msra.mxu0 0.0
        %10177 = vmatprep.subr.mxu0 0.0
        %10178 = vmatpush1.msra.mxu0 0.0
        %10179 = vmatprep.subr.mxu0 0.0
        %10180 = vmatpush1.msra.mxu0 0.0
        %10181 = vmatprep.subr.mxu0 0.0
        %10182 = vmatpush1.msra.mxu0 0.0
        %10183 = vmatprep.subr.mxu0 0.0
        %10184 = vmatpush1.msra.mxu0 0.0
        %10185 = vmatprep.mubr.f32.mxu0 0.0
        %10186 = vmatmul.mubr.f32.gmra.mrb[0].mxu0 %v10116
        %v10187 = vpop.f32.mrb[0].mxu0
        %v10188 = vadd.f32 0.0, %v10187
        %v10189 = vpop.f32.mrb[0].mxu0
        %v10190 = vadd.f32 0.0, %v10189
        %10191 = vmatprep.mubr.f32.mxu0 0.0
        %10192 = vmatmul.mubr.f32.gmra.mrb[0].mxu0 %v10119
        %v10193 = vpop.f32.mrb[0].mxu0
        %v10194 = vadd.f32 0.0, %v10193
        %v10195 = vpop.f32.mrb[0].mxu0
        %v10196 = vadd.f32 0.0, %v10195
        %10197 = vdwg.mxu0
        %v10198 = vadd.f32 %v10108, %v10188
        %v10199 = vadd.f32 %v10109, %v10190
        %v10200 = vadd.f32 %v10110, %v10194
        %v10201 = vadd.f32 %v10111, %v10196
        %s10202 = scalar_lea.vmem %s3, 128
        %v10203 = vld [vmem:[%s10202] sm:$0xff]
        %v10204 = vld [vmem:[%s10202 + $0x8] sm:$0x3]
        %v10206 = vsel %vm984, %v10203, 0
        %v10209 = vsel %vm984, %v10204, 0
        %10211 = vmatprep.subr.mxu0 %v6585
        %10212 = vmatpush1.msra.mxu0 %v6582
        %10213 = vmatprep.subr.mxu0 0.0
        %10214 = vmatpush1.msra.mxu0 0.0
        %10215 = vmatprep.subr.mxu0 0.0
        %10216 = vmatpush1.msra.mxu0 0.0
        %10217 = vmatprep.subr.mxu0 0.0
        %10218 = vmatpush1.msra.mxu0 0.0
        %10219 = vmatprep.subr.mxu0 0.0
        %10220 = vmatpush1.msra.mxu0 0.0
        %10221 = vmatprep.subr.mxu0 0.0
        %10222 = vmatpush1.msra.mxu0 0.0
        %10223 = vmatprep.subr.mxu0 0.0
        %10224 = vmatpush1.msra.mxu0 0.0
        %10225 = vmatprep.subr.mxu0 0.0
        %10226 = vmatpush1.msra.mxu0 0.0
        %10227 = vmatprep.subr.mxu0 0.0
        %10228 = vmatpush1.msra.mxu0 0.0
        %10229 = vmatprep.subr.mxu0 0.0
        %10230 = vmatpush1.msra.mxu0 0.0
        %10231 = vmatprep.subr.mxu0 0.0
        %10232 = vmatpush1.msra.mxu0 0.0
        %10233 = vmatprep.subr.mxu0 0.0
        %10234 = vmatpush1.msra.mxu0 0.0
        %10235 = vmatprep.subr.mxu0 0.0
        %10236 = vmatpush1.msra.mxu0 0.0
        %10237 = vmatprep.subr.mxu0 0.0
        %10238 = vmatpush1.msra.mxu0 0.0
        %10239 = vmatprep.subr.mxu0 0.0
        %10240 = vmatpush1.msra.mxu0 0.0
        %10241 = vmatprep.subr.mxu0 0.0
        %10242 = vmatpush1.msra.mxu0 0.0
        %10243 = vmatprep.subr.mxu0 0.0
        %10244 = vmatpush1.msra.mxu0 0.0
        %10245 = vmatprep.subr.mxu0 0.0
        %10246 = vmatpush1.msra.mxu0 0.0
        %10247 = vmatprep.subr.mxu0 0.0
        %10248 = vmatpush1.msra.mxu0 0.0
        %10249 = vmatprep.subr.mxu0 0.0
        %10250 = vmatpush1.msra.mxu0 0.0
        %10251 = vmatprep.subr.mxu0 0.0
        %10252 = vmatpush1.msra.mxu0 0.0
        %10253 = vmatprep.subr.mxu0 0.0
        %10254 = vmatpush1.msra.mxu0 0.0
        %10255 = vmatprep.subr.mxu0 0.0
        %10256 = vmatpush1.msra.mxu0 0.0
        %10257 = vmatprep.subr.mxu0 0.0
        %10258 = vmatpush1.msra.mxu0 0.0
        %10259 = vmatprep.subr.mxu0 0.0
        %10260 = vmatpush1.msra.mxu0 0.0
        %10261 = vmatprep.subr.mxu0 0.0
        %10262 = vmatpush1.msra.mxu0 0.0
        %10263 = vmatprep.subr.mxu0 0.0
        %10264 = vmatpush1.msra.mxu0 0.0
        %10265 = vmatprep.subr.mxu0 0.0
        %10266 = vmatpush1.msra.mxu0 0.0
        %10267 = vmatprep.subr.mxu0 0.0
        %10268 = vmatpush1.msra.mxu0 0.0
        %10269 = vmatprep.subr.mxu0 0.0
        %10270 = vmatpush1.msra.mxu0 0.0
        %10271 = vmatprep.subr.mxu0 0.0
        %10272 = vmatpush1.msra.mxu0 0.0
        %10273 = vmatprep.subr.mxu0 0.0
        %10274 = vmatpush1.msra.mxu0 0.0
        %10275 = vmatprep.mubr.f32.mxu0 0.0
        %10276 = vmatmul.mubr.f32.gmra.mrb[0].mxu0 %v10206
        %v10277 = vpop.f32.mrb[0].mxu0
        %v10278 = vadd.f32 0.0, %v10277
        %v10279 = vpop.f32.mrb[0].mxu0
        %v10280 = vadd.f32 0.0, %v10279
        %10281 = vmatprep.mubr.f32.mxu0 0.0
        %10282 = vmatmul.mubr.f32.gmra.mrb[0].mxu0 %v10209
        %v10283 = vpop.f32.mrb[0].mxu0
        %v10284 = vadd.f32 0.0, %v10283
        %v10285 = vpop.f32.mrb[0].mxu0
        %v10286 = vadd.f32 0.0, %v10285
        %10287 = vdwg.mxu0
        %v10288 = vadd.f32 %v10198, %v10278
        %v10289 = vadd.f32 %v10199, %v10280
        %v10290 = vadd.f32 %v10200, %v10284
        %v10291 = vadd.f32 %v10201, %v10286
        %v10292 = vld [vmem:[%s8] sm:$0xff]
        %v10293 = vld [vmem:[%s8 + $0x8] sm:$0x3]
        %10295 = vset.pattern.permute.xlu0 0
        %10296 = vperm.xlu0 %10295, %v10292
        %v10297 = vpop.permute.xlu0 %10296
        %10300 = vset.pattern.permute.xlu0 0
        %10301 = vperm.xlu0 %10300, %v10293
        %v10302 = vpop.permute.xlu0 %10301
        %v10304 = vmul.f32 %v10288, %v10297
        %v10305 = vmul.f32 %v10289, %v10297
        %v10306 = vmul.f32 %v10290, %v10302
        %v10307 = vmul.f32 %v10291, %v10302
        %v10308 = vld [vmem:[%s9] sm:$0xff]
        %v10309 = vld [vmem:[%s9 + $0x8] sm:$0x3]
        %10311 = vset.pattern.permute.xlu0 0
        %10312 = vperm.xlu0 %10311, %v10308
        %v10313 = vpop.permute.xlu0 %10312
        %10316 = vset.pattern.permute.xlu0 0
        %10317 = vperm.xlu0 %10316, %v10309
        %v10318 = vpop.permute.xlu0 %10317
        %v10320 = vadd.f32 %v10304, %v10313
        %v10321 = vadd.f32 %v10305, %v10313
        %v10322 = vadd.f32 %v10306, %v10318
        %v10323 = vadd.f32 %v10307, %v10318
        %v10324 = vtanh.pop %v10320
        %v10325 = vtanh.pop %v10321
        %v10326 = vtanh.pop %v10322
        %v10327 = vtanh.pop %v10323
        %10328 = vst [vmem:[%s458] sm:$0xff] %v10324
        %10329 = vst [vmem:[%s458 + $0x8] sm:$0xff] %v10325
        %10330 = vst [vmem:[%s458 + $0x10] sm:$0x3] %v10326
        %10331 = vst [vmem:[%s458 + $0x18] sm:$0x3] %v10327
        %p10332 = scmp.lt.s32.totalorder %s27, 1
        %s10333 = scalar_select %p10332, %s27, 1
        %s10334 = smul.addr %s10333, 2
        %s10335 = smul.addr %s10334, 2
        %s10336 = scalar_lea.vmem %s10, %s10335
        %p10337 = scmp.lt.s32.totalorder %s27, 1
        %s10338 = scalar_select %p10337, %s27, 1
        %s10339 = smul.addr %s10338, 4
        %s10340 = smul.addr %s10339, 8
        %s10341 = scalar_lea.vmem %s11, %s10340
        %p10342 = scmp.lt.s32.totalorder %s27, 1
        %s10343 = scalar_select %p10342, %s27, 1
        %s10344 = smul.addr %s10343, 4
        %s10345 = smul.addr %s10344, 8
        %s10346 = scalar_lea.vmem %s12, %s10345
        // Predicated region
        $region65: #{forward.3} parent=59 // pred_check
          %p10347 = pneg %p260
        $region66: #{forward.3} parent=59 // pred_check_branch
          %10349 = sbr.rel (%p10347) target = $region68
        $region67: #{forward.3} parent=59 // pred_region
          _
        $region68: #{forward.3} parent=59 // pred_fallthru
          _
        // Predicated region
        $region69: #{forward.3} parent=59 // pred_check
          %p10350 = pneg %p286
        $region70: #{forward.3} parent=59 // pred_check_branch
          %10352 = sbr.rel (%p10350) target = $region72
        $region71: #{forward.3} parent=59 // pred_region
          _
        $region72: #{forward.3} parent=59 // pred_fallthru
          _
        // Predicated region
        $region73: #{forward.3} parent=59 // pred_check
          %p10353 = pneg %p312
        $region74: #{forward.3} parent=59 // pred_check_branch
          %10355 = sbr.rel (%p10353) target = $region76
        $region75: #{forward.3} parent=59 // pred_region
          _
        $region76: #{forward.3} parent=59 // pred_fallthru
          _
      $region60: #{forward.3} parent=5 // pred_fallthru
        _
      %p10356 = scmp.le.s32.totalorder 2, %s22
      // Predicated region
      $region77: #{forward.3} parent=5 // pred_check
        %p10357 = pneg %p10356
      $region78: #{forward.3} parent=5 // pred_check_branch
        %10359 = sbr.rel (%p10357) target = $region80
      $region79: #{forward.3} parent=5 // pred_region
        %s10360 = ssub.s32 %s22, 2
        // Predicated region
        $region81: #{forward.3} parent=79 // pred_check
          %p10361 = pneg %p266
        $region82: #{forward.3} parent=79 // pred_check_branch
          %10363 = sbr.rel (%p10361) target = $region84
        $region83: #{forward.3} parent=79 // pred_region
          %p10364 = scmp.lt.s32.totalorder %s28, 1
          %s10365 = scalar_select %p10364, %s28, 1
          %s10366 = smul.addr %s10365, 2
          %s10367 = smul.addr %s10366, 2
          %s10368 = scalar_lea.vmem %s10, %s10367
        $region84: #{forward.3} parent=79 // pred_fallthru
          _
        // Predicated region
        $region85: #{forward.3} parent=79 // pred_check
          %p10369 = pneg %p292
        $region86: #{forward.3} parent=79 // pred_check_branch
          %10371 = sbr.rel (%p10369) target = $region88
        $region87: #{forward.3} parent=79 // pred_region
          %p10372 = scmp.lt.s32.totalorder %s28, 1
          %s10373 = scalar_select %p10372, %s28, 1
          %s10374 = smul.addr %s10373, 4
          %s10375 = smul.addr %s10374, 8
          %s10376 = scalar_lea.vmem %s11, %s10375
        $region88: #{forward.3} parent=79 // pred_fallthru
          _
        // Predicated region
        $region89: #{forward.3} parent=79 // pred_check
          %p10377 = pneg %p318
        $region90: #{forward.3} parent=79 // pred_check_branch
          %10379 = sbr.rel (%p10377) target = $region92
        $region91: #{forward.3} parent=79 // pred_region
          %p10380 = scmp.lt.s32.totalorder %s28, 1
          %s10381 = scalar_select %p10380, %s28, 1
          %s10382 = smul.addr %s10381, 4
          %s10383 = smul.addr %s10382, 8
          %s10384 = scalar_lea.vmem %s12, %s10383
        $region92: #{forward.3} parent=79 // pred_fallthru
          _
      $region80: #{forward.3} parent=5 // pred_fallthru
        _
    $region6: #{forward.3} parent=1 // loop_footer
      %s26 = sadd.s32 1, %s22
    $region7: #{forward.3} parent=1 // loop_footer_branch
      %21 = sbr.rel target = $region3
    $region8: #{forward.3} parent=1 // loop_exit
      _
    %10385 = vsyncpa [#allocation4], 1
    %s10386 = scalar_lea.sflag [#allocation4], 1
    %10387 = vsyncpa %s10386, 1

</llo_original>
